<compile_context>
chip_gen: v7x
topology: tpu7x:2x2x1
jax: 0.10.0
libtpu: 0.0.40
codegen_flags: <defaults>
</compile_context>

<pallas_src>
import functools

import numpy as np
import jax
import jax.numpy as jnp
from jax.experimental import pallas as pl
from jax.experimental.pallas import tpu as pltpu


def _round_up(v, m):
    return (v + m - 1) // m * m


def _window_attn_kernel(*refs, num_heads, mask_mode):
    """mask_mode: 0 = no mask, 1 = block_b % nW == 0 (broadcast),
    2 = nW % block_b == 0 (dynamic leading-dim slice of resident mask)."""
    if mask_mode:
        (x_ref, wqkv_ref, bqkv_ref, rpb_ref, wproj_ref, bproj_ref,
         mask_ref, o_ref) = refs
    else:
        (x_ref, wqkv_ref, bqkv_ref, rpb_ref, wproj_ref, bproj_ref,
         o_ref) = refs
        mask_ref = None

    tb, N, C = x_ref.shape
    hd = C // num_heads
    M = tb * N
    mmd = x_ref.dtype          # bf16 inputs -> bf16 MXU operands, f32 accumulate
    C_out = o_ref.shape[-1]    # lane-dense (padded) projection width

    # ---- fused QKV projection on the whole window-batch tile ----------------
    x2 = x_ref[...].reshape(M, C)                              # leading merge: free
    qkv = jnp.dot(x2, wqkv_ref[...], preferred_element_type=jnp.float32)
    qkv = (qkv + bqkv_ref[...]).astype(mmd)                    # (M, 3C); scale folded

    # ---- mask tile for this grid step (mask stays resident in VMEM) ---------
    if mask_mode == 1:
        nW = mask_ref.shape[0]
        reps = tb // nW
        mask_tile = mask_ref[...]                              # (nW, N, N) f32
    elif mask_mode == 2:
        nW = mask_ref.shape[0]
        start = pl.multiple_of((pl.program_id(0) * tb) % nW, tb)
        mask_tile = mask_ref[pl.ds(start, tb)]                 # (tb, N, N) f32

    # ---- per-head attention (static loop; heads live in the lane dim) -------
    head_outs = []
    for h in range(num_heads):
        q = qkv[:, h * hd:(h + 1) * hd].reshape(tb, N, hd)
        k = qkv[:, C + h * hd:C + (h + 1) * hd].reshape(tb, N, hd)
        v = qkv[:, 2 * C + h * hd:2 * C + (h + 1) * hd].reshape(tb, N, hd)

        s = jnp.einsum('bqd,bkd->bqk', q, k,
                       preferred_element_type=jnp.float32)     # (tb, N, N) f32
        s = s + rpb_ref[h][None]
        if mask_mode == 1:
            s = (s.reshape(reps, nW, N, N) + mask_tile[None]).reshape(tb, N, N)
        elif mask_mode == 2:
            s = s + mask_tile

        # numerically stable softmax; divide replaced by EUP reciprocal applied
        # to the (N, hd) output instead of the (N, N) probabilities.
        m = jnp.max(s, axis=-1, keepdims=True)
        p = jnp.exp(s - m)
        l = jnp.sum(p, axis=-1, keepdims=True)
        o = jnp.einsum('bqk,bkd->bqd', p.astype(mmd), v,
                       preferred_element_type=jnp.float32)     # (tb, N, hd) f32
        o = o * pl.reciprocal(l, approx=True)
        head_outs.append(o)

    attn_out = jnp.concatenate(head_outs, axis=-1).reshape(M, C)

    # ---- output projection (columns padded to a multiple of 128) ------------
    y = jnp.dot(attn_out.astype(mmd), wproj_ref[...],
                preferred_element_type=jnp.float32)
    y = y + bproj_ref[...]
    o_ref[...] = y.reshape(tb, N, C_out).astype(o_ref.dtype)


def make_relative_position_index(window_size):
    """Same buffer the PyTorch module registers (pure host-side indexing)."""
    Wh, Ww = window_size
    coords = np.stack(np.meshgrid(np.arange(Wh), np.arange(Ww), indexing='ij'))
    coords_flatten = coords.reshape(2, -1)
    rel = coords_flatten[:, :, None] - coords_flatten[:, None, :]
    rel = rel.transpose(1, 2, 0).copy()
    rel[:, :, 0] += Wh - 1
    rel[:, :, 1] += Ww - 1
    rel[:, :, 0] *= 2 * Ww - 1
    return jnp.asarray(rel.sum(-1), dtype=jnp.int32)            # (N, N)


def _vmem_bytes_estimate(bb, N, C, C_out, num_heads, hd, nW, mm_isz, out_isz):
    """Layout-padded ((8,128) tiles) VMEM estimate for one grid step."""
    r8 = lambda v: _round_up(max(v, 1), 8)
    rl = lambda v: _round_up(max(v, 1), 128)
    # streamed blocks (double-buffered input + output tiles)
    stream = 2 * bb * (r8(N) * rl(C) * mm_isz + r8(N) * rl(C_out) * out_isz)
    # invariant operands (worst case: double-buffered)
    resident = 2 * ((r8(C) * rl(3 * C) + r8(C) * rl(C_out)) * mm_isz
                    + (rl(3 * C) + rl(C_out)) * 4
                    + num_heads * r8(N) * rl(N) * 4
                    + (nW * r8(N) * rl(N) * 4 if nW else 0))
    # in-kernel temporaries per window
    per_win = (r8(N) * rl(3 * C) * (4 + mm_isz)        # qkv f32 + mm-dtype copy
               + 2 * r8(N) * rl(N) * 4                 # scores + probs
               + 3 * r8(N) * rl(hd) * mm_isz           # q, k, v
               + (num_heads + 1) * r8(N) * rl(hd) * 4  # per-head outputs till concat
               + r8(N) * (rl(C) + rl(C_out)) * 4)      # concat + projection result
    return stream + resident + bb * per_win


def window_attention_pallas(x, wqkv, bqkv, rpb_table, rel_pos_index,
                            wproj, bproj, *, num_heads, mask=None,
                            qk_scale=None, block_b=None, mm_dtype=None):
    """x: (B_, N, C) with B_ = num_windows * B.  Weights stored as (in, out).
    mm_dtype: optional MXU operand dtype (e.g. jnp.bfloat16); accumulation,
    bias, rel-pos bias, mask and softmax stay f32."""
    B_, N, C = x.shape
    assert C % num_heads == 0
    hd = C // num_heads
    scale = float(qk_scale) if qk_scale is not None else float(hd) ** -0.5

    out_dtype = x.dtype
    mmd = jnp.dtype(mm_dtype) if mm_dtype is not None else jnp.dtype(x.dtype)
    mm_isz = jnp.dtype(mmd).itemsize
    out_isz = jnp.dtype(out_dtype).itemsize
    f32 = jnp.float32

    # ---- one-time weight transforms (outside the kernel) --------------------
    wqkv_f = wqkv.astype(f32)
    bqkv_f = bqkv.astype(f32)
    # fold qk scale into the Q projection (q = x @ (s*Wq) + s*bq)
    wqkv_f = wqkv_f.at[:, :C].multiply(scale)
    bqkv_f = bqkv_f.at[:C].multiply(scale)
    # pad projection output channels to a lane-dense multiple of 128
    C_out = _round_up(C, 128)
    wproj_f = wproj.astype(f32)
    bproj_f = bproj.astype(f32)
    if C_out != C:
        wproj_f = jnp.pad(wproj_f, ((0, 0), (0, C_out - C)))
        bproj_f = jnp.pad(bproj_f, (0, C_out - C))

    wqkv_mm = wqkv_f.astype(mmd)
    wproj_mm = wproj_f.astype(mmd)
    bqkv2 = bqkv_f.reshape(1, 3 * C)
    bproj2 = bproj_f.reshape(1, C_out)

    # relative position bias gathered outside the kernel: (H, N, N) f32
    rpb = jnp.take(rpb_table.astype(f32), rel_pos_index.reshape(-1), axis=0)
    rpb = jnp.transpose(rpb.reshape(N, N, num_heads), (2, 0, 1))

    has_mask = mask is not None
    nW = int(mask.shape[0]) if has_mask else 0
    if has_mask:
        assert B_ % nW == 0, "B_ must be a multiple of num_windows when mask given"
        mask_f = mask.astype(f32)

    # ---- VMEM budget + tile size (generation-aware) --------------------------
    try:
        vmem_cap = int(pltpu.get_tpu_info().vmem_capacity_bytes)
    except Exception:
        vmem_cap = 64 * 1024 * 1024          # conservative (v7x per-TC) fallback
    budget = int(0.72 * vmem_cap)            # headroom for compiler scratch

    if block_b is None:
        row_target = 1024 if vmem_cap >= 100 * 2 ** 20 else 512
        bb = max(1, min(B_, row_target // N if N <= row_target else 1))
        if B_ >= 2:
            bb = min(bb, pl.cdiv(B_, 2))     # keep >=2 grid steps (megacore/pipeline)
        while bb > 1 and _vmem_bytes_estimate(bb, N, C, C_out, num_heads, hd,
                                              nW, mm_isz, out_isz) > budget:
            bb -= 1
    else:
        bb = max(1, min(int(block_b), B_))
    if has_mask:
        if bb >= nW:
            bb = max(nW, (bb // nW) * nW)    # whole-mask broadcast per block
        else:
            while nW % bb:                   # mask sliced by (b*bb) % nW
                bb -= 1
    bb = max(1, bb)

    grid_b = pl.cdiv(B_, bb)
    B_pad = grid_b * bb

    x_p = x.astype(mmd)
    if B_pad != B_:
        x_p = jnp.pad(x_p, ((0, B_pad - B_), (0, 0), (0, 0)))

    # ---- cost estimate / VMEM limit ------------------------------------------
    Mall = B_pad * N
    flops = int(2 * Mall * C * 3 * C + 4 * Mall * N * C + 2 * Mall * C * C_out)
    transcendentals = int(B_pad * num_heads * N * N)
    bytes_accessed = int(x_p.size * mm_isz
                         + (wqkv_mm.size + wproj_mm.size) * mm_isz
                         + (bqkv2.size + bproj2.size + rpb.size) * 4
                         + (mask_f.size * 4 if has_mask else 0)
                         + B_pad * N * C_out * out_isz)
    est = _vmem_bytes_estimate(bb, N, C, C_out, num_heads, hd, nW, mm_isz, out_isz)
    vmem_limit = int(min(budget, max(32 * 2 ** 20, 2 * est)))

    mask_mode = 0
    if has_mask:
        mask_mode = 1 if bb % nW == 0 else 2

    kernel = functools.partial(_window_attn_kernel, num_heads=num_heads,
                               mask_mode=mask_mode)

    def _const_spec(shape, single_buf):
        if single_buf:
            return pl.BlockSpec(shape, lambda b: (0,) * len(shape),
                                pipeline_mode=pl.Buffered(1))
        return pl.BlockSpec(shape, lambda b: (0,) * len(shape))

    def _build(single_buf):
        in_specs = [
            pl.BlockSpec((bb, N, C), lambda b: (b, 0, 0)),        # x tile (streamed)
            _const_spec((C, 3 * C), single_buf),                  # qkv weight
            _const_spec((1, 3 * C), single_buf),                  # qkv bias
            _const_spec((num_heads, N, N), single_buf),           # rel-pos bias
            _const_spec((C, C_out), single_buf),                  # proj weight (padded)
            _const_spec((1, C_out), single_buf),                  # proj bias (padded)
        ]
        inputs = [x_p, wqkv_mm, bqkv2, rpb, wproj_mm, bproj2]
        if has_mask:
            in_specs.append(_const_spec((nW, N, N), single_buf))  # resident mask
            inputs.append(mask_f)
        call = pl.pallas_call(
            kernel,
            out_shape=jax.ShapeDtypeStruct((B_pad, N, C_out), out_dtype),
            grid_spec=pltpu.PrefetchScalarGridSpec(
                num_scalar_prefetch=0,
                grid=(grid_b,),
                in_specs=in_specs,
                out_specs=pl.BlockSpec((bb, N, C_out), lambda b: (b, 0, 0)),
            ),
            compiler_params=pltpu.CompilerParams(
                dimension_semantics=("parallel",),
                vmem_limit_bytes=vmem_limit),
            cost_estimate=pl.CostEstimate(flops=flops,
                                          transcendentals=transcendentals,
                                          bytes_accessed=bytes_accessed),
        )
        return call, inputs

    try:
        call, inputs = _build(True)          # single-buffer the invariant operands
        out = call(*inputs)
    except Exception:
        call, inputs = _build(False)         # fallback: default double buffering
        out = call(*inputs)

    if B_pad != B_ or C_out != C:
        out = out[:B_, :, :C]
    return out


def reference_window_attention(x, wqkv, bqkv, rpb_table, rel_index, wproj,
                               bproj, num_heads, scale, mask=None):
    """Plain-JAX mirror of the PyTorch forward (for correctness checking)."""
    B_, N, C = x.shape
    hd = C // num_heads
    qkv = (x @ wqkv + bqkv).reshape(B_, N, 3, num_heads, hd)
    qkv = jnp.transpose(qkv, (2, 0, 3, 1, 4))
    q, k, v = qkv[0] * scale, qkv[1], qkv[2]
    attn = q @ jnp.swapaxes(k, -2, -1)
    rpb = jnp.take(rpb_table, rel_index.reshape(-1), axis=0)
    rpb = jnp.transpose(rpb.reshape(N, N, num_heads), (2, 0, 1))
    attn = attn + rpb[None]
    if mask is not None:
        nW = mask.shape[0]
        attn = attn.reshape(B_ // nW, nW, num_heads, N, N) + mask[None, :, None, :, :]
        attn = attn.reshape(B_, num_heads, N, N)
    attn = jax.nn.softmax(attn, axis=-1)
    out = jnp.transpose(attn @ v, (0, 2, 1, 3)).reshape(B_, N, C)
    return out @ wproj + bproj


if __name__ == "__main__":
    key = jax.random.PRNGKey(0)
    ks = jax.random.split(key, 6)

    window_size = (8, 8)
    dim = 32
    num_heads = 4
    B, nW = 1, 4
    N = window_size[0] * window_size[1]       # 64 tokens per window
    B_ = B * nW                                # 4 windows
    head_dim = dim // num_heads
    scale = head_dim ** -0.5

    x = jax.random.normal(ks[0], (B_, N, dim), dtype=jnp.float32)

    lim = 1.0 / (dim ** 0.5)
    wqkv = jax.random.uniform(ks[1], (dim, 3 * dim), minval=-lim, maxval=lim,
                              dtype=jnp.float32)
    bqkv = jax.random.uniform(ks[2], (3 * dim,), minval=-lim, maxval=lim,
                              dtype=jnp.float32)
    wproj = jax.random.uniform(ks[3], (dim, dim), minval=-lim, maxval=lim,
                               dtype=jnp.float32)
    bproj = jax.random.uniform(ks[4], (dim,), minval=-lim, maxval=lim,
                               dtype=jnp.float32)
    n_rel = (2 * window_size[0] - 1) * (2 * window_size[1] - 1)
    rpb_table = 0.02 * jax.random.normal(ks[5], (n_rel, num_heads),
                                         dtype=jnp.float32)
    rel_index = make_relative_position_index(window_size)

    # --- no-mask (non-shifted window) path, f32 MXU operands -----------------
    out = window_attention_pallas(x, wqkv, bqkv, rpb_table, rel_index, wproj,
                                  bproj, num_heads=num_heads, mask=None)
    jax.block_until_ready(out)
    ref = reference_window_attention(x, wqkv, bqkv, rpb_table, rel_index,
                                     wproj, bproj, num_heads, scale, mask=None)
    assert out.shape == (B_, N, dim)
    assert jnp.allclose(out, ref, atol=1e-3, rtol=1e-3), \
        f"max abs diff {jnp.max(jnp.abs(out - ref))}"

    # --- shifted-window-style mask path ---------------------------------------
    region = (jnp.arange(N) >= (N // 2)).astype(jnp.int32)
    base = jnp.where(region[:, None] == region[None, :], 0.0, -100.0)
    mask = jnp.stack([base if (w % 2 == 1) else jnp.zeros_like(base)
                      for w in range(nW)])                      # (nW, N, N)
    out_m = window_attention_pallas(x, wqkv, bqkv, rpb_table, rel_index, wproj,
                                    bproj, num_heads=num_heads, mask=mask)
    jax.block_until_ready(out_m)
    ref_m = reference_window_attention(x, wqkv, bqkv, rpb_table, rel_index,
                                       wproj, bproj, num_heads, scale, mask=mask)
    assert jnp.allclose(out_m, ref_m, atol=1e-3, rtol=1e-3), \
        f"max abs diff {jnp.max(jnp.abs(out_m - ref_m))}"

    # --- bf16 MXU-operand path (accumulation stays f32) -----------------------
    out_bf = window_attention_pallas(x, wqkv, bqkv, rpb_table, rel_index, wproj,
                                     bproj, num_heads=num_heads, mask=mask,
                                     mm_dtype=jnp.bfloat16)
    jax.block_until_ready(out_bf)
    assert jnp.allclose(out_bf, ref_m, atol=6e-2, rtol=6e-2), \
        f"max abs diff {jnp.max(jnp.abs(out_bf - ref_m))}"

    # TODO(synk): attn_drop / proj_drop with p>0 (inference identity here) would
    # need pltpu.prng_* if ever required.
    print("KERNEL_OK")
</pallas_src>

<mosaic_0001>
module attributes {stable_mosaic.version = 11 : i64} {
  func.func @_window_attn_kernel(%arg0: i32, %arg1: memref<2x64x32xf32, #tpu.memory_space<vmem>>, %arg2: memref<32x96xf32, #tpu.memory_space<vmem>>, %arg3: memref<1x96xf32, #tpu.memory_space<vmem>>, %arg4: memref<4x64x64xf32, #tpu.memory_space<vmem>>, %arg5: memref<32x128xf32, #tpu.memory_space<vmem>>, %arg6: memref<1x128xf32, #tpu.memory_space<vmem>>, %arg7: memref<2x64x128xf32, #tpu.memory_space<vmem>>) attributes {dimension_semantics = [#tpu.dimension_semantics<parallel>], iteration_bounds = array<i64: 2>, scalar_prefetch = 0 : i64, scratch_operands = 0 : i64, tpu.core_type = #tpu.core_type<tc>, window_params = [{transform_indices = @transform_0, window_bounds = array<i64: 2, 64, 32>}, {pipeline_mode = #tpu.pipeline_mode<synchronous>, transform_indices = @transform_1, window_bounds = array<i64: 32, 96>}, {pipeline_mode = #tpu.pipeline_mode<synchronous>, transform_indices = @transform_2, window_bounds = array<i64: 1, 96>}, {pipeline_mode = #tpu.pipeline_mode<synchronous>, transform_indices = @transform_3, window_bounds = array<i64: 4, 64, 64>}, {pipeline_mode = #tpu.pipeline_mode<synchronous>, transform_indices = @transform_4, window_bounds = array<i64: 32, 128>}, {pipeline_mode = #tpu.pipeline_mode<synchronous>, transform_indices = @transform_5, window_bounds = array<i64: 1, 128>}, {transform_indices = @transform_6, window_bounds = array<i64: 2, 64, 128>}]} {
    %c0 = arith.constant 0 : index
    %c0_0 = arith.constant 0 : index
    %c0_1 = arith.constant 0 : index
    %0 = vector.load %arg1[%c0, %c0_0, %c0_1] : memref<2x64x32xf32, #tpu.memory_space<vmem>>, vector<2x64x32xf32>
    %1 = vector.shape_cast %0 : vector<2x64x32xf32> to vector<128x32xf32>
    %c0_2 = arith.constant 0 : index
    %c0_3 = arith.constant 0 : index
    %2 = vector.load %arg2[%c0_2, %c0_3] : memref<32x96xf32, #tpu.memory_space<vmem>>, vector<32x96xf32>
    %cst = arith.constant dense<0.000000e+00> : vector<128x96xf32>
    %3 = tpu.matmul %1, %2, %cst {dimension_numbers = #tpu.dot_dimension_numbers<[1], [0], [0], [1], [0, 0, 1, 1], [], []>} : vector<128x32xf32>, vector<32x96xf32>, vector<128x96xf32> -> vector<128x96xf32>
    %c0_4 = arith.constant 0 : index
    %c0_5 = arith.constant 0 : index
    %4 = vector.load %arg3[%c0_4, %c0_5] : memref<1x96xf32, #tpu.memory_space<vmem>>, vector<1x96xf32>
    %5 = vector.broadcast %4 : vector<1x96xf32> to vector<128x96xf32>
    %6 = arith.addf %3, %5 : vector<128x96xf32>
    %7 = vector.extract_strided_slice %6 {offsets = [0, 0], sizes = [128, 8], strides = [1, 1]} : vector<128x96xf32> to vector<128x8xf32>
    %8 = vector.shape_cast %7 : vector<128x8xf32> to vector<2x64x8xf32>
    %9 = vector.extract_strided_slice %6 {offsets = [0, 32], sizes = [128, 8], strides = [1, 1]} : vector<128x96xf32> to vector<128x8xf32>
    %10 = vector.shape_cast %9 : vector<128x8xf32> to vector<2x64x8xf32>
    %11 = vector.extract_strided_slice %6 {offsets = [0, 64], sizes = [128, 8], strides = [1, 1]} : vector<128x96xf32> to vector<128x8xf32>
    %12 = vector.shape_cast %11 : vector<128x8xf32> to vector<2x64x8xf32>
    "tpu.trace_start"() <{level = 10 : i32, message = "bqd,bkd->bqk"}> : () -> ()
    %cst_6 = arith.constant dense<0.000000e+00> : vector<2x64x64xf32>
    %13 = tpu.matmul %8, %10, %cst_6 {dimension_numbers = #tpu.dot_dimension_numbers<[2], [2], [1], [1], [0, 0, 0, 1, 1, 1], [0], [0]>} : vector<2x64x8xf32>, vector<2x64x8xf32>, vector<2x64x64xf32> -> vector<2x64x64xf32>
    "tpu.trace_stop"() : () -> ()
    %c0_7 = arith.constant 0 : index
    %c0_8 = arith.constant 0 : index
    %c0_9 = arith.constant 0 : index
    %14 = vector.load %arg4[%c0_7, %c0_8, %c0_9] : memref<4x64x64xf32, #tpu.memory_space<vmem>>, vector<1x64x64xf32>
    %15 = vector.shape_cast %14 : vector<1x64x64xf32> to vector<64x64xf32>
    %16 = vector.shape_cast %15 : vector<64x64xf32> to vector<1x64x64xf32>
    %17 = vector.broadcast %16 : vector<1x64x64xf32> to vector<2x64x64xf32>
    %18 = arith.addf %13, %17 : vector<2x64x64xf32>
    %cst_10 = arith.constant dense<0xFF800000> : vector<2x64xf32>
    %19 = vector.multi_reduction <maximumf>, %18, %cst_10 [2] : vector<2x64x64xf32> to vector<2x64xf32>
    %20 = vector.shape_cast %19 : vector<2x64xf32> to vector<2x64x1xf32>
    %21 = vector.broadcast %20 : vector<2x64x1xf32> to vector<2x64x64xf32>
    %22 = arith.subf %18, %21 : vector<2x64x64xf32>
    %23 = math.exp %22 : vector<2x64x64xf32>
    %cst_11 = arith.constant dense<0.000000e+00> : vector<2x64xf32>
    %24 = vector.multi_reduction <add>, %23, %cst_11 [2] : vector<2x64x64xf32> to vector<2x64xf32>
    %25 = vector.shape_cast %24 : vector<2x64xf32> to vector<2x64x1xf32>
    "tpu.trace_start"() <{level = 10 : i32, message = "bqk,bkd->bqd"}> : () -> ()
    %cst_12 = arith.constant dense<0.000000e+00> : vector<2x64x8xf32>
    %26 = tpu.matmul %23, %12, %cst_12 {dimension_numbers = #tpu.dot_dimension_numbers<[2], [1], [1], [2], [0, 0, 0, 1, 1, 2], [0], [0]>} : vector<2x64x64xf32>, vector<2x64x8xf32>, vector<2x64x8xf32> -> vector<2x64x8xf32>
    "tpu.trace_stop"() : () -> ()
    %27 = tpu.reciprocal %25 {approx = true} : vector<2x64x1xf32> -> vector<2x64x1xf32>
    %28 = vector.broadcast %27 : vector<2x64x1xf32> to vector<2x64x8xf32>
    %29 = arith.mulf %26, %28 : vector<2x64x8xf32>
    %30 = vector.extract_strided_slice %6 {offsets = [0, 8], sizes = [128, 8], strides = [1, 1]} : vector<128x96xf32> to vector<128x8xf32>
    %31 = vector.shape_cast %30 : vector<128x8xf32> to vector<2x64x8xf32>
    %32 = vector.extract_strided_slice %6 {offsets = [0, 40], sizes = [128, 8], strides = [1, 1]} : vector<128x96xf32> to vector<128x8xf32>
    %33 = vector.shape_cast %32 : vector<128x8xf32> to vector<2x64x8xf32>
    %34 = vector.extract_strided_slice %6 {offsets = [0, 72], sizes = [128, 8], strides = [1, 1]} : vector<128x96xf32> to vector<128x8xf32>
    %35 = vector.shape_cast %34 : vector<128x8xf32> to vector<2x64x8xf32>
    "tpu.trace_start"() <{level = 10 : i32, message = "bqd,bkd->bqk"}> : () -> ()
    %cst_13 = arith.constant dense<0.000000e+00> : vector<2x64x64xf32>
    %36 = tpu.matmul %31, %33, %cst_13 {dimension_numbers = #tpu.dot_dimension_numbers<[2], [2], [1], [1], [0, 0, 0, 1, 1, 1], [0], [0]>} : vector<2x64x8xf32>, vector<2x64x8xf32>, vector<2x64x64xf32> -> vector<2x64x64xf32>
    "tpu.trace_stop"() : () -> ()
    %c1 = arith.constant 1 : index
    %c0_14 = arith.constant 0 : index
    %c0_15 = arith.constant 0 : index
    %37 = vector.load %arg4[%c1, %c0_14, %c0_15] : memref<4x64x64xf32, #tpu.memory_space<vmem>>, vector<1x64x64xf32>
    %38 = vector.shape_cast %37 : vector<1x64x64xf32> to vector<64x64xf32>
    %39 = vector.shape_cast %38 : vector<64x64xf32> to vector<1x64x64xf32>
    %40 = vector.broadcast %39 : vector<1x64x64xf32> to vector<2x64x64xf32>
    %41 = arith.addf %36, %40 : vector<2x64x64xf32>
    %cst_16 = arith.constant dense<0xFF800000> : vector<2x64xf32>
    %42 = vector.multi_reduction <maximumf>, %41, %cst_16 [2] : vector<2x64x64xf32> to vector<2x64xf32>
    %43 = vector.shape_cast %42 : vector<2x64xf32> to vector<2x64x1xf32>
    %44 = vector.broadcast %43 : vector<2x64x1xf32> to vector<2x64x64xf32>
    %45 = arith.subf %41, %44 : vector<2x64x64xf32>
    %46 = math.exp %45 : vector<2x64x64xf32>
    %cst_17 = arith.constant dense<0.000000e+00> : vector<2x64xf32>
    %47 = vector.multi_reduction <add>, %46, %cst_17 [2] : vector<2x64x64xf32> to vector<2x64xf32>
    %48 = vector.shape_cast %47 : vector<2x64xf32> to vector<2x64x1xf32>
    "tpu.trace_start"() <{level = 10 : i32, message = "bqk,bkd->bqd"}> : () -> ()
    %cst_18 = arith.constant dense<0.000000e+00> : vector<2x64x8xf32>
    %49 = tpu.matmul %46, %35, %cst_18 {dimension_numbers = #tpu.dot_dimension_numbers<[2], [1], [1], [2], [0, 0, 0, 1, 1, 2], [0], [0]>} : vector<2x64x64xf32>, vector<2x64x8xf32>, vector<2x64x8xf32> -> vector<2x64x8xf32>
    "tpu.trace_stop"() : () -> ()
    %50 = tpu.reciprocal %48 {approx = true} : vector<2x64x1xf32> -> vector<2x64x1xf32>
    %51 = vector.broadcast %50 : vector<2x64x1xf32> to vector<2x64x8xf32>
    %52 = arith.mulf %49, %51 : vector<2x64x8xf32>
    %53 = vector.extract_strided_slice %6 {offsets = [0, 16], sizes = [128, 8], strides = [1, 1]} : vector<128x96xf32> to vector<128x8xf32>
    %54 = vector.shape_cast %53 : vector<128x8xf32> to vector<2x64x8xf32>
    %55 = vector.extract_strided_slice %6 {offsets = [0, 48], sizes = [128, 8], strides = [1, 1]} : vector<128x96xf32> to vector<128x8xf32>
    %56 = vector.shape_cast %55 : vector<128x8xf32> to vector<2x64x8xf32>
    %57 = vector.extract_strided_slice %6 {offsets = [0, 80], sizes = [128, 8], strides = [1, 1]} : vector<128x96xf32> to vector<128x8xf32>
    %58 = vector.shape_cast %57 : vector<128x8xf32> to vector<2x64x8xf32>
    "tpu.trace_start"() <{level = 10 : i32, message = "bqd,bkd->bqk"}> : () -> ()
    %cst_19 = arith.constant dense<0.000000e+00> : vector<2x64x64xf32>
    %59 = tpu.matmul %54, %56, %cst_19 {dimension_numbers = #tpu.dot_dimension_numbers<[2], [2], [1], [1], [0, 0, 0, 1, 1, 1], [0], [0]>} : vector<2x64x8xf32>, vector<2x64x8xf32>, vector<2x64x64xf32> -> vector<2x64x64xf32>
    "tpu.trace_stop"() : () -> ()
    %c2 = arith.constant 2 : index
    %c0_20 = arith.constant 0 : index
    %c0_21 = arith.constant 0 : index
    %60 = vector.load %arg4[%c2, %c0_20, %c0_21] : memref<4x64x64xf32, #tpu.memory_space<vmem>>, vector<1x64x64xf32>
    %61 = vector.shape_cast %60 : vector<1x64x64xf32> to vector<64x64xf32>
    %62 = vector.shape_cast %61 : vector<64x64xf32> to vector<1x64x64xf32>
    %63 = vector.broadcast %62 : vector<1x64x64xf32> to vector<2x64x64xf32>
    %64 = arith.addf %59, %63 : vector<2x64x64xf32>
    %cst_22 = arith.constant dense<0xFF800000> : vector<2x64xf32>
    %65 = vector.multi_reduction <maximumf>, %64, %cst_22 [2] : vector<2x64x64xf32> to vector<2x64xf32>
    %66 = vector.shape_cast %65 : vector<2x64xf32> to vector<2x64x1xf32>
    %67 = vector.broadcast %66 : vector<2x64x1xf32> to vector<2x64x64xf32>
    %68 = arith.subf %64, %67 : vector<2x64x64xf32>
    %69 = math.exp %68 : vector<2x64x64xf32>
    %cst_23 = arith.constant dense<0.000000e+00> : vector<2x64xf32>
    %70 = vector.multi_reduction <add>, %69, %cst_23 [2] : vector<2x64x64xf32> to vector<2x64xf32>
    %71 = vector.shape_cast %70 : vector<2x64xf32> to vector<2x64x1xf32>
    "tpu.trace_start"() <{level = 10 : i32, message = "bqk,bkd->bqd"}> : () -> ()
    %cst_24 = arith.constant dense<0.000000e+00> : vector<2x64x8xf32>
    %72 = tpu.matmul %69, %58, %cst_24 {dimension_numbers = #tpu.dot_dimension_numbers<[2], [1], [1], [2], [0, 0, 0, 1, 1, 2], [0], [0]>} : vector<2x64x64xf32>, vector<2x64x8xf32>, vector<2x64x8xf32> -> vector<2x64x8xf32>
    "tpu.trace_stop"() : () -> ()
    %73 = tpu.reciprocal %71 {approx = true} : vector<2x64x1xf32> -> vector<2x64x1xf32>
    %74 = vector.broadcast %73 : vector<2x64x1xf32> to vector<2x64x8xf32>
    %75 = arith.mulf %72, %74 : vector<2x64x8xf32>
    %76 = vector.extract_strided_slice %6 {offsets = [0, 24], sizes = [128, 8], strides = [1, 1]} : vector<128x96xf32> to vector<128x8xf32>
    %77 = vector.shape_cast %76 : vector<128x8xf32> to vector<2x64x8xf32>
    %78 = vector.extract_strided_slice %6 {offsets = [0, 56], sizes = [128, 8], strides = [1, 1]} : vector<128x96xf32> to vector<128x8xf32>
    %79 = vector.shape_cast %78 : vector<128x8xf32> to vector<2x64x8xf32>
    %80 = vector.extract_strided_slice %6 {offsets = [0, 88], sizes = [128, 8], strides = [1, 1]} : vector<128x96xf32> to vector<128x8xf32>
    %81 = vector.shape_cast %80 : vector<128x8xf32> to vector<2x64x8xf32>
    "tpu.trace_start"() <{level = 10 : i32, message = "bqd,bkd->bqk"}> : () -> ()
    %cst_25 = arith.constant dense<0.000000e+00> : vector<2x64x64xf32>
    %82 = tpu.matmul %77, %79, %cst_25 {dimension_numbers = #tpu.dot_dimension_numbers<[2], [2], [1], [1], [0, 0, 0, 1, 1, 1], [0], [0]>} : vector<2x64x8xf32>, vector<2x64x8xf32>, vector<2x64x64xf32> -> vector<2x64x64xf32>
    "tpu.trace_stop"() : () -> ()
    %c3 = arith.constant 3 : index
    %c0_26 = arith.constant 0 : index
    %c0_27 = arith.constant 0 : index
    %83 = vector.load %arg4[%c3, %c0_26, %c0_27] : memref<4x64x64xf32, #tpu.memory_space<vmem>>, vector<1x64x64xf32>
    %84 = vector.shape_cast %83 : vector<1x64x64xf32> to vector<64x64xf32>
    %85 = vector.shape_cast %84 : vector<64x64xf32> to vector<1x64x64xf32>
    %86 = vector.broadcast %85 : vector<1x64x64xf32> to vector<2x64x64xf32>
    %87 = arith.addf %82, %86 : vector<2x64x64xf32>
    %cst_28 = arith.constant dense<0xFF800000> : vector<2x64xf32>
    %88 = vector.multi_reduction <maximumf>, %87, %cst_28 [2] : vector<2x64x64xf32> to vector<2x64xf32>
    %89 = vector.shape_cast %88 : vector<2x64xf32> to vector<2x64x1xf32>
    %90 = vector.broadcast %89 : vector<2x64x1xf32> to vector<2x64x64xf32>
    %91 = arith.subf %87, %90 : vector<2x64x64xf32>
    %92 = math.exp %91 : vector<2x64x64xf32>
    %cst_29 = arith.constant dense<0.000000e+00> : vector<2x64xf32>
    %93 = vector.multi_reduction <add>, %92, %cst_29 [2] : vector<2x64x64xf32> to vector<2x64xf32>
    %94 = vector.shape_cast %93 : vector<2x64xf32> to vector<2x64x1xf32>
    "tpu.trace_start"() <{level = 10 : i32, message = "bqk,bkd->bqd"}> : () -> ()
    %cst_30 = arith.constant dense<0.000000e+00> : vector<2x64x8xf32>
    %95 = tpu.matmul %92, %81, %cst_30 {dimension_numbers = #tpu.dot_dimension_numbers<[2], [1], [1], [2], [0, 0, 0, 1, 1, 2], [0], [0]>} : vector<2x64x64xf32>, vector<2x64x8xf32>, vector<2x64x8xf32> -> vector<2x64x8xf32>
    "tpu.trace_stop"() : () -> ()
    %96 = tpu.reciprocal %94 {approx = true} : vector<2x64x1xf32> -> vector<2x64x1xf32>
    %97 = vector.broadcast %96 : vector<2x64x1xf32> to vector<2x64x8xf32>
    %98 = arith.mulf %95, %97 : vector<2x64x8xf32>
    %99 = tpu.concatenate %29, %52, %75, %98 in 2 : vector<2x64x8xf32>, vector<2x64x8xf32>, vector<2x64x8xf32>, vector<2x64x8xf32> -> vector<2x64x32xf32>
    %100 = vector.shape_cast %99 : vector<2x64x32xf32> to vector<128x32xf32>
    %c0_31 = arith.constant 0 : index
    %c0_32 = arith.constant 0 : index
    %101 = vector.load %arg5[%c0_31, %c0_32] : memref<32x128xf32, #tpu.memory_space<vmem>>, vector<32x128xf32>
    %cst_33 = arith.constant dense<0.000000e+00> : vector<128x128xf32>
    %102 = tpu.matmul %100, %101, %cst_33 {dimension_numbers = #tpu.dot_dimension_numbers<[1], [0], [0], [1], [0, 0, 1, 1], [], []>} : vector<128x32xf32>, vector<32x128xf32>, vector<128x128xf32> -> vector<128x128xf32>
    %c0_34 = arith.constant 0 : index
    %c0_35 = arith.constant 0 : index
    %103 = vector.load %arg6[%c0_34, %c0_35] : memref<1x128xf32, #tpu.memory_space<vmem>>, vector<1x128xf32>
    %104 = vector.broadcast %103 : vector<1x128xf32> to vector<128x128xf32>
    %105 = arith.addf %102, %104 : vector<128x128xf32>
    %106 = vector.shape_cast %105 : vector<128x128xf32> to vector<2x64x128xf32>
    %c0_36 = arith.constant 0 : index
    %c0_37 = arith.constant 0 : index
    %c0_38 = arith.constant 0 : index
    %107 = vector.load %arg7[%c0_36, %c0_37, %c0_38] : memref<2x64x128xf32, #tpu.memory_space<vmem>>, vector<2x64x128xf32>
    tpu.vector_store %arg7[%c0_36, %c0_37, %c0_38], %106 {strides = array<i32>} : memref<2x64x128xf32, #tpu.memory_space<vmem>>, vector<2x64x128xf32>,
    return
  }
  func.func @transform_0(%arg0: i32) -> (i32, i32, i32) {
    %c0_i32 = arith.constant 0 : i32
    %c0_i32_0 = arith.constant 0 : i32
    %c0_i32_1 = arith.constant 0 : i32
    return %arg0, %c0_i32, %c0_i32_0 : i32, i32, i32
  }
  func.func @transform_1(%arg0: i32) -> (i32, i32) {
    %c0_i32 = arith.constant 0 : i32
    %c0_i32_0 = arith.constant 0 : i32
    %c0_i32_1 = arith.constant 0 : i32
    return %c0_i32, %c0_i32_0 : i32, i32
  }
  func.func @transform_2(%arg0: i32) -> (i32, i32) {
    %c0_i32 = arith.constant 0 : i32
    %c0_i32_0 = arith.constant 0 : i32
    %c0_i32_1 = arith.constant 0 : i32
    return %c0_i32, %c0_i32_0 : i32, i32
  }
  func.func @transform_3(%arg0: i32) -> (i32, i32, i32) {
    %c0_i32 = arith.constant 0 : i32
    %c0_i32_0 = arith.constant 0 : i32
    %c0_i32_1 = arith.constant 0 : i32
    %c0_i32_2 = arith.constant 0 : i32
    return %c0_i32, %c0_i32_0, %c0_i32_1 : i32, i32, i32
  }
  func.func @transform_4(%arg0: i32) -> (i32, i32) {
    %c0_i32 = arith.constant 0 : i32
    %c0_i32_0 = arith.constant 0 : i32
    %c0_i32_1 = arith.constant 0 : i32
    return %c0_i32, %c0_i32_0 : i32, i32
  }
  func.func @transform_5(%arg0: i32) -> (i32, i32) {
    %c0_i32 = arith.constant 0 : i32
    %c0_i32_0 = arith.constant 0 : i32
    %c0_i32_1 = arith.constant 0 : i32
    return %c0_i32, %c0_i32_0 : i32, i32
  }
  func.func @transform_6(%arg0: i32) -> (i32, i32, i32) {
    %c0_i32 = arith.constant 0 : i32
    %c0_i32_0 = arith.constant 0 : i32
    %c0_i32_1 = arith.constant 0 : i32
    return %arg0, %c0_i32, %c0_i32_0 : i32, i32, i32
  }
}

module attributes {stable_mosaic.version = 11 : i64} {
  func.func @_window_attn_kernel(%arg0: i32, %arg1: memref<2x64x32xf32, #tpu.memory_space<vmem>>, %arg2: memref<32x96xf32, #tpu.memory_space<vmem>>, %arg3: memref<1x96xf32, #tpu.memory_space<vmem>>, %arg4: memref<4x64x64xf32, #tpu.memory_space<vmem>>, %arg5: memref<32x128xf32, #tpu.memory_space<vmem>>, %arg6: memref<1x128xf32, #tpu.memory_space<vmem>>, %arg7: memref<2x64x128xf32, #tpu.memory_space<vmem>>) attributes {dimension_semantics = [#tpu.dimension_semantics<parallel>], iteration_bounds = array<i64: 2>, scalar_prefetch = 0 : i64, scratch_operands = 0 : i64, tpu.core_type = #tpu.core_type<tc>, window_params = [{transform_indices = @transform_0, window_bounds = array<i64: 2, 64, 32>}, {pipeline_mode = #tpu.pipeline_mode<synchronous>, transform_indices = @transform_1, window_bounds = array<i64: 32, 96>}, {pipeline_mode = #tpu.pipeline_mode<synchronous>, transform_indices = @transform_2, window_bounds = array<i64: 1, 96>}, {pipeline_mode = #tpu.pipeline_mode<synchronous>, transform_indices = @transform_3, window_bounds = array<i64: 4, 64, 64>}, {pipeline_mode = #tpu.pipeline_mode<synchronous>, transform_indices = @transform_4, window_bounds = array<i64: 32, 128>}, {pipeline_mode = #tpu.pipeline_mode<synchronous>, transform_indices = @transform_5, window_bounds = array<i64: 1, 128>}, {transform_indices = @transform_6, window_bounds = array<i64: 2, 64, 128>}]} {
    %c0 = arith.constant 0 : index
    %c0_0 = arith.constant 0 : index
    %c0_1 = arith.constant 0 : index
    %0 = vector.load %arg1[%c0, %c0_0, %c0_1] : memref<2x64x32xf32, #tpu.memory_space<vmem>>, vector<2x64x32xf32>
    %1 = vector.shape_cast %0 : vector<2x64x32xf32> to vector<128x32xf32>
    %c0_2 = arith.constant 0 : index
    %c0_3 = arith.constant 0 : index
    %2 = vector.load %arg2[%c0_2, %c0_3] : memref<32x96xf32, #tpu.memory_space<vmem>>, vector<32x96xf32>
    %cst = arith.constant dense<0.000000e+00> : vector<128x96xf32>
    %3 = tpu.matmul %1, %2, %cst {dimension_numbers = #tpu.dot_dimension_numbers<[1], [0], [0], [1], [0, 0, 1, 1], [], []>} : vector<128x32xf32>, vector<32x96xf32>, vector<128x96xf32> -> vector<128x96xf32>
    %c0_4 = arith.constant 0 : index
    %c0_5 = arith.constant 0 : index
    %4 = vector.load %arg3[%c0_4, %c0_5] : memref<1x96xf32, #tpu.memory_space<vmem>>, vector<1x96xf32>
    %5 = vector.broadcast %4 : vector<1x96xf32> to vector<128x96xf32>
    %6 = arith.addf %3, %5 : vector<128x96xf32>
    %7 = vector.extract_strided_slice %6 {offsets = [0, 0], sizes = [128, 8], strides = [1, 1]} : vector<128x96xf32> to vector<128x8xf32>
    %8 = vector.shape_cast %7 : vector<128x8xf32> to vector<2x64x8xf32>
    %9 = vector.extract_strided_slice %6 {offsets = [0, 32], sizes = [128, 8], strides = [1, 1]} : vector<128x96xf32> to vector<128x8xf32>
    %10 = vector.shape_cast %9 : vector<128x8xf32> to vector<2x64x8xf32>
    %11 = vector.extract_strided_slice %6 {offsets = [0, 64], sizes = [128, 8], strides = [1, 1]} : vector<128x96xf32> to vector<128x8xf32>
    %12 = vector.shape_cast %11 : vector<128x8xf32> to vector<2x64x8xf32>
    "tpu.trace_start"() <{level = 10 : i32, message = "bqd,bkd->bqk"}> : () -> ()
    %cst_6 = arith.constant dense<0.000000e+00> : vector<2x64x64xf32>
    %13 = tpu.matmul %8, %10, %cst_6 {dimension_numbers = #tpu.dot_dimension_numbers<[2], [2], [1], [1], [0, 0, 0, 1, 1, 1], [0], [0]>} : vector<2x64x8xf32>, vector<2x64x8xf32>, vector<2x64x64xf32> -> vector<2x64x64xf32>
    "tpu.trace_stop"() : () -> ()
    %c0_7 = arith.constant 0 : index
    %c0_8 = arith.constant 0 : index
    %c0_9 = arith.constant 0 : index
    %14 = vector.load %arg4[%c0_7, %c0_8, %c0_9] : memref<4x64x64xf32, #tpu.memory_space<vmem>>, vector<1x64x64xf32>
    %15 = vector.shape_cast %14 : vector<1x64x64xf32> to vector<64x64xf32>
    %16 = vector.shape_cast %15 : vector<64x64xf32> to vector<1x64x64xf32>
    %17 = vector.broadcast %16 : vector<1x64x64xf32> to vector<2x64x64xf32>
    %18 = arith.addf %13, %17 : vector<2x64x64xf32>
    %cst_10 = arith.constant dense<0xFF800000> : vector<2x64xf32>
    %19 = vector.multi_reduction <maximumf>, %18, %cst_10 [2] : vector<2x64x64xf32> to vector<2x64xf32>
    %20 = vector.shape_cast %19 : vector<2x64xf32> to vector<2x64x1xf32>
    %21 = vector.broadcast %20 : vector<2x64x1xf32> to vector<2x64x64xf32>
    %22 = arith.subf %18, %21 : vector<2x64x64xf32>
    %23 = math.exp %22 : vector<2x64x64xf32>
    %cst_11 = arith.constant dense<0.000000e+00> : vector<2x64xf32>
    %24 = vector.multi_reduction <add>, %23, %cst_11 [2] : vector<2x64x64xf32> to vector<2x64xf32>
    %25 = vector.shape_cast %24 : vector<2x64xf32> to vector<2x64x1xf32>
    "tpu.trace_start"() <{level = 10 : i32, message = "bqk,bkd->bqd"}> : () -> ()
    %cst_12 = arith.constant dense<0.000000e+00> : vector<2x64x8xf32>
    %26 = tpu.matmul %23, %12, %cst_12 {dimension_numbers = #tpu.dot_dimension_numbers<[2], [1], [1], [2], [0, 0, 0, 1, 1, 2], [0], [0]>} : vector<2x64x64xf32>, vector<2x64x8xf32>, vector<2x64x8xf32> -> vector<2x64x8xf32>
    "tpu.trace_stop"() : () -> ()
    %27 = tpu.reciprocal %25 {approx = true} : vector<2x64x1xf32> -> vector<2x64x1xf32>
    %28 = vector.broadcast %27 : vector<2x64x1xf32> to vector<2x64x8xf32>
    %29 = arith.mulf %26, %28 : vector<2x64x8xf32>
    %30 = vector.extract_strided_slice %6 {offsets = [0, 8], sizes = [128, 8], strides = [1, 1]} : vector<128x96xf32> to vector<128x8xf32>
    %31 = vector.shape_cast %30 : vector<128x8xf32> to vector<2x64x8xf32>
    %32 = vector.extract_strided_slice %6 {offsets = [0, 40], sizes = [128, 8], strides = [1, 1]} : vector<128x96xf32> to vector<128x8xf32>
    %33 = vector.shape_cast %32 : vector<128x8xf32> to vector<2x64x8xf32>
    %34 = vector.extract_strided_slice %6 {offsets = [0, 72], sizes = [128, 8], strides = [1, 1]} : vector<128x96xf32> to vector<128x8xf32>
    %35 = vector.shape_cast %34 : vector<128x8xf32> to vector<2x64x8xf32>
    "tpu.trace_start"() <{level = 10 : i32, message = "bqd,bkd->bqk"}> : () -> ()
    %cst_13 = arith.constant dense<0.000000e+00> : vector<2x64x64xf32>
    %36 = tpu.matmul %31, %33, %cst_13 {dimension_numbers = #tpu.dot_dimension_numbers<[2], [2], [1], [1], [0, 0, 0, 1, 1, 1], [0], [0]>} : vector<2x64x8xf32>, vector<2x64x8xf32>, vector<2x64x64xf32> -> vector<2x64x64xf32>
    "tpu.trace_stop"() : () -> ()
    %c1 = arith.constant 1 : index
    %c0_14 = arith.constant 0 : index
    %c0_15 = arith.constant 0 : index
    %37 = vector.load %arg4[%c1, %c0_14, %c0_15] : memref<4x64x64xf32, #tpu.memory_space<vmem>>, vector<1x64x64xf32>
    %38 = vector.shape_cast %37 : vector<1x64x64xf32> to vector<64x64xf32>
    %39 = vector.shape_cast %38 : vector<64x64xf32> to vector<1x64x64xf32>
    %40 = vector.broadcast %39 : vector<1x64x64xf32> to vector<2x64x64xf32>
    %41 = arith.addf %36, %40 : vector<2x64x64xf32>
    %cst_16 = arith.constant dense<0xFF800000> : vector<2x64xf32>
    %42 = vector.multi_reduction <maximumf>, %41, %cst_16 [2] : vector<2x64x64xf32> to vector<2x64xf32>
    %43 = vector.shape_cast %42 : vector<2x64xf32> to vector<2x64x1xf32>
    %44 = vector.broadcast %43 : vector<2x64x1xf32> to vector<2x64x64xf32>
    %45 = arith.subf %41, %44 : vector<2x64x64xf32>
    %46 = math.exp %45 : vector<2x64x64xf32>
    %cst_17 = arith.constant dense<0.000000e+00> : vector<2x64xf32>
    %47 = vector.multi_reduction <add>, %46, %cst_17 [2] : vector<2x64x64xf32> to vector<2x64xf32>
    %48 = vector.shape_cast %47 : vector<2x64xf32> to vector<2x64x1xf32>
    "tpu.trace_start"() <{level = 10 : i32, message = "bqk,bkd->bqd"}> : () -> ()
    %cst_18 = arith.constant dense<0.000000e+00> : vector<2x64x8xf32>
    %49 = tpu.matmul %46, %35, %cst_18 {dimension_numbers = #tpu.dot_dimension_numbers<[2], [1], [1], [2], [0, 0, 0, 1, 1, 2], [0], [0]>} : vector<2x64x64xf32>, vector<2x64x8xf32>, vector<2x64x8xf32> -> vector<2x64x8xf32>
    "tpu.trace_stop"() : () -> ()
    %50 = tpu.reciprocal %48 {approx = true} : vector<2x64x1xf32> -> vector<2x64x1xf32>
    %51 = vector.broadcast %50 : vector<2x64x1xf32> to vector<2x64x8xf32>
    %52 = arith.mulf %49, %51 : vector<2x64x8xf32>
    %53 = vector.extract_strided_slice %6 {offsets = [0, 16], sizes = [128, 8], strides = [1, 1]} : vector<128x96xf32> to vector<128x8xf32>
    %54 = vector.shape_cast %53 : vector<128x8xf32> to vector<2x64x8xf32>
    %55 = vector.extract_strided_slice %6 {offsets = [0, 48], sizes = [128, 8], strides = [1, 1]} : vector<128x96xf32> to vector<128x8xf32>
    %56 = vector.shape_cast %55 : vector<128x8xf32> to vector<2x64x8xf32>
    %57 = vector.extract_strided_slice %6 {offsets = [0, 80], sizes = [128, 8], strides = [1, 1]} : vector<128x96xf32> to vector<128x8xf32>
    %58 = vector.shape_cast %57 : vector<128x8xf32> to vector<2x64x8xf32>
    "tpu.trace_start"() <{level = 10 : i32, message = "bqd,bkd->bqk"}> : () -> ()
    %cst_19 = arith.constant dense<0.000000e+00> : vector<2x64x64xf32>
    %59 = tpu.matmul %54, %56, %cst_19 {dimension_numbers = #tpu.dot_dimension_numbers<[2], [2], [1], [1], [0, 0, 0, 1, 1, 1], [0], [0]>} : vector<2x64x8xf32>, vector<2x64x8xf32>, vector<2x64x64xf32> -> vector<2x64x64xf32>
    "tpu.trace_stop"() : () -> ()
    %c2 = arith.constant 2 : index
    %c0_20 = arith.constant 0 : index
    %c0_21 = arith.constant 0 : index
    %60 = vector.load %arg4[%c2, %c0_20, %c0_21] : memref<4x64x64xf32, #tpu.memory_space<vmem>>, vector<1x64x64xf32>
    %61 = vector.shape_cast %60 : vector<1x64x64xf32> to vector<64x64xf32>
    %62 = vector.shape_cast %61 : vector<64x64xf32> to vector<1x64x64xf32>
    %63 = vector.broadcast %62 : vector<1x64x64xf32> to vector<2x64x64xf32>
    %64 = arith.addf %59, %63 : vector<2x64x64xf32>
    %cst_22 = arith.constant dense<0xFF800000> : vector<2x64xf32>
    %65 = vector.multi_reduction <maximumf>, %64, %cst_22 [2] : vector<2x64x64xf32> to vector<2x64xf32>
    %66 = vector.shape_cast %65 : vector<2x64xf32> to vector<2x64x1xf32>
    %67 = vector.broadcast %66 : vector<2x64x1xf32> to vector<2x64x64xf32>
    %68 = arith.subf %64, %67 : vector<2x64x64xf32>
    %69 = math.exp %68 : vector<2x64x64xf32>
    %cst_23 = arith.constant dense<0.000000e+00> : vector<2x64xf32>
    %70 = vector.multi_reduction <add>, %69, %cst_23 [2] : vector<2x64x64xf32> to vector<2x64xf32>
    %71 = vector.shape_cast %70 : vector<2x64xf32> to vector<2x64x1xf32>
    "tpu.trace_start"() <{level = 10 : i32, message = "bqk,bkd->bqd"}> : () -> ()
    %cst_24 = arith.constant dense<0.000000e+00> : vector<2x64x8xf32>
    %72 = tpu.matmul %69, %58, %cst_24 {dimension_numbers = #tpu.dot_dimension_numbers<[2], [1], [1], [2], [0, 0, 0, 1, 1, 2], [0], [0]>} : vector<2x64x64xf32>, vector<2x64x8xf32>, vector<2x64x8xf32> -> vector<2x64x8xf32>
    "tpu.trace_stop"() : () -> ()
    %73 = tpu.reciprocal %71 {approx = true} : vector<2x64x1xf32> -> vector<2x64x1xf32>
    %74 = vector.broadcast %73 : vector<2x64x1xf32> to vector<2x64x8xf32>
    %75 = arith.mulf %72, %74 : vector<2x64x8xf32>
    %76 = vector.extract_strided_slice %6 {offsets = [0, 24], sizes = [128, 8], strides = [1, 1]} : vector<128x96xf32> to vector<128x8xf32>
    %77 = vector.shape_cast %76 : vector<128x8xf32> to vector<2x64x8xf32>
    %78 = vector.extract_strided_slice %6 {offsets = [0, 56], sizes = [128, 8], strides = [1, 1]} : vector<128x96xf32> to vector<128x8xf32>
    %79 = vector.shape_cast %78 : vector<128x8xf32> to vector<2x64x8xf32>
    %80 = vector.extract_strided_slice %6 {offsets = [0, 88], sizes = [128, 8], strides = [1, 1]} : vector<128x96xf32> to vector<128x8xf32>
    %81 = vector.shape_cast %80 : vector<128x8xf32> to vector<2x64x8xf32>
    "tpu.trace_start"() <{level = 10 : i32, message = "bqd,bkd->bqk"}> : () -> ()
    %cst_25 = arith.constant dense<0.000000e+00> : vector<2x64x64xf32>
    %82 = tpu.matmul %77, %79, %cst_25 {dimension_numbers = #tpu.dot_dimension_numbers<[2], [2], [1], [1], [0, 0, 0, 1, 1, 1], [0], [0]>} : vector<2x64x8xf32>, vector<2x64x8xf32>, vector<2x64x64xf32> -> vector<2x64x64xf32>
    "tpu.trace_stop"() : () -> ()
    %c3 = arith.constant 3 : index
    %c0_26 = arith.constant 0 : index
    %c0_27 = arith.constant 0 : index
    %83 = vector.load %arg4[%c3, %c0_26, %c0_27] : memref<4x64x64xf32, #tpu.memory_space<vmem>>, vector<1x64x64xf32>
    %84 = vector.shape_cast %83 : vector<1x64x64xf32> to vector<64x64xf32>
    %85 = vector.shape_cast %84 : vector<64x64xf32> to vector<1x64x64xf32>
    %86 = vector.broadcast %85 : vector<1x64x64xf32> to vector<2x64x64xf32>
    %87 = arith.addf %82, %86 : vector<2x64x64xf32>
    %cst_28 = arith.constant dense<0xFF800000> : vector<2x64xf32>
    %88 = vector.multi_reduction <maximumf>, %87, %cst_28 [2] : vector<2x64x64xf32> to vector<2x64xf32>
    %89 = vector.shape_cast %88 : vector<2x64xf32> to vector<2x64x1xf32>
    %90 = vector.broadcast %89 : vector<2x64x1xf32> to vector<2x64x64xf32>
    %91 = arith.subf %87, %90 : vector<2x64x64xf32>
    %92 = math.exp %91 : vector<2x64x64xf32>
    %cst_29 = arith.constant dense<0.000000e+00> : vector<2x64xf32>
    %93 = vector.multi_reduction <add>, %92, %cst_29 [2] : vector<2x64x64xf32> to vector<2x64xf32>
    %94 = vector.shape_cast %93 : vector<2x64xf32> to vector<2x64x1xf32>
    "tpu.trace_start"() <{level = 10 : i32, message = "bqk,bkd->bqd"}> : () -> ()
    %cst_30 = arith.constant dense<0.000000e+00> : vector<2x64x8xf32>
    %95 = tpu.matmul %92, %81, %cst_30 {dimension_numbers = #tpu.dot_dimension_numbers<[2], [1], [1], [2], [0, 0, 0, 1, 1, 2], [0], [0]>} : vector<2x64x64xf32>, vector<2x64x8xf32>, vector<2x64x8xf32> -> vector<2x64x8xf32>
    "tpu.trace_stop"() : () -> ()
    %96 = tpu.reciprocal %94 {approx = true} : vector<2x64x1xf32> -> vector<2x64x1xf32>
    %97 = vector.broadcast %96 : vector<2x64x1xf32> to vector<2x64x8xf32>
    %98 = arith.mulf %95, %97 : vector<2x64x8xf32>
    %99 = tpu.concatenate %29, %52, %75, %98 in 2 : vector<2x64x8xf32>, vector<2x64x8xf32>, vector<2x64x8xf32>, vector<2x64x8xf32> -> vector<2x64x32xf32>
    %100 = vector.shape_cast %99 : vector<2x64x32xf32> to vector<128x32xf32>
    %c0_31 = arith.constant 0 : index
    %c0_32 = arith.constant 0 : index
    %101 = vector.load %arg5[%c0_31, %c0_32] : memref<32x128xf32, #tpu.memory_space<vmem>>, vector<32x128xf32>
    %cst_33 = arith.constant dense<0.000000e+00> : vector<128x128xf32>
    %102 = tpu.matmul %100, %101, %cst_33 {dimension_numbers = #tpu.dot_dimension_numbers<[1], [0], [0], [1], [0, 0, 1, 1], [], []>} : vector<128x32xf32>, vector<32x128xf32>, vector<128x128xf32> -> vector<128x128xf32>
    %c0_34 = arith.constant 0 : index
    %c0_35 = arith.constant 0 : index
    %103 = vector.load %arg6[%c0_34, %c0_35] : memref<1x128xf32, #tpu.memory_space<vmem>>, vector<1x128xf32>
    %104 = vector.broadcast %103 : vector<1x128xf32> to vector<128x128xf32>
    %105 = arith.addf %102, %104 : vector<128x128xf32>
    %106 = vector.shape_cast %105 : vector<128x128xf32> to vector<2x64x128xf32>
    %c0_36 = arith.constant 0 : index
    %c0_37 = arith.constant 0 : index
    %c0_38 = arith.constant 0 : index
    %107 = vector.load %arg7[%c0_36, %c0_37, %c0_38] : memref<2x64x128xf32, #tpu.memory_space<vmem>>, vector<2x64x128xf32>
    tpu.vector_store %arg7[%c0_36, %c0_37, %c0_38], %106 {strides = array<i32>} : memref<2x64x128xf32, #tpu.memory_space<vmem>>, vector<2x64x128xf32>,
    return
  }
  func.func @transform_0(%arg0: i32) -> (i32, i32, i32) {
    %c0_i32 = arith.constant 0 : i32
    %c0_i32_0 = arith.constant 0 : i32
    %c0_i32_1 = arith.constant 0 : i32
    return %arg0, %c0_i32, %c0_i32_0 : i32, i32, i32
  }
  func.func @transform_1(%arg0: i32) -> (i32, i32) {
    %c0_i32 = arith.constant 0 : i32
    %c0_i32_0 = arith.constant 0 : i32
    %c0_i32_1 = arith.constant 0 : i32
    return %c0_i32, %c0_i32_0 : i32, i32
  }
  func.func @transform_2(%arg0: i32) -> (i32, i32) {
    %c0_i32 = arith.constant 0 : i32
    %c0_i32_0 = arith.constant 0 : i32
    %c0_i32_1 = arith.constant 0 : i32
    return %c0_i32, %c0_i32_0 : i32, i32
  }
  func.func @transform_3(%arg0: i32) -> (i32, i32, i32) {
    %c0_i32 = arith.constant 0 : i32
    %c0_i32_0 = arith.constant 0 : i32
    %c0_i32_1 = arith.constant 0 : i32
    %c0_i32_2 = arith.constant 0 : i32
    return %c0_i32, %c0_i32_0, %c0_i32_1 : i32, i32, i32
  }
  func.func @transform_4(%arg0: i32) -> (i32, i32) {
    %c0_i32 = arith.constant 0 : i32
    %c0_i32_0 = arith.constant 0 : i32
    %c0_i32_1 = arith.constant 0 : i32
    return %c0_i32, %c0_i32_0 : i32, i32
  }
  func.func @transform_5(%arg0: i32) -> (i32, i32) {
    %c0_i32 = arith.constant 0 : i32
    %c0_i32_0 = arith.constant 0 : i32
    %c0_i32_1 = arith.constant 0 : i32
    return %c0_i32, %c0_i32_0 : i32, i32
  }
  func.func @transform_6(%arg0: i32) -> (i32, i32, i32) {
    %c0_i32 = arith.constant 0 : i32
    %c0_i32_0 = arith.constant 0 : i32
    %c0_i32_1 = arith.constant 0 : i32
    return %arg0, %c0_i32, %c0_i32_0 : i32, i32, i32
  }
}

</mosaic_0001>

<llo_original>
// kernel: tpu_custom_call.1
$region0: #{tpu_custom_call.1}
  #allocation0 [shape = 'u32[]', space=smem, size = 0x4, offset = 0x4, fixed_abs, tag = 'smem constant byte address 0x4 - core index']
  #allocation1 [shape = 'u32[144,128]{1,0:T(1,128)}', space=vmem, size = 0x12000, scoped, tag = 'internal scratch']
  %s0 = inlined_call_operand.vmem [shape: f32[4,64,32], index: 0, kind: input, shape index: {}]
  %s1 = inlined_call_operand.vmem [shape: f32[32,96], index: 1, kind: input, shape index: {}]
  %s2 = inlined_call_operand.vmem [shape: f32[1,96], index: 2, kind: input, shape index: {}]
  %s3 = inlined_call_operand.vmem [shape: f32[4,64,64], index: 3, kind: input, shape index: {}]
  %s4 = inlined_call_operand.vmem [shape: f32[32,128], index: 4, kind: input, shape index: {}]
  %s5 = inlined_call_operand.vmem [shape: f32[1,128], index: 5, kind: input, shape index: {}]
  %s6 = inlined_call_operand.hbm [shape: f32[4,64,128], index: 6, kind: output, shape index: {}]
  %s7 = sld [smem:[#allocation0]]
  $region57: #{tpu_custom_call.1} parent=0
    _
  %s9 = ssub.s32 1, %s7
  %s10 = scalar_select 0, %s9, %s7
  $region1: #{tpu_custom_call.1} parent=0
    #allocation2 [shape = 'u8[131072]{0}', space=vmem, size = 0x20000, scoped, tag = 'output window, operand 0']
    #allocation3 [shape = 's32[2]{0}', space=sflag, size = 0x8, scoped, tag = 'scoped memory for tpu_custom_call.1']
    %11 = vsyncpa [#allocation3], 0
    %s12 = scalar_lea.sflag [#allocation3], 1
    %13 = vsyncpa %s12, 0
    loop: start=0, step=1, limit=4
    $region2: #{tpu_custom_call.1} parent=1 // loop_pre_header
      _
    $region3: #{tpu_custom_call.1} parent=1 // loop_header
      %s15 = sphi 0, %s19
      %p16 = scmp.ge.s32.totalorder %s15, 4
      %s25 = sphi 0, %s27
      %s28 = sphi 0, %s25
      %s29 = sphi 0, %s28
      %s45 = sphi 0, %s29
      %s49 = sphi 0, %s49
      %s51 = sphi 0, %s49
      %s52 = sphi 0, %s51
      %s66 = sphi 0, %s52
      %s70 = sphi 0, %s70
      %s72 = sphi 0, %s70
      %s73 = sphi 0, %s72
      %s87 = sphi 0, %s73
      %s91 = sphi 0, %s91
      %s93 = sphi 0, %s91
      %s94 = sphi 0, %s93
      %s108 = sphi 0, %s94
      %s112 = sphi 0, %s112
      %s114 = sphi 0, %s112
      %s115 = sphi 0, %s114
      %s129 = sphi 0, %s115
      %s133 = sphi 0, %s133
      %s135 = sphi 0, %s133
      %s136 = sphi 0, %s135
      %s150 = sphi 0, %s136
      %s156 = sphi 0, %s158
      %s159 = sphi 0, %s156
      %s160 = sphi 0, %s159
      %s176 = sphi 0, %s160
    $region4: #{tpu_custom_call.1} parent=1 // loop_header_branch
      %18 = sbr.rel (%p16) target = $region8
    $region5: #{tpu_custom_call.1} parent=1 // loop_body
      %s20 = ssub.s32 %s15, 1
      %s21 = ssub.s32 %s15, 2
      %s22 = sadd.s32 %s15, 1
      %s23 = ssub.s32 %s15, %s22
      %p24 = scmp.eq.s32.totalorder %s23, 0
      %s26 = sadd.s32 %s25, 1
      %s27 = scalar_select %p24, %s25, %s26
      %p30 = pneg %p24
      %p31 = scmp.eq.s32.totalorder %s15, 1
      %p32 = por %p30, %p31
      %p33 = scmp.ne.s32.totalorder %s25, %s28
      %p34 = scmp.eq.s32.totalorder %s15, 0
      %p35 = por %p33, %p34
      %p36 = scmp.ne.s32.totalorder %s25, %s28
      %p37 = scmp.eq.s32.totalorder %s20, 1
      %p38 = por %p36, %p37
      %p39 = scmp.ne.s32.totalorder %s28, %s29
      %p40 = scmp.eq.s32.totalorder %s20, 0
      %p41 = por %p39, %p40
      %p42 = scmp.ne.s32.totalorder %s28, %s29
      %p43 = scmp.eq.s32.totalorder %s21, 1
      %p44 = por %p42, %p43
      %p46 = scmp.ne.s32.totalorder %s29, %s45
      %p47 = scmp.eq.s32.totalorder %s21, 0
      %p48 = por %p46, %p47
      %s50 = sadd.s32 %s49, 1
      %p53 = scmp.eq.s32.totalorder %s15, 1
      %p54 = scmp.ne.s32.totalorder %s49, %s51
      %p55 = scmp.eq.s32.totalorder %s15, 0
      %p56 = por %p54, %p55
      %p57 = scmp.ne.s32.totalorder %s49, %s51
      %p58 = scmp.eq.s32.totalorder %s20, 1
      %p59 = por %p57, %p58
      %p60 = scmp.ne.s32.totalorder %s51, %s52
      %p61 = scmp.eq.s32.totalorder %s20, 0
      %p62 = por %p60, %p61
      %p63 = scmp.ne.s32.totalorder %s51, %s52
      %p64 = scmp.eq.s32.totalorder %s21, 1
      %p65 = por %p63, %p64
      %p67 = scmp.ne.s32.totalorder %s52, %s66
      %p68 = scmp.eq.s32.totalorder %s21, 0
      %p69 = por %p67, %p68
      %s71 = sadd.s32 %s70, 1
      %p74 = scmp.eq.s32.totalorder %s15, 1
      %p75 = scmp.ne.s32.totalorder %s70, %s72
      %p76 = scmp.eq.s32.totalorder %s15, 0
      %p77 = por %p75, %p76
      %p78 = scmp.ne.s32.totalorder %s70, %s72
      %p79 = scmp.eq.s32.totalorder %s20, 1
      %p80 = por %p78, %p79
      %p81 = scmp.ne.s32.totalorder %s72, %s73
      %p82 = scmp.eq.s32.totalorder %s20, 0
      %p83 = por %p81, %p82
      %p84 = scmp.ne.s32.totalorder %s72, %s73
      %p85 = scmp.eq.s32.totalorder %s21, 1
      %p86 = por %p84, %p85
      %p88 = scmp.ne.s32.totalorder %s73, %s87
      %p89 = scmp.eq.s32.totalorder %s21, 0
      %p90 = por %p88, %p89
      %s92 = sadd.s32 %s91, 1
      %p95 = scmp.eq.s32.totalorder %s15, 1
      %p96 = scmp.ne.s32.totalorder %s91, %s93
      %p97 = scmp.eq.s32.totalorder %s15, 0
      %p98 = por %p96, %p97
      %p99 = scmp.ne.s32.totalorder %s91, %s93
      %p100 = scmp.eq.s32.totalorder %s20, 1
      %p101 = por %p99, %p100
      %p102 = scmp.ne.s32.totalorder %s93, %s94
      %p103 = scmp.eq.s32.totalorder %s20, 0
      %p104 = por %p102, %p103
      %p105 = scmp.ne.s32.totalorder %s93, %s94
      %p106 = scmp.eq.s32.totalorder %s21, 1
      %p107 = por %p105, %p106
      %p109 = scmp.ne.s32.totalorder %s94, %s108
      %p110 = scmp.eq.s32.totalorder %s21, 0
      %p111 = por %p109, %p110
      %s113 = sadd.s32 %s112, 1
      %p116 = scmp.eq.s32.totalorder %s15, 1
      %p117 = scmp.ne.s32.totalorder %s112, %s114
      %p118 = scmp.eq.s32.totalorder %s15, 0
      %p119 = por %p117, %p118
      %p120 = scmp.ne.s32.totalorder %s112, %s114
      %p121 = scmp.eq.s32.totalorder %s20, 1
      %p122 = por %p120, %p121
      %p123 = scmp.ne.s32.totalorder %s114, %s115
      %p124 = scmp.eq.s32.totalorder %s20, 0
      %p125 = por %p123, %p124
      %p126 = scmp.ne.s32.totalorder %s114, %s115
      %p127 = scmp.eq.s32.totalorder %s21, 1
      %p128 = por %p126, %p127
      %p130 = scmp.ne.s32.totalorder %s115, %s129
      %p131 = scmp.eq.s32.totalorder %s21, 0
      %p132 = por %p130, %p131
      %s134 = sadd.s32 %s133, 1
      %p137 = scmp.eq.s32.totalorder %s15, 1
      %p138 = scmp.ne.s32.totalorder %s133, %s135
      %p139 = scmp.eq.s32.totalorder %s15, 0
      %p140 = por %p138, %p139
      %p141 = scmp.ne.s32.totalorder %s133, %s135
      %p142 = scmp.eq.s32.totalorder %s20, 1
      %p143 = por %p141, %p142
      %p144 = scmp.ne.s32.totalorder %s135, %s136
      %p145 = scmp.eq.s32.totalorder %s20, 0
      %p146 = por %p144, %p145
      %p147 = scmp.ne.s32.totalorder %s135, %s136
      %p148 = scmp.eq.s32.totalorder %s21, 1
      %p149 = por %p147, %p148
      %p151 = scmp.ne.s32.totalorder %s136, %s150
      %p152 = scmp.eq.s32.totalorder %s21, 0
      %p153 = por %p151, %p152
      %s154 = ssub.s32 %s15, %s22
      %p155 = scmp.eq.s32.totalorder %s154, 0
      %s157 = sadd.s32 %s156, 1
      %s158 = scalar_select %p155, %s156, %s157
      %p161 = pneg %p155
      %p162 = scmp.eq.s32.totalorder %s15, 1
      %p163 = por %p161, %p162
      %p164 = scmp.ne.s32.totalorder %s156, %s159
      %p165 = scmp.eq.s32.totalorder %s15, 0
      %p166 = por %p164, %p165
      %p167 = scmp.ne.s32.totalorder %s156, %s159
      %p168 = scmp.eq.s32.totalorder %s20, 1
      %p169 = por %p167, %p168
      %p170 = scmp.ne.s32.totalorder %s159, %s160
      %p171 = scmp.eq.s32.totalorder %s20, 0
      %p172 = por %p170, %p171
      %p173 = scmp.ne.s32.totalorder %s159, %s160
      %p174 = scmp.eq.s32.totalorder %s21, 1
      %p175 = por %p173, %p174
      %p177 = scmp.ne.s32.totalorder %s160, %s176
      %p178 = scmp.eq.s32.totalorder %s21, 0
      %p179 = por %p177, %p178
      %p180 = scmp.le.s32.totalorder 1, %s15
      %p181 = scmp.lt.s32.totalorder %s15, 3
      %p182 = pnand %p180, %p181
      %p183 = pneg %p182
      // Predicated region
      $region9: #{tpu_custom_call.1} parent=5 // pred_check
        _
      $region10: #{tpu_custom_call.1} parent=5 // pred_check_branch
        %185 = sbr.rel (%p182) target = $region12
      $region11: #{tpu_custom_call.1} parent=5 // pred_region
        %s186 = ssub.s32 %s15, 1
        // Predicated region
        $region13: #{tpu_custom_call.1} parent=11 // pred_check
          %p187 = pneg %p62
        $region14: #{tpu_custom_call.1} parent=11 // pred_check_branch
          %189 = sbr.rel (%p187) target = $region16
        $region15: #{tpu_custom_call.1} parent=11 // pred_region
          _
        $region16: #{tpu_custom_call.1} parent=11 // pred_fallthru
          _
        // Predicated region
        $region17: #{tpu_custom_call.1} parent=11 // pred_check
          %p190 = pneg %p83
        $region18: #{tpu_custom_call.1} parent=11 // pred_check_branch
          %192 = sbr.rel (%p190) target = $region20
        $region19: #{tpu_custom_call.1} parent=11 // pred_region
          _
        $region20: #{tpu_custom_call.1} parent=11 // pred_fallthru
          _
        // Predicated region
        $region21: #{tpu_custom_call.1} parent=11 // pred_check
          %p193 = pneg %p104
        $region22: #{tpu_custom_call.1} parent=11 // pred_check_branch
          %195 = sbr.rel (%p193) target = $region24
        $region23: #{tpu_custom_call.1} parent=11 // pred_region
          _
        $region24: #{tpu_custom_call.1} parent=11 // pred_fallthru
          _
        // Predicated region
        $region25: #{tpu_custom_call.1} parent=11 // pred_check
          %p196 = pneg %p125
        $region26: #{tpu_custom_call.1} parent=11 // pred_check_branch
          %198 = sbr.rel (%p196) target = $region28
        $region27: #{tpu_custom_call.1} parent=11 // pred_region
          _
        $region28: #{tpu_custom_call.1} parent=11 // pred_fallthru
          _
        // Predicated region
        $region29: #{tpu_custom_call.1} parent=11 // pred_check
          %p199 = pneg %p146
        $region30: #{tpu_custom_call.1} parent=11 // pred_check_branch
          %201 = sbr.rel (%p199) target = $region32
        $region31: #{tpu_custom_call.1} parent=11 // pred_region
          _
        $region32: #{tpu_custom_call.1} parent=11 // pred_fallthru
          _
      $region12: #{tpu_custom_call.1} parent=5 // pred_fallthru
        _
      %p202 = scmp.lt.s32.totalorder %s15, 2
      // Predicated region
      $region33: #{tpu_custom_call.1} parent=5 // pred_check
        %p203 = pneg %p202
      $region34: #{tpu_custom_call.1} parent=5 // pred_check_branch
        %205 = sbr.rel (%p203) target = $region36
      $region35: #{tpu_custom_call.1} parent=5 // pred_region
        // Predicated region
        $region37: #{tpu_custom_call.1} parent=35 // pred_check
          %p206 = pneg %p35
        $region38: #{tpu_custom_call.1} parent=35 // pred_check_branch
          %208 = sbr.rel (%p206) target = $region40
        $region39: #{tpu_custom_call.1} parent=35 // pred_region
          %s209 = smul.u32 2, %s15
          %p210 = scmp.lt.s32.totalorder %s209, 3
          %s211 = scalar_select %p210, %s209, 3
          %s212 = smul.addr %s211, 8
          %s213 = smul.addr %s212, 8
          %s214 = scalar_lea.vmem %s0, %s213
          %s215 = smul.u32 2, %s15
        $region40: #{tpu_custom_call.1} parent=35 // pred_fallthru
          _
      $region36: #{tpu_custom_call.1} parent=5 // pred_fallthru
        _
      %p216 = scmp.le.s32.totalorder 1, %s15
      %p217 = scmp.lt.s32.totalorder %s15, 3
      %p218 = pnand %p216, %p217
      %p219 = pneg %p218
      // Predicated region
      $region41: #{tpu_custom_call.1} parent=5 // pred_check
        _
      $region42: #{tpu_custom_call.1} parent=5 // pred_check_branch
        %221 = sbr.rel (%p218) target = $region44
      $region43: #{tpu_custom_call.1} parent=5 // pred_region
        %s222 = ssub.s32 %s15, 1
        %s223 = smul.u32 2, %s20
        %p224 = scmp.lt.s32.totalorder %s223, 3
        %s225 = scalar_select %p224, %s223, 3
        %s226 = smul.addr %s225, 8
        %s227 = smul.addr %s226, 8
        %s228 = scalar_lea.vmem %s0, %s227
        %p229 = pneg %p41
        %p230 = pneg %p38
        %p231 = pneg %p62
        %p232 = pneg %p59
        %p233 = pneg %p83
        %p234 = pneg %p80
        %p235 = pneg %p104
        %p236 = pneg %p101
        %p237 = pneg %p125
        %p238 = pneg %p122
        %p239 = pneg %p146
        %p240 = pneg %p143
        %p241 = pneg %p172
        %p242 = pneg %p169
        %s243 = sand.u32 %s159, 1
        %s244 = scalar_lea.sflag [#allocation3], %s243
        %s245 = sand.u32 %s159, 1
        %s246 = smul.addr %s245, 128
        %s247 = scalar_lea.vmem [#allocation2], %s246
        %s248 = smul.u32 2, %s20
        %p249 = scmp.lt.s32.totalorder %s248, 3
        %s250 = scalar_select %p249, %s248, 3
        %s251 = smul.addr %s250, 8
        %s252 = smul.addr %s251, 8
        %s253 = scalar_lea.vmem %s0, %s252
        %s254 = smul.u32 2, %s20
        %s255 = smul.u32 2, %s20
        %v256 = vld [vmem:[%s253] sm:$0xff]
        %v257 = vld [vmem:[%s253 + $0x8] sm:$0xff]
        %v258 = vld [vmem:[%s253 + $0x10] sm:$0xff]
        %v259 = vld [vmem:[%s253 + $0x18] sm:$0xff]
        %v260 = vld [vmem:[%s253 + $0x20] sm:$0xff]
        %v261 = vld [vmem:[%s253 + $0x28] sm:$0xff]
        %v262 = vld [vmem:[%s253 + $0x30] sm:$0xff]
        %v263 = vld [vmem:[%s253 + $0x38] sm:$0xff]
        %v264 = vld [vmem:[%s253 + $0x40] sm:$0xff]
        %v265 = vld [vmem:[%s253 + $0x48] sm:$0xff]
        %v266 = vld [vmem:[%s253 + $0x50] sm:$0xff]
        %v267 = vld [vmem:[%s253 + $0x58] sm:$0xff]
        %v268 = vld [vmem:[%s253 + $0x60] sm:$0xff]
        %v269 = vld [vmem:[%s253 + $0x68] sm:$0xff]
        %v270 = vld [vmem:[%s253 + $0x70] sm:$0xff]
        %v271 = vld [vmem:[%s253 + $0x78] sm:$0xff]
        %v272 = vld [vmem:[%s1] sm:$0xff]
        %v273 = vld [vmem:[%s1 + $0x8] sm:$0xff]
        %v274 = vld [vmem:[%s1 + $0x10] sm:$0xff]
        %v275 = vld [vmem:[%s1 + $0x18] sm:$0xff]
        %v276 = vld [vmem:[%s2] sm:$0x1]
        %v278 = vlaneseq
        %v279 = vshrl.u32 %v278, 7
        %v280 = vsub.s32 0, %v279
        %v281 = vrot.slane %v276, %v280
        %vm283 = vcmask 261120
        %v285 = vsel %vm283, %v256, 0
        %v288 = vsel %vm283, %v257, 0
        %v291 = vsel %vm283, %v258, 0
        %v294 = vsel %vm283, %v259, 0
        %v297 = vsel %vm283, %v260, 0
        %v300 = vsel %vm283, %v261, 0
        %v303 = vsel %vm283, %v262, 0
        %v306 = vsel %vm283, %v263, 0
        %v309 = vsel %vm283, %v264, 0
        %v312 = vsel %vm283, %v265, 0
        %v315 = vsel %vm283, %v266, 0
        %v318 = vsel %vm283, %v267, 0
        %v321 = vsel %vm283, %v268, 0
        %v324 = vsel %vm283, %v269, 0
        %v327 = vsel %vm283, %v270, 0
        %v330 = vsel %vm283, %v271, 0
        %332 = vmatprep.subr.mxu0 0.0
        %333 = vmatpush1.msra.mxu0 %v272
        %334 = vmatprep.subr.mxu0 0.0
        %335 = vmatpush1.msra.mxu0 %v273
        %336 = vmatprep.subr.mxu0 0.0
        %337 = vmatpush1.msra.mxu0 %v274
        %338 = vmatprep.subr.mxu0 0.0
        %339 = vmatpush1.msra.mxu0 %v275
        %340 = vmatprep.subr.mxu0 0.0
        %341 = vmatpush1.msra.mxu0 0.0
        %342 = vmatprep.subr.mxu0 0.0
        %343 = vmatpush1.msra.mxu0 0.0
        %344 = vmatprep.subr.mxu0 0.0
        %345 = vmatpush1.msra.mxu0 0.0
        %346 = vmatprep.subr.mxu0 0.0
        %347 = vmatpush1.msra.mxu0 0.0
        %348 = vmatprep.subr.mxu0 0.0
        %349 = vmatpush1.msra.mxu0 0.0
        %350 = vmatprep.subr.mxu0 0.0
        %351 = vmatpush1.msra.mxu0 0.0
        %352 = vmatprep.subr.mxu0 0.0
        %353 = vmatpush1.msra.mxu0 0.0
        %354 = vmatprep.subr.mxu0 0.0
        %355 = vmatpush1.msra.mxu0 0.0
        %356 = vmatprep.subr.mxu0 0.0
        %357 = vmatpush1.msra.mxu0 0.0
        %358 = vmatprep.subr.mxu0 0.0
        %359 = vmatpush1.msra.mxu0 0.0
        %360 = vmatprep.subr.mxu0 0.0
        %361 = vmatpush1.msra.mxu0 0.0
        %362 = vmatprep.subr.mxu0 0.0
        %363 = vmatpush1.msra.mxu0 0.0
        %364 = vmatprep.subr.mxu0 0.0
        %365 = vmatpush1.msra.mxu0 0.0
        %366 = vmatprep.subr.mxu0 0.0
        %367 = vmatpush1.msra.mxu0 0.0
        %368 = vmatprep.subr.mxu0 0.0
        %369 = vmatpush1.msra.mxu0 0.0
        %370 = vmatprep.subr.mxu0 0.0
        %371 = vmatpush1.msra.mxu0 0.0
        %372 = vmatprep.subr.mxu0 0.0
        %373 = vmatpush1.msra.mxu0 0.0
        %374 = vmatprep.subr.mxu0 0.0
        %375 = vmatpush1.msra.mxu0 0.0
        %376 = vmatprep.subr.mxu0 0.0
        %377 = vmatpush1.msra.mxu0 0.0
        %378 = vmatprep.subr.mxu0 0.0
        %379 = vmatpush1.msra.mxu0 0.0
        %380 = vmatprep.subr.mxu0 0.0
        %381 = vmatpush1.msra.mxu0 0.0
        %382 = vmatprep.subr.mxu0 0.0
        %383 = vmatpush1.msra.mxu0 0.0
        %384 = vmatprep.subr.mxu0 0.0
        %385 = vmatpush1.msra.mxu0 0.0
        %386 = vmatprep.subr.mxu0 0.0
        %387 = vmatpush1.msra.mxu0 0.0
        %388 = vmatprep.subr.mxu0 0.0
        %389 = vmatpush1.msra.mxu0 0.0
        %390 = vmatprep.subr.mxu0 0.0
        %391 = vmatpush1.msra.mxu0 0.0
        %392 = vmatprep.subr.mxu0 0.0
        %393 = vmatpush1.msra.mxu0 0.0
        %394 = vmatprep.subr.mxu0 0.0
        %395 = vmatpush1.msra.mxu0 0.0
        %396 = vmatprep.mubr.f32.mxu0 0.0
        %397 = vmatmul.mubr.f32.gmra.mrb[0].mxu0 %v285
        %v398 = vpop.f32.mrb[0].mxu0
        %v399 = vadd.f32 %v281, %v398
        %v400 = vpop.f32.mrb[0].mxu0
        %401 = vmatprep.mubr.f32.mxu0 0.0
        %402 = vmatmul.mubr.f32.gmra.mrb[0].mxu0 %v288
        %v403 = vpop.f32.mrb[0].mxu0
        %v404 = vadd.f32 %v281, %v403
        %v405 = vpop.f32.mrb[0].mxu0
        %406 = vmatprep.mubr.f32.mxu0 0.0
        %407 = vmatmul.mubr.f32.gmra.mrb[0].mxu0 %v291
        %v408 = vpop.f32.mrb[0].mxu0
        %v409 = vadd.f32 %v281, %v408
        %v410 = vpop.f32.mrb[0].mxu0
        %411 = vmatprep.mubr.f32.mxu0 0.0
        %412 = vmatmul.mubr.f32.gmra.mrb[0].mxu0 %v294
        %v413 = vpop.f32.mrb[0].mxu0
        %v414 = vadd.f32 %v281, %v413
        %v415 = vpop.f32.mrb[0].mxu0
        %416 = vmatprep.mubr.f32.mxu0 0.0
        %417 = vmatmul.mubr.f32.gmra.mrb[0].mxu0 %v297
        %v418 = vpop.f32.mrb[0].mxu0
        %v419 = vadd.f32 %v281, %v418
        %v420 = vpop.f32.mrb[0].mxu0
        %421 = vmatprep.mubr.f32.mxu0 0.0
        %422 = vmatmul.mubr.f32.gmra.mrb[0].mxu0 %v300
        %v423 = vpop.f32.mrb[0].mxu0
        %v424 = vadd.f32 %v281, %v423
        %v425 = vpop.f32.mrb[0].mxu0
        %426 = vmatprep.mubr.f32.mxu0 0.0
        %427 = vmatmul.mubr.f32.gmra.mrb[0].mxu0 %v303
        %v428 = vpop.f32.mrb[0].mxu0
        %v429 = vadd.f32 %v281, %v428
        %v430 = vpop.f32.mrb[0].mxu0
        %431 = vmatprep.mubr.f32.mxu0 0.0
        %432 = vmatmul.mubr.f32.gmra.mrb[0].mxu0 %v306
        %v433 = vpop.f32.mrb[0].mxu0
        %v434 = vadd.f32 %v281, %v433
        %v435 = vpop.f32.mrb[0].mxu0
        %436 = vmatprep.mubr.f32.mxu0 0.0
        %437 = vmatmul.mubr.f32.gmra.mrb[0].mxu0 %v309
        %v438 = vpop.f32.mrb[0].mxu0
        %v439 = vadd.f32 %v281, %v438
        %v440 = vpop.f32.mrb[0].mxu0
        %441 = vmatprep.mubr.f32.mxu0 0.0
        %442 = vmatmul.mubr.f32.gmra.mrb[0].mxu0 %v312
        %v443 = vpop.f32.mrb[0].mxu0
        %v444 = vadd.f32 %v281, %v443
        %v445 = vpop.f32.mrb[0].mxu0
        %446 = vmatprep.mubr.f32.mxu0 0.0
        %447 = vmatmul.mubr.f32.gmra.mrb[0].mxu0 %v315
        %v448 = vpop.f32.mrb[0].mxu0
        %v449 = vadd.f32 %v281, %v448
        %v450 = vpop.f32.mrb[0].mxu0
        %451 = vmatprep.mubr.f32.mxu0 0.0
        %452 = vmatmul.mubr.f32.gmra.mrb[0].mxu0 %v318
        %v453 = vpop.f32.mrb[0].mxu0
        %v454 = vadd.f32 %v281, %v453
        %v455 = vpop.f32.mrb[0].mxu0
        %456 = vmatprep.mubr.f32.mxu0 0.0
        %457 = vmatmul.mubr.f32.gmra.mrb[0].mxu0 %v321
        %v458 = vpop.f32.mrb[0].mxu0
        %v459 = vadd.f32 %v281, %v458
        %v460 = vpop.f32.mrb[0].mxu0
        %461 = vmatprep.mubr.f32.mxu0 0.0
        %462 = vmatmul.mubr.f32.gmra.mrb[0].mxu0 %v324
        %v463 = vpop.f32.mrb[0].mxu0
        %v464 = vadd.f32 %v281, %v463
        %v465 = vpop.f32.mrb[0].mxu0
        %466 = vmatprep.mubr.f32.mxu0 0.0
        %467 = vmatmul.mubr.f32.gmra.mrb[0].mxu0 %v327
        %v468 = vpop.f32.mrb[0].mxu0
        %v469 = vadd.f32 %v281, %v468
        %v470 = vpop.f32.mrb[0].mxu0
        %471 = vmatprep.mubr.f32.mxu0 0.0
        %472 = vmatmul.mubr.f32.gmra.mrb[0].mxu0 %v330
        %v473 = vpop.f32.mrb[0].mxu0
        %v474 = vadd.f32 %v281, %v473
        %v475 = vpop.f32.mrb[0].mxu0
        %476 = vdwg.mxu0
        %v477 = vld [vmem:[%s3] sm:$0xff]
        %v478 = vld [vmem:[%s3 + $0x8] sm:$0xff]
        %v479 = vld [vmem:[%s3 + $0x10] sm:$0xff]
        %v480 = vld [vmem:[%s3 + $0x18] sm:$0xff]
        %v481 = vld [vmem:[%s3 + $0x20] sm:$0xff]
        %v482 = vld [vmem:[%s3 + $0x28] sm:$0xff]
        %v483 = vld [vmem:[%s3 + $0x30] sm:$0xff]
        %v484 = vld [vmem:[%s3 + $0x38] sm:$0xff]
        %493 = vrot.lane.b32.xlu0 %v399, 96
        %v494 = vpop.permute.xlu0 %493
        %495 = vrot.lane.b32.xlu0 %v404, 96
        %v496 = vpop.permute.xlu0 %495
        %497 = vrot.lane.b32.xlu0 %v409, 96
        %v498 = vpop.permute.xlu0 %497
        %499 = vrot.lane.b32.xlu0 %v414, 96
        %v500 = vpop.permute.xlu0 %499
        %501 = vrot.lane.b32.xlu0 %v419, 96
        %v502 = vpop.permute.xlu0 %501
        %503 = vrot.lane.b32.xlu0 %v424, 96
        %v504 = vpop.permute.xlu0 %503
        %505 = vrot.lane.b32.xlu0 %v429, 96
        %v506 = vpop.permute.xlu0 %505
        %507 = vrot.lane.b32.xlu0 %v434, 96
        %v508 = vpop.permute.xlu0 %507
        %vm509 = vcmask 64512
        %v510 = vsel %vm509, %v399, 0
        %v512 = vsel %vm509, %v404, 0
        %v514 = vsel %vm509, %v409, 0
        %v516 = vsel %vm509, %v414, 0
        %v518 = vsel %vm509, %v419, 0
        %v520 = vsel %vm509, %v424, 0
        %v522 = vsel %vm509, %v429, 0
        %v524 = vsel %vm509, %v434, 0
        %v526 = vsel %vm509, %v494, 0
        %v528 = vsel %vm509, %v496, 0
        %v530 = vsel %vm509, %v498, 0
        %v532 = vsel %vm509, %v500, 0
        %v534 = vsel %vm509, %v502, 0
        %v536 = vsel %vm509, %v504, 0
        %v538 = vsel %vm509, %v506, 0
        %v540 = vsel %vm509, %v508, 0
        %542 = vmatprep.subr.mxu0 0.0
        %543 = vmatpush1.xpose.msra.mxu0 %v526
        %544 = vmatprep.subr.mxu0 0.0
        %545 = vmatpush1.xpose.msra.mxu0 %v528
        %546 = vmatprep.subr.mxu0 0.0
        %547 = vmatpush1.xpose.msra.mxu0 %v530
        %548 = vmatprep.subr.mxu0 0.0
        %549 = vmatpush1.xpose.msra.mxu0 %v532
        %550 = vmatprep.subr.mxu0 0.0
        %551 = vmatpush1.xpose.msra.mxu0 %v534
        %552 = vmatprep.subr.mxu0 0.0
        %553 = vmatpush1.xpose.msra.mxu0 %v536
        %554 = vmatprep.subr.mxu0 0.0
        %555 = vmatpush1.xpose.msra.mxu0 %v538
        %556 = vmatprep.subr.mxu0 0.0
        %557 = vmatpush1.xpose.msra.mxu0 %v540
        %558 = vmatprep.subr.mxu0 0.0
        %559 = vmatpush1.xpose.msra.mxu0 0.0
        %560 = vmatprep.subr.mxu0 0.0
        %561 = vmatpush1.xpose.msra.mxu0 0.0
        %562 = vmatprep.subr.mxu0 0.0
        %563 = vmatpush1.xpose.msra.mxu0 0.0
        %564 = vmatprep.subr.mxu0 0.0
        %565 = vmatpush1.xpose.msra.mxu0 0.0
        %566 = vmatprep.subr.mxu0 0.0
        %567 = vmatpush1.xpose.msra.mxu0 0.0
        %568 = vmatprep.subr.mxu0 0.0
        %569 = vmatpush1.xpose.msra.mxu0 0.0
        %570 = vmatprep.subr.mxu0 0.0
        %571 = vmatpush1.xpose.msra.mxu0 0.0
        %572 = vmatprep.subr.mxu0 0.0
        %573 = vmatpush1.xpose.msra.mxu0 0.0
        %574 = vmatprep.subr.mxu0 0.0
        %575 = vmatpush1.xpose.msra.mxu0 0.0
        %576 = vmatprep.subr.mxu0 0.0
        %577 = vmatpush1.xpose.msra.mxu0 0.0
        %578 = vmatprep.subr.mxu0 0.0
        %579 = vmatpush1.xpose.msra.mxu0 0.0
        %580 = vmatprep.subr.mxu0 0.0
        %581 = vmatpush1.xpose.msra.mxu0 0.0
        %582 = vmatprep.subr.mxu0 0.0
        %583 = vmatpush1.xpose.msra.mxu0 0.0
        %584 = vmatprep.subr.mxu0 0.0
        %585 = vmatpush1.xpose.msra.mxu0 0.0
        %586 = vmatprep.subr.mxu0 0.0
        %587 = vmatpush1.xpose.msra.mxu0 0.0
        %588 = vmatprep.subr.mxu0 0.0
        %589 = vmatpush1.xpose.msra.mxu0 0.0
        %590 = vmatprep.subr.mxu0 0.0
        %591 = vmatpush1.xpose.msra.mxu0 0.0
        %592 = vmatprep.subr.mxu0 0.0
        %593 = vmatpush1.xpose.msra.mxu0 0.0
        %594 = vmatprep.subr.mxu0 0.0
        %595 = vmatpush1.xpose.msra.mxu0 0.0
        %596 = vmatprep.subr.mxu0 0.0
        %597 = vmatpush1.xpose.msra.mxu0 0.0
        %598 = vmatprep.subr.mxu0 0.0
        %599 = vmatpush1.xpose.msra.mxu0 0.0
        %600 = vmatprep.subr.mxu0 0.0
        %601 = vmatpush1.xpose.msra.mxu0 0.0
        %602 = vmatprep.subr.mxu0 0.0
        %603 = vmatpush1.xpose.msra.mxu0 0.0
        %604 = vmatprep.subr.mxu0 0.0
        %605 = vmatpush1.xpose.msra.mxu0 0.0
        %606 = vmatprep.mubr.f32.mxu0 0.0
        %607 = vmatmul.mubr.f32.gmra.mrb[0].mxu0 %v510
        %v608 = vpop.f32.mrb[0].mxu0
        %v609 = vadd.f32 %v477, %v608
        %v610 = vpop.f32.mrb[0].mxu0
        %611 = vmatprep.mubr.f32.mxu0 0.0
        %612 = vmatmul.mubr.f32.gmra.mrb[0].mxu0 %v512
        %v613 = vpop.f32.mrb[0].mxu0
        %v614 = vadd.f32 %v478, %v613
        %v615 = vpop.f32.mrb[0].mxu0
        %616 = vmatprep.mubr.f32.mxu0 0.0
        %617 = vmatmul.mubr.f32.gmra.mrb[0].mxu0 %v514
        %v618 = vpop.f32.mrb[0].mxu0
        %v619 = vadd.f32 %v479, %v618
        %v620 = vpop.f32.mrb[0].mxu0
        %621 = vmatprep.mubr.f32.mxu0 0.0
        %622 = vmatmul.mubr.f32.gmra.mrb[0].mxu0 %v516
        %v623 = vpop.f32.mrb[0].mxu0
        %v624 = vadd.f32 %v480, %v623
        %v625 = vpop.f32.mrb[0].mxu0
        %626 = vmatprep.mubr.f32.mxu0 0.0
        %627 = vmatmul.mubr.f32.gmra.mrb[0].mxu0 %v518
        %v628 = vpop.f32.mrb[0].mxu0
        %v629 = vadd.f32 %v481, %v628
        %v630 = vpop.f32.mrb[0].mxu0
        %631 = vmatprep.mubr.f32.mxu0 0.0
        %632 = vmatmul.mubr.f32.gmra.mrb[0].mxu0 %v520
        %v633 = vpop.f32.mrb[0].mxu0
        %v634 = vadd.f32 %v482, %v633
        %v635 = vpop.f32.mrb[0].mxu0
        %636 = vmatprep.mubr.f32.mxu0 0.0
        %637 = vmatmul.mubr.f32.gmra.mrb[0].mxu0 %v522
        %v638 = vpop.f32.mrb[0].mxu0
        %v639 = vadd.f32 %v483, %v638
        %v640 = vpop.f32.mrb[0].mxu0
        %641 = vmatprep.mubr.f32.mxu0 0.0
        %642 = vmatmul.mubr.f32.gmra.mrb[0].mxu0 %v524
        %v643 = vpop.f32.mrb[0].mxu0
        %v644 = vadd.f32 %v484, %v643
        %v645 = vpop.f32.mrb[0].mxu0
        %646 = vdwg.mxu0
        %655 = vrot.lane.b32.xlu0 %v439, 96
        %v656 = vpop.permute.xlu0 %655
        %657 = vrot.lane.b32.xlu0 %v444, 96
        %v658 = vpop.permute.xlu0 %657
        %659 = vrot.lane.b32.xlu0 %v449, 96
        %v660 = vpop.permute.xlu0 %659
        %661 = vrot.lane.b32.xlu0 %v454, 96
        %v662 = vpop.permute.xlu0 %661
        %663 = vrot.lane.b32.xlu0 %v459, 96
        %v664 = vpop.permute.xlu0 %663
        %665 = vrot.lane.b32.xlu0 %v464, 96
        %v666 = vpop.permute.xlu0 %665
        %667 = vrot.lane.b32.xlu0 %v469, 96
        %v668 = vpop.permute.xlu0 %667
        %669 = vrot.lane.b32.xlu0 %v474, 96
        %v670 = vpop.permute.xlu0 %669
        %v671 = vsel %vm509, %v439, 0
        %v673 = vsel %vm509, %v444, 0
        %v675 = vsel %vm509, %v449, 0
        %v677 = vsel %vm509, %v454, 0
        %v679 = vsel %vm509, %v459, 0
        %v681 = vsel %vm509, %v464, 0
        %v683 = vsel %vm509, %v469, 0
        %v685 = vsel %vm509, %v474, 0
        %v687 = vsel %vm509, %v656, 0
        %v689 = vsel %vm509, %v658, 0
        %v691 = vsel %vm509, %v660, 0
        %v693 = vsel %vm509, %v662, 0
        %v695 = vsel %vm509, %v664, 0
        %v697 = vsel %vm509, %v666, 0
        %v699 = vsel %vm509, %v668, 0
        %v701 = vsel %vm509, %v670, 0
        %703 = vmatprep.subr.mxu0 0.0
        %704 = vmatpush1.xpose.msra.mxu0 %v687
        %705 = vmatprep.subr.mxu0 0.0
        %706 = vmatpush1.xpose.msra.mxu0 %v689
        %707 = vmatprep.subr.mxu0 0.0
        %708 = vmatpush1.xpose.msra.mxu0 %v691
        %709 = vmatprep.subr.mxu0 0.0
        %710 = vmatpush1.xpose.msra.mxu0 %v693
        %711 = vmatprep.subr.mxu0 0.0
        %712 = vmatpush1.xpose.msra.mxu0 %v695
        %713 = vmatprep.subr.mxu0 0.0
        %714 = vmatpush1.xpose.msra.mxu0 %v697
        %715 = vmatprep.subr.mxu0 0.0
        %716 = vmatpush1.xpose.msra.mxu0 %v699
        %717 = vmatprep.subr.mxu0 0.0
        %718 = vmatpush1.xpose.msra.mxu0 %v701
        %719 = vmatprep.subr.mxu0 0.0
        %720 = vmatpush1.xpose.msra.mxu0 0.0
        %721 = vmatprep.subr.mxu0 0.0
        %722 = vmatpush1.xpose.msra.mxu0 0.0
        %723 = vmatprep.subr.mxu0 0.0
        %724 = vmatpush1.xpose.msra.mxu0 0.0
        %725 = vmatprep.subr.mxu0 0.0
        %726 = vmatpush1.xpose.msra.mxu0 0.0
        %727 = vmatprep.subr.mxu0 0.0
        %728 = vmatpush1.xpose.msra.mxu0 0.0
        %729 = vmatprep.subr.mxu0 0.0
        %730 = vmatpush1.xpose.msra.mxu0 0.0
        %731 = vmatprep.subr.mxu0 0.0
        %732 = vmatpush1.xpose.msra.mxu0 0.0
        %733 = vmatprep.subr.mxu0 0.0
        %734 = vmatpush1.xpose.msra.mxu0 0.0
        %735 = vmatprep.subr.mxu0 0.0
        %736 = vmatpush1.xpose.msra.mxu0 0.0
        %737 = vmatprep.subr.mxu0 0.0
        %738 = vmatpush1.xpose.msra.mxu0 0.0
        %739 = vmatprep.subr.mxu0 0.0
        %740 = vmatpush1.xpose.msra.mxu0 0.0
        %741 = vmatprep.subr.mxu0 0.0
        %742 = vmatpush1.xpose.msra.mxu0 0.0
        %743 = vmatprep.subr.mxu0 0.0
        %744 = vmatpush1.xpose.msra.mxu0 0.0
        %745 = vmatprep.subr.mxu0 0.0
        %746 = vmatpush1.xpose.msra.mxu0 0.0
        %747 = vmatprep.subr.mxu0 0.0
        %748 = vmatpush1.xpose.msra.mxu0 0.0
        %749 = vmatprep.subr.mxu0 0.0
        %750 = vmatpush1.xpose.msra.mxu0 0.0
        %751 = vmatprep.subr.mxu0 0.0
        %752 = vmatpush1.xpose.msra.mxu0 0.0
        %753 = vmatprep.subr.mxu0 0.0
        %754 = vmatpush1.xpose.msra.mxu0 0.0
        %755 = vmatprep.subr.mxu0 0.0
        %756 = vmatpush1.xpose.msra.mxu0 0.0
        %757 = vmatprep.subr.mxu0 0.0
        %758 = vmatpush1.xpose.msra.mxu0 0.0
        %759 = vmatprep.subr.mxu0 0.0
        %760 = vmatpush1.xpose.msra.mxu0 0.0
        %761 = vmatprep.subr.mxu0 0.0
        %762 = vmatpush1.xpose.msra.mxu0 0.0
        %763 = vmatprep.subr.mxu0 0.0
        %764 = vmatpush1.xpose.msra.mxu0 0.0
        %765 = vmatprep.subr.mxu0 0.0
        %766 = vmatpush1.xpose.msra.mxu0 0.0
        %767 = vmatprep.mubr.f32.mxu0 0.0
        %768 = vmatmul.mubr.f32.gmra.mrb[0].mxu0 %v671
        %v769 = vpop.f32.mrb[0].mxu0
        %v770 = vadd.f32 %v477, %v769
        %v771 = vpop.f32.mrb[0].mxu0
        %772 = vmatprep.mubr.f32.mxu0 0.0
        %773 = vmatmul.mubr.f32.gmra.mrb[0].mxu0 %v673
        %v774 = vpop.f32.mrb[0].mxu0
        %v775 = vadd.f32 %v478, %v774
        %v776 = vpop.f32.mrb[0].mxu0
        %777 = vmatprep.mubr.f32.mxu0 0.0
        %778 = vmatmul.mubr.f32.gmra.mrb[0].mxu0 %v675
        %v779 = vpop.f32.mrb[0].mxu0
        %v780 = vadd.f32 %v479, %v779
        %v781 = vpop.f32.mrb[0].mxu0
        %782 = vmatprep.mubr.f32.mxu0 0.0
        %783 = vmatmul.mubr.f32.gmra.mrb[0].mxu0 %v677
        %v784 = vpop.f32.mrb[0].mxu0
        %v785 = vadd.f32 %v480, %v784
        %v786 = vpop.f32.mrb[0].mxu0
        %787 = vmatprep.mubr.f32.mxu0 0.0
        %788 = vmatmul.mubr.f32.gmra.mrb[0].mxu0 %v679
        %v789 = vpop.f32.mrb[0].mxu0
        %v790 = vadd.f32 %v481, %v789
        %v791 = vpop.f32.mrb[0].mxu0
        %792 = vmatprep.mubr.f32.mxu0 0.0
        %793 = vmatmul.mubr.f32.gmra.mrb[0].mxu0 %v681
        %v794 = vpop.f32.mrb[0].mxu0
        %v795 = vadd.f32 %v482, %v794
        %v796 = vpop.f32.mrb[0].mxu0
        %797 = vmatprep.mubr.f32.mxu0 0.0
        %798 = vmatmul.mubr.f32.gmra.mrb[0].mxu0 %v683
        %v799 = vpop.f32.mrb[0].mxu0
        %v800 = vadd.f32 %v483, %v799
        %v801 = vpop.f32.mrb[0].mxu0
        %802 = vmatprep.mubr.f32.mxu0 0.0
        %803 = vmatmul.mubr.f32.gmra.mrb[0].mxu0 %v685
        %v804 = vpop.f32.mrb[0].mxu0
        %v805 = vadd.f32 %v484, %v804
        %v806 = vpop.f32.mrb[0].mxu0
        %807 = vdwg.mxu0
        %vm808 = vcmask 523264
        %v809 = vsel %vm808, %v609, -inf
        %810 = vmax.xlane.f32.xlu0 %v809
        %v811 = vpop.xlane.xlu0 %810
        %v812 = vsel %vm808, %v614, -inf
        %813 = vmax.xlane.f32.xlu0 %v812
        %v814 = vpop.xlane.xlu0 %813
        %v815 = vsel %vm808, %v619, -inf
        %816 = vmax.xlane.f32.xlu0 %v815
        %v817 = vpop.xlane.xlu0 %816
        %v818 = vsel %vm808, %v624, -inf
        %819 = vmax.xlane.f32.xlu0 %v818
        %v820 = vpop.xlane.xlu0 %819
        %v821 = vsel %vm808, %v629, -inf
        %822 = vmax.xlane.f32.xlu0 %v821
        %v823 = vpop.xlane.xlu0 %822
        %v824 = vsel %vm808, %v634, -inf
        %825 = vmax.xlane.f32.xlu0 %v824
        %v826 = vpop.xlane.xlu0 %825
        %v827 = vsel %vm808, %v639, -inf
        %828 = vmax.xlane.f32.xlu0 %v827
        %v829 = vpop.xlane.xlu0 %828
        %v830 = vsel %vm808, %v644, -inf
        %831 = vmax.xlane.f32.xlu0 %v830
        %v832 = vpop.xlane.xlu0 %831
        %v833 = vsel %vm808, %v770, -inf
        %834 = vmax.xlane.f32.xlu0 %v833
        %v835 = vpop.xlane.xlu0 %834
        %v836 = vsel %vm808, %v775, -inf
        %837 = vmax.xlane.f32.xlu0 %v836
        %v838 = vpop.xlane.xlu0 %837
        %v839 = vsel %vm808, %v780, -inf
        %840 = vmax.xlane.f32.xlu0 %v839
        %v841 = vpop.xlane.xlu0 %840
        %v842 = vsel %vm808, %v785, -inf
        %843 = vmax.xlane.f32.xlu0 %v842
        %v844 = vpop.xlane.xlu0 %843
        %v845 = vsel %vm808, %v790, -inf
        %846 = vmax.xlane.f32.xlu0 %v845
        %v847 = vpop.xlane.xlu0 %846
        %v848 = vsel %vm808, %v795, -inf
        %849 = vmax.xlane.f32.xlu0 %v848
        %v850 = vpop.xlane.xlu0 %849
        %v851 = vsel %vm808, %v800, -inf
        %852 = vmax.xlane.f32.xlu0 %v851
        %v853 = vpop.xlane.xlu0 %852
        %v854 = vsel %vm808, %v805, -inf
        %855 = vmax.xlane.f32.xlu0 %v854
        %v856 = vpop.xlane.xlu0 %855
        %v857 = vsub.f32 %v609, %v811
        %v858 = vsub.f32 %v614, %v814
        %v859 = vsub.f32 %v619, %v817
        %v860 = vsub.f32 %v624, %v820
        %v861 = vsub.f32 %v629, %v823
        %v862 = vsub.f32 %v634, %v826
        %v863 = vsub.f32 %v639, %v829
        %v864 = vsub.f32 %v644, %v832
        %v865 = vsub.f32 %v770, %v835
        %v866 = vsub.f32 %v775, %v838
        %v867 = vsub.f32 %v780, %v841
        %v868 = vsub.f32 %v785, %v844
        %v869 = vsub.f32 %v790, %v847
        %v870 = vsub.f32 %v795, %v850
        %v871 = vsub.f32 %v800, %v853
        %v872 = vsub.f32 %v805, %v856
        %v873 = vmul.f32 %v857, 1.442695
        %v874 = vpow.pop %v873
        %v875 = vmul.f32 %v858, 1.442695
        %v876 = vpow.pop %v875
        %v877 = vmul.f32 %v859, 1.442695
        %v878 = vpow.pop %v877
        %v879 = vmul.f32 %v860, 1.442695
        %v880 = vpow.pop %v879
        %v881 = vmul.f32 %v861, 1.442695
        %v882 = vpow.pop %v881
        %v883 = vmul.f32 %v862, 1.442695
        %v884 = vpow.pop %v883
        %v885 = vmul.f32 %v863, 1.442695
        %v886 = vpow.pop %v885
        %v887 = vmul.f32 %v864, 1.442695
        %v888 = vpow.pop %v887
        %v889 = vmul.f32 %v865, 1.442695
        %v890 = vpow.pop %v889
        %v891 = vmul.f32 %v866, 1.442695
        %v892 = vpow.pop %v891
        %v893 = vmul.f32 %v867, 1.442695
        %v894 = vpow.pop %v893
        %v895 = vmul.f32 %v868, 1.442695
        %v896 = vpow.pop %v895
        %v897 = vmul.f32 %v869, 1.442695
        %v898 = vpow.pop %v897
        %v899 = vmul.f32 %v870, 1.442695
        %v900 = vpow.pop %v899
        %v901 = vmul.f32 %v871, 1.442695
        %v902 = vpow.pop %v901
        %v903 = vmul.f32 %v872, 1.442695
        %v904 = vpow.pop %v903
        %v905 = vsel %vm808, %v874, 0.0
        %906 = vadd.xlane.f32.xlu0 %v905
        %v907 = vpop.xlane.xlu0 %906
        %v908 = vsel %vm808, %v876, 0.0
        %909 = vadd.xlane.f32.xlu0 %v908
        %v910 = vpop.xlane.xlu0 %909
        %v911 = vsel %vm808, %v878, 0.0
        %912 = vadd.xlane.f32.xlu0 %v911
        %v913 = vpop.xlane.xlu0 %912
        %v914 = vsel %vm808, %v880, 0.0
        %915 = vadd.xlane.f32.xlu0 %v914
        %v916 = vpop.xlane.xlu0 %915
        %v917 = vsel %vm808, %v882, 0.0
        %918 = vadd.xlane.f32.xlu0 %v917
        %v919 = vpop.xlane.xlu0 %918
        %v920 = vsel %vm808, %v884, 0.0
        %921 = vadd.xlane.f32.xlu0 %v920
        %v922 = vpop.xlane.xlu0 %921
        %v923 = vsel %vm808, %v886, 0.0
        %924 = vadd.xlane.f32.xlu0 %v923
        %v925 = vpop.xlane.xlu0 %924
        %v926 = vsel %vm808, %v888, 0.0
        %927 = vadd.xlane.f32.xlu0 %v926
        %v928 = vpop.xlane.xlu0 %927
        %v929 = vsel %vm808, %v890, 0.0
        %930 = vadd.xlane.f32.xlu0 %v929
        %v931 = vpop.xlane.xlu0 %930
        %v932 = vsel %vm808, %v892, 0.0
        %933 = vadd.xlane.f32.xlu0 %v932
        %v934 = vpop.xlane.xlu0 %933
        %v935 = vsel %vm808, %v894, 0.0
        %936 = vadd.xlane.f32.xlu0 %v935
        %v937 = vpop.xlane.xlu0 %936
        %v938 = vsel %vm808, %v896, 0.0
        %939 = vadd.xlane.f32.xlu0 %v938
        %v940 = vpop.xlane.xlu0 %939
        %v941 = vsel %vm808, %v898, 0.0
        %942 = vadd.xlane.f32.xlu0 %v941
        %v943 = vpop.xlane.xlu0 %942
        %v944 = vsel %vm808, %v900, 0.0
        %945 = vadd.xlane.f32.xlu0 %v944
        %v946 = vpop.xlane.xlu0 %945
        %v947 = vsel %vm808, %v902, 0.0
        %948 = vadd.xlane.f32.xlu0 %v947
        %v949 = vpop.xlane.xlu0 %948
        %v950 = vsel %vm808, %v904, 0.0
        %951 = vadd.xlane.f32.xlu0 %v950
        %v952 = vpop.xlane.xlu0 %951
        %953 = vrot.lane.b32.xlu0 %v399, 64
        %v954 = vpop.permute.xlu0 %953
        %955 = vrot.lane.b32.xlu0 %v404, 64
        %v956 = vpop.permute.xlu0 %955
        %957 = vrot.lane.b32.xlu0 %v409, 64
        %v958 = vpop.permute.xlu0 %957
        %959 = vrot.lane.b32.xlu0 %v414, 64
        %v960 = vpop.permute.xlu0 %959
        %961 = vrot.lane.b32.xlu0 %v419, 64
        %v962 = vpop.permute.xlu0 %961
        %963 = vrot.lane.b32.xlu0 %v424, 64
        %v964 = vpop.permute.xlu0 %963
        %965 = vrot.lane.b32.xlu0 %v429, 64
        %v966 = vpop.permute.xlu0 %965
        %967 = vrot.lane.b32.xlu0 %v434, 64
        %v968 = vpop.permute.xlu0 %967
        %v978 = vsel %vm808, %v874, 0
        %v981 = vsel %vm808, %v876, 0
        %v984 = vsel %vm808, %v878, 0
        %v987 = vsel %vm808, %v880, 0
        %v990 = vsel %vm808, %v882, 0
        %v993 = vsel %vm808, %v884, 0
        %v996 = vsel %vm808, %v886, 0
        %v999 = vsel %vm808, %v888, 0
        %1001 = vmatprep.subr.mxu0 0.0
        %1002 = vmatpush1.msra.mxu0 %v954
        %1003 = vmatprep.subr.mxu0 0.0
        %1004 = vmatpush1.msra.mxu0 %v956
        %1005 = vmatprep.subr.mxu0 0.0
        %1006 = vmatpush1.msra.mxu0 %v958
        %1007 = vmatprep.subr.mxu0 0.0
        %1008 = vmatpush1.msra.mxu0 %v960
        %1009 = vmatprep.subr.mxu0 0.0
        %1010 = vmatpush1.msra.mxu0 %v962
        %1011 = vmatprep.subr.mxu0 0.0
        %1012 = vmatpush1.msra.mxu0 %v964
        %1013 = vmatprep.subr.mxu0 0.0
        %1014 = vmatpush1.msra.mxu0 %v966
        %1015 = vmatprep.subr.mxu0 0.0
        %1016 = vmatpush1.msra.mxu0 %v968
        %1017 = vmatprep.subr.mxu0 0.0
        %1018 = vmatpush1.msra.mxu0 0.0
        %1019 = vmatprep.subr.mxu0 0.0
        %1020 = vmatpush1.msra.mxu0 0.0
        %1021 = vmatprep.subr.mxu0 0.0
        %1022 = vmatpush1.msra.mxu0 0.0
        %1023 = vmatprep.subr.mxu0 0.0
        %1024 = vmatpush1.msra.mxu0 0.0
        %1025 = vmatprep.subr.mxu0 0.0
        %1026 = vmatpush1.msra.mxu0 0.0
        %1027 = vmatprep.subr.mxu0 0.0
        %1028 = vmatpush1.msra.mxu0 0.0
        %1029 = vmatprep.subr.mxu0 0.0
        %1030 = vmatpush1.msra.mxu0 0.0
        %1031 = vmatprep.subr.mxu0 0.0
        %1032 = vmatpush1.msra.mxu0 0.0
        %1033 = vmatprep.subr.mxu0 0.0
        %1034 = vmatpush1.msra.mxu0 0.0
        %1035 = vmatprep.subr.mxu0 0.0
        %1036 = vmatpush1.msra.mxu0 0.0
        %1037 = vmatprep.subr.mxu0 0.0
        %1038 = vmatpush1.msra.mxu0 0.0
        %1039 = vmatprep.subr.mxu0 0.0
        %1040 = vmatpush1.msra.mxu0 0.0
        %1041 = vmatprep.subr.mxu0 0.0
        %1042 = vmatpush1.msra.mxu0 0.0
        %1043 = vmatprep.subr.mxu0 0.0
        %1044 = vmatpush1.msra.mxu0 0.0
        %1045 = vmatprep.subr.mxu0 0.0
        %1046 = vmatpush1.msra.mxu0 0.0
        %1047 = vmatprep.subr.mxu0 0.0
        %1048 = vmatpush1.msra.mxu0 0.0
        %1049 = vmatprep.subr.mxu0 0.0
        %1050 = vmatpush1.msra.mxu0 0.0
        %1051 = vmatprep.subr.mxu0 0.0
        %1052 = vmatpush1.msra.mxu0 0.0
        %1053 = vmatprep.subr.mxu0 0.0
        %1054 = vmatpush1.msra.mxu0 0.0
        %1055 = vmatprep.subr.mxu0 0.0
        %1056 = vmatpush1.msra.mxu0 0.0
        %1057 = vmatprep.subr.mxu0 0.0
        %1058 = vmatpush1.msra.mxu0 0.0
        %1059 = vmatprep.subr.mxu0 0.0
        %1060 = vmatpush1.msra.mxu0 0.0
        %1061 = vmatprep.subr.mxu0 0.0
        %1062 = vmatpush1.msra.mxu0 0.0
        %1063 = vmatprep.subr.mxu0 0.0
        %1064 = vmatpush1.msra.mxu0 0.0
        %1065 = vmatprep.mubr.f32.mxu0 0.0
        %1066 = vmatmul.mubr.f32.gmra.mrb[0].mxu0 %v978
        %v1067 = vpop.f32.mrb[0].mxu0
        %v1068 = vadd.f32 0.0, %v1067
        %v1069 = vpop.f32.mrb[0].mxu0
        %1070 = vmatprep.mubr.f32.mxu0 0.0
        %1071 = vmatmul.mubr.f32.gmra.mrb[0].mxu0 %v981
        %v1072 = vpop.f32.mrb[0].mxu0
        %v1073 = vadd.f32 0.0, %v1072
        %v1074 = vpop.f32.mrb[0].mxu0
        %1075 = vmatprep.mubr.f32.mxu0 0.0
        %1076 = vmatmul.mubr.f32.gmra.mrb[0].mxu0 %v984
        %v1077 = vpop.f32.mrb[0].mxu0
        %v1078 = vadd.f32 0.0, %v1077
        %v1079 = vpop.f32.mrb[0].mxu0
        %1080 = vmatprep.mubr.f32.mxu0 0.0
        %1081 = vmatmul.mubr.f32.gmra.mrb[0].mxu0 %v987
        %v1082 = vpop.f32.mrb[0].mxu0
        %v1083 = vadd.f32 0.0, %v1082
        %v1084 = vpop.f32.mrb[0].mxu0
        %1085 = vmatprep.mubr.f32.mxu0 0.0
        %1086 = vmatmul.mubr.f32.gmra.mrb[0].mxu0 %v990
        %v1087 = vpop.f32.mrb[0].mxu0
        %v1088 = vadd.f32 0.0, %v1087
        %v1089 = vpop.f32.mrb[0].mxu0
        %1090 = vmatprep.mubr.f32.mxu0 0.0
        %1091 = vmatmul.mubr.f32.gmra.mrb[0].mxu0 %v993
        %v1092 = vpop.f32.mrb[0].mxu0
        %v1093 = vadd.f32 0.0, %v1092
        %v1094 = vpop.f32.mrb[0].mxu0
        %1095 = vmatprep.mubr.f32.mxu0 0.0
        %1096 = vmatmul.mubr.f32.gmra.mrb[0].mxu0 %v996
        %v1097 = vpop.f32.mrb[0].mxu0
        %v1098 = vadd.f32 0.0, %v1097
        %v1099 = vpop.f32.mrb[0].mxu0
        %1100 = vmatprep.mubr.f32.mxu0 0.0
        %1101 = vmatmul.mubr.f32.gmra.mrb[0].mxu0 %v999
        %v1102 = vpop.f32.mrb[0].mxu0
        %v1103 = vadd.f32 0.0, %v1102
        %v1104 = vpop.f32.mrb[0].mxu0
        %1105 = vdwg.mxu0
        %1106 = vrot.lane.b32.xlu0 %v439, 64
        %v1107 = vpop.permute.xlu0 %1106
        %1108 = vrot.lane.b32.xlu0 %v444, 64
        %v1109 = vpop.permute.xlu0 %1108
        %1110 = vrot.lane.b32.xlu0 %v449, 64
        %v1111 = vpop.permute.xlu0 %1110
        %1112 = vrot.lane.b32.xlu0 %v454, 64
        %v1113 = vpop.permute.xlu0 %1112
        %1114 = vrot.lane.b32.xlu0 %v459, 64
        %v1115 = vpop.permute.xlu0 %1114
        %1116 = vrot.lane.b32.xlu0 %v464, 64
        %v1117 = vpop.permute.xlu0 %1116
        %1118 = vrot.lane.b32.xlu0 %v469, 64
        %v1119 = vpop.permute.xlu0 %1118
        %1120 = vrot.lane.b32.xlu0 %v474, 64
        %v1121 = vpop.permute.xlu0 %1120
        %v1131 = vsel %vm808, %v890, 0
        %v1134 = vsel %vm808, %v892, 0
        %v1137 = vsel %vm808, %v894, 0
        %v1140 = vsel %vm808, %v896, 0
        %v1143 = vsel %vm808, %v898, 0
        %v1146 = vsel %vm808, %v900, 0
        %v1149 = vsel %vm808, %v902, 0
        %v1152 = vsel %vm808, %v904, 0
        %1154 = vmatprep.subr.mxu0 0.0
        %1155 = vmatpush1.msra.mxu0 %v1107
        %1156 = vmatprep.subr.mxu0 0.0
        %1157 = vmatpush1.msra.mxu0 %v1109
        %1158 = vmatprep.subr.mxu0 0.0
        %1159 = vmatpush1.msra.mxu0 %v1111
        %1160 = vmatprep.subr.mxu0 0.0
        %1161 = vmatpush1.msra.mxu0 %v1113
        %1162 = vmatprep.subr.mxu0 0.0
        %1163 = vmatpush1.msra.mxu0 %v1115
        %1164 = vmatprep.subr.mxu0 0.0
        %1165 = vmatpush1.msra.mxu0 %v1117
        %1166 = vmatprep.subr.mxu0 0.0
        %1167 = vmatpush1.msra.mxu0 %v1119
        %1168 = vmatprep.subr.mxu0 0.0
        %1169 = vmatpush1.msra.mxu0 %v1121
        %1170 = vmatprep.subr.mxu0 0.0
        %1171 = vmatpush1.msra.mxu0 0.0
        %1172 = vmatprep.subr.mxu0 0.0
        %1173 = vmatpush1.msra.mxu0 0.0
        %1174 = vmatprep.subr.mxu0 0.0
        %1175 = vmatpush1.msra.mxu0 0.0
        %1176 = vmatprep.subr.mxu0 0.0
        %1177 = vmatpush1.msra.mxu0 0.0
        %1178 = vmatprep.subr.mxu0 0.0
        %1179 = vmatpush1.msra.mxu0 0.0
        %1180 = vmatprep.subr.mxu0 0.0
        %1181 = vmatpush1.msra.mxu0 0.0
        %1182 = vmatprep.subr.mxu0 0.0
        %1183 = vmatpush1.msra.mxu0 0.0
        %1184 = vmatprep.subr.mxu0 0.0
        %1185 = vmatpush1.msra.mxu0 0.0
        %1186 = vmatprep.subr.mxu0 0.0
        %1187 = vmatpush1.msra.mxu0 0.0
        %1188 = vmatprep.subr.mxu0 0.0
        %1189 = vmatpush1.msra.mxu0 0.0
        %1190 = vmatprep.subr.mxu0 0.0
        %1191 = vmatpush1.msra.mxu0 0.0
        %1192 = vmatprep.subr.mxu0 0.0
        %1193 = vmatpush1.msra.mxu0 0.0
        %1194 = vmatprep.subr.mxu0 0.0
        %1195 = vmatpush1.msra.mxu0 0.0
        %1196 = vmatprep.subr.mxu0 0.0
        %1197 = vmatpush1.msra.mxu0 0.0
        %1198 = vmatprep.subr.mxu0 0.0
        %1199 = vmatpush1.msra.mxu0 0.0
        %1200 = vmatprep.subr.mxu0 0.0
        %1201 = vmatpush1.msra.mxu0 0.0
        %1202 = vmatprep.subr.mxu0 0.0
        %1203 = vmatpush1.msra.mxu0 0.0
        %1204 = vmatprep.subr.mxu0 0.0
        %1205 = vmatpush1.msra.mxu0 0.0
        %1206 = vmatprep.subr.mxu0 0.0
        %1207 = vmatpush1.msra.mxu0 0.0
        %1208 = vmatprep.subr.mxu0 0.0
        %1209 = vmatpush1.msra.mxu0 0.0
        %1210 = vmatprep.subr.mxu0 0.0
        %1211 = vmatpush1.msra.mxu0 0.0
        %1212 = vmatprep.subr.mxu0 0.0
        %1213 = vmatpush1.msra.mxu0 0.0
        %1214 = vmatprep.subr.mxu0 0.0
        %1215 = vmatpush1.msra.mxu0 0.0
        %1216 = vmatprep.subr.mxu0 0.0
        %1217 = vmatpush1.msra.mxu0 0.0
        %1218 = vmatprep.mubr.f32.mxu0 0.0
        %1219 = vmatmul.mubr.f32.gmra.mrb[0].mxu0 %v1131
        %v1220 = vpop.f32.mrb[0].mxu0
        %v1221 = vadd.f32 0.0, %v1220
        %v1222 = vpop.f32.mrb[0].mxu0
        %1223 = vmatprep.mubr.f32.mxu0 0.0
        %1224 = vmatmul.mubr.f32.gmra.mrb[0].mxu0 %v1134
        %v1225 = vpop.f32.mrb[0].mxu0
        %v1226 = vadd.f32 0.0, %v1225
        %v1227 = vpop.f32.mrb[0].mxu0
        %1228 = vmatprep.mubr.f32.mxu0 0.0
        %1229 = vmatmul.mubr.f32.gmra.mrb[0].mxu0 %v1137
        %v1230 = vpop.f32.mrb[0].mxu0
        %v1231 = vadd.f32 0.0, %v1230
        %v1232 = vpop.f32.mrb[0].mxu0
        %1233 = vmatprep.mubr.f32.mxu0 0.0
        %1234 = vmatmul.mubr.f32.gmra.mrb[0].mxu0 %v1140
        %v1235 = vpop.f32.mrb[0].mxu0
        %v1236 = vadd.f32 0.0, %v1235
        %v1237 = vpop.f32.mrb[0].mxu0
        %1238 = vmatprep.mubr.f32.mxu0 0.0
        %1239 = vmatmul.mubr.f32.gmra.mrb[0].mxu0 %v1143
        %v1240 = vpop.f32.mrb[0].mxu0
        %v1241 = vadd.f32 0.0, %v1240
        %v1242 = vpop.f32.mrb[0].mxu0
        %1243 = vmatprep.mubr.f32.mxu0 0.0
        %1244 = vmatmul.mubr.f32.gmra.mrb[0].mxu0 %v1146
        %v1245 = vpop.f32.mrb[0].mxu0
        %v1246 = vadd.f32 0.0, %v1245
        %v1247 = vpop.f32.mrb[0].mxu0
        %1248 = vmatprep.mubr.f32.mxu0 0.0
        %1249 = vmatmul.mubr.f32.gmra.mrb[0].mxu0 %v1149
        %v1250 = vpop.f32.mrb[0].mxu0
        %v1251 = vadd.f32 0.0, %v1250
        %v1252 = vpop.f32.mrb[0].mxu0
        %1253 = vmatprep.mubr.f32.mxu0 0.0
        %1254 = vmatmul.mubr.f32.gmra.mrb[0].mxu0 %v1152
        %v1255 = vpop.f32.mrb[0].mxu0
        %v1256 = vadd.f32 0.0, %v1255
        %v1257 = vpop.f32.mrb[0].mxu0
        %1258 = vdwg.mxu0
        %v1259 = vrcp.pop %v907
        %v1260 = vrcp.pop %v910
        %v1261 = vrcp.pop %v913
        %v1262 = vrcp.pop %v916
        %v1263 = vrcp.pop %v919
        %v1264 = vrcp.pop %v922
        %v1265 = vrcp.pop %v925
        %v1266 = vrcp.pop %v928
        %v1267 = vrcp.pop %v931
        %v1268 = vrcp.pop %v934
        %v1269 = vrcp.pop %v937
        %v1270 = vrcp.pop %v940
        %v1271 = vrcp.pop %v943
        %v1272 = vrcp.pop %v946
        %v1273 = vrcp.pop %v949
        %v1274 = vrcp.pop %v952
        %v1275 = vmul.f32 %v1068, %v1259
        %v1276 = vmul.f32 %v1073, %v1260
        %v1277 = vmul.f32 %v1078, %v1261
        %v1278 = vmul.f32 %v1083, %v1262
        %v1279 = vmul.f32 %v1088, %v1263
        %v1280 = vmul.f32 %v1093, %v1264
        %v1281 = vmul.f32 %v1098, %v1265
        %v1282 = vmul.f32 %v1103, %v1266
        %v1283 = vmul.f32 %v1221, %v1267
        %v1284 = vmul.f32 %v1226, %v1268
        %v1285 = vmul.f32 %v1231, %v1269
        %v1286 = vmul.f32 %v1236, %v1270
        %v1287 = vmul.f32 %v1241, %v1271
        %v1288 = vmul.f32 %v1246, %v1272
        %v1289 = vmul.f32 %v1251, %v1273
        %v1290 = vmul.f32 %v1256, %v1274
        %s1291 = scalar_lea.vmem %s3, 64
        %v1292 = vld [vmem:[%s1291] sm:$0xff]
        %v1293 = vld [vmem:[%s1291 + $0x8] sm:$0xff]
        %v1294 = vld [vmem:[%s1291 + $0x10] sm:$0xff]
        %v1295 = vld [vmem:[%s1291 + $0x18] sm:$0xff]
        %v1296 = vld [vmem:[%s1291 + $0x20] sm:$0xff]
        %v1297 = vld [vmem:[%s1291 + $0x28] sm:$0xff]
        %v1298 = vld [vmem:[%s1291 + $0x30] sm:$0xff]
        %v1299 = vld [vmem:[%s1291 + $0x38] sm:$0xff]
        %1300 = vrot.lane.b32.xlu0 %v399, 120
        %v1301 = vpop.permute.xlu0 %1300
        %1302 = vrot.lane.b32.xlu0 %v404, 120
        %v1303 = vpop.permute.xlu0 %1302
        %1304 = vrot.lane.b32.xlu0 %v409, 120
        %v1305 = vpop.permute.xlu0 %1304
        %1306 = vrot.lane.b32.xlu0 %v414, 120
        %v1307 = vpop.permute.xlu0 %1306
        %1308 = vrot.lane.b32.xlu0 %v419, 120
        %v1309 = vpop.permute.xlu0 %1308
        %1310 = vrot.lane.b32.xlu0 %v424, 120
        %v1311 = vpop.permute.xlu0 %1310
        %1312 = vrot.lane.b32.xlu0 %v429, 120
        %v1313 = vpop.permute.xlu0 %1312
        %1314 = vrot.lane.b32.xlu0 %v434, 120
        %v1315 = vpop.permute.xlu0 %1314
        %1316 = vrot.lane.b32.xlu0 %v399, 88
        %v1317 = vpop.permute.xlu0 %1316
        %1318 = vrot.lane.b32.xlu0 %v404, 88
        %v1319 = vpop.permute.xlu0 %1318
        %1320 = vrot.lane.b32.xlu0 %v409, 88
        %v1321 = vpop.permute.xlu0 %1320
        %1322 = vrot.lane.b32.xlu0 %v414, 88
        %v1323 = vpop.permute.xlu0 %1322
        %1324 = vrot.lane.b32.xlu0 %v419, 88
        %v1325 = vpop.permute.xlu0 %1324
        %1326 = vrot.lane.b32.xlu0 %v424, 88
        %v1327 = vpop.permute.xlu0 %1326
        %1328 = vrot.lane.b32.xlu0 %v429, 88
        %v1329 = vpop.permute.xlu0 %1328
        %1330 = vrot.lane.b32.xlu0 %v434, 88
        %v1331 = vpop.permute.xlu0 %1330
        %v1332 = vsel %vm509, %v1301, 0
        %v1334 = vsel %vm509, %v1303, 0
        %v1336 = vsel %vm509, %v1305, 0
        %v1338 = vsel %vm509, %v1307, 0
        %v1340 = vsel %vm509, %v1309, 0
        %v1342 = vsel %vm509, %v1311, 0
        %v1344 = vsel %vm509, %v1313, 0
        %v1346 = vsel %vm509, %v1315, 0
        %v1348 = vsel %vm509, %v1317, 0
        %v1350 = vsel %vm509, %v1319, 0
        %v1352 = vsel %vm509, %v1321, 0
        %v1354 = vsel %vm509, %v1323, 0
        %v1356 = vsel %vm509, %v1325, 0
        %v1358 = vsel %vm509, %v1327, 0
        %v1360 = vsel %vm509, %v1329, 0
        %v1362 = vsel %vm509, %v1331, 0
        %1364 = vmatprep.subr.mxu0 0.0
        %1365 = vmatpush1.xpose.msra.mxu0 %v1348
        %1366 = vmatprep.subr.mxu0 0.0
        %1367 = vmatpush1.xpose.msra.mxu0 %v1350
        %1368 = vmatprep.subr.mxu0 0.0
        %1369 = vmatpush1.xpose.msra.mxu0 %v1352
        %1370 = vmatprep.subr.mxu0 0.0
        %1371 = vmatpush1.xpose.msra.mxu0 %v1354
        %1372 = vmatprep.subr.mxu0 0.0
        %1373 = vmatpush1.xpose.msra.mxu0 %v1356
        %1374 = vmatprep.subr.mxu0 0.0
        %1375 = vmatpush1.xpose.msra.mxu0 %v1358
        %1376 = vmatprep.subr.mxu0 0.0
        %1377 = vmatpush1.xpose.msra.mxu0 %v1360
        %1378 = vmatprep.subr.mxu0 0.0
        %1379 = vmatpush1.xpose.msra.mxu0 %v1362
        %1380 = vmatprep.subr.mxu0 0.0
        %1381 = vmatpush1.xpose.msra.mxu0 0.0
        %1382 = vmatprep.subr.mxu0 0.0
        %1383 = vmatpush1.xpose.msra.mxu0 0.0
        %1384 = vmatprep.subr.mxu0 0.0
        %1385 = vmatpush1.xpose.msra.mxu0 0.0
        %1386 = vmatprep.subr.mxu0 0.0
        %1387 = vmatpush1.xpose.msra.mxu0 0.0
        %1388 = vmatprep.subr.mxu0 0.0
        %1389 = vmatpush1.xpose.msra.mxu0 0.0
        %1390 = vmatprep.subr.mxu0 0.0
        %1391 = vmatpush1.xpose.msra.mxu0 0.0
        %1392 = vmatprep.subr.mxu0 0.0
        %1393 = vmatpush1.xpose.msra.mxu0 0.0
        %1394 = vmatprep.subr.mxu0 0.0
        %1395 = vmatpush1.xpose.msra.mxu0 0.0
        %1396 = vmatprep.subr.mxu0 0.0
        %1397 = vmatpush1.xpose.msra.mxu0 0.0
        %1398 = vmatprep.subr.mxu0 0.0
        %1399 = vmatpush1.xpose.msra.mxu0 0.0
        %1400 = vmatprep.subr.mxu0 0.0
        %1401 = vmatpush1.xpose.msra.mxu0 0.0
        %1402 = vmatprep.subr.mxu0 0.0
        %1403 = vmatpush1.xpose.msra.mxu0 0.0
        %1404 = vmatprep.subr.mxu0 0.0
        %1405 = vmatpush1.xpose.msra.mxu0 0.0
        %1406 = vmatprep.subr.mxu0 0.0
        %1407 = vmatpush1.xpose.msra.mxu0 0.0
        %1408 = vmatprep.subr.mxu0 0.0
        %1409 = vmatpush1.xpose.msra.mxu0 0.0
        %1410 = vmatprep.subr.mxu0 0.0
        %1411 = vmatpush1.xpose.msra.mxu0 0.0
        %1412 = vmatprep.subr.mxu0 0.0
        %1413 = vmatpush1.xpose.msra.mxu0 0.0
        %1414 = vmatprep.subr.mxu0 0.0
        %1415 = vmatpush1.xpose.msra.mxu0 0.0
        %1416 = vmatprep.subr.mxu0 0.0
        %1417 = vmatpush1.xpose.msra.mxu0 0.0
        %1418 = vmatprep.subr.mxu0 0.0
        %1419 = vmatpush1.xpose.msra.mxu0 0.0
        %1420 = vmatprep.subr.mxu0 0.0
        %1421 = vmatpush1.xpose.msra.mxu0 0.0
        %1422 = vmatprep.subr.mxu0 0.0
        %1423 = vmatpush1.xpose.msra.mxu0 0.0
        %1424 = vmatprep.subr.mxu0 0.0
        %1425 = vmatpush1.xpose.msra.mxu0 0.0
        %1426 = vmatprep.subr.mxu0 0.0
        %1427 = vmatpush1.xpose.msra.mxu0 0.0
        %1428 = vmatprep.mubr.f32.mxu0 0.0
        %1429 = vmatmul.mubr.f32.gmra.mrb[0].mxu0 %v1332
        %v1430 = vpop.f32.mrb[0].mxu0
        %v1431 = vadd.f32 %v1292, %v1430
        %v1432 = vpop.f32.mrb[0].mxu0
        %1433 = vmatprep.mubr.f32.mxu0 0.0
        %1434 = vmatmul.mubr.f32.gmra.mrb[0].mxu0 %v1334
        %v1435 = vpop.f32.mrb[0].mxu0
        %v1436 = vadd.f32 %v1293, %v1435
        %v1437 = vpop.f32.mrb[0].mxu0
        %1438 = vmatprep.mubr.f32.mxu0 0.0
        %1439 = vmatmul.mubr.f32.gmra.mrb[0].mxu0 %v1336
        %v1440 = vpop.f32.mrb[0].mxu0
        %v1441 = vadd.f32 %v1294, %v1440
        %v1442 = vpop.f32.mrb[0].mxu0
        %1443 = vmatprep.mubr.f32.mxu0 0.0
        %1444 = vmatmul.mubr.f32.gmra.mrb[0].mxu0 %v1338
        %v1445 = vpop.f32.mrb[0].mxu0
        %v1446 = vadd.f32 %v1295, %v1445
        %v1447 = vpop.f32.mrb[0].mxu0
        %1448 = vmatprep.mubr.f32.mxu0 0.0
        %1449 = vmatmul.mubr.f32.gmra.mrb[0].mxu0 %v1340
        %v1450 = vpop.f32.mrb[0].mxu0
        %v1451 = vadd.f32 %v1296, %v1450
        %v1452 = vpop.f32.mrb[0].mxu0
        %1453 = vmatprep.mubr.f32.mxu0 0.0
        %1454 = vmatmul.mubr.f32.gmra.mrb[0].mxu0 %v1342
        %v1455 = vpop.f32.mrb[0].mxu0
        %v1456 = vadd.f32 %v1297, %v1455
        %v1457 = vpop.f32.mrb[0].mxu0
        %1458 = vmatprep.mubr.f32.mxu0 0.0
        %1459 = vmatmul.mubr.f32.gmra.mrb[0].mxu0 %v1344
        %v1460 = vpop.f32.mrb[0].mxu0
        %v1461 = vadd.f32 %v1298, %v1460
        %v1462 = vpop.f32.mrb[0].mxu0
        %1463 = vmatprep.mubr.f32.mxu0 0.0
        %1464 = vmatmul.mubr.f32.gmra.mrb[0].mxu0 %v1346
        %v1465 = vpop.f32.mrb[0].mxu0
        %v1466 = vadd.f32 %v1299, %v1465
        %v1467 = vpop.f32.mrb[0].mxu0
        %1468 = vdwg.mxu0
        %1469 = vrot.lane.b32.xlu0 %v439, 120
        %v1470 = vpop.permute.xlu0 %1469
        %1471 = vrot.lane.b32.xlu0 %v444, 120
        %v1472 = vpop.permute.xlu0 %1471
        %1473 = vrot.lane.b32.xlu0 %v449, 120
        %v1474 = vpop.permute.xlu0 %1473
        %1475 = vrot.lane.b32.xlu0 %v454, 120
        %v1476 = vpop.permute.xlu0 %1475
        %1477 = vrot.lane.b32.xlu0 %v459, 120
        %v1478 = vpop.permute.xlu0 %1477
        %1479 = vrot.lane.b32.xlu0 %v464, 120
        %v1480 = vpop.permute.xlu0 %1479
        %1481 = vrot.lane.b32.xlu0 %v469, 120
        %v1482 = vpop.permute.xlu0 %1481
        %1483 = vrot.lane.b32.xlu0 %v474, 120
        %v1484 = vpop.permute.xlu0 %1483
        %1485 = vrot.lane.b32.xlu0 %v439, 88
        %v1486 = vpop.permute.xlu0 %1485
        %1487 = vrot.lane.b32.xlu0 %v444, 88
        %v1488 = vpop.permute.xlu0 %1487
        %1489 = vrot.lane.b32.xlu0 %v449, 88
        %v1490 = vpop.permute.xlu0 %1489
        %1491 = vrot.lane.b32.xlu0 %v454, 88
        %v1492 = vpop.permute.xlu0 %1491
        %1493 = vrot.lane.b32.xlu0 %v459, 88
        %v1494 = vpop.permute.xlu0 %1493
        %1495 = vrot.lane.b32.xlu0 %v464, 88
        %v1496 = vpop.permute.xlu0 %1495
        %1497 = vrot.lane.b32.xlu0 %v469, 88
        %v1498 = vpop.permute.xlu0 %1497
        %1499 = vrot.lane.b32.xlu0 %v474, 88
        %v1500 = vpop.permute.xlu0 %1499
        %v1501 = vsel %vm509, %v1470, 0
        %v1503 = vsel %vm509, %v1472, 0
        %v1505 = vsel %vm509, %v1474, 0
        %v1507 = vsel %vm509, %v1476, 0
        %v1509 = vsel %vm509, %v1478, 0
        %v1511 = vsel %vm509, %v1480, 0
        %v1513 = vsel %vm509, %v1482, 0
        %v1515 = vsel %vm509, %v1484, 0
        %v1517 = vsel %vm509, %v1486, 0
        %v1519 = vsel %vm509, %v1488, 0
        %v1521 = vsel %vm509, %v1490, 0
        %v1523 = vsel %vm509, %v1492, 0
        %v1525 = vsel %vm509, %v1494, 0
        %v1527 = vsel %vm509, %v1496, 0
        %v1529 = vsel %vm509, %v1498, 0
        %v1531 = vsel %vm509, %v1500, 0
        %1533 = vmatprep.subr.mxu0 0.0
        %1534 = vmatpush1.xpose.msra.mxu0 %v1517
        %1535 = vmatprep.subr.mxu0 0.0
        %1536 = vmatpush1.xpose.msra.mxu0 %v1519
        %1537 = vmatprep.subr.mxu0 0.0
        %1538 = vmatpush1.xpose.msra.mxu0 %v1521
        %1539 = vmatprep.subr.mxu0 0.0
        %1540 = vmatpush1.xpose.msra.mxu0 %v1523
        %1541 = vmatprep.subr.mxu0 0.0
        %1542 = vmatpush1.xpose.msra.mxu0 %v1525
        %1543 = vmatprep.subr.mxu0 0.0
        %1544 = vmatpush1.xpose.msra.mxu0 %v1527
        %1545 = vmatprep.subr.mxu0 0.0
        %1546 = vmatpush1.xpose.msra.mxu0 %v1529
        %1547 = vmatprep.subr.mxu0 0.0
        %1548 = vmatpush1.xpose.msra.mxu0 %v1531
        %1549 = vmatprep.subr.mxu0 0.0
        %1550 = vmatpush1.xpose.msra.mxu0 0.0
        %1551 = vmatprep.subr.mxu0 0.0
        %1552 = vmatpush1.xpose.msra.mxu0 0.0
        %1553 = vmatprep.subr.mxu0 0.0
        %1554 = vmatpush1.xpose.msra.mxu0 0.0
        %1555 = vmatprep.subr.mxu0 0.0
        %1556 = vmatpush1.xpose.msra.mxu0 0.0
        %1557 = vmatprep.subr.mxu0 0.0
        %1558 = vmatpush1.xpose.msra.mxu0 0.0
        %1559 = vmatprep.subr.mxu0 0.0
        %1560 = vmatpush1.xpose.msra.mxu0 0.0
        %1561 = vmatprep.subr.mxu0 0.0
        %1562 = vmatpush1.xpose.msra.mxu0 0.0
        %1563 = vmatprep.subr.mxu0 0.0
        %1564 = vmatpush1.xpose.msra.mxu0 0.0
        %1565 = vmatprep.subr.mxu0 0.0
        %1566 = vmatpush1.xpose.msra.mxu0 0.0
        %1567 = vmatprep.subr.mxu0 0.0
        %1568 = vmatpush1.xpose.msra.mxu0 0.0
        %1569 = vmatprep.subr.mxu0 0.0
        %1570 = vmatpush1.xpose.msra.mxu0 0.0
        %1571 = vmatprep.subr.mxu0 0.0
        %1572 = vmatpush1.xpose.msra.mxu0 0.0
        %1573 = vmatprep.subr.mxu0 0.0
        %1574 = vmatpush1.xpose.msra.mxu0 0.0
        %1575 = vmatprep.subr.mxu0 0.0
        %1576 = vmatpush1.xpose.msra.mxu0 0.0
        %1577 = vmatprep.subr.mxu0 0.0
        %1578 = vmatpush1.xpose.msra.mxu0 0.0
        %1579 = vmatprep.subr.mxu0 0.0
        %1580 = vmatpush1.xpose.msra.mxu0 0.0
        %1581 = vmatprep.subr.mxu0 0.0
        %1582 = vmatpush1.xpose.msra.mxu0 0.0
        %1583 = vmatprep.subr.mxu0 0.0
        %1584 = vmatpush1.xpose.msra.mxu0 0.0
        %1585 = vmatprep.subr.mxu0 0.0
        %1586 = vmatpush1.xpose.msra.mxu0 0.0
        %1587 = vmatprep.subr.mxu0 0.0
        %1588 = vmatpush1.xpose.msra.mxu0 0.0
        %1589 = vmatprep.subr.mxu0 0.0
        %1590 = vmatpush1.xpose.msra.mxu0 0.0
        %1591 = vmatprep.subr.mxu0 0.0
        %1592 = vmatpush1.xpose.msra.mxu0 0.0
        %1593 = vmatprep.subr.mxu0 0.0
        %1594 = vmatpush1.xpose.msra.mxu0 0.0
        %1595 = vmatprep.subr.mxu0 0.0
        %1596 = vmatpush1.xpose.msra.mxu0 0.0
        %1597 = vmatprep.mubr.f32.mxu0 0.0
        %1598 = vmatmul.mubr.f32.gmra.mrb[0].mxu0 %v1501
        %v1599 = vpop.f32.mrb[0].mxu0
        %v1600 = vadd.f32 %v1292, %v1599
        %v1601 = vpop.f32.mrb[0].mxu0
        %1602 = vmatprep.mubr.f32.mxu0 0.0
        %1603 = vmatmul.mubr.f32.gmra.mrb[0].mxu0 %v1503
        %v1604 = vpop.f32.mrb[0].mxu0
        %v1605 = vadd.f32 %v1293, %v1604
        %v1606 = vpop.f32.mrb[0].mxu0
        %1607 = vmatprep.mubr.f32.mxu0 0.0
        %1608 = vmatmul.mubr.f32.gmra.mrb[0].mxu0 %v1505
        %v1609 = vpop.f32.mrb[0].mxu0
        %v1610 = vadd.f32 %v1294, %v1609
        %v1611 = vpop.f32.mrb[0].mxu0
        %1612 = vmatprep.mubr.f32.mxu0 0.0
        %1613 = vmatmul.mubr.f32.gmra.mrb[0].mxu0 %v1507
        %v1614 = vpop.f32.mrb[0].mxu0
        %v1615 = vadd.f32 %v1295, %v1614
        %v1616 = vpop.f32.mrb[0].mxu0
        %1617 = vmatprep.mubr.f32.mxu0 0.0
        %1618 = vmatmul.mubr.f32.gmra.mrb[0].mxu0 %v1509
        %v1619 = vpop.f32.mrb[0].mxu0
        %v1620 = vadd.f32 %v1296, %v1619
        %v1621 = vpop.f32.mrb[0].mxu0
        %1622 = vmatprep.mubr.f32.mxu0 0.0
        %1623 = vmatmul.mubr.f32.gmra.mrb[0].mxu0 %v1511
        %v1624 = vpop.f32.mrb[0].mxu0
        %v1625 = vadd.f32 %v1297, %v1624
        %v1626 = vpop.f32.mrb[0].mxu0
        %1627 = vmatprep.mubr.f32.mxu0 0.0
        %1628 = vmatmul.mubr.f32.gmra.mrb[0].mxu0 %v1513
        %v1629 = vpop.f32.mrb[0].mxu0
        %v1630 = vadd.f32 %v1298, %v1629
        %v1631 = vpop.f32.mrb[0].mxu0
        %1632 = vmatprep.mubr.f32.mxu0 0.0
        %1633 = vmatmul.mubr.f32.gmra.mrb[0].mxu0 %v1515
        %v1634 = vpop.f32.mrb[0].mxu0
        %v1635 = vadd.f32 %v1299, %v1634
        %v1636 = vpop.f32.mrb[0].mxu0
        %1637 = vdwg.mxu0
        %v1638 = vsel %vm808, %v1431, -inf
        %1639 = vmax.xlane.f32.xlu0 %v1638
        %v1640 = vpop.xlane.xlu0 %1639
        %v1641 = vsel %vm808, %v1436, -inf
        %1642 = vmax.xlane.f32.xlu0 %v1641
        %v1643 = vpop.xlane.xlu0 %1642
        %v1644 = vsel %vm808, %v1441, -inf
        %1645 = vmax.xlane.f32.xlu0 %v1644
        %v1646 = vpop.xlane.xlu0 %1645
        %v1647 = vsel %vm808, %v1446, -inf
        %1648 = vmax.xlane.f32.xlu0 %v1647
        %v1649 = vpop.xlane.xlu0 %1648
        %v1650 = vsel %vm808, %v1451, -inf
        %1651 = vmax.xlane.f32.xlu0 %v1650
        %v1652 = vpop.xlane.xlu0 %1651
        %v1653 = vsel %vm808, %v1456, -inf
        %1654 = vmax.xlane.f32.xlu0 %v1653
        %v1655 = vpop.xlane.xlu0 %1654
        %v1656 = vsel %vm808, %v1461, -inf
        %1657 = vmax.xlane.f32.xlu0 %v1656
        %v1658 = vpop.xlane.xlu0 %1657
        %v1659 = vsel %vm808, %v1466, -inf
        %1660 = vmax.xlane.f32.xlu0 %v1659
        %v1661 = vpop.xlane.xlu0 %1660
        %v1662 = vsel %vm808, %v1600, -inf
        %1663 = vmax.xlane.f32.xlu0 %v1662
        %v1664 = vpop.xlane.xlu0 %1663
        %v1665 = vsel %vm808, %v1605, -inf
        %1666 = vmax.xlane.f32.xlu0 %v1665
        %v1667 = vpop.xlane.xlu0 %1666
        %v1668 = vsel %vm808, %v1610, -inf
        %1669 = vmax.xlane.f32.xlu0 %v1668
        %v1670 = vpop.xlane.xlu0 %1669
        %v1671 = vsel %vm808, %v1615, -inf
        %1672 = vmax.xlane.f32.xlu0 %v1671
        %v1673 = vpop.xlane.xlu0 %1672
        %v1674 = vsel %vm808, %v1620, -inf
        %1675 = vmax.xlane.f32.xlu0 %v1674
        %v1676 = vpop.xlane.xlu0 %1675
        %v1677 = vsel %vm808, %v1625, -inf
        %1678 = vmax.xlane.f32.xlu0 %v1677
        %v1679 = vpop.xlane.xlu0 %1678
        %v1680 = vsel %vm808, %v1630, -inf
        %1681 = vmax.xlane.f32.xlu0 %v1680
        %v1682 = vpop.xlane.xlu0 %1681
        %v1683 = vsel %vm808, %v1635, -inf
        %1684 = vmax.xlane.f32.xlu0 %v1683
        %v1685 = vpop.xlane.xlu0 %1684
        %v1686 = vsub.f32 %v1431, %v1640
        %v1687 = vsub.f32 %v1436, %v1643
        %v1688 = vsub.f32 %v1441, %v1646
        %v1689 = vsub.f32 %v1446, %v1649
        %v1690 = vsub.f32 %v1451, %v1652
        %v1691 = vsub.f32 %v1456, %v1655
        %v1692 = vsub.f32 %v1461, %v1658
        %v1693 = vsub.f32 %v1466, %v1661
        %v1694 = vsub.f32 %v1600, %v1664
        %v1695 = vsub.f32 %v1605, %v1667
        %v1696 = vsub.f32 %v1610, %v1670
        %v1697 = vsub.f32 %v1615, %v1673
        %v1698 = vsub.f32 %v1620, %v1676
        %v1699 = vsub.f32 %v1625, %v1679
        %v1700 = vsub.f32 %v1630, %v1682
        %v1701 = vsub.f32 %v1635, %v1685
        %v1702 = vmul.f32 %v1686, 1.442695
        %v1703 = vpow.pop %v1702
        %v1704 = vmul.f32 %v1687, 1.442695
        %v1705 = vpow.pop %v1704
        %v1706 = vmul.f32 %v1688, 1.442695
        %v1707 = vpow.pop %v1706
        %v1708 = vmul.f32 %v1689, 1.442695
        %v1709 = vpow.pop %v1708
        %v1710 = vmul.f32 %v1690, 1.442695
        %v1711 = vpow.pop %v1710
        %v1712 = vmul.f32 %v1691, 1.442695
        %v1713 = vpow.pop %v1712
        %v1714 = vmul.f32 %v1692, 1.442695
        %v1715 = vpow.pop %v1714
        %v1716 = vmul.f32 %v1693, 1.442695
        %v1717 = vpow.pop %v1716
        %v1718 = vmul.f32 %v1694, 1.442695
        %v1719 = vpow.pop %v1718
        %v1720 = vmul.f32 %v1695, 1.442695
        %v1721 = vpow.pop %v1720
        %v1722 = vmul.f32 %v1696, 1.442695
        %v1723 = vpow.pop %v1722
        %v1724 = vmul.f32 %v1697, 1.442695
        %v1725 = vpow.pop %v1724
        %v1726 = vmul.f32 %v1698, 1.442695
        %v1727 = vpow.pop %v1726
        %v1728 = vmul.f32 %v1699, 1.442695
        %v1729 = vpow.pop %v1728
        %v1730 = vmul.f32 %v1700, 1.442695
        %v1731 = vpow.pop %v1730
        %v1732 = vmul.f32 %v1701, 1.442695
        %v1733 = vpow.pop %v1732
        %v1734 = vsel %vm808, %v1703, 0.0
        %1735 = vadd.xlane.f32.xlu0 %v1734
        %v1736 = vpop.xlane.xlu0 %1735
        %v1737 = vsel %vm808, %v1705, 0.0
        %1738 = vadd.xlane.f32.xlu0 %v1737
        %v1739 = vpop.xlane.xlu0 %1738
        %v1740 = vsel %vm808, %v1707, 0.0
        %1741 = vadd.xlane.f32.xlu0 %v1740
        %v1742 = vpop.xlane.xlu0 %1741
        %v1743 = vsel %vm808, %v1709, 0.0
        %1744 = vadd.xlane.f32.xlu0 %v1743
        %v1745 = vpop.xlane.xlu0 %1744
        %v1746 = vsel %vm808, %v1711, 0.0
        %1747 = vadd.xlane.f32.xlu0 %v1746
        %v1748 = vpop.xlane.xlu0 %1747
        %v1749 = vsel %vm808, %v1713, 0.0
        %1750 = vadd.xlane.f32.xlu0 %v1749
        %v1751 = vpop.xlane.xlu0 %1750
        %v1752 = vsel %vm808, %v1715, 0.0
        %1753 = vadd.xlane.f32.xlu0 %v1752
        %v1754 = vpop.xlane.xlu0 %1753
        %v1755 = vsel %vm808, %v1717, 0.0
        %1756 = vadd.xlane.f32.xlu0 %v1755
        %v1757 = vpop.xlane.xlu0 %1756
        %v1758 = vsel %vm808, %v1719, 0.0
        %1759 = vadd.xlane.f32.xlu0 %v1758
        %v1760 = vpop.xlane.xlu0 %1759
        %v1761 = vsel %vm808, %v1721, 0.0
        %1762 = vadd.xlane.f32.xlu0 %v1761
        %v1763 = vpop.xlane.xlu0 %1762
        %v1764 = vsel %vm808, %v1723, 0.0
        %1765 = vadd.xlane.f32.xlu0 %v1764
        %v1766 = vpop.xlane.xlu0 %1765
        %v1767 = vsel %vm808, %v1725, 0.0
        %1768 = vadd.xlane.f32.xlu0 %v1767
        %v1769 = vpop.xlane.xlu0 %1768
        %v1770 = vsel %vm808, %v1727, 0.0
        %1771 = vadd.xlane.f32.xlu0 %v1770
        %v1772 = vpop.xlane.xlu0 %1771
        %v1773 = vsel %vm808, %v1729, 0.0
        %1774 = vadd.xlane.f32.xlu0 %v1773
        %v1775 = vpop.xlane.xlu0 %1774
        %v1776 = vsel %vm808, %v1731, 0.0
        %1777 = vadd.xlane.f32.xlu0 %v1776
        %v1778 = vpop.xlane.xlu0 %1777
        %v1779 = vsel %vm808, %v1733, 0.0
        %1780 = vadd.xlane.f32.xlu0 %v1779
        %v1781 = vpop.xlane.xlu0 %1780
        %1782 = vrot.lane.b32.xlu0 %v399, 56
        %v1783 = vpop.permute.xlu0 %1782
        %1784 = vrot.lane.b32.xlu0 %v404, 56
        %v1785 = vpop.permute.xlu0 %1784
        %1786 = vrot.lane.b32.xlu0 %v409, 56
        %v1787 = vpop.permute.xlu0 %1786
        %1788 = vrot.lane.b32.xlu0 %v414, 56
        %v1789 = vpop.permute.xlu0 %1788
        %1790 = vrot.lane.b32.xlu0 %v419, 56
        %v1791 = vpop.permute.xlu0 %1790
        %1792 = vrot.lane.b32.xlu0 %v424, 56
        %v1793 = vpop.permute.xlu0 %1792
        %1794 = vrot.lane.b32.xlu0 %v429, 56
        %v1795 = vpop.permute.xlu0 %1794
        %1796 = vrot.lane.b32.xlu0 %v434, 56
        %v1797 = vpop.permute.xlu0 %1796
        %v1807 = vsel %vm808, %v1703, 0
        %v1810 = vsel %vm808, %v1705, 0
        %v1813 = vsel %vm808, %v1707, 0
        %v1816 = vsel %vm808, %v1709, 0
        %v1819 = vsel %vm808, %v1711, 0
        %v1822 = vsel %vm808, %v1713, 0
        %v1825 = vsel %vm808, %v1715, 0
        %v1828 = vsel %vm808, %v1717, 0
        %1830 = vmatprep.subr.mxu0 0.0
        %1831 = vmatpush1.msra.mxu0 %v1783
        %1832 = vmatprep.subr.mxu0 0.0
        %1833 = vmatpush1.msra.mxu0 %v1785
        %1834 = vmatprep.subr.mxu0 0.0
        %1835 = vmatpush1.msra.mxu0 %v1787
        %1836 = vmatprep.subr.mxu0 0.0
        %1837 = vmatpush1.msra.mxu0 %v1789
        %1838 = vmatprep.subr.mxu0 0.0
        %1839 = vmatpush1.msra.mxu0 %v1791
        %1840 = vmatprep.subr.mxu0 0.0
        %1841 = vmatpush1.msra.mxu0 %v1793
        %1842 = vmatprep.subr.mxu0 0.0
        %1843 = vmatpush1.msra.mxu0 %v1795
        %1844 = vmatprep.subr.mxu0 0.0
        %1845 = vmatpush1.msra.mxu0 %v1797
        %1846 = vmatprep.subr.mxu0 0.0
        %1847 = vmatpush1.msra.mxu0 0.0
        %1848 = vmatprep.subr.mxu0 0.0
        %1849 = vmatpush1.msra.mxu0 0.0
        %1850 = vmatprep.subr.mxu0 0.0
        %1851 = vmatpush1.msra.mxu0 0.0
        %1852 = vmatprep.subr.mxu0 0.0
        %1853 = vmatpush1.msra.mxu0 0.0
        %1854 = vmatprep.subr.mxu0 0.0
        %1855 = vmatpush1.msra.mxu0 0.0
        %1856 = vmatprep.subr.mxu0 0.0
        %1857 = vmatpush1.msra.mxu0 0.0
        %1858 = vmatprep.subr.mxu0 0.0
        %1859 = vmatpush1.msra.mxu0 0.0
        %1860 = vmatprep.subr.mxu0 0.0
        %1861 = vmatpush1.msra.mxu0 0.0
        %1862 = vmatprep.subr.mxu0 0.0
        %1863 = vmatpush1.msra.mxu0 0.0
        %1864 = vmatprep.subr.mxu0 0.0
        %1865 = vmatpush1.msra.mxu0 0.0
        %1866 = vmatprep.subr.mxu0 0.0
        %1867 = vmatpush1.msra.mxu0 0.0
        %1868 = vmatprep.subr.mxu0 0.0
        %1869 = vmatpush1.msra.mxu0 0.0
        %1870 = vmatprep.subr.mxu0 0.0
        %1871 = vmatpush1.msra.mxu0 0.0
        %1872 = vmatprep.subr.mxu0 0.0
        %1873 = vmatpush1.msra.mxu0 0.0
        %1874 = vmatprep.subr.mxu0 0.0
        %1875 = vmatpush1.msra.mxu0 0.0
        %1876 = vmatprep.subr.mxu0 0.0
        %1877 = vmatpush1.msra.mxu0 0.0
        %1878 = vmatprep.subr.mxu0 0.0
        %1879 = vmatpush1.msra.mxu0 0.0
        %1880 = vmatprep.subr.mxu0 0.0
        %1881 = vmatpush1.msra.mxu0 0.0
        %1882 = vmatprep.subr.mxu0 0.0
        %1883 = vmatpush1.msra.mxu0 0.0
        %1884 = vmatprep.subr.mxu0 0.0
        %1885 = vmatpush1.msra.mxu0 0.0
        %1886 = vmatprep.subr.mxu0 0.0
        %1887 = vmatpush1.msra.mxu0 0.0
        %1888 = vmatprep.subr.mxu0 0.0
        %1889 = vmatpush1.msra.mxu0 0.0
        %1890 = vmatprep.subr.mxu0 0.0
        %1891 = vmatpush1.msra.mxu0 0.0
        %1892 = vmatprep.subr.mxu0 0.0
        %1893 = vmatpush1.msra.mxu0 0.0
        %1894 = vmatprep.mubr.f32.mxu0 0.0
        %1895 = vmatmul.mubr.f32.gmra.mrb[0].mxu0 %v1807
        %v1896 = vpop.f32.mrb[0].mxu0
        %v1897 = vadd.f32 0.0, %v1896
        %v1898 = vpop.f32.mrb[0].mxu0
        %1899 = vmatprep.mubr.f32.mxu0 0.0
        %1900 = vmatmul.mubr.f32.gmra.mrb[0].mxu0 %v1810
        %v1901 = vpop.f32.mrb[0].mxu0
        %v1902 = vadd.f32 0.0, %v1901
        %v1903 = vpop.f32.mrb[0].mxu0
        %1904 = vmatprep.mubr.f32.mxu0 0.0
        %1905 = vmatmul.mubr.f32.gmra.mrb[0].mxu0 %v1813
        %v1906 = vpop.f32.mrb[0].mxu0
        %v1907 = vadd.f32 0.0, %v1906
        %v1908 = vpop.f32.mrb[0].mxu0
        %1909 = vmatprep.mubr.f32.mxu0 0.0
        %1910 = vmatmul.mubr.f32.gmra.mrb[0].mxu0 %v1816
        %v1911 = vpop.f32.mrb[0].mxu0
        %v1912 = vadd.f32 0.0, %v1911
        %v1913 = vpop.f32.mrb[0].mxu0
        %1914 = vmatprep.mubr.f32.mxu0 0.0
        %1915 = vmatmul.mubr.f32.gmra.mrb[0].mxu0 %v1819
        %v1916 = vpop.f32.mrb[0].mxu0
        %v1917 = vadd.f32 0.0, %v1916
        %v1918 = vpop.f32.mrb[0].mxu0
        %1919 = vmatprep.mubr.f32.mxu0 0.0
        %1920 = vmatmul.mubr.f32.gmra.mrb[0].mxu0 %v1822
        %v1921 = vpop.f32.mrb[0].mxu0
        %v1922 = vadd.f32 0.0, %v1921
        %v1923 = vpop.f32.mrb[0].mxu0
        %1924 = vmatprep.mubr.f32.mxu0 0.0
        %1925 = vmatmul.mubr.f32.gmra.mrb[0].mxu0 %v1825
        %v1926 = vpop.f32.mrb[0].mxu0
        %v1927 = vadd.f32 0.0, %v1926
        %v1928 = vpop.f32.mrb[0].mxu0
        %1929 = vmatprep.mubr.f32.mxu0 0.0
        %1930 = vmatmul.mubr.f32.gmra.mrb[0].mxu0 %v1828
        %v1931 = vpop.f32.mrb[0].mxu0
        %v1932 = vadd.f32 0.0, %v1931
        %v1933 = vpop.f32.mrb[0].mxu0
        %1934 = vdwg.mxu0
        %1935 = vrot.lane.b32.xlu0 %v439, 56
        %v1936 = vpop.permute.xlu0 %1935
        %1937 = vrot.lane.b32.xlu0 %v444, 56
        %v1938 = vpop.permute.xlu0 %1937
        %1939 = vrot.lane.b32.xlu0 %v449, 56
        %v1940 = vpop.permute.xlu0 %1939
        %1941 = vrot.lane.b32.xlu0 %v454, 56
        %v1942 = vpop.permute.xlu0 %1941
        %1943 = vrot.lane.b32.xlu0 %v459, 56
        %v1944 = vpop.permute.xlu0 %1943
        %1945 = vrot.lane.b32.xlu0 %v464, 56
        %v1946 = vpop.permute.xlu0 %1945
        %1947 = vrot.lane.b32.xlu0 %v469, 56
        %v1948 = vpop.permute.xlu0 %1947
        %1949 = vrot.lane.b32.xlu0 %v474, 56
        %v1950 = vpop.permute.xlu0 %1949
        %v1960 = vsel %vm808, %v1719, 0
        %v1963 = vsel %vm808, %v1721, 0
        %v1966 = vsel %vm808, %v1723, 0
        %v1969 = vsel %vm808, %v1725, 0
        %v1972 = vsel %vm808, %v1727, 0
        %v1975 = vsel %vm808, %v1729, 0
        %v1978 = vsel %vm808, %v1731, 0
        %v1981 = vsel %vm808, %v1733, 0
        %1983 = vmatprep.subr.mxu0 0.0
        %1984 = vmatpush1.msra.mxu0 %v1936
        %1985 = vmatprep.subr.mxu0 0.0
        %1986 = vmatpush1.msra.mxu0 %v1938
        %1987 = vmatprep.subr.mxu0 0.0
        %1988 = vmatpush1.msra.mxu0 %v1940
        %1989 = vmatprep.subr.mxu0 0.0
        %1990 = vmatpush1.msra.mxu0 %v1942
        %1991 = vmatprep.subr.mxu0 0.0
        %1992 = vmatpush1.msra.mxu0 %v1944
        %1993 = vmatprep.subr.mxu0 0.0
        %1994 = vmatpush1.msra.mxu0 %v1946
        %1995 = vmatprep.subr.mxu0 0.0
        %1996 = vmatpush1.msra.mxu0 %v1948
        %1997 = vmatprep.subr.mxu0 0.0
        %1998 = vmatpush1.msra.mxu0 %v1950
        %1999 = vmatprep.subr.mxu0 0.0
        %2000 = vmatpush1.msra.mxu0 0.0
        %2001 = vmatprep.subr.mxu0 0.0
        %2002 = vmatpush1.msra.mxu0 0.0
        %2003 = vmatprep.subr.mxu0 0.0
        %2004 = vmatpush1.msra.mxu0 0.0
        %2005 = vmatprep.subr.mxu0 0.0
        %2006 = vmatpush1.msra.mxu0 0.0
        %2007 = vmatprep.subr.mxu0 0.0
        %2008 = vmatpush1.msra.mxu0 0.0
        %2009 = vmatprep.subr.mxu0 0.0
        %2010 = vmatpush1.msra.mxu0 0.0
        %2011 = vmatprep.subr.mxu0 0.0
        %2012 = vmatpush1.msra.mxu0 0.0
        %2013 = vmatprep.subr.mxu0 0.0
        %2014 = vmatpush1.msra.mxu0 0.0
        %2015 = vmatprep.subr.mxu0 0.0
        %2016 = vmatpush1.msra.mxu0 0.0
        %2017 = vmatprep.subr.mxu0 0.0
        %2018 = vmatpush1.msra.mxu0 0.0
        %2019 = vmatprep.subr.mxu0 0.0
        %2020 = vmatpush1.msra.mxu0 0.0
        %2021 = vmatprep.subr.mxu0 0.0
        %2022 = vmatpush1.msra.mxu0 0.0
        %2023 = vmatprep.subr.mxu0 0.0
        %2024 = vmatpush1.msra.mxu0 0.0
        %2025 = vmatprep.subr.mxu0 0.0
        %2026 = vmatpush1.msra.mxu0 0.0
        %2027 = vmatprep.subr.mxu0 0.0
        %2028 = vmatpush1.msra.mxu0 0.0
        %2029 = vmatprep.subr.mxu0 0.0
        %2030 = vmatpush1.msra.mxu0 0.0
        %2031 = vmatprep.subr.mxu0 0.0
        %2032 = vmatpush1.msra.mxu0 0.0
        %2033 = vmatprep.subr.mxu0 0.0
        %2034 = vmatpush1.msra.mxu0 0.0
        %2035 = vmatprep.subr.mxu0 0.0
        %2036 = vmatpush1.msra.mxu0 0.0
        %2037 = vmatprep.subr.mxu0 0.0
        %2038 = vmatpush1.msra.mxu0 0.0
        %2039 = vmatprep.subr.mxu0 0.0
        %2040 = vmatpush1.msra.mxu0 0.0
        %2041 = vmatprep.subr.mxu0 0.0
        %2042 = vmatpush1.msra.mxu0 0.0
        %2043 = vmatprep.subr.mxu0 0.0
        %2044 = vmatpush1.msra.mxu0 0.0
        %2045 = vmatprep.subr.mxu0 0.0
        %2046 = vmatpush1.msra.mxu0 0.0
        %2047 = vmatprep.mubr.f32.mxu0 0.0
        %2048 = vmatmul.mubr.f32.gmra.mrb[0].mxu0 %v1960
        %v2049 = vpop.f32.mrb[0].mxu0
        %v2050 = vadd.f32 0.0, %v2049
        %v2051 = vpop.f32.mrb[0].mxu0
        %2052 = vmatprep.mubr.f32.mxu0 0.0
        %2053 = vmatmul.mubr.f32.gmra.mrb[0].mxu0 %v1963
        %v2054 = vpop.f32.mrb[0].mxu0
        %v2055 = vadd.f32 0.0, %v2054
        %v2056 = vpop.f32.mrb[0].mxu0
        %2057 = vmatprep.mubr.f32.mxu0 0.0
        %2058 = vmatmul.mubr.f32.gmra.mrb[0].mxu0 %v1966
        %v2059 = vpop.f32.mrb[0].mxu0
        %v2060 = vadd.f32 0.0, %v2059
        %v2061 = vpop.f32.mrb[0].mxu0
        %2062 = vmatprep.mubr.f32.mxu0 0.0
        %2063 = vmatmul.mubr.f32.gmra.mrb[0].mxu0 %v1969
        %v2064 = vpop.f32.mrb[0].mxu0
        %v2065 = vadd.f32 0.0, %v2064
        %v2066 = vpop.f32.mrb[0].mxu0
        %2067 = vmatprep.mubr.f32.mxu0 0.0
        %2068 = vmatmul.mubr.f32.gmra.mrb[0].mxu0 %v1972
        %v2069 = vpop.f32.mrb[0].mxu0
        %v2070 = vadd.f32 0.0, %v2069
        %v2071 = vpop.f32.mrb[0].mxu0
        %2072 = vmatprep.mubr.f32.mxu0 0.0
        %2073 = vmatmul.mubr.f32.gmra.mrb[0].mxu0 %v1975
        %v2074 = vpop.f32.mrb[0].mxu0
        %v2075 = vadd.f32 0.0, %v2074
        %v2076 = vpop.f32.mrb[0].mxu0
        %2077 = vmatprep.mubr.f32.mxu0 0.0
        %2078 = vmatmul.mubr.f32.gmra.mrb[0].mxu0 %v1978
        %v2079 = vpop.f32.mrb[0].mxu0
        %v2080 = vadd.f32 0.0, %v2079
        %v2081 = vpop.f32.mrb[0].mxu0
        %2082 = vmatprep.mubr.f32.mxu0 0.0
        %2083 = vmatmul.mubr.f32.gmra.mrb[0].mxu0 %v1981
        %v2084 = vpop.f32.mrb[0].mxu0
        %v2085 = vadd.f32 0.0, %v2084
        %v2086 = vpop.f32.mrb[0].mxu0
        %2087 = vdwg.mxu0
        %v2088 = vrcp.pop %v1736
        %v2089 = vrcp.pop %v1739
        %v2090 = vrcp.pop %v1742
        %v2091 = vrcp.pop %v1745
        %v2092 = vrcp.pop %v1748
        %v2093 = vrcp.pop %v1751
        %v2094 = vrcp.pop %v1754
        %v2095 = vrcp.pop %v1757
        %v2096 = vrcp.pop %v1760
        %v2097 = vrcp.pop %v1763
        %v2098 = vrcp.pop %v1766
        %v2099 = vrcp.pop %v1769
        %v2100 = vrcp.pop %v1772
        %v2101 = vrcp.pop %v1775
        %v2102 = vrcp.pop %v1778
        %v2103 = vrcp.pop %v1781
        %v2104 = vmul.f32 %v1897, %v2088
        %v2105 = vmul.f32 %v1902, %v2089
        %v2106 = vmul.f32 %v1907, %v2090
        %v2107 = vmul.f32 %v1912, %v2091
        %v2108 = vmul.f32 %v1917, %v2092
        %v2109 = vmul.f32 %v1922, %v2093
        %v2110 = vmul.f32 %v1927, %v2094
        %v2111 = vmul.f32 %v1932, %v2095
        %v2112 = vmul.f32 %v2050, %v2096
        %v2113 = vmul.f32 %v2055, %v2097
        %v2114 = vmul.f32 %v2060, %v2098
        %v2115 = vmul.f32 %v2065, %v2099
        %v2116 = vmul.f32 %v2070, %v2100
        %v2117 = vmul.f32 %v2075, %v2101
        %v2118 = vmul.f32 %v2080, %v2102
        %v2119 = vmul.f32 %v2085, %v2103
        %s2120 = scalar_lea.vmem %s3, 128
        %v2121 = vld [vmem:[%s2120] sm:$0xff]
        %v2122 = vld [vmem:[%s2120 + $0x8] sm:$0xff]
        %v2123 = vld [vmem:[%s2120 + $0x10] sm:$0xff]
        %v2124 = vld [vmem:[%s2120 + $0x18] sm:$0xff]
        %v2125 = vld [vmem:[%s2120 + $0x20] sm:$0xff]
        %v2126 = vld [vmem:[%s2120 + $0x28] sm:$0xff]
        %v2127 = vld [vmem:[%s2120 + $0x30] sm:$0xff]
        %v2128 = vld [vmem:[%s2120 + $0x38] sm:$0xff]
        %2129 = vrot.lane.b32.xlu0 %v399, 112
        %v2130 = vpop.permute.xlu0 %2129
        %2131 = vrot.lane.b32.xlu0 %v404, 112
        %v2132 = vpop.permute.xlu0 %2131
        %2133 = vrot.lane.b32.xlu0 %v409, 112
        %v2134 = vpop.permute.xlu0 %2133
        %2135 = vrot.lane.b32.xlu0 %v414, 112
        %v2136 = vpop.permute.xlu0 %2135
        %2137 = vrot.lane.b32.xlu0 %v419, 112
        %v2138 = vpop.permute.xlu0 %2137
        %2139 = vrot.lane.b32.xlu0 %v424, 112
        %v2140 = vpop.permute.xlu0 %2139
        %2141 = vrot.lane.b32.xlu0 %v429, 112
        %v2142 = vpop.permute.xlu0 %2141
        %2143 = vrot.lane.b32.xlu0 %v434, 112
        %v2144 = vpop.permute.xlu0 %2143
        %2145 = vrot.lane.b32.xlu0 %v399, 80
        %v2146 = vpop.permute.xlu0 %2145
        %2147 = vrot.lane.b32.xlu0 %v404, 80
        %v2148 = vpop.permute.xlu0 %2147
        %2149 = vrot.lane.b32.xlu0 %v409, 80
        %v2150 = vpop.permute.xlu0 %2149
        %2151 = vrot.lane.b32.xlu0 %v414, 80
        %v2152 = vpop.permute.xlu0 %2151
        %2153 = vrot.lane.b32.xlu0 %v419, 80
        %v2154 = vpop.permute.xlu0 %2153
        %2155 = vrot.lane.b32.xlu0 %v424, 80
        %v2156 = vpop.permute.xlu0 %2155
        %2157 = vrot.lane.b32.xlu0 %v429, 80
        %v2158 = vpop.permute.xlu0 %2157
        %2159 = vrot.lane.b32.xlu0 %v434, 80
        %v2160 = vpop.permute.xlu0 %2159
        %v2161 = vsel %vm509, %v2130, 0
        %v2163 = vsel %vm509, %v2132, 0
        %v2165 = vsel %vm509, %v2134, 0
        %v2167 = vsel %vm509, %v2136, 0
        %v2169 = vsel %vm509, %v2138, 0
        %v2171 = vsel %vm509, %v2140, 0
        %v2173 = vsel %vm509, %v2142, 0
        %v2175 = vsel %vm509, %v2144, 0
        %v2177 = vsel %vm509, %v2146, 0
        %v2179 = vsel %vm509, %v2148, 0
        %v2181 = vsel %vm509, %v2150, 0
        %v2183 = vsel %vm509, %v2152, 0
        %v2185 = vsel %vm509, %v2154, 0
        %v2187 = vsel %vm509, %v2156, 0
        %v2189 = vsel %vm509, %v2158, 0
        %v2191 = vsel %vm509, %v2160, 0
        %2193 = vmatprep.subr.mxu0 0.0
        %2194 = vmatpush1.xpose.msra.mxu0 %v2177
        %2195 = vmatprep.subr.mxu0 0.0
        %2196 = vmatpush1.xpose.msra.mxu0 %v2179
        %2197 = vmatprep.subr.mxu0 0.0
        %2198 = vmatpush1.xpose.msra.mxu0 %v2181
        %2199 = vmatprep.subr.mxu0 0.0
        %2200 = vmatpush1.xpose.msra.mxu0 %v2183
        %2201 = vmatprep.subr.mxu0 0.0
        %2202 = vmatpush1.xpose.msra.mxu0 %v2185
        %2203 = vmatprep.subr.mxu0 0.0
        %2204 = vmatpush1.xpose.msra.mxu0 %v2187
        %2205 = vmatprep.subr.mxu0 0.0
        %2206 = vmatpush1.xpose.msra.mxu0 %v2189
        %2207 = vmatprep.subr.mxu0 0.0
        %2208 = vmatpush1.xpose.msra.mxu0 %v2191
        %2209 = vmatprep.subr.mxu0 0.0
        %2210 = vmatpush1.xpose.msra.mxu0 0.0
        %2211 = vmatprep.subr.mxu0 0.0
        %2212 = vmatpush1.xpose.msra.mxu0 0.0
        %2213 = vmatprep.subr.mxu0 0.0
        %2214 = vmatpush1.xpose.msra.mxu0 0.0
        %2215 = vmatprep.subr.mxu0 0.0
        %2216 = vmatpush1.xpose.msra.mxu0 0.0
        %2217 = vmatprep.subr.mxu0 0.0
        %2218 = vmatpush1.xpose.msra.mxu0 0.0
        %2219 = vmatprep.subr.mxu0 0.0
        %2220 = vmatpush1.xpose.msra.mxu0 0.0
        %2221 = vmatprep.subr.mxu0 0.0
        %2222 = vmatpush1.xpose.msra.mxu0 0.0
        %2223 = vmatprep.subr.mxu0 0.0
        %2224 = vmatpush1.xpose.msra.mxu0 0.0
        %2225 = vmatprep.subr.mxu0 0.0
        %2226 = vmatpush1.xpose.msra.mxu0 0.0
        %2227 = vmatprep.subr.mxu0 0.0
        %2228 = vmatpush1.xpose.msra.mxu0 0.0
        %2229 = vmatprep.subr.mxu0 0.0
        %2230 = vmatpush1.xpose.msra.mxu0 0.0
        %2231 = vmatprep.subr.mxu0 0.0
        %2232 = vmatpush1.xpose.msra.mxu0 0.0
        %2233 = vmatprep.subr.mxu0 0.0
        %2234 = vmatpush1.xpose.msra.mxu0 0.0
        %2235 = vmatprep.subr.mxu0 0.0
        %2236 = vmatpush1.xpose.msra.mxu0 0.0
        %2237 = vmatprep.subr.mxu0 0.0
        %2238 = vmatpush1.xpose.msra.mxu0 0.0
        %2239 = vmatprep.subr.mxu0 0.0
        %2240 = vmatpush1.xpose.msra.mxu0 0.0
        %2241 = vmatprep.subr.mxu0 0.0
        %2242 = vmatpush1.xpose.msra.mxu0 0.0
        %2243 = vmatprep.subr.mxu0 0.0
        %2244 = vmatpush1.xpose.msra.mxu0 0.0
        %2245 = vmatprep.subr.mxu0 0.0
        %2246 = vmatpush1.xpose.msra.mxu0 0.0
        %2247 = vmatprep.subr.mxu0 0.0
        %2248 = vmatpush1.xpose.msra.mxu0 0.0
        %2249 = vmatprep.subr.mxu0 0.0
        %2250 = vmatpush1.xpose.msra.mxu0 0.0
        %2251 = vmatprep.subr.mxu0 0.0
        %2252 = vmatpush1.xpose.msra.mxu0 0.0
        %2253 = vmatprep.subr.mxu0 0.0
        %2254 = vmatpush1.xpose.msra.mxu0 0.0
        %2255 = vmatprep.subr.mxu0 0.0
        %2256 = vmatpush1.xpose.msra.mxu0 0.0
        %2257 = vmatprep.mubr.f32.mxu0 0.0
        %2258 = vmatmul.mubr.f32.gmra.mrb[0].mxu0 %v2161
        %v2259 = vpop.f32.mrb[0].mxu0
        %v2260 = vadd.f32 %v2121, %v2259
        %v2261 = vpop.f32.mrb[0].mxu0
        %2262 = vmatprep.mubr.f32.mxu0 0.0
        %2263 = vmatmul.mubr.f32.gmra.mrb[0].mxu0 %v2163
        %v2264 = vpop.f32.mrb[0].mxu0
        %v2265 = vadd.f32 %v2122, %v2264
        %v2266 = vpop.f32.mrb[0].mxu0
        %2267 = vmatprep.mubr.f32.mxu0 0.0
        %2268 = vmatmul.mubr.f32.gmra.mrb[0].mxu0 %v2165
        %v2269 = vpop.f32.mrb[0].mxu0
        %v2270 = vadd.f32 %v2123, %v2269
        %v2271 = vpop.f32.mrb[0].mxu0
        %2272 = vmatprep.mubr.f32.mxu0 0.0
        %2273 = vmatmul.mubr.f32.gmra.mrb[0].mxu0 %v2167
        %v2274 = vpop.f32.mrb[0].mxu0
        %v2275 = vadd.f32 %v2124, %v2274
        %v2276 = vpop.f32.mrb[0].mxu0
        %2277 = vmatprep.mubr.f32.mxu0 0.0
        %2278 = vmatmul.mubr.f32.gmra.mrb[0].mxu0 %v2169
        %v2279 = vpop.f32.mrb[0].mxu0
        %v2280 = vadd.f32 %v2125, %v2279
        %v2281 = vpop.f32.mrb[0].mxu0
        %2282 = vmatprep.mubr.f32.mxu0 0.0
        %2283 = vmatmul.mubr.f32.gmra.mrb[0].mxu0 %v2171
        %v2284 = vpop.f32.mrb[0].mxu0
        %v2285 = vadd.f32 %v2126, %v2284
        %v2286 = vpop.f32.mrb[0].mxu0
        %2287 = vmatprep.mubr.f32.mxu0 0.0
        %2288 = vmatmul.mubr.f32.gmra.mrb[0].mxu0 %v2173
        %v2289 = vpop.f32.mrb[0].mxu0
        %v2290 = vadd.f32 %v2127, %v2289
        %v2291 = vpop.f32.mrb[0].mxu0
        %2292 = vmatprep.mubr.f32.mxu0 0.0
        %2293 = vmatmul.mubr.f32.gmra.mrb[0].mxu0 %v2175
        %v2294 = vpop.f32.mrb[0].mxu0
        %v2295 = vadd.f32 %v2128, %v2294
        %v2296 = vpop.f32.mrb[0].mxu0
        %2297 = vdwg.mxu0
        %2298 = vrot.lane.b32.xlu0 %v439, 112
        %v2299 = vpop.permute.xlu0 %2298
        %2300 = vrot.lane.b32.xlu0 %v444, 112
        %v2301 = vpop.permute.xlu0 %2300
        %2302 = vrot.lane.b32.xlu0 %v449, 112
        %v2303 = vpop.permute.xlu0 %2302
        %2304 = vrot.lane.b32.xlu0 %v454, 112
        %v2305 = vpop.permute.xlu0 %2304
        %2306 = vrot.lane.b32.xlu0 %v459, 112
        %v2307 = vpop.permute.xlu0 %2306
        %2308 = vrot.lane.b32.xlu0 %v464, 112
        %v2309 = vpop.permute.xlu0 %2308
        %2310 = vrot.lane.b32.xlu0 %v469, 112
        %v2311 = vpop.permute.xlu0 %2310
        %2312 = vrot.lane.b32.xlu0 %v474, 112
        %v2313 = vpop.permute.xlu0 %2312
        %2314 = vrot.lane.b32.xlu0 %v439, 80
        %v2315 = vpop.permute.xlu0 %2314
        %2316 = vrot.lane.b32.xlu0 %v444, 80
        %v2317 = vpop.permute.xlu0 %2316
        %2318 = vrot.lane.b32.xlu0 %v449, 80
        %v2319 = vpop.permute.xlu0 %2318
        %2320 = vrot.lane.b32.xlu0 %v454, 80
        %v2321 = vpop.permute.xlu0 %2320
        %2322 = vrot.lane.b32.xlu0 %v459, 80
        %v2323 = vpop.permute.xlu0 %2322
        %2324 = vrot.lane.b32.xlu0 %v464, 80
        %v2325 = vpop.permute.xlu0 %2324
        %2326 = vrot.lane.b32.xlu0 %v469, 80
        %v2327 = vpop.permute.xlu0 %2326
        %2328 = vrot.lane.b32.xlu0 %v474, 80
        %v2329 = vpop.permute.xlu0 %2328
        %v2330 = vsel %vm509, %v2299, 0
        %v2332 = vsel %vm509, %v2301, 0
        %v2334 = vsel %vm509, %v2303, 0
        %v2336 = vsel %vm509, %v2305, 0
        %v2338 = vsel %vm509, %v2307, 0
        %v2340 = vsel %vm509, %v2309, 0
        %v2342 = vsel %vm509, %v2311, 0
        %v2344 = vsel %vm509, %v2313, 0
        %v2346 = vsel %vm509, %v2315, 0
        %v2348 = vsel %vm509, %v2317, 0
        %v2350 = vsel %vm509, %v2319, 0
        %v2352 = vsel %vm509, %v2321, 0
        %v2354 = vsel %vm509, %v2323, 0
        %v2356 = vsel %vm509, %v2325, 0
        %v2358 = vsel %vm509, %v2327, 0
        %v2360 = vsel %vm509, %v2329, 0
        %2362 = vmatprep.subr.mxu0 0.0
        %2363 = vmatpush1.xpose.msra.mxu0 %v2346
        %2364 = vmatprep.subr.mxu0 0.0
        %2365 = vmatpush1.xpose.msra.mxu0 %v2348
        %2366 = vmatprep.subr.mxu0 0.0
        %2367 = vmatpush1.xpose.msra.mxu0 %v2350
        %2368 = vmatprep.subr.mxu0 0.0
        %2369 = vmatpush1.xpose.msra.mxu0 %v2352
        %2370 = vmatprep.subr.mxu0 0.0
        %2371 = vmatpush1.xpose.msra.mxu0 %v2354
        %2372 = vmatprep.subr.mxu0 0.0
        %2373 = vmatpush1.xpose.msra.mxu0 %v2356
        %2374 = vmatprep.subr.mxu0 0.0
        %2375 = vmatpush1.xpose.msra.mxu0 %v2358
        %2376 = vmatprep.subr.mxu0 0.0
        %2377 = vmatpush1.xpose.msra.mxu0 %v2360
        %2378 = vmatprep.subr.mxu0 0.0
        %2379 = vmatpush1.xpose.msra.mxu0 0.0
        %2380 = vmatprep.subr.mxu0 0.0
        %2381 = vmatpush1.xpose.msra.mxu0 0.0
        %2382 = vmatprep.subr.mxu0 0.0
        %2383 = vmatpush1.xpose.msra.mxu0 0.0
        %2384 = vmatprep.subr.mxu0 0.0
        %2385 = vmatpush1.xpose.msra.mxu0 0.0
        %2386 = vmatprep.subr.mxu0 0.0
        %2387 = vmatpush1.xpose.msra.mxu0 0.0
        %2388 = vmatprep.subr.mxu0 0.0
        %2389 = vmatpush1.xpose.msra.mxu0 0.0
        %2390 = vmatprep.subr.mxu0 0.0
        %2391 = vmatpush1.xpose.msra.mxu0 0.0
        %2392 = vmatprep.subr.mxu0 0.0
        %2393 = vmatpush1.xpose.msra.mxu0 0.0
        %2394 = vmatprep.subr.mxu0 0.0
        %2395 = vmatpush1.xpose.msra.mxu0 0.0
        %2396 = vmatprep.subr.mxu0 0.0
        %2397 = vmatpush1.xpose.msra.mxu0 0.0
        %2398 = vmatprep.subr.mxu0 0.0
        %2399 = vmatpush1.xpose.msra.mxu0 0.0
        %2400 = vmatprep.subr.mxu0 0.0
        %2401 = vmatpush1.xpose.msra.mxu0 0.0
        %2402 = vmatprep.subr.mxu0 0.0
        %2403 = vmatpush1.xpose.msra.mxu0 0.0
        %2404 = vmatprep.subr.mxu0 0.0
        %2405 = vmatpush1.xpose.msra.mxu0 0.0
        %2406 = vmatprep.subr.mxu0 0.0
        %2407 = vmatpush1.xpose.msra.mxu0 0.0
        %2408 = vmatprep.subr.mxu0 0.0
        %2409 = vmatpush1.xpose.msra.mxu0 0.0
        %2410 = vmatprep.subr.mxu0 0.0
        %2411 = vmatpush1.xpose.msra.mxu0 0.0
        %2412 = vmatprep.subr.mxu0 0.0
        %2413 = vmatpush1.xpose.msra.mxu0 0.0
        %2414 = vmatprep.subr.mxu0 0.0
        %2415 = vmatpush1.xpose.msra.mxu0 0.0
        %2416 = vmatprep.subr.mxu0 0.0
        %2417 = vmatpush1.xpose.msra.mxu0 0.0
        %2418 = vmatprep.subr.mxu0 0.0
        %2419 = vmatpush1.xpose.msra.mxu0 0.0
        %2420 = vmatprep.subr.mxu0 0.0
        %2421 = vmatpush1.xpose.msra.mxu0 0.0
        %2422 = vmatprep.subr.mxu0 0.0
        %2423 = vmatpush1.xpose.msra.mxu0 0.0
        %2424 = vmatprep.subr.mxu0 0.0
        %2425 = vmatpush1.xpose.msra.mxu0 0.0
        %2426 = vmatprep.mubr.f32.mxu0 0.0
        %2427 = vmatmul.mubr.f32.gmra.mrb[0].mxu0 %v2330
        %v2428 = vpop.f32.mrb[0].mxu0
        %v2429 = vadd.f32 %v2121, %v2428
        %v2430 = vpop.f32.mrb[0].mxu0
        %2431 = vmatprep.mubr.f32.mxu0 0.0
        %2432 = vmatmul.mubr.f32.gmra.mrb[0].mxu0 %v2332
        %v2433 = vpop.f32.mrb[0].mxu0
        %v2434 = vadd.f32 %v2122, %v2433
        %v2435 = vpop.f32.mrb[0].mxu0
        %2436 = vmatprep.mubr.f32.mxu0 0.0
        %2437 = vmatmul.mubr.f32.gmra.mrb[0].mxu0 %v2334
        %v2438 = vpop.f32.mrb[0].mxu0
        %v2439 = vadd.f32 %v2123, %v2438
        %v2440 = vpop.f32.mrb[0].mxu0
        %2441 = vmatprep.mubr.f32.mxu0 0.0
        %2442 = vmatmul.mubr.f32.gmra.mrb[0].mxu0 %v2336
        %v2443 = vpop.f32.mrb[0].mxu0
        %v2444 = vadd.f32 %v2124, %v2443
        %v2445 = vpop.f32.mrb[0].mxu0
        %2446 = vmatprep.mubr.f32.mxu0 0.0
        %2447 = vmatmul.mubr.f32.gmra.mrb[0].mxu0 %v2338
        %v2448 = vpop.f32.mrb[0].mxu0
        %v2449 = vadd.f32 %v2125, %v2448
        %v2450 = vpop.f32.mrb[0].mxu0
        %2451 = vmatprep.mubr.f32.mxu0 0.0
        %2452 = vmatmul.mubr.f32.gmra.mrb[0].mxu0 %v2340
        %v2453 = vpop.f32.mrb[0].mxu0
        %v2454 = vadd.f32 %v2126, %v2453
        %v2455 = vpop.f32.mrb[0].mxu0
        %2456 = vmatprep.mubr.f32.mxu0 0.0
        %2457 = vmatmul.mubr.f32.gmra.mrb[0].mxu0 %v2342
        %v2458 = vpop.f32.mrb[0].mxu0
        %v2459 = vadd.f32 %v2127, %v2458
        %v2460 = vpop.f32.mrb[0].mxu0
        %2461 = vmatprep.mubr.f32.mxu0 0.0
        %2462 = vmatmul.mubr.f32.gmra.mrb[0].mxu0 %v2344
        %v2463 = vpop.f32.mrb[0].mxu0
        %v2464 = vadd.f32 %v2128, %v2463
        %v2465 = vpop.f32.mrb[0].mxu0
        %2466 = vdwg.mxu0
        %v2467 = vsel %vm808, %v2260, -inf
        %2468 = vmax.xlane.f32.xlu0 %v2467
        %v2469 = vpop.xlane.xlu0 %2468
        %v2470 = vsel %vm808, %v2265, -inf
        %2471 = vmax.xlane.f32.xlu0 %v2470
        %v2472 = vpop.xlane.xlu0 %2471
        %v2473 = vsel %vm808, %v2270, -inf
        %2474 = vmax.xlane.f32.xlu0 %v2473
        %v2475 = vpop.xlane.xlu0 %2474
        %v2476 = vsel %vm808, %v2275, -inf
        %2477 = vmax.xlane.f32.xlu0 %v2476
        %v2478 = vpop.xlane.xlu0 %2477
        %v2479 = vsel %vm808, %v2280, -inf
        %2480 = vmax.xlane.f32.xlu0 %v2479
        %v2481 = vpop.xlane.xlu0 %2480
        %v2482 = vsel %vm808, %v2285, -inf
        %2483 = vmax.xlane.f32.xlu0 %v2482
        %v2484 = vpop.xlane.xlu0 %2483
        %v2485 = vsel %vm808, %v2290, -inf
        %2486 = vmax.xlane.f32.xlu0 %v2485
        %v2487 = vpop.xlane.xlu0 %2486
        %v2488 = vsel %vm808, %v2295, -inf
        %2489 = vmax.xlane.f32.xlu0 %v2488
        %v2490 = vpop.xlane.xlu0 %2489
        %v2491 = vsel %vm808, %v2429, -inf
        %2492 = vmax.xlane.f32.xlu0 %v2491
        %v2493 = vpop.xlane.xlu0 %2492
        %v2494 = vsel %vm808, %v2434, -inf
        %2495 = vmax.xlane.f32.xlu0 %v2494
        %v2496 = vpop.xlane.xlu0 %2495
        %v2497 = vsel %vm808, %v2439, -inf
        %2498 = vmax.xlane.f32.xlu0 %v2497
        %v2499 = vpop.xlane.xlu0 %2498
        %v2500 = vsel %vm808, %v2444, -inf
        %2501 = vmax.xlane.f32.xlu0 %v2500
        %v2502 = vpop.xlane.xlu0 %2501
        %v2503 = vsel %vm808, %v2449, -inf
        %2504 = vmax.xlane.f32.xlu0 %v2503
        %v2505 = vpop.xlane.xlu0 %2504
        %v2506 = vsel %vm808, %v2454, -inf
        %2507 = vmax.xlane.f32.xlu0 %v2506
        %v2508 = vpop.xlane.xlu0 %2507
        %v2509 = vsel %vm808, %v2459, -inf
        %2510 = vmax.xlane.f32.xlu0 %v2509
        %v2511 = vpop.xlane.xlu0 %2510
        %v2512 = vsel %vm808, %v2464, -inf
        %2513 = vmax.xlane.f32.xlu0 %v2512
        %v2514 = vpop.xlane.xlu0 %2513
        %v2515 = vsub.f32 %v2260, %v2469
        %v2516 = vsub.f32 %v2265, %v2472
        %v2517 = vsub.f32 %v2270, %v2475
        %v2518 = vsub.f32 %v2275, %v2478
        %v2519 = vsub.f32 %v2280, %v2481
        %v2520 = vsub.f32 %v2285, %v2484
        %v2521 = vsub.f32 %v2290, %v2487
        %v2522 = vsub.f32 %v2295, %v2490
        %v2523 = vsub.f32 %v2429, %v2493
        %v2524 = vsub.f32 %v2434, %v2496
        %v2525 = vsub.f32 %v2439, %v2499
        %v2526 = vsub.f32 %v2444, %v2502
        %v2527 = vsub.f32 %v2449, %v2505
        %v2528 = vsub.f32 %v2454, %v2508
        %v2529 = vsub.f32 %v2459, %v2511
        %v2530 = vsub.f32 %v2464, %v2514
        %v2531 = vmul.f32 %v2515, 1.442695
        %v2532 = vpow.pop %v2531
        %v2533 = vmul.f32 %v2516, 1.442695
        %v2534 = vpow.pop %v2533
        %v2535 = vmul.f32 %v2517, 1.442695
        %v2536 = vpow.pop %v2535
        %v2537 = vmul.f32 %v2518, 1.442695
        %v2538 = vpow.pop %v2537
        %v2539 = vmul.f32 %v2519, 1.442695
        %v2540 = vpow.pop %v2539
        %v2541 = vmul.f32 %v2520, 1.442695
        %v2542 = vpow.pop %v2541
        %v2543 = vmul.f32 %v2521, 1.442695
        %v2544 = vpow.pop %v2543
        %v2545 = vmul.f32 %v2522, 1.442695
        %v2546 = vpow.pop %v2545
        %v2547 = vmul.f32 %v2523, 1.442695
        %v2548 = vpow.pop %v2547
        %v2549 = vmul.f32 %v2524, 1.442695
        %v2550 = vpow.pop %v2549
        %v2551 = vmul.f32 %v2525, 1.442695
        %v2552 = vpow.pop %v2551
        %v2553 = vmul.f32 %v2526, 1.442695
        %v2554 = vpow.pop %v2553
        %v2555 = vmul.f32 %v2527, 1.442695
        %v2556 = vpow.pop %v2555
        %v2557 = vmul.f32 %v2528, 1.442695
        %v2558 = vpow.pop %v2557
        %v2559 = vmul.f32 %v2529, 1.442695
        %v2560 = vpow.pop %v2559
        %v2561 = vmul.f32 %v2530, 1.442695
        %v2562 = vpow.pop %v2561
        %v2563 = vsel %vm808, %v2532, 0.0
        %2564 = vadd.xlane.f32.xlu0 %v2563
        %v2565 = vpop.xlane.xlu0 %2564
        %v2566 = vsel %vm808, %v2534, 0.0
        %2567 = vadd.xlane.f32.xlu0 %v2566
        %v2568 = vpop.xlane.xlu0 %2567
        %v2569 = vsel %vm808, %v2536, 0.0
        %2570 = vadd.xlane.f32.xlu0 %v2569
        %v2571 = vpop.xlane.xlu0 %2570
        %v2572 = vsel %vm808, %v2538, 0.0
        %2573 = vadd.xlane.f32.xlu0 %v2572
        %v2574 = vpop.xlane.xlu0 %2573
        %v2575 = vsel %vm808, %v2540, 0.0
        %2576 = vadd.xlane.f32.xlu0 %v2575
        %v2577 = vpop.xlane.xlu0 %2576
        %v2578 = vsel %vm808, %v2542, 0.0
        %2579 = vadd.xlane.f32.xlu0 %v2578
        %v2580 = vpop.xlane.xlu0 %2579
        %v2581 = vsel %vm808, %v2544, 0.0
        %2582 = vadd.xlane.f32.xlu0 %v2581
        %v2583 = vpop.xlane.xlu0 %2582
        %v2584 = vsel %vm808, %v2546, 0.0
        %2585 = vadd.xlane.f32.xlu0 %v2584
        %v2586 = vpop.xlane.xlu0 %2585
        %v2587 = vsel %vm808, %v2548, 0.0
        %2588 = vadd.xlane.f32.xlu0 %v2587
        %v2589 = vpop.xlane.xlu0 %2588
        %v2590 = vsel %vm808, %v2550, 0.0
        %2591 = vadd.xlane.f32.xlu0 %v2590
        %v2592 = vpop.xlane.xlu0 %2591
        %v2593 = vsel %vm808, %v2552, 0.0
        %2594 = vadd.xlane.f32.xlu0 %v2593
        %v2595 = vpop.xlane.xlu0 %2594
        %v2596 = vsel %vm808, %v2554, 0.0
        %2597 = vadd.xlane.f32.xlu0 %v2596
        %v2598 = vpop.xlane.xlu0 %2597
        %v2599 = vsel %vm808, %v2556, 0.0
        %2600 = vadd.xlane.f32.xlu0 %v2599
        %v2601 = vpop.xlane.xlu0 %2600
        %v2602 = vsel %vm808, %v2558, 0.0
        %2603 = vadd.xlane.f32.xlu0 %v2602
        %v2604 = vpop.xlane.xlu0 %2603
        %v2605 = vsel %vm808, %v2560, 0.0
        %2606 = vadd.xlane.f32.xlu0 %v2605
        %v2607 = vpop.xlane.xlu0 %2606
        %v2608 = vsel %vm808, %v2562, 0.0
        %2609 = vadd.xlane.f32.xlu0 %v2608
        %v2610 = vpop.xlane.xlu0 %2609
        %2611 = vrot.lane.b32.xlu0 %v399, 48
        %v2612 = vpop.permute.xlu0 %2611
        %2613 = vrot.lane.b32.xlu0 %v404, 48
        %v2614 = vpop.permute.xlu0 %2613
        %2615 = vrot.lane.b32.xlu0 %v409, 48
        %v2616 = vpop.permute.xlu0 %2615
        %2617 = vrot.lane.b32.xlu0 %v414, 48
        %v2618 = vpop.permute.xlu0 %2617
        %2619 = vrot.lane.b32.xlu0 %v419, 48
        %v2620 = vpop.permute.xlu0 %2619
        %2621 = vrot.lane.b32.xlu0 %v424, 48
        %v2622 = vpop.permute.xlu0 %2621
        %2623 = vrot.lane.b32.xlu0 %v429, 48
        %v2624 = vpop.permute.xlu0 %2623
        %2625 = vrot.lane.b32.xlu0 %v434, 48
        %v2626 = vpop.permute.xlu0 %2625
        %v2636 = vsel %vm808, %v2532, 0
        %v2639 = vsel %vm808, %v2534, 0
        %v2642 = vsel %vm808, %v2536, 0
        %v2645 = vsel %vm808, %v2538, 0
        %v2648 = vsel %vm808, %v2540, 0
        %v2651 = vsel %vm808, %v2542, 0
        %v2654 = vsel %vm808, %v2544, 0
        %v2657 = vsel %vm808, %v2546, 0
        %2659 = vmatprep.subr.mxu0 0.0
        %2660 = vmatpush1.msra.mxu0 %v2612
        %2661 = vmatprep.subr.mxu0 0.0
        %2662 = vmatpush1.msra.mxu0 %v2614
        %2663 = vmatprep.subr.mxu0 0.0
        %2664 = vmatpush1.msra.mxu0 %v2616
        %2665 = vmatprep.subr.mxu0 0.0
        %2666 = vmatpush1.msra.mxu0 %v2618
        %2667 = vmatprep.subr.mxu0 0.0
        %2668 = vmatpush1.msra.mxu0 %v2620
        %2669 = vmatprep.subr.mxu0 0.0
        %2670 = vmatpush1.msra.mxu0 %v2622
        %2671 = vmatprep.subr.mxu0 0.0
        %2672 = vmatpush1.msra.mxu0 %v2624
        %2673 = vmatprep.subr.mxu0 0.0
        %2674 = vmatpush1.msra.mxu0 %v2626
        %2675 = vmatprep.subr.mxu0 0.0
        %2676 = vmatpush1.msra.mxu0 0.0
        %2677 = vmatprep.subr.mxu0 0.0
        %2678 = vmatpush1.msra.mxu0 0.0
        %2679 = vmatprep.subr.mxu0 0.0
        %2680 = vmatpush1.msra.mxu0 0.0
        %2681 = vmatprep.subr.mxu0 0.0
        %2682 = vmatpush1.msra.mxu0 0.0
        %2683 = vmatprep.subr.mxu0 0.0
        %2684 = vmatpush1.msra.mxu0 0.0
        %2685 = vmatprep.subr.mxu0 0.0
        %2686 = vmatpush1.msra.mxu0 0.0
        %2687 = vmatprep.subr.mxu0 0.0
        %2688 = vmatpush1.msra.mxu0 0.0
        %2689 = vmatprep.subr.mxu0 0.0
        %2690 = vmatpush1.msra.mxu0 0.0
        %2691 = vmatprep.subr.mxu0 0.0
        %2692 = vmatpush1.msra.mxu0 0.0
        %2693 = vmatprep.subr.mxu0 0.0
        %2694 = vmatpush1.msra.mxu0 0.0
        %2695 = vmatprep.subr.mxu0 0.0
        %2696 = vmatpush1.msra.mxu0 0.0
        %2697 = vmatprep.subr.mxu0 0.0
        %2698 = vmatpush1.msra.mxu0 0.0
        %2699 = vmatprep.subr.mxu0 0.0
        %2700 = vmatpush1.msra.mxu0 0.0
        %2701 = vmatprep.subr.mxu0 0.0
        %2702 = vmatpush1.msra.mxu0 0.0
        %2703 = vmatprep.subr.mxu0 0.0
        %2704 = vmatpush1.msra.mxu0 0.0
        %2705 = vmatprep.subr.mxu0 0.0
        %2706 = vmatpush1.msra.mxu0 0.0
        %2707 = vmatprep.subr.mxu0 0.0
        %2708 = vmatpush1.msra.mxu0 0.0
        %2709 = vmatprep.subr.mxu0 0.0
        %2710 = vmatpush1.msra.mxu0 0.0
        %2711 = vmatprep.subr.mxu0 0.0
        %2712 = vmatpush1.msra.mxu0 0.0
        %2713 = vmatprep.subr.mxu0 0.0
        %2714 = vmatpush1.msra.mxu0 0.0
        %2715 = vmatprep.subr.mxu0 0.0
        %2716 = vmatpush1.msra.mxu0 0.0
        %2717 = vmatprep.subr.mxu0 0.0
        %2718 = vmatpush1.msra.mxu0 0.0
        %2719 = vmatprep.subr.mxu0 0.0
        %2720 = vmatpush1.msra.mxu0 0.0
        %2721 = vmatprep.subr.mxu0 0.0
        %2722 = vmatpush1.msra.mxu0 0.0
        %2723 = vmatprep.mubr.f32.mxu0 0.0
        %2724 = vmatmul.mubr.f32.gmra.mrb[0].mxu0 %v2636
        %v2725 = vpop.f32.mrb[0].mxu0
        %v2726 = vadd.f32 0.0, %v2725
        %v2727 = vpop.f32.mrb[0].mxu0
        %2728 = vmatprep.mubr.f32.mxu0 0.0
        %2729 = vmatmul.mubr.f32.gmra.mrb[0].mxu0 %v2639
        %v2730 = vpop.f32.mrb[0].mxu0
        %v2731 = vadd.f32 0.0, %v2730
        %v2732 = vpop.f32.mrb[0].mxu0
        %2733 = vmatprep.mubr.f32.mxu0 0.0
        %2734 = vmatmul.mubr.f32.gmra.mrb[0].mxu0 %v2642
        %v2735 = vpop.f32.mrb[0].mxu0
        %v2736 = vadd.f32 0.0, %v2735
        %v2737 = vpop.f32.mrb[0].mxu0
        %2738 = vmatprep.mubr.f32.mxu0 0.0
        %2739 = vmatmul.mubr.f32.gmra.mrb[0].mxu0 %v2645
        %v2740 = vpop.f32.mrb[0].mxu0
        %v2741 = vadd.f32 0.0, %v2740
        %v2742 = vpop.f32.mrb[0].mxu0
        %2743 = vmatprep.mubr.f32.mxu0 0.0
        %2744 = vmatmul.mubr.f32.gmra.mrb[0].mxu0 %v2648
        %v2745 = vpop.f32.mrb[0].mxu0
        %v2746 = vadd.f32 0.0, %v2745
        %v2747 = vpop.f32.mrb[0].mxu0
        %2748 = vmatprep.mubr.f32.mxu0 0.0
        %2749 = vmatmul.mubr.f32.gmra.mrb[0].mxu0 %v2651
        %v2750 = vpop.f32.mrb[0].mxu0
        %v2751 = vadd.f32 0.0, %v2750
        %v2752 = vpop.f32.mrb[0].mxu0
        %2753 = vmatprep.mubr.f32.mxu0 0.0
        %2754 = vmatmul.mubr.f32.gmra.mrb[0].mxu0 %v2654
        %v2755 = vpop.f32.mrb[0].mxu0
        %v2756 = vadd.f32 0.0, %v2755
        %v2757 = vpop.f32.mrb[0].mxu0
        %2758 = vmatprep.mubr.f32.mxu0 0.0
        %2759 = vmatmul.mubr.f32.gmra.mrb[0].mxu0 %v2657
        %v2760 = vpop.f32.mrb[0].mxu0
        %v2761 = vadd.f32 0.0, %v2760
        %v2762 = vpop.f32.mrb[0].mxu0
        %2763 = vdwg.mxu0
        %2764 = vrot.lane.b32.xlu0 %v439, 48
        %v2765 = vpop.permute.xlu0 %2764
        %2766 = vrot.lane.b32.xlu0 %v444, 48
        %v2767 = vpop.permute.xlu0 %2766
        %2768 = vrot.lane.b32.xlu0 %v449, 48
        %v2769 = vpop.permute.xlu0 %2768
        %2770 = vrot.lane.b32.xlu0 %v454, 48
        %v2771 = vpop.permute.xlu0 %2770
        %2772 = vrot.lane.b32.xlu0 %v459, 48
        %v2773 = vpop.permute.xlu0 %2772
        %2774 = vrot.lane.b32.xlu0 %v464, 48
        %v2775 = vpop.permute.xlu0 %2774
        %2776 = vrot.lane.b32.xlu0 %v469, 48
        %v2777 = vpop.permute.xlu0 %2776
        %2778 = vrot.lane.b32.xlu0 %v474, 48
        %v2779 = vpop.permute.xlu0 %2778
        %v2789 = vsel %vm808, %v2548, 0
        %v2792 = vsel %vm808, %v2550, 0
        %v2795 = vsel %vm808, %v2552, 0
        %v2798 = vsel %vm808, %v2554, 0
        %v2801 = vsel %vm808, %v2556, 0
        %v2804 = vsel %vm808, %v2558, 0
        %v2807 = vsel %vm808, %v2560, 0
        %v2810 = vsel %vm808, %v2562, 0
        %2812 = vmatprep.subr.mxu0 0.0
        %2813 = vmatpush1.msra.mxu0 %v2765
        %2814 = vmatprep.subr.mxu0 0.0
        %2815 = vmatpush1.msra.mxu0 %v2767
        %2816 = vmatprep.subr.mxu0 0.0
        %2817 = vmatpush1.msra.mxu0 %v2769
        %2818 = vmatprep.subr.mxu0 0.0
        %2819 = vmatpush1.msra.mxu0 %v2771
        %2820 = vmatprep.subr.mxu0 0.0
        %2821 = vmatpush1.msra.mxu0 %v2773
        %2822 = vmatprep.subr.mxu0 0.0
        %2823 = vmatpush1.msra.mxu0 %v2775
        %2824 = vmatprep.subr.mxu0 0.0
        %2825 = vmatpush1.msra.mxu0 %v2777
        %2826 = vmatprep.subr.mxu0 0.0
        %2827 = vmatpush1.msra.mxu0 %v2779
        %2828 = vmatprep.subr.mxu0 0.0
        %2829 = vmatpush1.msra.mxu0 0.0
        %2830 = vmatprep.subr.mxu0 0.0
        %2831 = vmatpush1.msra.mxu0 0.0
        %2832 = vmatprep.subr.mxu0 0.0
        %2833 = vmatpush1.msra.mxu0 0.0
        %2834 = vmatprep.subr.mxu0 0.0
        %2835 = vmatpush1.msra.mxu0 0.0
        %2836 = vmatprep.subr.mxu0 0.0
        %2837 = vmatpush1.msra.mxu0 0.0
        %2838 = vmatprep.subr.mxu0 0.0
        %2839 = vmatpush1.msra.mxu0 0.0
        %2840 = vmatprep.subr.mxu0 0.0
        %2841 = vmatpush1.msra.mxu0 0.0
        %2842 = vmatprep.subr.mxu0 0.0
        %2843 = vmatpush1.msra.mxu0 0.0
        %2844 = vmatprep.subr.mxu0 0.0
        %2845 = vmatpush1.msra.mxu0 0.0
        %2846 = vmatprep.subr.mxu0 0.0
        %2847 = vmatpush1.msra.mxu0 0.0
        %2848 = vmatprep.subr.mxu0 0.0
        %2849 = vmatpush1.msra.mxu0 0.0
        %2850 = vmatprep.subr.mxu0 0.0
        %2851 = vmatpush1.msra.mxu0 0.0
        %2852 = vmatprep.subr.mxu0 0.0
        %2853 = vmatpush1.msra.mxu0 0.0
        %2854 = vmatprep.subr.mxu0 0.0
        %2855 = vmatpush1.msra.mxu0 0.0
        %2856 = vmatprep.subr.mxu0 0.0
        %2857 = vmatpush1.msra.mxu0 0.0
        %2858 = vmatprep.subr.mxu0 0.0
        %2859 = vmatpush1.msra.mxu0 0.0
        %2860 = vmatprep.subr.mxu0 0.0
        %2861 = vmatpush1.msra.mxu0 0.0
        %2862 = vmatprep.subr.mxu0 0.0
        %2863 = vmatpush1.msra.mxu0 0.0
        %2864 = vmatprep.subr.mxu0 0.0
        %2865 = vmatpush1.msra.mxu0 0.0
        %2866 = vmatprep.subr.mxu0 0.0
        %2867 = vmatpush1.msra.mxu0 0.0
        %2868 = vmatprep.subr.mxu0 0.0
        %2869 = vmatpush1.msra.mxu0 0.0
        %2870 = vmatprep.subr.mxu0 0.0
        %2871 = vmatpush1.msra.mxu0 0.0
        %2872 = vmatprep.subr.mxu0 0.0
        %2873 = vmatpush1.msra.mxu0 0.0
        %2874 = vmatprep.subr.mxu0 0.0
        %2875 = vmatpush1.msra.mxu0 0.0
        %2876 = vmatprep.mubr.f32.mxu0 0.0
        %2877 = vmatmul.mubr.f32.gmra.mrb[0].mxu0 %v2789
        %v2878 = vpop.f32.mrb[0].mxu0
        %v2879 = vadd.f32 0.0, %v2878
        %v2880 = vpop.f32.mrb[0].mxu0
        %2881 = vmatprep.mubr.f32.mxu0 0.0
        %2882 = vmatmul.mubr.f32.gmra.mrb[0].mxu0 %v2792
        %v2883 = vpop.f32.mrb[0].mxu0
        %v2884 = vadd.f32 0.0, %v2883
        %v2885 = vpop.f32.mrb[0].mxu0
        %2886 = vmatprep.mubr.f32.mxu0 0.0
        %2887 = vmatmul.mubr.f32.gmra.mrb[0].mxu0 %v2795
        %v2888 = vpop.f32.mrb[0].mxu0
        %v2889 = vadd.f32 0.0, %v2888
        %v2890 = vpop.f32.mrb[0].mxu0
        %2891 = vmatprep.mubr.f32.mxu0 0.0
        %2892 = vmatmul.mubr.f32.gmra.mrb[0].mxu0 %v2798
        %v2893 = vpop.f32.mrb[0].mxu0
        %v2894 = vadd.f32 0.0, %v2893
        %v2895 = vpop.f32.mrb[0].mxu0
        %2896 = vmatprep.mubr.f32.mxu0 0.0
        %2897 = vmatmul.mubr.f32.gmra.mrb[0].mxu0 %v2801
        %v2898 = vpop.f32.mrb[0].mxu0
        %v2899 = vadd.f32 0.0, %v2898
        %v2900 = vpop.f32.mrb[0].mxu0
        %2901 = vmatprep.mubr.f32.mxu0 0.0
        %2902 = vmatmul.mubr.f32.gmra.mrb[0].mxu0 %v2804
        %v2903 = vpop.f32.mrb[0].mxu0
        %v2904 = vadd.f32 0.0, %v2903
        %v2905 = vpop.f32.mrb[0].mxu0
        %2906 = vmatprep.mubr.f32.mxu0 0.0
        %2907 = vmatmul.mubr.f32.gmra.mrb[0].mxu0 %v2807
        %v2908 = vpop.f32.mrb[0].mxu0
        %v2909 = vadd.f32 0.0, %v2908
        %v2910 = vpop.f32.mrb[0].mxu0
        %2911 = vmatprep.mubr.f32.mxu0 0.0
        %2912 = vmatmul.mubr.f32.gmra.mrb[0].mxu0 %v2810
        %v2913 = vpop.f32.mrb[0].mxu0
        %v2914 = vadd.f32 0.0, %v2913
        %v2915 = vpop.f32.mrb[0].mxu0
        %2916 = vdwg.mxu0
        %v2917 = vrcp.pop %v2565
        %v2918 = vrcp.pop %v2568
        %v2919 = vrcp.pop %v2571
        %v2920 = vrcp.pop %v2574
        %v2921 = vrcp.pop %v2577
        %v2922 = vrcp.pop %v2580
        %v2923 = vrcp.pop %v2583
        %v2924 = vrcp.pop %v2586
        %v2925 = vrcp.pop %v2589
        %v2926 = vrcp.pop %v2592
        %v2927 = vrcp.pop %v2595
        %v2928 = vrcp.pop %v2598
        %v2929 = vrcp.pop %v2601
        %v2930 = vrcp.pop %v2604
        %v2931 = vrcp.pop %v2607
        %v2932 = vrcp.pop %v2610
        %v2933 = vmul.f32 %v2726, %v2917
        %v2934 = vmul.f32 %v2731, %v2918
        %v2935 = vmul.f32 %v2736, %v2919
        %v2936 = vmul.f32 %v2741, %v2920
        %v2937 = vmul.f32 %v2746, %v2921
        %v2938 = vmul.f32 %v2751, %v2922
        %v2939 = vmul.f32 %v2756, %v2923
        %v2940 = vmul.f32 %v2761, %v2924
        %v2941 = vmul.f32 %v2879, %v2925
        %v2942 = vmul.f32 %v2884, %v2926
        %v2943 = vmul.f32 %v2889, %v2927
        %v2944 = vmul.f32 %v2894, %v2928
        %v2945 = vmul.f32 %v2899, %v2929
        %v2946 = vmul.f32 %v2904, %v2930
        %v2947 = vmul.f32 %v2909, %v2931
        %v2948 = vmul.f32 %v2914, %v2932
        %s2949 = scalar_lea.vmem %s3, 192
        %v2950 = vld [vmem:[%s2949] sm:$0xff]
        %v2951 = vld [vmem:[%s2949 + $0x8] sm:$0xff]
        %v2952 = vld [vmem:[%s2949 + $0x10] sm:$0xff]
        %v2953 = vld [vmem:[%s2949 + $0x18] sm:$0xff]
        %v2954 = vld [vmem:[%s2949 + $0x20] sm:$0xff]
        %v2955 = vld [vmem:[%s2949 + $0x28] sm:$0xff]
        %v2956 = vld [vmem:[%s2949 + $0x30] sm:$0xff]
        %v2957 = vld [vmem:[%s2949 + $0x38] sm:$0xff]
        %2958 = vrot.lane.b32.xlu0 %v399, 104
        %v2959 = vpop.permute.xlu0 %2958
        %2960 = vrot.lane.b32.xlu0 %v404, 104
        %v2961 = vpop.permute.xlu0 %2960
        %2962 = vrot.lane.b32.xlu0 %v409, 104
        %v2963 = vpop.permute.xlu0 %2962
        %2964 = vrot.lane.b32.xlu0 %v414, 104
        %v2965 = vpop.permute.xlu0 %2964
        %2966 = vrot.lane.b32.xlu0 %v419, 104
        %v2967 = vpop.permute.xlu0 %2966
        %2968 = vrot.lane.b32.xlu0 %v424, 104
        %v2969 = vpop.permute.xlu0 %2968
        %2970 = vrot.lane.b32.xlu0 %v429, 104
        %v2971 = vpop.permute.xlu0 %2970
        %2972 = vrot.lane.b32.xlu0 %v434, 104
        %v2973 = vpop.permute.xlu0 %2972
        %2974 = vrot.lane.b32.xlu0 %v399, 72
        %v2975 = vpop.permute.xlu0 %2974
        %2976 = vrot.lane.b32.xlu0 %v404, 72
        %v2977 = vpop.permute.xlu0 %2976
        %2978 = vrot.lane.b32.xlu0 %v409, 72
        %v2979 = vpop.permute.xlu0 %2978
        %2980 = vrot.lane.b32.xlu0 %v414, 72
        %v2981 = vpop.permute.xlu0 %2980
        %2982 = vrot.lane.b32.xlu0 %v419, 72
        %v2983 = vpop.permute.xlu0 %2982
        %2984 = vrot.lane.b32.xlu0 %v424, 72
        %v2985 = vpop.permute.xlu0 %2984
        %2986 = vrot.lane.b32.xlu0 %v429, 72
        %v2987 = vpop.permute.xlu0 %2986
        %2988 = vrot.lane.b32.xlu0 %v434, 72
        %v2989 = vpop.permute.xlu0 %2988
        %v2990 = vsel %vm509, %v2959, 0
        %v2992 = vsel %vm509, %v2961, 0
        %v2994 = vsel %vm509, %v2963, 0
        %v2996 = vsel %vm509, %v2965, 0
        %v2998 = vsel %vm509, %v2967, 0
        %v3000 = vsel %vm509, %v2969, 0
        %v3002 = vsel %vm509, %v2971, 0
        %v3004 = vsel %vm509, %v2973, 0
        %v3006 = vsel %vm509, %v2975, 0
        %v3008 = vsel %vm509, %v2977, 0
        %v3010 = vsel %vm509, %v2979, 0
        %v3012 = vsel %vm509, %v2981, 0
        %v3014 = vsel %vm509, %v2983, 0
        %v3016 = vsel %vm509, %v2985, 0
        %v3018 = vsel %vm509, %v2987, 0
        %v3020 = vsel %vm509, %v2989, 0
        %3022 = vmatprep.subr.mxu0 0.0
        %3023 = vmatpush1.xpose.msra.mxu0 %v3006
        %3024 = vmatprep.subr.mxu0 0.0
        %3025 = vmatpush1.xpose.msra.mxu0 %v3008
        %3026 = vmatprep.subr.mxu0 0.0
        %3027 = vmatpush1.xpose.msra.mxu0 %v3010
        %3028 = vmatprep.subr.mxu0 0.0
        %3029 = vmatpush1.xpose.msra.mxu0 %v3012
        %3030 = vmatprep.subr.mxu0 0.0
        %3031 = vmatpush1.xpose.msra.mxu0 %v3014
        %3032 = vmatprep.subr.mxu0 0.0
        %3033 = vmatpush1.xpose.msra.mxu0 %v3016
        %3034 = vmatprep.subr.mxu0 0.0
        %3035 = vmatpush1.xpose.msra.mxu0 %v3018
        %3036 = vmatprep.subr.mxu0 0.0
        %3037 = vmatpush1.xpose.msra.mxu0 %v3020
        %3038 = vmatprep.subr.mxu0 0.0
        %3039 = vmatpush1.xpose.msra.mxu0 0.0
        %3040 = vmatprep.subr.mxu0 0.0
        %3041 = vmatpush1.xpose.msra.mxu0 0.0
        %3042 = vmatprep.subr.mxu0 0.0
        %3043 = vmatpush1.xpose.msra.mxu0 0.0
        %3044 = vmatprep.subr.mxu0 0.0
        %3045 = vmatpush1.xpose.msra.mxu0 0.0
        %3046 = vmatprep.subr.mxu0 0.0
        %3047 = vmatpush1.xpose.msra.mxu0 0.0
        %3048 = vmatprep.subr.mxu0 0.0
        %3049 = vmatpush1.xpose.msra.mxu0 0.0
        %3050 = vmatprep.subr.mxu0 0.0
        %3051 = vmatpush1.xpose.msra.mxu0 0.0
        %3052 = vmatprep.subr.mxu0 0.0
        %3053 = vmatpush1.xpose.msra.mxu0 0.0
        %3054 = vmatprep.subr.mxu0 0.0
        %3055 = vmatpush1.xpose.msra.mxu0 0.0
        %3056 = vmatprep.subr.mxu0 0.0
        %3057 = vmatpush1.xpose.msra.mxu0 0.0
        %3058 = vmatprep.subr.mxu0 0.0
        %3059 = vmatpush1.xpose.msra.mxu0 0.0
        %3060 = vmatprep.subr.mxu0 0.0
        %3061 = vmatpush1.xpose.msra.mxu0 0.0
        %3062 = vmatprep.subr.mxu0 0.0
        %3063 = vmatpush1.xpose.msra.mxu0 0.0
        %3064 = vmatprep.subr.mxu0 0.0
        %3065 = vmatpush1.xpose.msra.mxu0 0.0
        %3066 = vmatprep.subr.mxu0 0.0
        %3067 = vmatpush1.xpose.msra.mxu0 0.0
        %3068 = vmatprep.subr.mxu0 0.0
        %3069 = vmatpush1.xpose.msra.mxu0 0.0
        %3070 = vmatprep.subr.mxu0 0.0
        %3071 = vmatpush1.xpose.msra.mxu0 0.0
        %3072 = vmatprep.subr.mxu0 0.0
        %3073 = vmatpush1.xpose.msra.mxu0 0.0
        %3074 = vmatprep.subr.mxu0 0.0
        %3075 = vmatpush1.xpose.msra.mxu0 0.0
        %3076 = vmatprep.subr.mxu0 0.0
        %3077 = vmatpush1.xpose.msra.mxu0 0.0
        %3078 = vmatprep.subr.mxu0 0.0
        %3079 = vmatpush1.xpose.msra.mxu0 0.0
        %3080 = vmatprep.subr.mxu0 0.0
        %3081 = vmatpush1.xpose.msra.mxu0 0.0
        %3082 = vmatprep.subr.mxu0 0.0
        %3083 = vmatpush1.xpose.msra.mxu0 0.0
        %3084 = vmatprep.subr.mxu0 0.0
        %3085 = vmatpush1.xpose.msra.mxu0 0.0
        %3086 = vmatprep.mubr.f32.mxu0 0.0
        %3087 = vmatmul.mubr.f32.gmra.mrb[0].mxu0 %v2990
        %v3088 = vpop.f32.mrb[0].mxu0
        %v3089 = vadd.f32 %v2950, %v3088
        %v3090 = vpop.f32.mrb[0].mxu0
        %3091 = vmatprep.mubr.f32.mxu0 0.0
        %3092 = vmatmul.mubr.f32.gmra.mrb[0].mxu0 %v2992
        %v3093 = vpop.f32.mrb[0].mxu0
        %v3094 = vadd.f32 %v2951, %v3093
        %v3095 = vpop.f32.mrb[0].mxu0
        %3096 = vmatprep.mubr.f32.mxu0 0.0
        %3097 = vmatmul.mubr.f32.gmra.mrb[0].mxu0 %v2994
        %v3098 = vpop.f32.mrb[0].mxu0
        %v3099 = vadd.f32 %v2952, %v3098
        %v3100 = vpop.f32.mrb[0].mxu0
        %3101 = vmatprep.mubr.f32.mxu0 0.0
        %3102 = vmatmul.mubr.f32.gmra.mrb[0].mxu0 %v2996
        %v3103 = vpop.f32.mrb[0].mxu0
        %v3104 = vadd.f32 %v2953, %v3103
        %v3105 = vpop.f32.mrb[0].mxu0
        %3106 = vmatprep.mubr.f32.mxu0 0.0
        %3107 = vmatmul.mubr.f32.gmra.mrb[0].mxu0 %v2998
        %v3108 = vpop.f32.mrb[0].mxu0
        %v3109 = vadd.f32 %v2954, %v3108
        %v3110 = vpop.f32.mrb[0].mxu0
        %3111 = vmatprep.mubr.f32.mxu0 0.0
        %3112 = vmatmul.mubr.f32.gmra.mrb[0].mxu0 %v3000
        %v3113 = vpop.f32.mrb[0].mxu0
        %v3114 = vadd.f32 %v2955, %v3113
        %v3115 = vpop.f32.mrb[0].mxu0
        %3116 = vmatprep.mubr.f32.mxu0 0.0
        %3117 = vmatmul.mubr.f32.gmra.mrb[0].mxu0 %v3002
        %v3118 = vpop.f32.mrb[0].mxu0
        %v3119 = vadd.f32 %v2956, %v3118
        %v3120 = vpop.f32.mrb[0].mxu0
        %3121 = vmatprep.mubr.f32.mxu0 0.0
        %3122 = vmatmul.mubr.f32.gmra.mrb[0].mxu0 %v3004
        %v3123 = vpop.f32.mrb[0].mxu0
        %v3124 = vadd.f32 %v2957, %v3123
        %v3125 = vpop.f32.mrb[0].mxu0
        %3126 = vdwg.mxu0
        %3127 = vrot.lane.b32.xlu0 %v439, 104
        %v3128 = vpop.permute.xlu0 %3127
        %3129 = vrot.lane.b32.xlu0 %v444, 104
        %v3130 = vpop.permute.xlu0 %3129
        %3131 = vrot.lane.b32.xlu0 %v449, 104
        %v3132 = vpop.permute.xlu0 %3131
        %3133 = vrot.lane.b32.xlu0 %v454, 104
        %v3134 = vpop.permute.xlu0 %3133
        %3135 = vrot.lane.b32.xlu0 %v459, 104
        %v3136 = vpop.permute.xlu0 %3135
        %3137 = vrot.lane.b32.xlu0 %v464, 104
        %v3138 = vpop.permute.xlu0 %3137
        %3139 = vrot.lane.b32.xlu0 %v469, 104
        %v3140 = vpop.permute.xlu0 %3139
        %3141 = vrot.lane.b32.xlu0 %v474, 104
        %v3142 = vpop.permute.xlu0 %3141
        %3143 = vrot.lane.b32.xlu0 %v439, 72
        %v3144 = vpop.permute.xlu0 %3143
        %3145 = vrot.lane.b32.xlu0 %v444, 72
        %v3146 = vpop.permute.xlu0 %3145
        %3147 = vrot.lane.b32.xlu0 %v449, 72
        %v3148 = vpop.permute.xlu0 %3147
        %3149 = vrot.lane.b32.xlu0 %v454, 72
        %v3150 = vpop.permute.xlu0 %3149
        %3151 = vrot.lane.b32.xlu0 %v459, 72
        %v3152 = vpop.permute.xlu0 %3151
        %3153 = vrot.lane.b32.xlu0 %v464, 72
        %v3154 = vpop.permute.xlu0 %3153
        %3155 = vrot.lane.b32.xlu0 %v469, 72
        %v3156 = vpop.permute.xlu0 %3155
        %3157 = vrot.lane.b32.xlu0 %v474, 72
        %v3158 = vpop.permute.xlu0 %3157
        %v3159 = vsel %vm509, %v3128, 0
        %v3161 = vsel %vm509, %v3130, 0
        %v3163 = vsel %vm509, %v3132, 0
        %v3165 = vsel %vm509, %v3134, 0
        %v3167 = vsel %vm509, %v3136, 0
        %v3169 = vsel %vm509, %v3138, 0
        %v3171 = vsel %vm509, %v3140, 0
        %v3173 = vsel %vm509, %v3142, 0
        %v3175 = vsel %vm509, %v3144, 0
        %v3177 = vsel %vm509, %v3146, 0
        %v3179 = vsel %vm509, %v3148, 0
        %v3181 = vsel %vm509, %v3150, 0
        %v3183 = vsel %vm509, %v3152, 0
        %v3185 = vsel %vm509, %v3154, 0
        %v3187 = vsel %vm509, %v3156, 0
        %v3189 = vsel %vm509, %v3158, 0
        %3191 = vmatprep.subr.mxu0 0.0
        %3192 = vmatpush1.xpose.msra.mxu0 %v3175
        %3193 = vmatprep.subr.mxu0 0.0
        %3194 = vmatpush1.xpose.msra.mxu0 %v3177
        %3195 = vmatprep.subr.mxu0 0.0
        %3196 = vmatpush1.xpose.msra.mxu0 %v3179
        %3197 = vmatprep.subr.mxu0 0.0
        %3198 = vmatpush1.xpose.msra.mxu0 %v3181
        %3199 = vmatprep.subr.mxu0 0.0
        %3200 = vmatpush1.xpose.msra.mxu0 %v3183
        %3201 = vmatprep.subr.mxu0 0.0
        %3202 = vmatpush1.xpose.msra.mxu0 %v3185
        %3203 = vmatprep.subr.mxu0 0.0
        %3204 = vmatpush1.xpose.msra.mxu0 %v3187
        %3205 = vmatprep.subr.mxu0 0.0
        %3206 = vmatpush1.xpose.msra.mxu0 %v3189
        %3207 = vmatprep.subr.mxu0 0.0
        %3208 = vmatpush1.xpose.msra.mxu0 0.0
        %3209 = vmatprep.subr.mxu0 0.0
        %3210 = vmatpush1.xpose.msra.mxu0 0.0
        %3211 = vmatprep.subr.mxu0 0.0
        %3212 = vmatpush1.xpose.msra.mxu0 0.0
        %3213 = vmatprep.subr.mxu0 0.0
        %3214 = vmatpush1.xpose.msra.mxu0 0.0
        %3215 = vmatprep.subr.mxu0 0.0
        %3216 = vmatpush1.xpose.msra.mxu0 0.0
        %3217 = vmatprep.subr.mxu0 0.0
        %3218 = vmatpush1.xpose.msra.mxu0 0.0
        %3219 = vmatprep.subr.mxu0 0.0
        %3220 = vmatpush1.xpose.msra.mxu0 0.0
        %3221 = vmatprep.subr.mxu0 0.0
        %3222 = vmatpush1.xpose.msra.mxu0 0.0
        %3223 = vmatprep.subr.mxu0 0.0
        %3224 = vmatpush1.xpose.msra.mxu0 0.0
        %3225 = vmatprep.subr.mxu0 0.0
        %3226 = vmatpush1.xpose.msra.mxu0 0.0
        %3227 = vmatprep.subr.mxu0 0.0
        %3228 = vmatpush1.xpose.msra.mxu0 0.0
        %3229 = vmatprep.subr.mxu0 0.0
        %3230 = vmatpush1.xpose.msra.mxu0 0.0
        %3231 = vmatprep.subr.mxu0 0.0
        %3232 = vmatpush1.xpose.msra.mxu0 0.0
        %3233 = vmatprep.subr.mxu0 0.0
        %3234 = vmatpush1.xpose.msra.mxu0 0.0
        %3235 = vmatprep.subr.mxu0 0.0
        %3236 = vmatpush1.xpose.msra.mxu0 0.0
        %3237 = vmatprep.subr.mxu0 0.0
        %3238 = vmatpush1.xpose.msra.mxu0 0.0
        %3239 = vmatprep.subr.mxu0 0.0
        %3240 = vmatpush1.xpose.msra.mxu0 0.0
        %3241 = vmatprep.subr.mxu0 0.0
        %3242 = vmatpush1.xpose.msra.mxu0 0.0
        %3243 = vmatprep.subr.mxu0 0.0
        %3244 = vmatpush1.xpose.msra.mxu0 0.0
        %3245 = vmatprep.subr.mxu0 0.0
        %3246 = vmatpush1.xpose.msra.mxu0 0.0
        %3247 = vmatprep.subr.mxu0 0.0
        %3248 = vmatpush1.xpose.msra.mxu0 0.0
        %3249 = vmatprep.subr.mxu0 0.0
        %3250 = vmatpush1.xpose.msra.mxu0 0.0
        %3251 = vmatprep.subr.mxu0 0.0
        %3252 = vmatpush1.xpose.msra.mxu0 0.0
        %3253 = vmatprep.subr.mxu0 0.0
        %3254 = vmatpush1.xpose.msra.mxu0 0.0
        %3255 = vmatprep.mubr.f32.mxu0 0.0
        %3256 = vmatmul.mubr.f32.gmra.mrb[0].mxu0 %v3159
        %v3257 = vpop.f32.mrb[0].mxu0
        %v3258 = vadd.f32 %v2950, %v3257
        %v3259 = vpop.f32.mrb[0].mxu0
        %3260 = vmatprep.mubr.f32.mxu0 0.0
        %3261 = vmatmul.mubr.f32.gmra.mrb[0].mxu0 %v3161
        %v3262 = vpop.f32.mrb[0].mxu0
        %v3263 = vadd.f32 %v2951, %v3262
        %v3264 = vpop.f32.mrb[0].mxu0
        %3265 = vmatprep.mubr.f32.mxu0 0.0
        %3266 = vmatmul.mubr.f32.gmra.mrb[0].mxu0 %v3163
        %v3267 = vpop.f32.mrb[0].mxu0
        %v3268 = vadd.f32 %v2952, %v3267
        %v3269 = vpop.f32.mrb[0].mxu0
        %3270 = vmatprep.mubr.f32.mxu0 0.0
        %3271 = vmatmul.mubr.f32.gmra.mrb[0].mxu0 %v3165
        %v3272 = vpop.f32.mrb[0].mxu0
        %v3273 = vadd.f32 %v2953, %v3272
        %v3274 = vpop.f32.mrb[0].mxu0
        %3275 = vmatprep.mubr.f32.mxu0 0.0
        %3276 = vmatmul.mubr.f32.gmra.mrb[0].mxu0 %v3167
        %v3277 = vpop.f32.mrb[0].mxu0
        %v3278 = vadd.f32 %v2954, %v3277
        %v3279 = vpop.f32.mrb[0].mxu0
        %3280 = vmatprep.mubr.f32.mxu0 0.0
        %3281 = vmatmul.mubr.f32.gmra.mrb[0].mxu0 %v3169
        %v3282 = vpop.f32.mrb[0].mxu0
        %v3283 = vadd.f32 %v2955, %v3282
        %v3284 = vpop.f32.mrb[0].mxu0
        %3285 = vmatprep.mubr.f32.mxu0 0.0
        %3286 = vmatmul.mubr.f32.gmra.mrb[0].mxu0 %v3171
        %v3287 = vpop.f32.mrb[0].mxu0
        %v3288 = vadd.f32 %v2956, %v3287
        %v3289 = vpop.f32.mrb[0].mxu0
        %3290 = vmatprep.mubr.f32.mxu0 0.0
        %3291 = vmatmul.mubr.f32.gmra.mrb[0].mxu0 %v3173
        %v3292 = vpop.f32.mrb[0].mxu0
        %v3293 = vadd.f32 %v2957, %v3292
        %v3294 = vpop.f32.mrb[0].mxu0
        %3295 = vdwg.mxu0
        %v3296 = vsel %vm808, %v3089, -inf
        %3297 = vmax.xlane.f32.xlu0 %v3296
        %v3298 = vpop.xlane.xlu0 %3297
        %v3299 = vsel %vm808, %v3094, -inf
        %3300 = vmax.xlane.f32.xlu0 %v3299
        %v3301 = vpop.xlane.xlu0 %3300
        %v3302 = vsel %vm808, %v3099, -inf
        %3303 = vmax.xlane.f32.xlu0 %v3302
        %v3304 = vpop.xlane.xlu0 %3303
        %v3305 = vsel %vm808, %v3104, -inf
        %3306 = vmax.xlane.f32.xlu0 %v3305
        %v3307 = vpop.xlane.xlu0 %3306
        %v3308 = vsel %vm808, %v3109, -inf
        %3309 = vmax.xlane.f32.xlu0 %v3308
        %v3310 = vpop.xlane.xlu0 %3309
        %v3311 = vsel %vm808, %v3114, -inf
        %3312 = vmax.xlane.f32.xlu0 %v3311
        %v3313 = vpop.xlane.xlu0 %3312
        %v3314 = vsel %vm808, %v3119, -inf
        %3315 = vmax.xlane.f32.xlu0 %v3314
        %v3316 = vpop.xlane.xlu0 %3315
        %v3317 = vsel %vm808, %v3124, -inf
        %3318 = vmax.xlane.f32.xlu0 %v3317
        %v3319 = vpop.xlane.xlu0 %3318
        %v3320 = vsel %vm808, %v3258, -inf
        %3321 = vmax.xlane.f32.xlu0 %v3320
        %v3322 = vpop.xlane.xlu0 %3321
        %v3323 = vsel %vm808, %v3263, -inf
        %3324 = vmax.xlane.f32.xlu0 %v3323
        %v3325 = vpop.xlane.xlu0 %3324
        %v3326 = vsel %vm808, %v3268, -inf
        %3327 = vmax.xlane.f32.xlu0 %v3326
        %v3328 = vpop.xlane.xlu0 %3327
        %v3329 = vsel %vm808, %v3273, -inf
        %3330 = vmax.xlane.f32.xlu0 %v3329
        %v3331 = vpop.xlane.xlu0 %3330
        %v3332 = vsel %vm808, %v3278, -inf
        %3333 = vmax.xlane.f32.xlu0 %v3332
        %v3334 = vpop.xlane.xlu0 %3333
        %v3335 = vsel %vm808, %v3283, -inf
        %3336 = vmax.xlane.f32.xlu0 %v3335
        %v3337 = vpop.xlane.xlu0 %3336
        %v3338 = vsel %vm808, %v3288, -inf
        %3339 = vmax.xlane.f32.xlu0 %v3338
        %v3340 = vpop.xlane.xlu0 %3339
        %v3341 = vsel %vm808, %v3293, -inf
        %3342 = vmax.xlane.f32.xlu0 %v3341
        %v3343 = vpop.xlane.xlu0 %3342
        %v3344 = vsub.f32 %v3089, %v3298
        %v3345 = vsub.f32 %v3094, %v3301
        %v3346 = vsub.f32 %v3099, %v3304
        %v3347 = vsub.f32 %v3104, %v3307
        %v3348 = vsub.f32 %v3109, %v3310
        %v3349 = vsub.f32 %v3114, %v3313
        %v3350 = vsub.f32 %v3119, %v3316
        %v3351 = vsub.f32 %v3124, %v3319
        %v3352 = vsub.f32 %v3258, %v3322
        %v3353 = vsub.f32 %v3263, %v3325
        %v3354 = vsub.f32 %v3268, %v3328
        %v3355 = vsub.f32 %v3273, %v3331
        %v3356 = vsub.f32 %v3278, %v3334
        %v3357 = vsub.f32 %v3283, %v3337
        %v3358 = vsub.f32 %v3288, %v3340
        %v3359 = vsub.f32 %v3293, %v3343
        %v3360 = vmul.f32 %v3344, 1.442695
        %v3361 = vpow.pop %v3360
        %v3362 = vmul.f32 %v3345, 1.442695
        %v3363 = vpow.pop %v3362
        %v3364 = vmul.f32 %v3346, 1.442695
        %v3365 = vpow.pop %v3364
        %v3366 = vmul.f32 %v3347, 1.442695
        %v3367 = vpow.pop %v3366
        %v3368 = vmul.f32 %v3348, 1.442695
        %v3369 = vpow.pop %v3368
        %v3370 = vmul.f32 %v3349, 1.442695
        %v3371 = vpow.pop %v3370
        %v3372 = vmul.f32 %v3350, 1.442695
        %v3373 = vpow.pop %v3372
        %v3374 = vmul.f32 %v3351, 1.442695
        %v3375 = vpow.pop %v3374
        %v3376 = vmul.f32 %v3352, 1.442695
        %v3377 = vpow.pop %v3376
        %v3378 = vmul.f32 %v3353, 1.442695
        %v3379 = vpow.pop %v3378
        %v3380 = vmul.f32 %v3354, 1.442695
        %v3381 = vpow.pop %v3380
        %v3382 = vmul.f32 %v3355, 1.442695
        %v3383 = vpow.pop %v3382
        %v3384 = vmul.f32 %v3356, 1.442695
        %v3385 = vpow.pop %v3384
        %v3386 = vmul.f32 %v3357, 1.442695
        %v3387 = vpow.pop %v3386
        %v3388 = vmul.f32 %v3358, 1.442695
        %v3389 = vpow.pop %v3388
        %v3390 = vmul.f32 %v3359, 1.442695
        %v3391 = vpow.pop %v3390
        %v3392 = vsel %vm808, %v3361, 0.0
        %3393 = vadd.xlane.f32.xlu0 %v3392
        %v3394 = vpop.xlane.xlu0 %3393
        %v3395 = vsel %vm808, %v3363, 0.0
        %3396 = vadd.xlane.f32.xlu0 %v3395
        %v3397 = vpop.xlane.xlu0 %3396
        %v3398 = vsel %vm808, %v3365, 0.0
        %3399 = vadd.xlane.f32.xlu0 %v3398
        %v3400 = vpop.xlane.xlu0 %3399
        %v3401 = vsel %vm808, %v3367, 0.0
        %3402 = vadd.xlane.f32.xlu0 %v3401
        %v3403 = vpop.xlane.xlu0 %3402
        %v3404 = vsel %vm808, %v3369, 0.0
        %3405 = vadd.xlane.f32.xlu0 %v3404
        %v3406 = vpop.xlane.xlu0 %3405
        %v3407 = vsel %vm808, %v3371, 0.0
        %3408 = vadd.xlane.f32.xlu0 %v3407
        %v3409 = vpop.xlane.xlu0 %3408
        %v3410 = vsel %vm808, %v3373, 0.0
        %3411 = vadd.xlane.f32.xlu0 %v3410
        %v3412 = vpop.xlane.xlu0 %3411
        %v3413 = vsel %vm808, %v3375, 0.0
        %3414 = vadd.xlane.f32.xlu0 %v3413
        %v3415 = vpop.xlane.xlu0 %3414
        %v3416 = vsel %vm808, %v3377, 0.0
        %3417 = vadd.xlane.f32.xlu0 %v3416
        %v3418 = vpop.xlane.xlu0 %3417
        %v3419 = vsel %vm808, %v3379, 0.0
        %3420 = vadd.xlane.f32.xlu0 %v3419
        %v3421 = vpop.xlane.xlu0 %3420
        %v3422 = vsel %vm808, %v3381, 0.0
        %3423 = vadd.xlane.f32.xlu0 %v3422
        %v3424 = vpop.xlane.xlu0 %3423
        %v3425 = vsel %vm808, %v3383, 0.0
        %3426 = vadd.xlane.f32.xlu0 %v3425
        %v3427 = vpop.xlane.xlu0 %3426
        %v3428 = vsel %vm808, %v3385, 0.0
        %3429 = vadd.xlane.f32.xlu0 %v3428
        %v3430 = vpop.xlane.xlu0 %3429
        %v3431 = vsel %vm808, %v3387, 0.0
        %3432 = vadd.xlane.f32.xlu0 %v3431
        %v3433 = vpop.xlane.xlu0 %3432
        %v3434 = vsel %vm808, %v3389, 0.0
        %3435 = vadd.xlane.f32.xlu0 %v3434
        %v3436 = vpop.xlane.xlu0 %3435
        %v3437 = vsel %vm808, %v3391, 0.0
        %3438 = vadd.xlane.f32.xlu0 %v3437
        %v3439 = vpop.xlane.xlu0 %3438
        %3440 = vrot.lane.b32.xlu0 %v399, 40
        %v3441 = vpop.permute.xlu0 %3440
        %3442 = vrot.lane.b32.xlu0 %v404, 40
        %v3443 = vpop.permute.xlu0 %3442
        %3444 = vrot.lane.b32.xlu0 %v409, 40
        %v3445 = vpop.permute.xlu0 %3444
        %3446 = vrot.lane.b32.xlu0 %v414, 40
        %v3447 = vpop.permute.xlu0 %3446
        %3448 = vrot.lane.b32.xlu0 %v419, 40
        %v3449 = vpop.permute.xlu0 %3448
        %3450 = vrot.lane.b32.xlu0 %v424, 40
        %v3451 = vpop.permute.xlu0 %3450
        %3452 = vrot.lane.b32.xlu0 %v429, 40
        %v3453 = vpop.permute.xlu0 %3452
        %3454 = vrot.lane.b32.xlu0 %v434, 40
        %v3455 = vpop.permute.xlu0 %3454
        %v3465 = vsel %vm808, %v3361, 0
        %v3468 = vsel %vm808, %v3363, 0
        %v3471 = vsel %vm808, %v3365, 0
        %v3474 = vsel %vm808, %v3367, 0
        %v3477 = vsel %vm808, %v3369, 0
        %v3480 = vsel %vm808, %v3371, 0
        %v3483 = vsel %vm808, %v3373, 0
        %v3486 = vsel %vm808, %v3375, 0
        %3488 = vmatprep.subr.mxu0 0.0
        %3489 = vmatpush1.msra.mxu0 %v3441
        %3490 = vmatprep.subr.mxu0 0.0
        %3491 = vmatpush1.msra.mxu0 %v3443
        %3492 = vmatprep.subr.mxu0 0.0
        %3493 = vmatpush1.msra.mxu0 %v3445
        %3494 = vmatprep.subr.mxu0 0.0
        %3495 = vmatpush1.msra.mxu0 %v3447
        %3496 = vmatprep.subr.mxu0 0.0
        %3497 = vmatpush1.msra.mxu0 %v3449
        %3498 = vmatprep.subr.mxu0 0.0
        %3499 = vmatpush1.msra.mxu0 %v3451
        %3500 = vmatprep.subr.mxu0 0.0
        %3501 = vmatpush1.msra.mxu0 %v3453
        %3502 = vmatprep.subr.mxu0 0.0
        %3503 = vmatpush1.msra.mxu0 %v3455
        %3504 = vmatprep.subr.mxu0 0.0
        %3505 = vmatpush1.msra.mxu0 0.0
        %3506 = vmatprep.subr.mxu0 0.0
        %3507 = vmatpush1.msra.mxu0 0.0
        %3508 = vmatprep.subr.mxu0 0.0
        %3509 = vmatpush1.msra.mxu0 0.0
        %3510 = vmatprep.subr.mxu0 0.0
        %3511 = vmatpush1.msra.mxu0 0.0
        %3512 = vmatprep.subr.mxu0 0.0
        %3513 = vmatpush1.msra.mxu0 0.0
        %3514 = vmatprep.subr.mxu0 0.0
        %3515 = vmatpush1.msra.mxu0 0.0
        %3516 = vmatprep.subr.mxu0 0.0
        %3517 = vmatpush1.msra.mxu0 0.0
        %3518 = vmatprep.subr.mxu0 0.0
        %3519 = vmatpush1.msra.mxu0 0.0
        %3520 = vmatprep.subr.mxu0 0.0
        %3521 = vmatpush1.msra.mxu0 0.0
        %3522 = vmatprep.subr.mxu0 0.0
        %3523 = vmatpush1.msra.mxu0 0.0
        %3524 = vmatprep.subr.mxu0 0.0
        %3525 = vmatpush1.msra.mxu0 0.0
        %3526 = vmatprep.subr.mxu0 0.0
        %3527 = vmatpush1.msra.mxu0 0.0
        %3528 = vmatprep.subr.mxu0 0.0
        %3529 = vmatpush1.msra.mxu0 0.0
        %3530 = vmatprep.subr.mxu0 0.0
        %3531 = vmatpush1.msra.mxu0 0.0
        %3532 = vmatprep.subr.mxu0 0.0
        %3533 = vmatpush1.msra.mxu0 0.0
        %3534 = vmatprep.subr.mxu0 0.0
        %3535 = vmatpush1.msra.mxu0 0.0
        %3536 = vmatprep.subr.mxu0 0.0
        %3537 = vmatpush1.msra.mxu0 0.0
        %3538 = vmatprep.subr.mxu0 0.0
        %3539 = vmatpush1.msra.mxu0 0.0
        %3540 = vmatprep.subr.mxu0 0.0
        %3541 = vmatpush1.msra.mxu0 0.0
        %3542 = vmatprep.subr.mxu0 0.0
        %3543 = vmatpush1.msra.mxu0 0.0
        %3544 = vmatprep.subr.mxu0 0.0
        %3545 = vmatpush1.msra.mxu0 0.0
        %3546 = vmatprep.subr.mxu0 0.0
        %3547 = vmatpush1.msra.mxu0 0.0
        %3548 = vmatprep.subr.mxu0 0.0
        %3549 = vmatpush1.msra.mxu0 0.0
        %3550 = vmatprep.subr.mxu0 0.0
        %3551 = vmatpush1.msra.mxu0 0.0
        %3552 = vmatprep.mubr.f32.mxu0 0.0
        %3553 = vmatmul.mubr.f32.gmra.mrb[0].mxu0 %v3465
        %v3554 = vpop.f32.mrb[0].mxu0
        %v3555 = vadd.f32 0.0, %v3554
        %v3556 = vpop.f32.mrb[0].mxu0
        %3557 = vmatprep.mubr.f32.mxu0 0.0
        %3558 = vmatmul.mubr.f32.gmra.mrb[0].mxu0 %v3468
        %v3559 = vpop.f32.mrb[0].mxu0
        %v3560 = vadd.f32 0.0, %v3559
        %v3561 = vpop.f32.mrb[0].mxu0
        %3562 = vmatprep.mubr.f32.mxu0 0.0
        %3563 = vmatmul.mubr.f32.gmra.mrb[0].mxu0 %v3471
        %v3564 = vpop.f32.mrb[0].mxu0
        %v3565 = vadd.f32 0.0, %v3564
        %v3566 = vpop.f32.mrb[0].mxu0
        %3567 = vmatprep.mubr.f32.mxu0 0.0
        %3568 = vmatmul.mubr.f32.gmra.mrb[0].mxu0 %v3474
        %v3569 = vpop.f32.mrb[0].mxu0
        %v3570 = vadd.f32 0.0, %v3569
        %v3571 = vpop.f32.mrb[0].mxu0
        %3572 = vmatprep.mubr.f32.mxu0 0.0
        %3573 = vmatmul.mubr.f32.gmra.mrb[0].mxu0 %v3477
        %v3574 = vpop.f32.mrb[0].mxu0
        %v3575 = vadd.f32 0.0, %v3574
        %v3576 = vpop.f32.mrb[0].mxu0
        %3577 = vmatprep.mubr.f32.mxu0 0.0
        %3578 = vmatmul.mubr.f32.gmra.mrb[0].mxu0 %v3480
        %v3579 = vpop.f32.mrb[0].mxu0
        %v3580 = vadd.f32 0.0, %v3579
        %v3581 = vpop.f32.mrb[0].mxu0
        %3582 = vmatprep.mubr.f32.mxu0 0.0
        %3583 = vmatmul.mubr.f32.gmra.mrb[0].mxu0 %v3483
        %v3584 = vpop.f32.mrb[0].mxu0
        %v3585 = vadd.f32 0.0, %v3584
        %v3586 = vpop.f32.mrb[0].mxu0
        %3587 = vmatprep.mubr.f32.mxu0 0.0
        %3588 = vmatmul.mubr.f32.gmra.mrb[0].mxu0 %v3486
        %v3589 = vpop.f32.mrb[0].mxu0
        %v3590 = vadd.f32 0.0, %v3589
        %v3591 = vpop.f32.mrb[0].mxu0
        %3592 = vdwg.mxu0
        %3593 = vrot.lane.b32.xlu0 %v439, 40
        %v3594 = vpop.permute.xlu0 %3593
        %3595 = vrot.lane.b32.xlu0 %v444, 40
        %v3596 = vpop.permute.xlu0 %3595
        %3597 = vrot.lane.b32.xlu0 %v449, 40
        %v3598 = vpop.permute.xlu0 %3597
        %3599 = vrot.lane.b32.xlu0 %v454, 40
        %v3600 = vpop.permute.xlu0 %3599
        %3601 = vrot.lane.b32.xlu0 %v459, 40
        %v3602 = vpop.permute.xlu0 %3601
        %3603 = vrot.lane.b32.xlu0 %v464, 40
        %v3604 = vpop.permute.xlu0 %3603
        %3605 = vrot.lane.b32.xlu0 %v469, 40
        %v3606 = vpop.permute.xlu0 %3605
        %3607 = vrot.lane.b32.xlu0 %v474, 40
        %v3608 = vpop.permute.xlu0 %3607
        %v3618 = vsel %vm808, %v3377, 0
        %v3621 = vsel %vm808, %v3379, 0
        %v3624 = vsel %vm808, %v3381, 0
        %v3627 = vsel %vm808, %v3383, 0
        %v3630 = vsel %vm808, %v3385, 0
        %v3633 = vsel %vm808, %v3387, 0
        %v3636 = vsel %vm808, %v3389, 0
        %v3639 = vsel %vm808, %v3391, 0
        %3641 = vmatprep.subr.mxu0 0.0
        %3642 = vmatpush1.msra.mxu0 %v3594
        %3643 = vmatprep.subr.mxu0 0.0
        %3644 = vmatpush1.msra.mxu0 %v3596
        %3645 = vmatprep.subr.mxu0 0.0
        %3646 = vmatpush1.msra.mxu0 %v3598
        %3647 = vmatprep.subr.mxu0 0.0
        %3648 = vmatpush1.msra.mxu0 %v3600
        %3649 = vmatprep.subr.mxu0 0.0
        %3650 = vmatpush1.msra.mxu0 %v3602
        %3651 = vmatprep.subr.mxu0 0.0
        %3652 = vmatpush1.msra.mxu0 %v3604
        %3653 = vmatprep.subr.mxu0 0.0
        %3654 = vmatpush1.msra.mxu0 %v3606
        %3655 = vmatprep.subr.mxu0 0.0
        %3656 = vmatpush1.msra.mxu0 %v3608
        %3657 = vmatprep.subr.mxu0 0.0
        %3658 = vmatpush1.msra.mxu0 0.0
        %3659 = vmatprep.subr.mxu0 0.0
        %3660 = vmatpush1.msra.mxu0 0.0
        %3661 = vmatprep.subr.mxu0 0.0
        %3662 = vmatpush1.msra.mxu0 0.0
        %3663 = vmatprep.subr.mxu0 0.0
        %3664 = vmatpush1.msra.mxu0 0.0
        %3665 = vmatprep.subr.mxu0 0.0
        %3666 = vmatpush1.msra.mxu0 0.0
        %3667 = vmatprep.subr.mxu0 0.0
        %3668 = vmatpush1.msra.mxu0 0.0
        %3669 = vmatprep.subr.mxu0 0.0
        %3670 = vmatpush1.msra.mxu0 0.0
        %3671 = vmatprep.subr.mxu0 0.0
        %3672 = vmatpush1.msra.mxu0 0.0
        %3673 = vmatprep.subr.mxu0 0.0
        %3674 = vmatpush1.msra.mxu0 0.0
        %3675 = vmatprep.subr.mxu0 0.0
        %3676 = vmatpush1.msra.mxu0 0.0
        %3677 = vmatprep.subr.mxu0 0.0
        %3678 = vmatpush1.msra.mxu0 0.0
        %3679 = vmatprep.subr.mxu0 0.0
        %3680 = vmatpush1.msra.mxu0 0.0
        %3681 = vmatprep.subr.mxu0 0.0
        %3682 = vmatpush1.msra.mxu0 0.0
        %3683 = vmatprep.subr.mxu0 0.0
        %3684 = vmatpush1.msra.mxu0 0.0
        %3685 = vmatprep.subr.mxu0 0.0
        %3686 = vmatpush1.msra.mxu0 0.0
        %3687 = vmatprep.subr.mxu0 0.0
        %3688 = vmatpush1.msra.mxu0 0.0
        %3689 = vmatprep.subr.mxu0 0.0
        %3690 = vmatpush1.msra.mxu0 0.0
        %3691 = vmatprep.subr.mxu0 0.0
        %3692 = vmatpush1.msra.mxu0 0.0
        %3693 = vmatprep.subr.mxu0 0.0
        %3694 = vmatpush1.msra.mxu0 0.0
        %3695 = vmatprep.subr.mxu0 0.0
        %3696 = vmatpush1.msra.mxu0 0.0
        %3697 = vmatprep.subr.mxu0 0.0
        %3698 = vmatpush1.msra.mxu0 0.0
        %3699 = vmatprep.subr.mxu0 0.0
        %3700 = vmatpush1.msra.mxu0 0.0
        %3701 = vmatprep.subr.mxu0 0.0
        %3702 = vmatpush1.msra.mxu0 0.0
        %3703 = vmatprep.subr.mxu0 0.0
        %3704 = vmatpush1.msra.mxu0 0.0
        %3705 = vmatprep.mubr.f32.mxu0 0.0
        %3706 = vmatmul.mubr.f32.gmra.mrb[0].mxu0 %v3618
        %v3707 = vpop.f32.mrb[0].mxu0
        %v3708 = vadd.f32 0.0, %v3707
        %v3709 = vpop.f32.mrb[0].mxu0
        %3710 = vmatprep.mubr.f32.mxu0 0.0
        %3711 = vmatmul.mubr.f32.gmra.mrb[0].mxu0 %v3621
        %v3712 = vpop.f32.mrb[0].mxu0
        %v3713 = vadd.f32 0.0, %v3712
        %v3714 = vpop.f32.mrb[0].mxu0
        %3715 = vmatprep.mubr.f32.mxu0 0.0
        %3716 = vmatmul.mubr.f32.gmra.mrb[0].mxu0 %v3624
        %v3717 = vpop.f32.mrb[0].mxu0
        %v3718 = vadd.f32 0.0, %v3717
        %v3719 = vpop.f32.mrb[0].mxu0
        %3720 = vmatprep.mubr.f32.mxu0 0.0
        %3721 = vmatmul.mubr.f32.gmra.mrb[0].mxu0 %v3627
        %v3722 = vpop.f32.mrb[0].mxu0
        %v3723 = vadd.f32 0.0, %v3722
        %v3724 = vpop.f32.mrb[0].mxu0
        %3725 = vmatprep.mubr.f32.mxu0 0.0
        %3726 = vmatmul.mubr.f32.gmra.mrb[0].mxu0 %v3630
        %v3727 = vpop.f32.mrb[0].mxu0
        %v3728 = vadd.f32 0.0, %v3727
        %v3729 = vpop.f32.mrb[0].mxu0
        %3730 = vmatprep.mubr.f32.mxu0 0.0
        %3731 = vmatmul.mubr.f32.gmra.mrb[0].mxu0 %v3633
        %v3732 = vpop.f32.mrb[0].mxu0
        %v3733 = vadd.f32 0.0, %v3732
        %v3734 = vpop.f32.mrb[0].mxu0
        %3735 = vmatprep.mubr.f32.mxu0 0.0
        %3736 = vmatmul.mubr.f32.gmra.mrb[0].mxu0 %v3636
        %v3737 = vpop.f32.mrb[0].mxu0
        %v3738 = vadd.f32 0.0, %v3737
        %v3739 = vpop.f32.mrb[0].mxu0
        %3740 = vmatprep.mubr.f32.mxu0 0.0
        %3741 = vmatmul.mubr.f32.gmra.mrb[0].mxu0 %v3639
        %v3742 = vpop.f32.mrb[0].mxu0
        %v3743 = vadd.f32 0.0, %v3742
        %v3744 = vpop.f32.mrb[0].mxu0
        %3745 = vdwg.mxu0
        %v3746 = vrcp.pop %v3394
        %v3747 = vrcp.pop %v3397
        %v3748 = vrcp.pop %v3400
        %v3749 = vrcp.pop %v3403
        %v3750 = vrcp.pop %v3406
        %v3751 = vrcp.pop %v3409
        %v3752 = vrcp.pop %v3412
        %v3753 = vrcp.pop %v3415
        %v3754 = vrcp.pop %v3418
        %v3755 = vrcp.pop %v3421
        %v3756 = vrcp.pop %v3424
        %v3757 = vrcp.pop %v3427
        %v3758 = vrcp.pop %v3430
        %v3759 = vrcp.pop %v3433
        %v3760 = vrcp.pop %v3436
        %v3761 = vrcp.pop %v3439
        %v3762 = vmul.f32 %v3555, %v3746
        %v3763 = vmul.f32 %v3560, %v3747
        %v3764 = vmul.f32 %v3565, %v3748
        %v3765 = vmul.f32 %v3570, %v3749
        %v3766 = vmul.f32 %v3575, %v3750
        %v3767 = vmul.f32 %v3580, %v3751
        %v3768 = vmul.f32 %v3585, %v3752
        %v3769 = vmul.f32 %v3590, %v3753
        %v3770 = vmul.f32 %v3708, %v3754
        %v3771 = vmul.f32 %v3713, %v3755
        %v3772 = vmul.f32 %v3718, %v3756
        %v3773 = vmul.f32 %v3723, %v3757
        %v3774 = vmul.f32 %v3728, %v3758
        %v3775 = vmul.f32 %v3733, %v3759
        %v3776 = vmul.f32 %v3738, %v3760
        %v3777 = vmul.f32 %v3743, %v3761
        %3794 = vrot.lane.b32.xlu0 %v2104, 8
        %v3795 = vpop.permute.xlu0 %3794
        %3796 = vrot.lane.b32.xlu0 %v2105, 8
        %v3797 = vpop.permute.xlu0 %3796
        %3798 = vrot.lane.b32.xlu0 %v2106, 8
        %v3799 = vpop.permute.xlu0 %3798
        %3800 = vrot.lane.b32.xlu0 %v2107, 8
        %v3801 = vpop.permute.xlu0 %3800
        %3802 = vrot.lane.b32.xlu0 %v2108, 8
        %v3803 = vpop.permute.xlu0 %3802
        %3804 = vrot.lane.b32.xlu0 %v2109, 8
        %v3805 = vpop.permute.xlu0 %3804
        %3806 = vrot.lane.b32.xlu0 %v2110, 8
        %v3807 = vpop.permute.xlu0 %3806
        %3808 = vrot.lane.b32.xlu0 %v2111, 8
        %v3809 = vpop.permute.xlu0 %3808
        %3810 = vrot.lane.b32.xlu0 %v2112, 8
        %v3811 = vpop.permute.xlu0 %3810
        %3812 = vrot.lane.b32.xlu0 %v2113, 8
        %v3813 = vpop.permute.xlu0 %3812
        %3814 = vrot.lane.b32.xlu0 %v2114, 8
        %v3815 = vpop.permute.xlu0 %3814
        %3816 = vrot.lane.b32.xlu0 %v2115, 8
        %v3817 = vpop.permute.xlu0 %3816
        %3818 = vrot.lane.b32.xlu0 %v2116, 8
        %v3819 = vpop.permute.xlu0 %3818
        %3820 = vrot.lane.b32.xlu0 %v2117, 8
        %v3821 = vpop.permute.xlu0 %3820
        %3822 = vrot.lane.b32.xlu0 %v2118, 8
        %v3823 = vpop.permute.xlu0 %3822
        %3824 = vrot.lane.b32.xlu0 %v2119, 8
        %v3825 = vpop.permute.xlu0 %3824
        %3858 = vrot.lane.b32.xlu0 %v2933, 16
        %v3859 = vpop.permute.xlu0 %3858
        %3860 = vrot.lane.b32.xlu0 %v2934, 16
        %v3861 = vpop.permute.xlu0 %3860
        %3862 = vrot.lane.b32.xlu0 %v2935, 16
        %v3863 = vpop.permute.xlu0 %3862
        %3864 = vrot.lane.b32.xlu0 %v2936, 16
        %v3865 = vpop.permute.xlu0 %3864
        %3866 = vrot.lane.b32.xlu0 %v2937, 16
        %v3867 = vpop.permute.xlu0 %3866
        %3868 = vrot.lane.b32.xlu0 %v2938, 16
        %v3869 = vpop.permute.xlu0 %3868
        %3870 = vrot.lane.b32.xlu0 %v2939, 16
        %v3871 = vpop.permute.xlu0 %3870
        %3872 = vrot.lane.b32.xlu0 %v2940, 16
        %v3873 = vpop.permute.xlu0 %3872
        %3874 = vrot.lane.b32.xlu0 %v2941, 16
        %v3875 = vpop.permute.xlu0 %3874
        %3876 = vrot.lane.b32.xlu0 %v2942, 16
        %v3877 = vpop.permute.xlu0 %3876
        %3878 = vrot.lane.b32.xlu0 %v2943, 16
        %v3879 = vpop.permute.xlu0 %3878
        %3880 = vrot.lane.b32.xlu0 %v2944, 16
        %v3881 = vpop.permute.xlu0 %3880
        %3882 = vrot.lane.b32.xlu0 %v2945, 16
        %v3883 = vpop.permute.xlu0 %3882
        %3884 = vrot.lane.b32.xlu0 %v2946, 16
        %v3885 = vpop.permute.xlu0 %3884
        %3886 = vrot.lane.b32.xlu0 %v2947, 16
        %v3887 = vpop.permute.xlu0 %3886
        %3888 = vrot.lane.b32.xlu0 %v2948, 16
        %v3889 = vpop.permute.xlu0 %3888
        %3922 = vrot.lane.b32.xlu0 %v3762, 24
        %v3923 = vpop.permute.xlu0 %3922
        %3924 = vrot.lane.b32.xlu0 %v3763, 24
        %v3925 = vpop.permute.xlu0 %3924
        %3926 = vrot.lane.b32.xlu0 %v3764, 24
        %v3927 = vpop.permute.xlu0 %3926
        %3928 = vrot.lane.b32.xlu0 %v3765, 24
        %v3929 = vpop.permute.xlu0 %3928
        %3930 = vrot.lane.b32.xlu0 %v3766, 24
        %v3931 = vpop.permute.xlu0 %3930
        %3932 = vrot.lane.b32.xlu0 %v3767, 24
        %v3933 = vpop.permute.xlu0 %3932
        %3934 = vrot.lane.b32.xlu0 %v3768, 24
        %v3935 = vpop.permute.xlu0 %3934
        %3936 = vrot.lane.b32.xlu0 %v3769, 24
        %v3937 = vpop.permute.xlu0 %3936
        %3938 = vrot.lane.b32.xlu0 %v3770, 24
        %v3939 = vpop.permute.xlu0 %3938
        %3940 = vrot.lane.b32.xlu0 %v3771, 24
        %v3941 = vpop.permute.xlu0 %3940
        %3942 = vrot.lane.b32.xlu0 %v3772, 24
        %v3943 = vpop.permute.xlu0 %3942
        %3944 = vrot.lane.b32.xlu0 %v3773, 24
        %v3945 = vpop.permute.xlu0 %3944
        %3946 = vrot.lane.b32.xlu0 %v3774, 24
        %v3947 = vpop.permute.xlu0 %3946
        %3948 = vrot.lane.b32.xlu0 %v3775, 24
        %v3949 = vpop.permute.xlu0 %3948
        %3950 = vrot.lane.b32.xlu0 %v3776, 24
        %v3951 = vpop.permute.xlu0 %3950
        %3952 = vrot.lane.b32.xlu0 %v3777, 24
        %v3953 = vpop.permute.xlu0 %3952
        %v3970 = vsel %vm509, %v1275, %v3795
        %v3971 = vsel %vm509, %v1276, %v3797
        %v3972 = vsel %vm509, %v1277, %v3799
        %v3973 = vsel %vm509, %v1278, %v3801
        %v3974 = vsel %vm509, %v1279, %v3803
        %v3975 = vsel %vm509, %v1280, %v3805
        %v3976 = vsel %vm509, %v1281, %v3807
        %v3977 = vsel %vm509, %v1282, %v3809
        %v3978 = vsel %vm509, %v1283, %v3811
        %v3979 = vsel %vm509, %v1284, %v3813
        %v3980 = vsel %vm509, %v1285, %v3815
        %v3981 = vsel %vm509, %v1286, %v3817
        %v3982 = vsel %vm509, %v1287, %v3819
        %v3983 = vsel %vm509, %v1288, %v3821
        %v3984 = vsel %vm509, %v1289, %v3823
        %v3985 = vsel %vm509, %v1290, %v3825
        %vm3986 = vcmask 130048
        %v3987 = vsel %vm3986, %v3970, %v3859
        %v3988 = vsel %vm3986, %v3971, %v3861
        %v3989 = vsel %vm3986, %v3972, %v3863
        %v3990 = vsel %vm3986, %v3973, %v3865
        %v3991 = vsel %vm3986, %v3974, %v3867
        %v3992 = vsel %vm3986, %v3975, %v3869
        %v3993 = vsel %vm3986, %v3976, %v3871
        %v3994 = vsel %vm3986, %v3977, %v3873
        %v3995 = vsel %vm3986, %v3978, %v3875
        %v3996 = vsel %vm3986, %v3979, %v3877
        %v3997 = vsel %vm3986, %v3980, %v3879
        %v3998 = vsel %vm3986, %v3981, %v3881
        %v3999 = vsel %vm3986, %v3982, %v3883
        %v4000 = vsel %vm3986, %v3983, %v3885
        %v4001 = vsel %vm3986, %v3984, %v3887
        %v4002 = vsel %vm3986, %v3985, %v3889
        %vm4003 = vcmask 195584
        %v4004 = vsel %vm4003, %v3987, %v3923
        %v4005 = vsel %vm4003, %v3988, %v3925
        %v4006 = vsel %vm4003, %v3989, %v3927
        %v4007 = vsel %vm4003, %v3990, %v3929
        %v4008 = vsel %vm4003, %v3991, %v3931
        %v4009 = vsel %vm4003, %v3992, %v3933
        %v4010 = vsel %vm4003, %v3993, %v3935
        %v4011 = vsel %vm4003, %v3994, %v3937
        %v4012 = vsel %vm4003, %v3995, %v3939
        %v4013 = vsel %vm4003, %v3996, %v3941
        %v4014 = vsel %vm4003, %v3997, %v3943
        %v4015 = vsel %vm4003, %v3998, %v3945
        %v4016 = vsel %vm4003, %v3999, %v3947
        %v4017 = vsel %vm4003, %v4000, %v3949
        %v4018 = vsel %vm4003, %v4001, %v3951
        %v4019 = vsel %vm4003, %v4002, %v3953
        %v4020 = vld [vmem:[%s4] sm:$0xff]
        %v4021 = vld [vmem:[%s4 + $0x8] sm:$0xff]
        %v4022 = vld [vmem:[%s4 + $0x10] sm:$0xff]
        %v4023 = vld [vmem:[%s4 + $0x18] sm:$0xff]
        %v4024 = vld [vmem:[%s5] sm:$0x1]
        %v4026 = vlaneseq
        %v4027 = vshrl.u32 %v4026, 7
        %v4028 = vsub.s32 0, %v4027
        %v4029 = vrot.slane %v4024, %v4028
        %v4032 = vsel %vm283, %v4004, 0
        %v4035 = vsel %vm283, %v4005, 0
        %v4038 = vsel %vm283, %v4006, 0
        %v4041 = vsel %vm283, %v4007, 0
        %v4044 = vsel %vm283, %v4008, 0
        %v4047 = vsel %vm283, %v4009, 0
        %v4050 = vsel %vm283, %v4010, 0
        %v4053 = vsel %vm283, %v4011, 0
        %v4056 = vsel %vm283, %v4012, 0
        %v4059 = vsel %vm283, %v4013, 0
        %v4062 = vsel %vm283, %v4014, 0
        %v4065 = vsel %vm283, %v4015, 0
        %v4068 = vsel %vm283, %v4016, 0
        %v4071 = vsel %vm283, %v4017, 0
        %v4074 = vsel %vm283, %v4018, 0
        %v4077 = vsel %vm283, %v4019, 0
        %4079 = vmatprep.subr.mxu0 0.0
        %4080 = vmatpush1.msra.mxu0 %v4020
        %4081 = vmatprep.subr.mxu0 0.0
        %4082 = vmatpush1.msra.mxu0 %v4021
        %4083 = vmatprep.subr.mxu0 0.0
        %4084 = vmatpush1.msra.mxu0 %v4022
        %4085 = vmatprep.subr.mxu0 0.0
        %4086 = vmatpush1.msra.mxu0 %v4023
        %4087 = vmatprep.subr.mxu0 0.0
        %4088 = vmatpush1.msra.mxu0 0.0
        %4089 = vmatprep.subr.mxu0 0.0
        %4090 = vmatpush1.msra.mxu0 0.0
        %4091 = vmatprep.subr.mxu0 0.0
        %4092 = vmatpush1.msra.mxu0 0.0
        %4093 = vmatprep.subr.mxu0 0.0
        %4094 = vmatpush1.msra.mxu0 0.0
        %4095 = vmatprep.subr.mxu0 0.0
        %4096 = vmatpush1.msra.mxu0 0.0
        %4097 = vmatprep.subr.mxu0 0.0
        %4098 = vmatpush1.msra.mxu0 0.0
        %4099 = vmatprep.subr.mxu0 0.0
        %4100 = vmatpush1.msra.mxu0 0.0
        %4101 = vmatprep.subr.mxu0 0.0
        %4102 = vmatpush1.msra.mxu0 0.0
        %4103 = vmatprep.subr.mxu0 0.0
        %4104 = vmatpush1.msra.mxu0 0.0
        %4105 = vmatprep.subr.mxu0 0.0
        %4106 = vmatpush1.msra.mxu0 0.0
        %4107 = vmatprep.subr.mxu0 0.0
        %4108 = vmatpush1.msra.mxu0 0.0
        %4109 = vmatprep.subr.mxu0 0.0
        %4110 = vmatpush1.msra.mxu0 0.0
        %4111 = vmatprep.subr.mxu0 0.0
        %4112 = vmatpush1.msra.mxu0 0.0
        %4113 = vmatprep.subr.mxu0 0.0
        %4114 = vmatpush1.msra.mxu0 0.0
        %4115 = vmatprep.subr.mxu0 0.0
        %4116 = vmatpush1.msra.mxu0 0.0
        %4117 = vmatprep.subr.mxu0 0.0
        %4118 = vmatpush1.msra.mxu0 0.0
        %4119 = vmatprep.subr.mxu0 0.0
        %4120 = vmatpush1.msra.mxu0 0.0
        %4121 = vmatprep.subr.mxu0 0.0
        %4122 = vmatpush1.msra.mxu0 0.0
        %4123 = vmatprep.subr.mxu0 0.0
        %4124 = vmatpush1.msra.mxu0 0.0
        %4125 = vmatprep.subr.mxu0 0.0
        %4126 = vmatpush1.msra.mxu0 0.0
        %4127 = vmatprep.subr.mxu0 0.0
        %4128 = vmatpush1.msra.mxu0 0.0
        %4129 = vmatprep.subr.mxu0 0.0
        %4130 = vmatpush1.msra.mxu0 0.0
        %4131 = vmatprep.subr.mxu0 0.0
        %4132 = vmatpush1.msra.mxu0 0.0
        %4133 = vmatprep.subr.mxu0 0.0
        %4134 = vmatpush1.msra.mxu0 0.0
        %4135 = vmatprep.subr.mxu0 0.0
        %4136 = vmatpush1.msra.mxu0 0.0
        %4137 = vmatprep.subr.mxu0 0.0
        %4138 = vmatpush1.msra.mxu0 0.0
        %4139 = vmatprep.subr.mxu0 0.0
        %4140 = vmatpush1.msra.mxu0 0.0
        %4141 = vmatprep.subr.mxu0 0.0
        %4142 = vmatpush1.msra.mxu0 0.0
        %4143 = vmatprep.mubr.f32.mxu0 0.0
        %4144 = vmatmul.mubr.f32.gmra.mrb[0].mxu0 %v4032
        %v4145 = vpop.f32.mrb[0].mxu0
        %v4146 = vadd.f32 %v4029, %v4145
        %v4147 = vpop.f32.mrb[0].mxu0
        %4148 = vmatprep.mubr.f32.mxu0 0.0
        %4149 = vmatmul.mubr.f32.gmra.mrb[0].mxu0 %v4035
        %v4150 = vpop.f32.mrb[0].mxu0
        %v4151 = vadd.f32 %v4029, %v4150
        %v4152 = vpop.f32.mrb[0].mxu0
        %4153 = vmatprep.mubr.f32.mxu0 0.0
        %4154 = vmatmul.mubr.f32.gmra.mrb[0].mxu0 %v4038
        %v4155 = vpop.f32.mrb[0].mxu0
        %v4156 = vadd.f32 %v4029, %v4155
        %v4157 = vpop.f32.mrb[0].mxu0
        %4158 = vmatprep.mubr.f32.mxu0 0.0
        %4159 = vmatmul.mubr.f32.gmra.mrb[0].mxu0 %v4041
        %v4160 = vpop.f32.mrb[0].mxu0
        %v4161 = vadd.f32 %v4029, %v4160
        %v4162 = vpop.f32.mrb[0].mxu0
        %4163 = vmatprep.mubr.f32.mxu0 0.0
        %4164 = vmatmul.mubr.f32.gmra.mrb[0].mxu0 %v4044
        %v4165 = vpop.f32.mrb[0].mxu0
        %v4166 = vadd.f32 %v4029, %v4165
        %v4167 = vpop.f32.mrb[0].mxu0
        %4168 = vmatprep.mubr.f32.mxu0 0.0
        %4169 = vmatmul.mubr.f32.gmra.mrb[0].mxu0 %v4047
        %v4170 = vpop.f32.mrb[0].mxu0
        %v4171 = vadd.f32 %v4029, %v4170
        %v4172 = vpop.f32.mrb[0].mxu0
        %4173 = vmatprep.mubr.f32.mxu0 0.0
        %4174 = vmatmul.mubr.f32.gmra.mrb[0].mxu0 %v4050
        %v4175 = vpop.f32.mrb[0].mxu0
        %v4176 = vadd.f32 %v4029, %v4175
        %v4177 = vpop.f32.mrb[0].mxu0
        %4178 = vmatprep.mubr.f32.mxu0 0.0
        %4179 = vmatmul.mubr.f32.gmra.mrb[0].mxu0 %v4053
        %v4180 = vpop.f32.mrb[0].mxu0
        %v4181 = vadd.f32 %v4029, %v4180
        %v4182 = vpop.f32.mrb[0].mxu0
        %4183 = vmatprep.mubr.f32.mxu0 0.0
        %4184 = vmatmul.mubr.f32.gmra.mrb[0].mxu0 %v4056
        %v4185 = vpop.f32.mrb[0].mxu0
        %v4186 = vadd.f32 %v4029, %v4185
        %v4187 = vpop.f32.mrb[0].mxu0
        %4188 = vmatprep.mubr.f32.mxu0 0.0
        %4189 = vmatmul.mubr.f32.gmra.mrb[0].mxu0 %v4059
        %v4190 = vpop.f32.mrb[0].mxu0
        %v4191 = vadd.f32 %v4029, %v4190
        %v4192 = vpop.f32.mrb[0].mxu0
        %4193 = vmatprep.mubr.f32.mxu0 0.0
        %4194 = vmatmul.mubr.f32.gmra.mrb[0].mxu0 %v4062
        %v4195 = vpop.f32.mrb[0].mxu0
        %v4196 = vadd.f32 %v4029, %v4195
        %v4197 = vpop.f32.mrb[0].mxu0
        %4198 = vmatprep.mubr.f32.mxu0 0.0
        %4199 = vmatmul.mubr.f32.gmra.mrb[0].mxu0 %v4065
        %v4200 = vpop.f32.mrb[0].mxu0
        %v4201 = vadd.f32 %v4029, %v4200
        %v4202 = vpop.f32.mrb[0].mxu0
        %4203 = vmatprep.mubr.f32.mxu0 0.0
        %4204 = vmatmul.mubr.f32.gmra.mrb[0].mxu0 %v4068
        %v4205 = vpop.f32.mrb[0].mxu0
        %v4206 = vadd.f32 %v4029, %v4205
        %v4207 = vpop.f32.mrb[0].mxu0
        %4208 = vmatprep.mubr.f32.mxu0 0.0
        %4209 = vmatmul.mubr.f32.gmra.mrb[0].mxu0 %v4071
        %v4210 = vpop.f32.mrb[0].mxu0
        %v4211 = vadd.f32 %v4029, %v4210
        %v4212 = vpop.f32.mrb[0].mxu0
        %4213 = vmatprep.mubr.f32.mxu0 0.0
        %4214 = vmatmul.mubr.f32.gmra.mrb[0].mxu0 %v4074
        %v4215 = vpop.f32.mrb[0].mxu0
        %v4216 = vadd.f32 %v4029, %v4215
        %v4217 = vpop.f32.mrb[0].mxu0
        %4218 = vmatprep.mubr.f32.mxu0 0.0
        %4219 = vmatmul.mubr.f32.gmra.mrb[0].mxu0 %v4077
        %v4220 = vpop.f32.mrb[0].mxu0
        %v4221 = vadd.f32 %v4029, %v4220
        %v4222 = vpop.f32.mrb[0].mxu0
        %4223 = vdwg.mxu0
        %4224 = vst [vmem:[%s247] sm:$0xff] %v4146
        %4225 = vst [vmem:[%s247 + $0x8] sm:$0xff] %v4151
        %4226 = vst [vmem:[%s247 + $0x10] sm:$0xff] %v4156
        %4227 = vst [vmem:[%s247 + $0x18] sm:$0xff] %v4161
        %4228 = vst [vmem:[%s247 + $0x20] sm:$0xff] %v4166
        %4229 = vst [vmem:[%s247 + $0x28] sm:$0xff] %v4171
        %4230 = vst [vmem:[%s247 + $0x30] sm:$0xff] %v4176
        %4231 = vst [vmem:[%s247 + $0x38] sm:$0xff] %v4181
        %4232 = vst [vmem:[%s247 + $0x40] sm:$0xff] %v4186
        %4233 = vst [vmem:[%s247 + $0x48] sm:$0xff] %v4191
        %4234 = vst [vmem:[%s247 + $0x50] sm:$0xff] %v4196
        %4235 = vst [vmem:[%s247 + $0x58] sm:$0xff] %v4201
        %4236 = vst [vmem:[%s247 + $0x60] sm:$0xff] %v4206
        %4237 = vst [vmem:[%s247 + $0x68] sm:$0xff] %v4211
        %4238 = vst [vmem:[%s247 + $0x70] sm:$0xff] %v4216
        %4239 = vst [vmem:[%s247 + $0x78] sm:$0xff] %v4221
        %s4240 = sand.u32 %s159, 1
        %s4241 = scalar_lea.sflag [#allocation3], %s4240
        %s4242 = sand.u32 %s159, 1
        %s4243 = smul.addr %s4242, 128
        %s4244 = scalar_lea.vmem [#allocation2], %s4243
        // Predicated region
        $region45: #{tpu_custom_call.1} parent=43 // pred_check
          %p4245 = pneg %p169
        $region46: #{tpu_custom_call.1} parent=43 // pred_check_branch
          %4247 = sbr.rel (%p4245) target = $region48
        $region47: #{tpu_custom_call.1} parent=43 // pred_region
          %s4248 = smul.u32 2, %s20
          %s4250 = ssub.s32 2048, 2048
          %4251 = vsyncadd %s4241, %s4250
          %s4252 = smul.addr %s4248, 8
          %s4253 = smul.addr %s4252, 128
          %s4254 = scalar_lea.hbm %s6, %s4253
          %s4255 = sshll.u32 %s4244, 4
          %s4256 = int_to_ptr.vmem [resolvable:$true] %s4255
          %4261 = dma.vmem_to_hbm [thread:$0]  %s4256, 2048, %s4254, %s4241, 128, 128, 8
        $region48: #{tpu_custom_call.1} parent=43 // pred_fallthru
          _
      $region44: #{tpu_custom_call.1} parent=5 // pred_fallthru
        _
      %p4262 = scmp.le.s32.totalorder 2, %s15
      // Predicated region
      $region49: #{tpu_custom_call.1} parent=5 // pred_check
        %p4263 = pneg %p4262
      $region50: #{tpu_custom_call.1} parent=5 // pred_check_branch
        %4265 = sbr.rel (%p4263) target = $region52
      $region51: #{tpu_custom_call.1} parent=5 // pred_region
        %s4266 = ssub.s32 %s15, 2
        // Predicated region
        $region53: #{tpu_custom_call.1} parent=51 // pred_check
          %p4267 = pneg %p175
        $region54: #{tpu_custom_call.1} parent=51 // pred_check_branch
          %4269 = sbr.rel (%p4267) target = $region56
        $region55: #{tpu_custom_call.1} parent=51 // pred_region
          %s4270 = sand.u32 %s160, 1
          %s4271 = scalar_lea.sflag [#allocation3], %s4270
          %s4272 = sand.u32 %s160, 1
          %s4273 = smul.addr %s4272, 128
          %s4274 = scalar_lea.vmem [#allocation2], %s4273
          %4275 = dma.done %s4271, 2048
        $region56: #{tpu_custom_call.1} parent=51 // pred_fallthru
          _
      $region52: #{tpu_custom_call.1} parent=5 // pred_fallthru
        _
    $region6: #{tpu_custom_call.1} parent=1 // loop_footer
      %s19 = sadd.s32 1, %s15
    $region7: #{tpu_custom_call.1} parent=1 // loop_footer_branch
      %14 = sbr.rel target = $region3
    $region8: #{tpu_custom_call.1} parent=1 // loop_exit
      _
    %4276 = vsyncpa [#allocation3], 1
    %s4277 = scalar_lea.sflag [#allocation3], 1
    %4278 = vsyncpa %s4277, 1

// kernel: tpu_custom_call.1
$region0: #{tpu_custom_call.1}
  #allocation0 [shape = 'u32[]', space=smem, size = 0x4, offset = 0x4, fixed_abs, tag = 'smem constant byte address 0x4 - core index']
  #allocation1 [shape = 'u32[144,128]{1,0:T(1,128)}', space=vmem, size = 0x12000, scoped, tag = 'internal scratch']
  %s0 = inlined_call_operand.vmem [shape: f32[4,64,32], index: 0, kind: input, shape index: {}]
  %s1 = inlined_call_operand.vmem [shape: f32[32,96], index: 1, kind: input, shape index: {}]
  %s2 = inlined_call_operand.vmem [shape: f32[1,96], index: 2, kind: input, shape index: {}]
  %s3 = inlined_call_operand.vmem [shape: f32[4,64,64], index: 3, kind: input, shape index: {}]
  %s4 = inlined_call_operand.vmem [shape: f32[32,128], index: 4, kind: input, shape index: {}]
  %s5 = inlined_call_operand.vmem [shape: f32[1,128], index: 5, kind: input, shape index: {}]
  %s6 = inlined_call_operand.hbm [shape: f32[4,64,128], index: 6, kind: output, shape index: {}]
  %s7 = sld [smem:[#allocation0]]
  $region57: #{tpu_custom_call.1} parent=0
    _
  %s9 = ssub.s32 1, %s7
  %s10 = scalar_select 0, %s9, %s7
  $region1: #{tpu_custom_call.1} parent=0
    #allocation2 [shape = 'u8[131072]{0}', space=vmem, size = 0x20000, scoped, tag = 'output window, operand 0']
    #allocation3 [shape = 's32[2]{0}', space=sflag, size = 0x8, scoped, tag = 'scoped memory for tpu_custom_call.1']
    %11 = vsyncpa [#allocation3], 0
    %s12 = scalar_lea.sflag [#allocation3], 1
    %13 = vsyncpa %s12, 0
    loop: start=0, step=1, limit=4
    $region2: #{tpu_custom_call.1} parent=1 // loop_pre_header
      _
    $region3: #{tpu_custom_call.1} parent=1 // loop_header
      %s15 = sphi 0, %s19
      %p16 = scmp.ge.s32.totalorder %s15, 4
      %s25 = sphi 0, %s27
      %s28 = sphi 0, %s25
      %s29 = sphi 0, %s28
      %s45 = sphi 0, %s29
      %s49 = sphi 0, %s49
      %s51 = sphi 0, %s49
      %s52 = sphi 0, %s51
      %s66 = sphi 0, %s52
      %s70 = sphi 0, %s70
      %s72 = sphi 0, %s70
      %s73 = sphi 0, %s72
      %s87 = sphi 0, %s73
      %s91 = sphi 0, %s91
      %s93 = sphi 0, %s91
      %s94 = sphi 0, %s93
      %s108 = sphi 0, %s94
      %s112 = sphi 0, %s112
      %s114 = sphi 0, %s112
      %s115 = sphi 0, %s114
      %s129 = sphi 0, %s115
      %s133 = sphi 0, %s133
      %s135 = sphi 0, %s133
      %s136 = sphi 0, %s135
      %s150 = sphi 0, %s136
      %s156 = sphi 0, %s158
      %s159 = sphi 0, %s156
      %s160 = sphi 0, %s159
      %s176 = sphi 0, %s160
    $region4: #{tpu_custom_call.1} parent=1 // loop_header_branch
      %18 = sbr.rel (%p16) target = $region8
    $region5: #{tpu_custom_call.1} parent=1 // loop_body
      %s20 = ssub.s32 %s15, 1
      %s21 = ssub.s32 %s15, 2
      %s22 = sadd.s32 %s15, 1
      %s23 = ssub.s32 %s15, %s22
      %p24 = scmp.eq.s32.totalorder %s23, 0
      %s26 = sadd.s32 %s25, 1
      %s27 = scalar_select %p24, %s25, %s26
      %p30 = pneg %p24
      %p31 = scmp.eq.s32.totalorder %s15, 1
      %p32 = por %p30, %p31
      %p33 = scmp.ne.s32.totalorder %s25, %s28
      %p34 = scmp.eq.s32.totalorder %s15, 0
      %p35 = por %p33, %p34
      %p36 = scmp.ne.s32.totalorder %s25, %s28
      %p37 = scmp.eq.s32.totalorder %s20, 1
      %p38 = por %p36, %p37
      %p39 = scmp.ne.s32.totalorder %s28, %s29
      %p40 = scmp.eq.s32.totalorder %s20, 0
      %p41 = por %p39, %p40
      %p42 = scmp.ne.s32.totalorder %s28, %s29
      %p43 = scmp.eq.s32.totalorder %s21, 1
      %p44 = por %p42, %p43
      %p46 = scmp.ne.s32.totalorder %s29, %s45
      %p47 = scmp.eq.s32.totalorder %s21, 0
      %p48 = por %p46, %p47
      %s50 = sadd.s32 %s49, 1
      %p53 = scmp.eq.s32.totalorder %s15, 1
      %p54 = scmp.ne.s32.totalorder %s49, %s51
      %p55 = scmp.eq.s32.totalorder %s15, 0
      %p56 = por %p54, %p55
      %p57 = scmp.ne.s32.totalorder %s49, %s51
      %p58 = scmp.eq.s32.totalorder %s20, 1
      %p59 = por %p57, %p58
      %p60 = scmp.ne.s32.totalorder %s51, %s52
      %p61 = scmp.eq.s32.totalorder %s20, 0
      %p62 = por %p60, %p61
      %p63 = scmp.ne.s32.totalorder %s51, %s52
      %p64 = scmp.eq.s32.totalorder %s21, 1
      %p65 = por %p63, %p64
      %p67 = scmp.ne.s32.totalorder %s52, %s66
      %p68 = scmp.eq.s32.totalorder %s21, 0
      %p69 = por %p67, %p68
      %s71 = sadd.s32 %s70, 1
      %p74 = scmp.eq.s32.totalorder %s15, 1
      %p75 = scmp.ne.s32.totalorder %s70, %s72
      %p76 = scmp.eq.s32.totalorder %s15, 0
      %p77 = por %p75, %p76
      %p78 = scmp.ne.s32.totalorder %s70, %s72
      %p79 = scmp.eq.s32.totalorder %s20, 1
      %p80 = por %p78, %p79
      %p81 = scmp.ne.s32.totalorder %s72, %s73
      %p82 = scmp.eq.s32.totalorder %s20, 0
      %p83 = por %p81, %p82
      %p84 = scmp.ne.s32.totalorder %s72, %s73
      %p85 = scmp.eq.s32.totalorder %s21, 1
      %p86 = por %p84, %p85
      %p88 = scmp.ne.s32.totalorder %s73, %s87
      %p89 = scmp.eq.s32.totalorder %s21, 0
      %p90 = por %p88, %p89
      %s92 = sadd.s32 %s91, 1
      %p95 = scmp.eq.s32.totalorder %s15, 1
      %p96 = scmp.ne.s32.totalorder %s91, %s93
      %p97 = scmp.eq.s32.totalorder %s15, 0
      %p98 = por %p96, %p97
      %p99 = scmp.ne.s32.totalorder %s91, %s93
      %p100 = scmp.eq.s32.totalorder %s20, 1
      %p101 = por %p99, %p100
      %p102 = scmp.ne.s32.totalorder %s93, %s94
      %p103 = scmp.eq.s32.totalorder %s20, 0
      %p104 = por %p102, %p103
      %p105 = scmp.ne.s32.totalorder %s93, %s94
      %p106 = scmp.eq.s32.totalorder %s21, 1
      %p107 = por %p105, %p106
      %p109 = scmp.ne.s32.totalorder %s94, %s108
      %p110 = scmp.eq.s32.totalorder %s21, 0
      %p111 = por %p109, %p110
      %s113 = sadd.s32 %s112, 1
      %p116 = scmp.eq.s32.totalorder %s15, 1
      %p117 = scmp.ne.s32.totalorder %s112, %s114
      %p118 = scmp.eq.s32.totalorder %s15, 0
      %p119 = por %p117, %p118
      %p120 = scmp.ne.s32.totalorder %s112, %s114
      %p121 = scmp.eq.s32.totalorder %s20, 1
      %p122 = por %p120, %p121
      %p123 = scmp.ne.s32.totalorder %s114, %s115
      %p124 = scmp.eq.s32.totalorder %s20, 0
      %p125 = por %p123, %p124
      %p126 = scmp.ne.s32.totalorder %s114, %s115
      %p127 = scmp.eq.s32.totalorder %s21, 1
      %p128 = por %p126, %p127
      %p130 = scmp.ne.s32.totalorder %s115, %s129
      %p131 = scmp.eq.s32.totalorder %s21, 0
      %p132 = por %p130, %p131
      %s134 = sadd.s32 %s133, 1
      %p137 = scmp.eq.s32.totalorder %s15, 1
      %p138 = scmp.ne.s32.totalorder %s133, %s135
      %p139 = scmp.eq.s32.totalorder %s15, 0
      %p140 = por %p138, %p139
      %p141 = scmp.ne.s32.totalorder %s133, %s135
      %p142 = scmp.eq.s32.totalorder %s20, 1
      %p143 = por %p141, %p142
      %p144 = scmp.ne.s32.totalorder %s135, %s136
      %p145 = scmp.eq.s32.totalorder %s20, 0
      %p146 = por %p144, %p145
      %p147 = scmp.ne.s32.totalorder %s135, %s136
      %p148 = scmp.eq.s32.totalorder %s21, 1
      %p149 = por %p147, %p148
      %p151 = scmp.ne.s32.totalorder %s136, %s150
      %p152 = scmp.eq.s32.totalorder %s21, 0
      %p153 = por %p151, %p152
      %s154 = ssub.s32 %s15, %s22
      %p155 = scmp.eq.s32.totalorder %s154, 0
      %s157 = sadd.s32 %s156, 1
      %s158 = scalar_select %p155, %s156, %s157
      %p161 = pneg %p155
      %p162 = scmp.eq.s32.totalorder %s15, 1
      %p163 = por %p161, %p162
      %p164 = scmp.ne.s32.totalorder %s156, %s159
      %p165 = scmp.eq.s32.totalorder %s15, 0
      %p166 = por %p164, %p165
      %p167 = scmp.ne.s32.totalorder %s156, %s159
      %p168 = scmp.eq.s32.totalorder %s20, 1
      %p169 = por %p167, %p168
      %p170 = scmp.ne.s32.totalorder %s159, %s160
      %p171 = scmp.eq.s32.totalorder %s20, 0
      %p172 = por %p170, %p171
      %p173 = scmp.ne.s32.totalorder %s159, %s160
      %p174 = scmp.eq.s32.totalorder %s21, 1
      %p175 = por %p173, %p174
      %p177 = scmp.ne.s32.totalorder %s160, %s176
      %p178 = scmp.eq.s32.totalorder %s21, 0
      %p179 = por %p177, %p178
      %p180 = scmp.le.s32.totalorder 1, %s15
      %p181 = scmp.lt.s32.totalorder %s15, 3
      %p182 = pnand %p180, %p181
      %p183 = pneg %p182
      // Predicated region
      $region9: #{tpu_custom_call.1} parent=5 // pred_check
        _
      $region10: #{tpu_custom_call.1} parent=5 // pred_check_branch
        %185 = sbr.rel (%p182) target = $region12
      $region11: #{tpu_custom_call.1} parent=5 // pred_region
        %s186 = ssub.s32 %s15, 1
        // Predicated region
        $region13: #{tpu_custom_call.1} parent=11 // pred_check
          %p187 = pneg %p62
        $region14: #{tpu_custom_call.1} parent=11 // pred_check_branch
          %189 = sbr.rel (%p187) target = $region16
        $region15: #{tpu_custom_call.1} parent=11 // pred_region
          _
        $region16: #{tpu_custom_call.1} parent=11 // pred_fallthru
          _
        // Predicated region
        $region17: #{tpu_custom_call.1} parent=11 // pred_check
          %p190 = pneg %p83
        $region18: #{tpu_custom_call.1} parent=11 // pred_check_branch
          %192 = sbr.rel (%p190) target = $region20
        $region19: #{tpu_custom_call.1} parent=11 // pred_region
          _
        $region20: #{tpu_custom_call.1} parent=11 // pred_fallthru
          _
        // Predicated region
        $region21: #{tpu_custom_call.1} parent=11 // pred_check
          %p193 = pneg %p104
        $region22: #{tpu_custom_call.1} parent=11 // pred_check_branch
          %195 = sbr.rel (%p193) target = $region24
        $region23: #{tpu_custom_call.1} parent=11 // pred_region
          _
        $region24: #{tpu_custom_call.1} parent=11 // pred_fallthru
          _
        // Predicated region
        $region25: #{tpu_custom_call.1} parent=11 // pred_check
          %p196 = pneg %p125
        $region26: #{tpu_custom_call.1} parent=11 // pred_check_branch
          %198 = sbr.rel (%p196) target = $region28
        $region27: #{tpu_custom_call.1} parent=11 // pred_region
          _
        $region28: #{tpu_custom_call.1} parent=11 // pred_fallthru
          _
        // Predicated region
        $region29: #{tpu_custom_call.1} parent=11 // pred_check
          %p199 = pneg %p146
        $region30: #{tpu_custom_call.1} parent=11 // pred_check_branch
          %201 = sbr.rel (%p199) target = $region32
        $region31: #{tpu_custom_call.1} parent=11 // pred_region
          _
        $region32: #{tpu_custom_call.1} parent=11 // pred_fallthru
          _
      $region12: #{tpu_custom_call.1} parent=5 // pred_fallthru
        _
      %p202 = scmp.lt.s32.totalorder %s15, 2
      // Predicated region
      $region33: #{tpu_custom_call.1} parent=5 // pred_check
        %p203 = pneg %p202
      $region34: #{tpu_custom_call.1} parent=5 // pred_check_branch
        %205 = sbr.rel (%p203) target = $region36
      $region35: #{tpu_custom_call.1} parent=5 // pred_region
        // Predicated region
        $region37: #{tpu_custom_call.1} parent=35 // pred_check
          %p206 = pneg %p35
        $region38: #{tpu_custom_call.1} parent=35 // pred_check_branch
          %208 = sbr.rel (%p206) target = $region40
        $region39: #{tpu_custom_call.1} parent=35 // pred_region
          %s209 = smul.u32 2, %s15
          %p210 = scmp.lt.s32.totalorder %s209, 3
          %s211 = scalar_select %p210, %s209, 3
          %s212 = smul.addr %s211, 8
          %s213 = smul.addr %s212, 8
          %s214 = scalar_lea.vmem %s0, %s213
          %s215 = smul.u32 2, %s15
        $region40: #{tpu_custom_call.1} parent=35 // pred_fallthru
          _
      $region36: #{tpu_custom_call.1} parent=5 // pred_fallthru
        _
      %p216 = scmp.le.s32.totalorder 1, %s15
      %p217 = scmp.lt.s32.totalorder %s15, 3
      %p218 = pnand %p216, %p217
      %p219 = pneg %p218
      // Predicated region
      $region41: #{tpu_custom_call.1} parent=5 // pred_check
        _
      $region42: #{tpu_custom_call.1} parent=5 // pred_check_branch
        %221 = sbr.rel (%p218) target = $region44
      $region43: #{tpu_custom_call.1} parent=5 // pred_region
        %s222 = ssub.s32 %s15, 1
        %s223 = smul.u32 2, %s20
        %p224 = scmp.lt.s32.totalorder %s223, 3
        %s225 = scalar_select %p224, %s223, 3
        %s226 = smul.addr %s225, 8
        %s227 = smul.addr %s226, 8
        %s228 = scalar_lea.vmem %s0, %s227
        %p229 = pneg %p41
        %p230 = pneg %p38
        %p231 = pneg %p62
        %p232 = pneg %p59
        %p233 = pneg %p83
        %p234 = pneg %p80
        %p235 = pneg %p104
        %p236 = pneg %p101
        %p237 = pneg %p125
        %p238 = pneg %p122
        %p239 = pneg %p146
        %p240 = pneg %p143
        %p241 = pneg %p172
        %p242 = pneg %p169
        %s243 = sand.u32 %s159, 1
        %s244 = scalar_lea.sflag [#allocation3], %s243
        %s245 = sand.u32 %s159, 1
        %s246 = smul.addr %s245, 128
        %s247 = scalar_lea.vmem [#allocation2], %s246
        %s248 = smul.u32 2, %s20
        %p249 = scmp.lt.s32.totalorder %s248, 3
        %s250 = scalar_select %p249, %s248, 3
        %s251 = smul.addr %s250, 8
        %s252 = smul.addr %s251, 8
        %s253 = scalar_lea.vmem %s0, %s252
        %s254 = smul.u32 2, %s20
        %s255 = smul.u32 2, %s20
        %v256 = vld [vmem:[%s253] sm:$0xff]
        %v257 = vld [vmem:[%s253 + $0x8] sm:$0xff]
        %v258 = vld [vmem:[%s253 + $0x10] sm:$0xff]
        %v259 = vld [vmem:[%s253 + $0x18] sm:$0xff]
        %v260 = vld [vmem:[%s253 + $0x20] sm:$0xff]
        %v261 = vld [vmem:[%s253 + $0x28] sm:$0xff]
        %v262 = vld [vmem:[%s253 + $0x30] sm:$0xff]
        %v263 = vld [vmem:[%s253 + $0x38] sm:$0xff]
        %v264 = vld [vmem:[%s253 + $0x40] sm:$0xff]
        %v265 = vld [vmem:[%s253 + $0x48] sm:$0xff]
        %v266 = vld [vmem:[%s253 + $0x50] sm:$0xff]
        %v267 = vld [vmem:[%s253 + $0x58] sm:$0xff]
        %v268 = vld [vmem:[%s253 + $0x60] sm:$0xff]
        %v269 = vld [vmem:[%s253 + $0x68] sm:$0xff]
        %v270 = vld [vmem:[%s253 + $0x70] sm:$0xff]
        %v271 = vld [vmem:[%s253 + $0x78] sm:$0xff]
        %v272 = vld [vmem:[%s1] sm:$0xff]
        %v273 = vld [vmem:[%s1 + $0x8] sm:$0xff]
        %v274 = vld [vmem:[%s1 + $0x10] sm:$0xff]
        %v275 = vld [vmem:[%s1 + $0x18] sm:$0xff]
        %v276 = vld [vmem:[%s2] sm:$0x1]
        %v278 = vlaneseq
        %v279 = vshrl.u32 %v278, 7
        %v280 = vsub.s32 0, %v279
        %v281 = vrot.slane %v276, %v280
        %vm283 = vcmask 261120
        %v285 = vsel %vm283, %v256, 0
        %v288 = vsel %vm283, %v257, 0
        %v291 = vsel %vm283, %v258, 0
        %v294 = vsel %vm283, %v259, 0
        %v297 = vsel %vm283, %v260, 0
        %v300 = vsel %vm283, %v261, 0
        %v303 = vsel %vm283, %v262, 0
        %v306 = vsel %vm283, %v263, 0
        %v309 = vsel %vm283, %v264, 0
        %v312 = vsel %vm283, %v265, 0
        %v315 = vsel %vm283, %v266, 0
        %v318 = vsel %vm283, %v267, 0
        %v321 = vsel %vm283, %v268, 0
        %v324 = vsel %vm283, %v269, 0
        %v327 = vsel %vm283, %v270, 0
        %v330 = vsel %vm283, %v271, 0
        %332 = vmatprep.subr.mxu0 0.0
        %333 = vmatpush1.msra.mxu0 %v272
        %334 = vmatprep.subr.mxu0 0.0
        %335 = vmatpush1.msra.mxu0 %v273
        %336 = vmatprep.subr.mxu0 0.0
        %337 = vmatpush1.msra.mxu0 %v274
        %338 = vmatprep.subr.mxu0 0.0
        %339 = vmatpush1.msra.mxu0 %v275
        %340 = vmatprep.subr.mxu0 0.0
        %341 = vmatpush1.msra.mxu0 0.0
        %342 = vmatprep.subr.mxu0 0.0
        %343 = vmatpush1.msra.mxu0 0.0
        %344 = vmatprep.subr.mxu0 0.0
        %345 = vmatpush1.msra.mxu0 0.0
        %346 = vmatprep.subr.mxu0 0.0
        %347 = vmatpush1.msra.mxu0 0.0
        %348 = vmatprep.subr.mxu0 0.0
        %349 = vmatpush1.msra.mxu0 0.0
        %350 = vmatprep.subr.mxu0 0.0
        %351 = vmatpush1.msra.mxu0 0.0
        %352 = vmatprep.subr.mxu0 0.0
        %353 = vmatpush1.msra.mxu0 0.0
        %354 = vmatprep.subr.mxu0 0.0
        %355 = vmatpush1.msra.mxu0 0.0
        %356 = vmatprep.subr.mxu0 0.0
        %357 = vmatpush1.msra.mxu0 0.0
        %358 = vmatprep.subr.mxu0 0.0
        %359 = vmatpush1.msra.mxu0 0.0
        %360 = vmatprep.subr.mxu0 0.0
        %361 = vmatpush1.msra.mxu0 0.0
        %362 = vmatprep.subr.mxu0 0.0
        %363 = vmatpush1.msra.mxu0 0.0
        %364 = vmatprep.subr.mxu0 0.0
        %365 = vmatpush1.msra.mxu0 0.0
        %366 = vmatprep.subr.mxu0 0.0
        %367 = vmatpush1.msra.mxu0 0.0
        %368 = vmatprep.subr.mxu0 0.0
        %369 = vmatpush1.msra.mxu0 0.0
        %370 = vmatprep.subr.mxu0 0.0
        %371 = vmatpush1.msra.mxu0 0.0
        %372 = vmatprep.subr.mxu0 0.0
        %373 = vmatpush1.msra.mxu0 0.0
        %374 = vmatprep.subr.mxu0 0.0
        %375 = vmatpush1.msra.mxu0 0.0
        %376 = vmatprep.subr.mxu0 0.0
        %377 = vmatpush1.msra.mxu0 0.0
        %378 = vmatprep.subr.mxu0 0.0
        %379 = vmatpush1.msra.mxu0 0.0
        %380 = vmatprep.subr.mxu0 0.0
        %381 = vmatpush1.msra.mxu0 0.0
        %382 = vmatprep.subr.mxu0 0.0
        %383 = vmatpush1.msra.mxu0 0.0
        %384 = vmatprep.subr.mxu0 0.0
        %385 = vmatpush1.msra.mxu0 0.0
        %386 = vmatprep.subr.mxu0 0.0
        %387 = vmatpush1.msra.mxu0 0.0
        %388 = vmatprep.subr.mxu0 0.0
        %389 = vmatpush1.msra.mxu0 0.0
        %390 = vmatprep.subr.mxu0 0.0
        %391 = vmatpush1.msra.mxu0 0.0
        %392 = vmatprep.subr.mxu0 0.0
        %393 = vmatpush1.msra.mxu0 0.0
        %394 = vmatprep.subr.mxu0 0.0
        %395 = vmatpush1.msra.mxu0 0.0
        %396 = vmatprep.mubr.f32.mxu0 0.0
        %397 = vmatmul.mubr.f32.gmra.mrb[0].mxu0 %v285
        %v398 = vpop.f32.mrb[0].mxu0
        %v399 = vadd.f32 %v281, %v398
        %v400 = vpop.f32.mrb[0].mxu0
        %401 = vmatprep.mubr.f32.mxu0 0.0
        %402 = vmatmul.mubr.f32.gmra.mrb[0].mxu0 %v288
        %v403 = vpop.f32.mrb[0].mxu0
        %v404 = vadd.f32 %v281, %v403
        %v405 = vpop.f32.mrb[0].mxu0
        %406 = vmatprep.mubr.f32.mxu0 0.0
        %407 = vmatmul.mubr.f32.gmra.mrb[0].mxu0 %v291
        %v408 = vpop.f32.mrb[0].mxu0
        %v409 = vadd.f32 %v281, %v408
        %v410 = vpop.f32.mrb[0].mxu0
        %411 = vmatprep.mubr.f32.mxu0 0.0
        %412 = vmatmul.mubr.f32.gmra.mrb[0].mxu0 %v294
        %v413 = vpop.f32.mrb[0].mxu0
        %v414 = vadd.f32 %v281, %v413
        %v415 = vpop.f32.mrb[0].mxu0
        %416 = vmatprep.mubr.f32.mxu0 0.0
        %417 = vmatmul.mubr.f32.gmra.mrb[0].mxu0 %v297
        %v418 = vpop.f32.mrb[0].mxu0
        %v419 = vadd.f32 %v281, %v418
        %v420 = vpop.f32.mrb[0].mxu0
        %421 = vmatprep.mubr.f32.mxu0 0.0
        %422 = vmatmul.mubr.f32.gmra.mrb[0].mxu0 %v300
        %v423 = vpop.f32.mrb[0].mxu0
        %v424 = vadd.f32 %v281, %v423
        %v425 = vpop.f32.mrb[0].mxu0
        %426 = vmatprep.mubr.f32.mxu0 0.0
        %427 = vmatmul.mubr.f32.gmra.mrb[0].mxu0 %v303
        %v428 = vpop.f32.mrb[0].mxu0
        %v429 = vadd.f32 %v281, %v428
        %v430 = vpop.f32.mrb[0].mxu0
        %431 = vmatprep.mubr.f32.mxu0 0.0
        %432 = vmatmul.mubr.f32.gmra.mrb[0].mxu0 %v306
        %v433 = vpop.f32.mrb[0].mxu0
        %v434 = vadd.f32 %v281, %v433
        %v435 = vpop.f32.mrb[0].mxu0
        %436 = vmatprep.mubr.f32.mxu0 0.0
        %437 = vmatmul.mubr.f32.gmra.mrb[0].mxu0 %v309
        %v438 = vpop.f32.mrb[0].mxu0
        %v439 = vadd.f32 %v281, %v438
        %v440 = vpop.f32.mrb[0].mxu0
        %441 = vmatprep.mubr.f32.mxu0 0.0
        %442 = vmatmul.mubr.f32.gmra.mrb[0].mxu0 %v312
        %v443 = vpop.f32.mrb[0].mxu0
        %v444 = vadd.f32 %v281, %v443
        %v445 = vpop.f32.mrb[0].mxu0
        %446 = vmatprep.mubr.f32.mxu0 0.0
        %447 = vmatmul.mubr.f32.gmra.mrb[0].mxu0 %v315
        %v448 = vpop.f32.mrb[0].mxu0
        %v449 = vadd.f32 %v281, %v448
        %v450 = vpop.f32.mrb[0].mxu0
        %451 = vmatprep.mubr.f32.mxu0 0.0
        %452 = vmatmul.mubr.f32.gmra.mrb[0].mxu0 %v318
        %v453 = vpop.f32.mrb[0].mxu0
        %v454 = vadd.f32 %v281, %v453
        %v455 = vpop.f32.mrb[0].mxu0
        %456 = vmatprep.mubr.f32.mxu0 0.0
        %457 = vmatmul.mubr.f32.gmra.mrb[0].mxu0 %v321
        %v458 = vpop.f32.mrb[0].mxu0
        %v459 = vadd.f32 %v281, %v458
        %v460 = vpop.f32.mrb[0].mxu0
        %461 = vmatprep.mubr.f32.mxu0 0.0
        %462 = vmatmul.mubr.f32.gmra.mrb[0].mxu0 %v324
        %v463 = vpop.f32.mrb[0].mxu0
        %v464 = vadd.f32 %v281, %v463
        %v465 = vpop.f32.mrb[0].mxu0
        %466 = vmatprep.mubr.f32.mxu0 0.0
        %467 = vmatmul.mubr.f32.gmra.mrb[0].mxu0 %v327
        %v468 = vpop.f32.mrb[0].mxu0
        %v469 = vadd.f32 %v281, %v468
        %v470 = vpop.f32.mrb[0].mxu0
        %471 = vmatprep.mubr.f32.mxu0 0.0
        %472 = vmatmul.mubr.f32.gmra.mrb[0].mxu0 %v330
        %v473 = vpop.f32.mrb[0].mxu0
        %v474 = vadd.f32 %v281, %v473
        %v475 = vpop.f32.mrb[0].mxu0
        %476 = vdwg.mxu0
        %v477 = vld [vmem:[%s3] sm:$0xff]
        %v478 = vld [vmem:[%s3 + $0x8] sm:$0xff]
        %v479 = vld [vmem:[%s3 + $0x10] sm:$0xff]
        %v480 = vld [vmem:[%s3 + $0x18] sm:$0xff]
        %v481 = vld [vmem:[%s3 + $0x20] sm:$0xff]
        %v482 = vld [vmem:[%s3 + $0x28] sm:$0xff]
        %v483 = vld [vmem:[%s3 + $0x30] sm:$0xff]
        %v484 = vld [vmem:[%s3 + $0x38] sm:$0xff]
        %493 = vrot.lane.b32.xlu0 %v399, 96
        %v494 = vpop.permute.xlu0 %493
        %495 = vrot.lane.b32.xlu0 %v404, 96
        %v496 = vpop.permute.xlu0 %495
        %497 = vrot.lane.b32.xlu0 %v409, 96
        %v498 = vpop.permute.xlu0 %497
        %499 = vrot.lane.b32.xlu0 %v414, 96
        %v500 = vpop.permute.xlu0 %499
        %501 = vrot.lane.b32.xlu0 %v419, 96
        %v502 = vpop.permute.xlu0 %501
        %503 = vrot.lane.b32.xlu0 %v424, 96
        %v504 = vpop.permute.xlu0 %503
        %505 = vrot.lane.b32.xlu0 %v429, 96
        %v506 = vpop.permute.xlu0 %505
        %507 = vrot.lane.b32.xlu0 %v434, 96
        %v508 = vpop.permute.xlu0 %507
        %vm509 = vcmask 64512
        %v510 = vsel %vm509, %v399, 0
        %v512 = vsel %vm509, %v404, 0
        %v514 = vsel %vm509, %v409, 0
        %v516 = vsel %vm509, %v414, 0
        %v518 = vsel %vm509, %v419, 0
        %v520 = vsel %vm509, %v424, 0
        %v522 = vsel %vm509, %v429, 0
        %v524 = vsel %vm509, %v434, 0
        %v526 = vsel %vm509, %v494, 0
        %v528 = vsel %vm509, %v496, 0
        %v530 = vsel %vm509, %v498, 0
        %v532 = vsel %vm509, %v500, 0
        %v534 = vsel %vm509, %v502, 0
        %v536 = vsel %vm509, %v504, 0
        %v538 = vsel %vm509, %v506, 0
        %v540 = vsel %vm509, %v508, 0
        %542 = vmatprep.subr.mxu0 0.0
        %543 = vmatpush1.xpose.msra.mxu0 %v526
        %544 = vmatprep.subr.mxu0 0.0
        %545 = vmatpush1.xpose.msra.mxu0 %v528
        %546 = vmatprep.subr.mxu0 0.0
        %547 = vmatpush1.xpose.msra.mxu0 %v530
        %548 = vmatprep.subr.mxu0 0.0
        %549 = vmatpush1.xpose.msra.mxu0 %v532
        %550 = vmatprep.subr.mxu0 0.0
        %551 = vmatpush1.xpose.msra.mxu0 %v534
        %552 = vmatprep.subr.mxu0 0.0
        %553 = vmatpush1.xpose.msra.mxu0 %v536
        %554 = vmatprep.subr.mxu0 0.0
        %555 = vmatpush1.xpose.msra.mxu0 %v538
        %556 = vmatprep.subr.mxu0 0.0
        %557 = vmatpush1.xpose.msra.mxu0 %v540
        %558 = vmatprep.subr.mxu0 0.0
        %559 = vmatpush1.xpose.msra.mxu0 0.0
        %560 = vmatprep.subr.mxu0 0.0
        %561 = vmatpush1.xpose.msra.mxu0 0.0
        %562 = vmatprep.subr.mxu0 0.0
        %563 = vmatpush1.xpose.msra.mxu0 0.0
        %564 = vmatprep.subr.mxu0 0.0
        %565 = vmatpush1.xpose.msra.mxu0 0.0
        %566 = vmatprep.subr.mxu0 0.0
        %567 = vmatpush1.xpose.msra.mxu0 0.0
        %568 = vmatprep.subr.mxu0 0.0
        %569 = vmatpush1.xpose.msra.mxu0 0.0
        %570 = vmatprep.subr.mxu0 0.0
        %571 = vmatpush1.xpose.msra.mxu0 0.0
        %572 = vmatprep.subr.mxu0 0.0
        %573 = vmatpush1.xpose.msra.mxu0 0.0
        %574 = vmatprep.subr.mxu0 0.0
        %575 = vmatpush1.xpose.msra.mxu0 0.0
        %576 = vmatprep.subr.mxu0 0.0
        %577 = vmatpush1.xpose.msra.mxu0 0.0
        %578 = vmatprep.subr.mxu0 0.0
        %579 = vmatpush1.xpose.msra.mxu0 0.0
        %580 = vmatprep.subr.mxu0 0.0
        %581 = vmatpush1.xpose.msra.mxu0 0.0
        %582 = vmatprep.subr.mxu0 0.0
        %583 = vmatpush1.xpose.msra.mxu0 0.0
        %584 = vmatprep.subr.mxu0 0.0
        %585 = vmatpush1.xpose.msra.mxu0 0.0
        %586 = vmatprep.subr.mxu0 0.0
        %587 = vmatpush1.xpose.msra.mxu0 0.0
        %588 = vmatprep.subr.mxu0 0.0
        %589 = vmatpush1.xpose.msra.mxu0 0.0
        %590 = vmatprep.subr.mxu0 0.0
        %591 = vmatpush1.xpose.msra.mxu0 0.0
        %592 = vmatprep.subr.mxu0 0.0
        %593 = vmatpush1.xpose.msra.mxu0 0.0
        %594 = vmatprep.subr.mxu0 0.0
        %595 = vmatpush1.xpose.msra.mxu0 0.0
        %596 = vmatprep.subr.mxu0 0.0
        %597 = vmatpush1.xpose.msra.mxu0 0.0
        %598 = vmatprep.subr.mxu0 0.0
        %599 = vmatpush1.xpose.msra.mxu0 0.0
        %600 = vmatprep.subr.mxu0 0.0
        %601 = vmatpush1.xpose.msra.mxu0 0.0
        %602 = vmatprep.subr.mxu0 0.0
        %603 = vmatpush1.xpose.msra.mxu0 0.0
        %604 = vmatprep.subr.mxu0 0.0
        %605 = vmatpush1.xpose.msra.mxu0 0.0
        %606 = vmatprep.mubr.f32.mxu0 0.0
        %607 = vmatmul.mubr.f32.gmra.mrb[0].mxu0 %v510
        %v608 = vpop.f32.mrb[0].mxu0
        %v609 = vadd.f32 %v477, %v608
        %v610 = vpop.f32.mrb[0].mxu0
        %611 = vmatprep.mubr.f32.mxu0 0.0
        %612 = vmatmul.mubr.f32.gmra.mrb[0].mxu0 %v512
        %v613 = vpop.f32.mrb[0].mxu0
        %v614 = vadd.f32 %v478, %v613
        %v615 = vpop.f32.mrb[0].mxu0
        %616 = vmatprep.mubr.f32.mxu0 0.0
        %617 = vmatmul.mubr.f32.gmra.mrb[0].mxu0 %v514
        %v618 = vpop.f32.mrb[0].mxu0
        %v619 = vadd.f32 %v479, %v618
        %v620 = vpop.f32.mrb[0].mxu0
        %621 = vmatprep.mubr.f32.mxu0 0.0
        %622 = vmatmul.mubr.f32.gmra.mrb[0].mxu0 %v516
        %v623 = vpop.f32.mrb[0].mxu0
        %v624 = vadd.f32 %v480, %v623
        %v625 = vpop.f32.mrb[0].mxu0
        %626 = vmatprep.mubr.f32.mxu0 0.0
        %627 = vmatmul.mubr.f32.gmra.mrb[0].mxu0 %v518
        %v628 = vpop.f32.mrb[0].mxu0
        %v629 = vadd.f32 %v481, %v628
        %v630 = vpop.f32.mrb[0].mxu0
        %631 = vmatprep.mubr.f32.mxu0 0.0
        %632 = vmatmul.mubr.f32.gmra.mrb[0].mxu0 %v520
        %v633 = vpop.f32.mrb[0].mxu0
        %v634 = vadd.f32 %v482, %v633
        %v635 = vpop.f32.mrb[0].mxu0
        %636 = vmatprep.mubr.f32.mxu0 0.0
        %637 = vmatmul.mubr.f32.gmra.mrb[0].mxu0 %v522
        %v638 = vpop.f32.mrb[0].mxu0
        %v639 = vadd.f32 %v483, %v638
        %v640 = vpop.f32.mrb[0].mxu0
        %641 = vmatprep.mubr.f32.mxu0 0.0
        %642 = vmatmul.mubr.f32.gmra.mrb[0].mxu0 %v524
        %v643 = vpop.f32.mrb[0].mxu0
        %v644 = vadd.f32 %v484, %v643
        %v645 = vpop.f32.mrb[0].mxu0
        %646 = vdwg.mxu0
        %655 = vrot.lane.b32.xlu0 %v439, 96
        %v656 = vpop.permute.xlu0 %655
        %657 = vrot.lane.b32.xlu0 %v444, 96
        %v658 = vpop.permute.xlu0 %657
        %659 = vrot.lane.b32.xlu0 %v449, 96
        %v660 = vpop.permute.xlu0 %659
        %661 = vrot.lane.b32.xlu0 %v454, 96
        %v662 = vpop.permute.xlu0 %661
        %663 = vrot.lane.b32.xlu0 %v459, 96
        %v664 = vpop.permute.xlu0 %663
        %665 = vrot.lane.b32.xlu0 %v464, 96
        %v666 = vpop.permute.xlu0 %665
        %667 = vrot.lane.b32.xlu0 %v469, 96
        %v668 = vpop.permute.xlu0 %667
        %669 = vrot.lane.b32.xlu0 %v474, 96
        %v670 = vpop.permute.xlu0 %669
        %v671 = vsel %vm509, %v439, 0
        %v673 = vsel %vm509, %v444, 0
        %v675 = vsel %vm509, %v449, 0
        %v677 = vsel %vm509, %v454, 0
        %v679 = vsel %vm509, %v459, 0
        %v681 = vsel %vm509, %v464, 0
        %v683 = vsel %vm509, %v469, 0
        %v685 = vsel %vm509, %v474, 0
        %v687 = vsel %vm509, %v656, 0
        %v689 = vsel %vm509, %v658, 0
        %v691 = vsel %vm509, %v660, 0
        %v693 = vsel %vm509, %v662, 0
        %v695 = vsel %vm509, %v664, 0
        %v697 = vsel %vm509, %v666, 0
        %v699 = vsel %vm509, %v668, 0
        %v701 = vsel %vm509, %v670, 0
        %703 = vmatprep.subr.mxu0 0.0
        %704 = vmatpush1.xpose.msra.mxu0 %v687
        %705 = vmatprep.subr.mxu0 0.0
        %706 = vmatpush1.xpose.msra.mxu0 %v689
        %707 = vmatprep.subr.mxu0 0.0
        %708 = vmatpush1.xpose.msra.mxu0 %v691
        %709 = vmatprep.subr.mxu0 0.0
        %710 = vmatpush1.xpose.msra.mxu0 %v693
        %711 = vmatprep.subr.mxu0 0.0
        %712 = vmatpush1.xpose.msra.mxu0 %v695
        %713 = vmatprep.subr.mxu0 0.0
        %714 = vmatpush1.xpose.msra.mxu0 %v697
        %715 = vmatprep.subr.mxu0 0.0
        %716 = vmatpush1.xpose.msra.mxu0 %v699
        %717 = vmatprep.subr.mxu0 0.0
        %718 = vmatpush1.xpose.msra.mxu0 %v701
        %719 = vmatprep.subr.mxu0 0.0
        %720 = vmatpush1.xpose.msra.mxu0 0.0
        %721 = vmatprep.subr.mxu0 0.0
        %722 = vmatpush1.xpose.msra.mxu0 0.0
        %723 = vmatprep.subr.mxu0 0.0
        %724 = vmatpush1.xpose.msra.mxu0 0.0
        %725 = vmatprep.subr.mxu0 0.0
        %726 = vmatpush1.xpose.msra.mxu0 0.0
        %727 = vmatprep.subr.mxu0 0.0
        %728 = vmatpush1.xpose.msra.mxu0 0.0
        %729 = vmatprep.subr.mxu0 0.0
        %730 = vmatpush1.xpose.msra.mxu0 0.0
        %731 = vmatprep.subr.mxu0 0.0
        %732 = vmatpush1.xpose.msra.mxu0 0.0
        %733 = vmatprep.subr.mxu0 0.0
        %734 = vmatpush1.xpose.msra.mxu0 0.0
        %735 = vmatprep.subr.mxu0 0.0
        %736 = vmatpush1.xpose.msra.mxu0 0.0
        %737 = vmatprep.subr.mxu0 0.0
        %738 = vmatpush1.xpose.msra.mxu0 0.0
        %739 = vmatprep.subr.mxu0 0.0
        %740 = vmatpush1.xpose.msra.mxu0 0.0
        %741 = vmatprep.subr.mxu0 0.0
        %742 = vmatpush1.xpose.msra.mxu0 0.0
        %743 = vmatprep.subr.mxu0 0.0
        %744 = vmatpush1.xpose.msra.mxu0 0.0
        %745 = vmatprep.subr.mxu0 0.0
        %746 = vmatpush1.xpose.msra.mxu0 0.0
        %747 = vmatprep.subr.mxu0 0.0
        %748 = vmatpush1.xpose.msra.mxu0 0.0
        %749 = vmatprep.subr.mxu0 0.0
        %750 = vmatpush1.xpose.msra.mxu0 0.0
        %751 = vmatprep.subr.mxu0 0.0
        %752 = vmatpush1.xpose.msra.mxu0 0.0
        %753 = vmatprep.subr.mxu0 0.0
        %754 = vmatpush1.xpose.msra.mxu0 0.0
        %755 = vmatprep.subr.mxu0 0.0
        %756 = vmatpush1.xpose.msra.mxu0 0.0
        %757 = vmatprep.subr.mxu0 0.0
        %758 = vmatpush1.xpose.msra.mxu0 0.0
        %759 = vmatprep.subr.mxu0 0.0
        %760 = vmatpush1.xpose.msra.mxu0 0.0
        %761 = vmatprep.subr.mxu0 0.0
        %762 = vmatpush1.xpose.msra.mxu0 0.0
        %763 = vmatprep.subr.mxu0 0.0
        %764 = vmatpush1.xpose.msra.mxu0 0.0
        %765 = vmatprep.subr.mxu0 0.0
        %766 = vmatpush1.xpose.msra.mxu0 0.0
        %767 = vmatprep.mubr.f32.mxu0 0.0
        %768 = vmatmul.mubr.f32.gmra.mrb[0].mxu0 %v671
        %v769 = vpop.f32.mrb[0].mxu0
        %v770 = vadd.f32 %v477, %v769
        %v771 = vpop.f32.mrb[0].mxu0
        %772 = vmatprep.mubr.f32.mxu0 0.0
        %773 = vmatmul.mubr.f32.gmra.mrb[0].mxu0 %v673
        %v774 = vpop.f32.mrb[0].mxu0
        %v775 = vadd.f32 %v478, %v774
        %v776 = vpop.f32.mrb[0].mxu0
        %777 = vmatprep.mubr.f32.mxu0 0.0
        %778 = vmatmul.mubr.f32.gmra.mrb[0].mxu0 %v675
        %v779 = vpop.f32.mrb[0].mxu0
        %v780 = vadd.f32 %v479, %v779
        %v781 = vpop.f32.mrb[0].mxu0
        %782 = vmatprep.mubr.f32.mxu0 0.0
        %783 = vmatmul.mubr.f32.gmra.mrb[0].mxu0 %v677
        %v784 = vpop.f32.mrb[0].mxu0
        %v785 = vadd.f32 %v480, %v784
        %v786 = vpop.f32.mrb[0].mxu0
        %787 = vmatprep.mubr.f32.mxu0 0.0
        %788 = vmatmul.mubr.f32.gmra.mrb[0].mxu0 %v679
        %v789 = vpop.f32.mrb[0].mxu0
        %v790 = vadd.f32 %v481, %v789
        %v791 = vpop.f32.mrb[0].mxu0
        %792 = vmatprep.mubr.f32.mxu0 0.0
        %793 = vmatmul.mubr.f32.gmra.mrb[0].mxu0 %v681
        %v794 = vpop.f32.mrb[0].mxu0
        %v795 = vadd.f32 %v482, %v794
        %v796 = vpop.f32.mrb[0].mxu0
        %797 = vmatprep.mubr.f32.mxu0 0.0
        %798 = vmatmul.mubr.f32.gmra.mrb[0].mxu0 %v683
        %v799 = vpop.f32.mrb[0].mxu0
        %v800 = vadd.f32 %v483, %v799
        %v801 = vpop.f32.mrb[0].mxu0
        %802 = vmatprep.mubr.f32.mxu0 0.0
        %803 = vmatmul.mubr.f32.gmra.mrb[0].mxu0 %v685
        %v804 = vpop.f32.mrb[0].mxu0
        %v805 = vadd.f32 %v484, %v804
        %v806 = vpop.f32.mrb[0].mxu0
        %807 = vdwg.mxu0
        %vm808 = vcmask 523264
        %v809 = vsel %vm808, %v609, -inf
        %810 = vmax.xlane.f32.xlu0 %v809
        %v811 = vpop.xlane.xlu0 %810
        %v812 = vsel %vm808, %v614, -inf
        %813 = vmax.xlane.f32.xlu0 %v812
        %v814 = vpop.xlane.xlu0 %813
        %v815 = vsel %vm808, %v619, -inf
        %816 = vmax.xlane.f32.xlu0 %v815
        %v817 = vpop.xlane.xlu0 %816
        %v818 = vsel %vm808, %v624, -inf
        %819 = vmax.xlane.f32.xlu0 %v818
        %v820 = vpop.xlane.xlu0 %819
        %v821 = vsel %vm808, %v629, -inf
        %822 = vmax.xlane.f32.xlu0 %v821
        %v823 = vpop.xlane.xlu0 %822
        %v824 = vsel %vm808, %v634, -inf
        %825 = vmax.xlane.f32.xlu0 %v824
        %v826 = vpop.xlane.xlu0 %825
        %v827 = vsel %vm808, %v639, -inf
        %828 = vmax.xlane.f32.xlu0 %v827
        %v829 = vpop.xlane.xlu0 %828
        %v830 = vsel %vm808, %v644, -inf
        %831 = vmax.xlane.f32.xlu0 %v830
        %v832 = vpop.xlane.xlu0 %831
        %v833 = vsel %vm808, %v770, -inf
        %834 = vmax.xlane.f32.xlu0 %v833
        %v835 = vpop.xlane.xlu0 %834
        %v836 = vsel %vm808, %v775, -inf
        %837 = vmax.xlane.f32.xlu0 %v836
        %v838 = vpop.xlane.xlu0 %837
        %v839 = vsel %vm808, %v780, -inf
        %840 = vmax.xlane.f32.xlu0 %v839
        %v841 = vpop.xlane.xlu0 %840
        %v842 = vsel %vm808, %v785, -inf
        %843 = vmax.xlane.f32.xlu0 %v842
        %v844 = vpop.xlane.xlu0 %843
        %v845 = vsel %vm808, %v790, -inf
        %846 = vmax.xlane.f32.xlu0 %v845
        %v847 = vpop.xlane.xlu0 %846
        %v848 = vsel %vm808, %v795, -inf
        %849 = vmax.xlane.f32.xlu0 %v848
        %v850 = vpop.xlane.xlu0 %849
        %v851 = vsel %vm808, %v800, -inf
        %852 = vmax.xlane.f32.xlu0 %v851
        %v853 = vpop.xlane.xlu0 %852
        %v854 = vsel %vm808, %v805, -inf
        %855 = vmax.xlane.f32.xlu0 %v854
        %v856 = vpop.xlane.xlu0 %855
        %v857 = vsub.f32 %v609, %v811
        %v858 = vsub.f32 %v614, %v814
        %v859 = vsub.f32 %v619, %v817
        %v860 = vsub.f32 %v624, %v820
        %v861 = vsub.f32 %v629, %v823
        %v862 = vsub.f32 %v634, %v826
        %v863 = vsub.f32 %v639, %v829
        %v864 = vsub.f32 %v644, %v832
        %v865 = vsub.f32 %v770, %v835
        %v866 = vsub.f32 %v775, %v838
        %v867 = vsub.f32 %v780, %v841
        %v868 = vsub.f32 %v785, %v844
        %v869 = vsub.f32 %v790, %v847
        %v870 = vsub.f32 %v795, %v850
        %v871 = vsub.f32 %v800, %v853
        %v872 = vsub.f32 %v805, %v856
        %v873 = vmul.f32 %v857, 1.442695
        %v874 = vpow.pop %v873
        %v875 = vmul.f32 %v858, 1.442695
        %v876 = vpow.pop %v875
        %v877 = vmul.f32 %v859, 1.442695
        %v878 = vpow.pop %v877
        %v879 = vmul.f32 %v860, 1.442695
        %v880 = vpow.pop %v879
        %v881 = vmul.f32 %v861, 1.442695
        %v882 = vpow.pop %v881
        %v883 = vmul.f32 %v862, 1.442695
        %v884 = vpow.pop %v883
        %v885 = vmul.f32 %v863, 1.442695
        %v886 = vpow.pop %v885
        %v887 = vmul.f32 %v864, 1.442695
        %v888 = vpow.pop %v887
        %v889 = vmul.f32 %v865, 1.442695
        %v890 = vpow.pop %v889
        %v891 = vmul.f32 %v866, 1.442695
        %v892 = vpow.pop %v891
        %v893 = vmul.f32 %v867, 1.442695
        %v894 = vpow.pop %v893
        %v895 = vmul.f32 %v868, 1.442695
        %v896 = vpow.pop %v895
        %v897 = vmul.f32 %v869, 1.442695
        %v898 = vpow.pop %v897
        %v899 = vmul.f32 %v870, 1.442695
        %v900 = vpow.pop %v899
        %v901 = vmul.f32 %v871, 1.442695
        %v902 = vpow.pop %v901
        %v903 = vmul.f32 %v872, 1.442695
        %v904 = vpow.pop %v903
        %v905 = vsel %vm808, %v874, 0.0
        %906 = vadd.xlane.f32.xlu0 %v905
        %v907 = vpop.xlane.xlu0 %906
        %v908 = vsel %vm808, %v876, 0.0
        %909 = vadd.xlane.f32.xlu0 %v908
        %v910 = vpop.xlane.xlu0 %909
        %v911 = vsel %vm808, %v878, 0.0
        %912 = vadd.xlane.f32.xlu0 %v911
        %v913 = vpop.xlane.xlu0 %912
        %v914 = vsel %vm808, %v880, 0.0
        %915 = vadd.xlane.f32.xlu0 %v914
        %v916 = vpop.xlane.xlu0 %915
        %v917 = vsel %vm808, %v882, 0.0
        %918 = vadd.xlane.f32.xlu0 %v917
        %v919 = vpop.xlane.xlu0 %918
        %v920 = vsel %vm808, %v884, 0.0
        %921 = vadd.xlane.f32.xlu0 %v920
        %v922 = vpop.xlane.xlu0 %921
        %v923 = vsel %vm808, %v886, 0.0
        %924 = vadd.xlane.f32.xlu0 %v923
        %v925 = vpop.xlane.xlu0 %924
        %v926 = vsel %vm808, %v888, 0.0
        %927 = vadd.xlane.f32.xlu0 %v926
        %v928 = vpop.xlane.xlu0 %927
        %v929 = vsel %vm808, %v890, 0.0
        %930 = vadd.xlane.f32.xlu0 %v929
        %v931 = vpop.xlane.xlu0 %930
        %v932 = vsel %vm808, %v892, 0.0
        %933 = vadd.xlane.f32.xlu0 %v932
        %v934 = vpop.xlane.xlu0 %933
        %v935 = vsel %vm808, %v894, 0.0
        %936 = vadd.xlane.f32.xlu0 %v935
        %v937 = vpop.xlane.xlu0 %936
        %v938 = vsel %vm808, %v896, 0.0
        %939 = vadd.xlane.f32.xlu0 %v938
        %v940 = vpop.xlane.xlu0 %939
        %v941 = vsel %vm808, %v898, 0.0
        %942 = vadd.xlane.f32.xlu0 %v941
        %v943 = vpop.xlane.xlu0 %942
        %v944 = vsel %vm808, %v900, 0.0
        %945 = vadd.xlane.f32.xlu0 %v944
        %v946 = vpop.xlane.xlu0 %945
        %v947 = vsel %vm808, %v902, 0.0
        %948 = vadd.xlane.f32.xlu0 %v947
        %v949 = vpop.xlane.xlu0 %948
        %v950 = vsel %vm808, %v904, 0.0
        %951 = vadd.xlane.f32.xlu0 %v950
        %v952 = vpop.xlane.xlu0 %951
        %953 = vrot.lane.b32.xlu0 %v399, 64
        %v954 = vpop.permute.xlu0 %953
        %955 = vrot.lane.b32.xlu0 %v404, 64
        %v956 = vpop.permute.xlu0 %955
        %957 = vrot.lane.b32.xlu0 %v409, 64
        %v958 = vpop.permute.xlu0 %957
        %959 = vrot.lane.b32.xlu0 %v414, 64
        %v960 = vpop.permute.xlu0 %959
        %961 = vrot.lane.b32.xlu0 %v419, 64
        %v962 = vpop.permute.xlu0 %961
        %963 = vrot.lane.b32.xlu0 %v424, 64
        %v964 = vpop.permute.xlu0 %963
        %965 = vrot.lane.b32.xlu0 %v429, 64
        %v966 = vpop.permute.xlu0 %965
        %967 = vrot.lane.b32.xlu0 %v434, 64
        %v968 = vpop.permute.xlu0 %967
        %v978 = vsel %vm808, %v874, 0
        %v981 = vsel %vm808, %v876, 0
        %v984 = vsel %vm808, %v878, 0
        %v987 = vsel %vm808, %v880, 0
        %v990 = vsel %vm808, %v882, 0
        %v993 = vsel %vm808, %v884, 0
        %v996 = vsel %vm808, %v886, 0
        %v999 = vsel %vm808, %v888, 0
        %1001 = vmatprep.subr.mxu0 0.0
        %1002 = vmatpush1.msra.mxu0 %v954
        %1003 = vmatprep.subr.mxu0 0.0
        %1004 = vmatpush1.msra.mxu0 %v956
        %1005 = vmatprep.subr.mxu0 0.0
        %1006 = vmatpush1.msra.mxu0 %v958
        %1007 = vmatprep.subr.mxu0 0.0
        %1008 = vmatpush1.msra.mxu0 %v960
        %1009 = vmatprep.subr.mxu0 0.0
        %1010 = vmatpush1.msra.mxu0 %v962
        %1011 = vmatprep.subr.mxu0 0.0
        %1012 = vmatpush1.msra.mxu0 %v964
        %1013 = vmatprep.subr.mxu0 0.0
        %1014 = vmatpush1.msra.mxu0 %v966
        %1015 = vmatprep.subr.mxu0 0.0
        %1016 = vmatpush1.msra.mxu0 %v968
        %1017 = vmatprep.subr.mxu0 0.0
        %1018 = vmatpush1.msra.mxu0 0.0
        %1019 = vmatprep.subr.mxu0 0.0
        %1020 = vmatpush1.msra.mxu0 0.0
        %1021 = vmatprep.subr.mxu0 0.0
        %1022 = vmatpush1.msra.mxu0 0.0
        %1023 = vmatprep.subr.mxu0 0.0
        %1024 = vmatpush1.msra.mxu0 0.0
        %1025 = vmatprep.subr.mxu0 0.0
        %1026 = vmatpush1.msra.mxu0 0.0
        %1027 = vmatprep.subr.mxu0 0.0
        %1028 = vmatpush1.msra.mxu0 0.0
        %1029 = vmatprep.subr.mxu0 0.0
        %1030 = vmatpush1.msra.mxu0 0.0
        %1031 = vmatprep.subr.mxu0 0.0
        %1032 = vmatpush1.msra.mxu0 0.0
        %1033 = vmatprep.subr.mxu0 0.0
        %1034 = vmatpush1.msra.mxu0 0.0
        %1035 = vmatprep.subr.mxu0 0.0
        %1036 = vmatpush1.msra.mxu0 0.0
        %1037 = vmatprep.subr.mxu0 0.0
        %1038 = vmatpush1.msra.mxu0 0.0
        %1039 = vmatprep.subr.mxu0 0.0
        %1040 = vmatpush1.msra.mxu0 0.0
        %1041 = vmatprep.subr.mxu0 0.0
        %1042 = vmatpush1.msra.mxu0 0.0
        %1043 = vmatprep.subr.mxu0 0.0
        %1044 = vmatpush1.msra.mxu0 0.0
        %1045 = vmatprep.subr.mxu0 0.0
        %1046 = vmatpush1.msra.mxu0 0.0
        %1047 = vmatprep.subr.mxu0 0.0
        %1048 = vmatpush1.msra.mxu0 0.0
        %1049 = vmatprep.subr.mxu0 0.0
        %1050 = vmatpush1.msra.mxu0 0.0
        %1051 = vmatprep.subr.mxu0 0.0
        %1052 = vmatpush1.msra.mxu0 0.0
        %1053 = vmatprep.subr.mxu0 0.0
        %1054 = vmatpush1.msra.mxu0 0.0
        %1055 = vmatprep.subr.mxu0 0.0
        %1056 = vmatpush1.msra.mxu0 0.0
        %1057 = vmatprep.subr.mxu0 0.0
        %1058 = vmatpush1.msra.mxu0 0.0
        %1059 = vmatprep.subr.mxu0 0.0
        %1060 = vmatpush1.msra.mxu0 0.0
        %1061 = vmatprep.subr.mxu0 0.0
        %1062 = vmatpush1.msra.mxu0 0.0
        %1063 = vmatprep.subr.mxu0 0.0
        %1064 = vmatpush1.msra.mxu0 0.0
        %1065 = vmatprep.mubr.f32.mxu0 0.0
        %1066 = vmatmul.mubr.f32.gmra.mrb[0].mxu0 %v978
        %v1067 = vpop.f32.mrb[0].mxu0
        %v1068 = vadd.f32 0.0, %v1067
        %v1069 = vpop.f32.mrb[0].mxu0
        %1070 = vmatprep.mubr.f32.mxu0 0.0
        %1071 = vmatmul.mubr.f32.gmra.mrb[0].mxu0 %v981
        %v1072 = vpop.f32.mrb[0].mxu0
        %v1073 = vadd.f32 0.0, %v1072
        %v1074 = vpop.f32.mrb[0].mxu0
        %1075 = vmatprep.mubr.f32.mxu0 0.0
        %1076 = vmatmul.mubr.f32.gmra.mrb[0].mxu0 %v984
        %v1077 = vpop.f32.mrb[0].mxu0
        %v1078 = vadd.f32 0.0, %v1077
        %v1079 = vpop.f32.mrb[0].mxu0
        %1080 = vmatprep.mubr.f32.mxu0 0.0
        %1081 = vmatmul.mubr.f32.gmra.mrb[0].mxu0 %v987
        %v1082 = vpop.f32.mrb[0].mxu0
        %v1083 = vadd.f32 0.0, %v1082
        %v1084 = vpop.f32.mrb[0].mxu0
        %1085 = vmatprep.mubr.f32.mxu0 0.0
        %1086 = vmatmul.mubr.f32.gmra.mrb[0].mxu0 %v990
        %v1087 = vpop.f32.mrb[0].mxu0
        %v1088 = vadd.f32 0.0, %v1087
        %v1089 = vpop.f32.mrb[0].mxu0
        %1090 = vmatprep.mubr.f32.mxu0 0.0
        %1091 = vmatmul.mubr.f32.gmra.mrb[0].mxu0 %v993
        %v1092 = vpop.f32.mrb[0].mxu0
        %v1093 = vadd.f32 0.0, %v1092
        %v1094 = vpop.f32.mrb[0].mxu0
        %1095 = vmatprep.mubr.f32.mxu0 0.0
        %1096 = vmatmul.mubr.f32.gmra.mrb[0].mxu0 %v996
        %v1097 = vpop.f32.mrb[0].mxu0
        %v1098 = vadd.f32 0.0, %v1097
        %v1099 = vpop.f32.mrb[0].mxu0
        %1100 = vmatprep.mubr.f32.mxu0 0.0
        %1101 = vmatmul.mubr.f32.gmra.mrb[0].mxu0 %v999
        %v1102 = vpop.f32.mrb[0].mxu0
        %v1103 = vadd.f32 0.0, %v1102
        %v1104 = vpop.f32.mrb[0].mxu0
        %1105 = vdwg.mxu0
        %1106 = vrot.lane.b32.xlu0 %v439, 64
        %v1107 = vpop.permute.xlu0 %1106
        %1108 = vrot.lane.b32.xlu0 %v444, 64
        %v1109 = vpop.permute.xlu0 %1108
        %1110 = vrot.lane.b32.xlu0 %v449, 64
        %v1111 = vpop.permute.xlu0 %1110
        %1112 = vrot.lane.b32.xlu0 %v454, 64
        %v1113 = vpop.permute.xlu0 %1112
        %1114 = vrot.lane.b32.xlu0 %v459, 64
        %v1115 = vpop.permute.xlu0 %1114
        %1116 = vrot.lane.b32.xlu0 %v464, 64
        %v1117 = vpop.permute.xlu0 %1116
        %1118 = vrot.lane.b32.xlu0 %v469, 64
        %v1119 = vpop.permute.xlu0 %1118
        %1120 = vrot.lane.b32.xlu0 %v474, 64
        %v1121 = vpop.permute.xlu0 %1120
        %v1131 = vsel %vm808, %v890, 0
        %v1134 = vsel %vm808, %v892, 0
        %v1137 = vsel %vm808, %v894, 0
        %v1140 = vsel %vm808, %v896, 0
        %v1143 = vsel %vm808, %v898, 0
        %v1146 = vsel %vm808, %v900, 0
        %v1149 = vsel %vm808, %v902, 0
        %v1152 = vsel %vm808, %v904, 0
        %1154 = vmatprep.subr.mxu0 0.0
        %1155 = vmatpush1.msra.mxu0 %v1107
        %1156 = vmatprep.subr.mxu0 0.0
        %1157 = vmatpush1.msra.mxu0 %v1109
        %1158 = vmatprep.subr.mxu0 0.0
        %1159 = vmatpush1.msra.mxu0 %v1111
        %1160 = vmatprep.subr.mxu0 0.0
        %1161 = vmatpush1.msra.mxu0 %v1113
        %1162 = vmatprep.subr.mxu0 0.0
        %1163 = vmatpush1.msra.mxu0 %v1115
        %1164 = vmatprep.subr.mxu0 0.0
        %1165 = vmatpush1.msra.mxu0 %v1117
        %1166 = vmatprep.subr.mxu0 0.0
        %1167 = vmatpush1.msra.mxu0 %v1119
        %1168 = vmatprep.subr.mxu0 0.0
        %1169 = vmatpush1.msra.mxu0 %v1121
        %1170 = vmatprep.subr.mxu0 0.0
        %1171 = vmatpush1.msra.mxu0 0.0
        %1172 = vmatprep.subr.mxu0 0.0
        %1173 = vmatpush1.msra.mxu0 0.0
        %1174 = vmatprep.subr.mxu0 0.0
        %1175 = vmatpush1.msra.mxu0 0.0
        %1176 = vmatprep.subr.mxu0 0.0
        %1177 = vmatpush1.msra.mxu0 0.0
        %1178 = vmatprep.subr.mxu0 0.0
        %1179 = vmatpush1.msra.mxu0 0.0
        %1180 = vmatprep.subr.mxu0 0.0
        %1181 = vmatpush1.msra.mxu0 0.0
        %1182 = vmatprep.subr.mxu0 0.0
        %1183 = vmatpush1.msra.mxu0 0.0
        %1184 = vmatprep.subr.mxu0 0.0
        %1185 = vmatpush1.msra.mxu0 0.0
        %1186 = vmatprep.subr.mxu0 0.0
        %1187 = vmatpush1.msra.mxu0 0.0
        %1188 = vmatprep.subr.mxu0 0.0
        %1189 = vmatpush1.msra.mxu0 0.0
        %1190 = vmatprep.subr.mxu0 0.0
        %1191 = vmatpush1.msra.mxu0 0.0
        %1192 = vmatprep.subr.mxu0 0.0
        %1193 = vmatpush1.msra.mxu0 0.0
        %1194 = vmatprep.subr.mxu0 0.0
        %1195 = vmatpush1.msra.mxu0 0.0
        %1196 = vmatprep.subr.mxu0 0.0
        %1197 = vmatpush1.msra.mxu0 0.0
        %1198 = vmatprep.subr.mxu0 0.0
        %1199 = vmatpush1.msra.mxu0 0.0
        %1200 = vmatprep.subr.mxu0 0.0
        %1201 = vmatpush1.msra.mxu0 0.0
        %1202 = vmatprep.subr.mxu0 0.0
        %1203 = vmatpush1.msra.mxu0 0.0
        %1204 = vmatprep.subr.mxu0 0.0
        %1205 = vmatpush1.msra.mxu0 0.0
        %1206 = vmatprep.subr.mxu0 0.0
        %1207 = vmatpush1.msra.mxu0 0.0
        %1208 = vmatprep.subr.mxu0 0.0
        %1209 = vmatpush1.msra.mxu0 0.0
        %1210 = vmatprep.subr.mxu0 0.0
        %1211 = vmatpush1.msra.mxu0 0.0
        %1212 = vmatprep.subr.mxu0 0.0
        %1213 = vmatpush1.msra.mxu0 0.0
        %1214 = vmatprep.subr.mxu0 0.0
        %1215 = vmatpush1.msra.mxu0 0.0
        %1216 = vmatprep.subr.mxu0 0.0
        %1217 = vmatpush1.msra.mxu0 0.0
        %1218 = vmatprep.mubr.f32.mxu0 0.0
        %1219 = vmatmul.mubr.f32.gmra.mrb[0].mxu0 %v1131
        %v1220 = vpop.f32.mrb[0].mxu0
        %v1221 = vadd.f32 0.0, %v1220
        %v1222 = vpop.f32.mrb[0].mxu0
        %1223 = vmatprep.mubr.f32.mxu0 0.0
        %1224 = vmatmul.mubr.f32.gmra.mrb[0].mxu0 %v1134
        %v1225 = vpop.f32.mrb[0].mxu0
        %v1226 = vadd.f32 0.0, %v1225
        %v1227 = vpop.f32.mrb[0].mxu0
        %1228 = vmatprep.mubr.f32.mxu0 0.0
        %1229 = vmatmul.mubr.f32.gmra.mrb[0].mxu0 %v1137
        %v1230 = vpop.f32.mrb[0].mxu0
        %v1231 = vadd.f32 0.0, %v1230
        %v1232 = vpop.f32.mrb[0].mxu0
        %1233 = vmatprep.mubr.f32.mxu0 0.0
        %1234 = vmatmul.mubr.f32.gmra.mrb[0].mxu0 %v1140
        %v1235 = vpop.f32.mrb[0].mxu0
        %v1236 = vadd.f32 0.0, %v1235
        %v1237 = vpop.f32.mrb[0].mxu0
        %1238 = vmatprep.mubr.f32.mxu0 0.0
        %1239 = vmatmul.mubr.f32.gmra.mrb[0].mxu0 %v1143
        %v1240 = vpop.f32.mrb[0].mxu0
        %v1241 = vadd.f32 0.0, %v1240
        %v1242 = vpop.f32.mrb[0].mxu0
        %1243 = vmatprep.mubr.f32.mxu0 0.0
        %1244 = vmatmul.mubr.f32.gmra.mrb[0].mxu0 %v1146
        %v1245 = vpop.f32.mrb[0].mxu0
        %v1246 = vadd.f32 0.0, %v1245
        %v1247 = vpop.f32.mrb[0].mxu0
        %1248 = vmatprep.mubr.f32.mxu0 0.0
        %1249 = vmatmul.mubr.f32.gmra.mrb[0].mxu0 %v1149
        %v1250 = vpop.f32.mrb[0].mxu0
        %v1251 = vadd.f32 0.0, %v1250
        %v1252 = vpop.f32.mrb[0].mxu0
        %1253 = vmatprep.mubr.f32.mxu0 0.0
        %1254 = vmatmul.mubr.f32.gmra.mrb[0].mxu0 %v1152
        %v1255 = vpop.f32.mrb[0].mxu0
        %v1256 = vadd.f32 0.0, %v1255
        %v1257 = vpop.f32.mrb[0].mxu0
        %1258 = vdwg.mxu0
        %v1259 = vrcp.pop %v907
        %v1260 = vrcp.pop %v910
        %v1261 = vrcp.pop %v913
        %v1262 = vrcp.pop %v916
        %v1263 = vrcp.pop %v919
        %v1264 = vrcp.pop %v922
        %v1265 = vrcp.pop %v925
        %v1266 = vrcp.pop %v928
        %v1267 = vrcp.pop %v931
        %v1268 = vrcp.pop %v934
        %v1269 = vrcp.pop %v937
        %v1270 = vrcp.pop %v940
        %v1271 = vrcp.pop %v943
        %v1272 = vrcp.pop %v946
        %v1273 = vrcp.pop %v949
        %v1274 = vrcp.pop %v952
        %v1275 = vmul.f32 %v1068, %v1259
        %v1276 = vmul.f32 %v1073, %v1260
        %v1277 = vmul.f32 %v1078, %v1261
        %v1278 = vmul.f32 %v1083, %v1262
        %v1279 = vmul.f32 %v1088, %v1263
        %v1280 = vmul.f32 %v1093, %v1264
        %v1281 = vmul.f32 %v1098, %v1265
        %v1282 = vmul.f32 %v1103, %v1266
        %v1283 = vmul.f32 %v1221, %v1267
        %v1284 = vmul.f32 %v1226, %v1268
        %v1285 = vmul.f32 %v1231, %v1269
        %v1286 = vmul.f32 %v1236, %v1270
        %v1287 = vmul.f32 %v1241, %v1271
        %v1288 = vmul.f32 %v1246, %v1272
        %v1289 = vmul.f32 %v1251, %v1273
        %v1290 = vmul.f32 %v1256, %v1274
        %s1291 = scalar_lea.vmem %s3, 64
        %v1292 = vld [vmem:[%s1291] sm:$0xff]
        %v1293 = vld [vmem:[%s1291 + $0x8] sm:$0xff]
        %v1294 = vld [vmem:[%s1291 + $0x10] sm:$0xff]
        %v1295 = vld [vmem:[%s1291 + $0x18] sm:$0xff]
        %v1296 = vld [vmem:[%s1291 + $0x20] sm:$0xff]
        %v1297 = vld [vmem:[%s1291 + $0x28] sm:$0xff]
        %v1298 = vld [vmem:[%s1291 + $0x30] sm:$0xff]
        %v1299 = vld [vmem:[%s1291 + $0x38] sm:$0xff]
        %1300 = vrot.lane.b32.xlu0 %v399, 120
        %v1301 = vpop.permute.xlu0 %1300
        %1302 = vrot.lane.b32.xlu0 %v404, 120
        %v1303 = vpop.permute.xlu0 %1302
        %1304 = vrot.lane.b32.xlu0 %v409, 120
        %v1305 = vpop.permute.xlu0 %1304
        %1306 = vrot.lane.b32.xlu0 %v414, 120
        %v1307 = vpop.permute.xlu0 %1306
        %1308 = vrot.lane.b32.xlu0 %v419, 120
        %v1309 = vpop.permute.xlu0 %1308
        %1310 = vrot.lane.b32.xlu0 %v424, 120
        %v1311 = vpop.permute.xlu0 %1310
        %1312 = vrot.lane.b32.xlu0 %v429, 120
        %v1313 = vpop.permute.xlu0 %1312
        %1314 = vrot.lane.b32.xlu0 %v434, 120
        %v1315 = vpop.permute.xlu0 %1314
        %1316 = vrot.lane.b32.xlu0 %v399, 88
        %v1317 = vpop.permute.xlu0 %1316
        %1318 = vrot.lane.b32.xlu0 %v404, 88
        %v1319 = vpop.permute.xlu0 %1318
        %1320 = vrot.lane.b32.xlu0 %v409, 88
        %v1321 = vpop.permute.xlu0 %1320
        %1322 = vrot.lane.b32.xlu0 %v414, 88
        %v1323 = vpop.permute.xlu0 %1322
        %1324 = vrot.lane.b32.xlu0 %v419, 88
        %v1325 = vpop.permute.xlu0 %1324
        %1326 = vrot.lane.b32.xlu0 %v424, 88
        %v1327 = vpop.permute.xlu0 %1326
        %1328 = vrot.lane.b32.xlu0 %v429, 88
        %v1329 = vpop.permute.xlu0 %1328
        %1330 = vrot.lane.b32.xlu0 %v434, 88
        %v1331 = vpop.permute.xlu0 %1330
        %v1332 = vsel %vm509, %v1301, 0
        %v1334 = vsel %vm509, %v1303, 0
        %v1336 = vsel %vm509, %v1305, 0
        %v1338 = vsel %vm509, %v1307, 0
        %v1340 = vsel %vm509, %v1309, 0
        %v1342 = vsel %vm509, %v1311, 0
        %v1344 = vsel %vm509, %v1313, 0
        %v1346 = vsel %vm509, %v1315, 0
        %v1348 = vsel %vm509, %v1317, 0
        %v1350 = vsel %vm509, %v1319, 0
        %v1352 = vsel %vm509, %v1321, 0
        %v1354 = vsel %vm509, %v1323, 0
        %v1356 = vsel %vm509, %v1325, 0
        %v1358 = vsel %vm509, %v1327, 0
        %v1360 = vsel %vm509, %v1329, 0
        %v1362 = vsel %vm509, %v1331, 0
        %1364 = vmatprep.subr.mxu0 0.0
        %1365 = vmatpush1.xpose.msra.mxu0 %v1348
        %1366 = vmatprep.subr.mxu0 0.0
        %1367 = vmatpush1.xpose.msra.mxu0 %v1350
        %1368 = vmatprep.subr.mxu0 0.0
        %1369 = vmatpush1.xpose.msra.mxu0 %v1352
        %1370 = vmatprep.subr.mxu0 0.0
        %1371 = vmatpush1.xpose.msra.mxu0 %v1354
        %1372 = vmatprep.subr.mxu0 0.0
        %1373 = vmatpush1.xpose.msra.mxu0 %v1356
        %1374 = vmatprep.subr.mxu0 0.0
        %1375 = vmatpush1.xpose.msra.mxu0 %v1358
        %1376 = vmatprep.subr.mxu0 0.0
        %1377 = vmatpush1.xpose.msra.mxu0 %v1360
        %1378 = vmatprep.subr.mxu0 0.0
        %1379 = vmatpush1.xpose.msra.mxu0 %v1362
        %1380 = vmatprep.subr.mxu0 0.0
        %1381 = vmatpush1.xpose.msra.mxu0 0.0
        %1382 = vmatprep.subr.mxu0 0.0
        %1383 = vmatpush1.xpose.msra.mxu0 0.0
        %1384 = vmatprep.subr.mxu0 0.0
        %1385 = vmatpush1.xpose.msra.mxu0 0.0
        %1386 = vmatprep.subr.mxu0 0.0
        %1387 = vmatpush1.xpose.msra.mxu0 0.0
        %1388 = vmatprep.subr.mxu0 0.0
        %1389 = vmatpush1.xpose.msra.mxu0 0.0
        %1390 = vmatprep.subr.mxu0 0.0
        %1391 = vmatpush1.xpose.msra.mxu0 0.0
        %1392 = vmatprep.subr.mxu0 0.0
        %1393 = vmatpush1.xpose.msra.mxu0 0.0
        %1394 = vmatprep.subr.mxu0 0.0
        %1395 = vmatpush1.xpose.msra.mxu0 0.0
        %1396 = vmatprep.subr.mxu0 0.0
        %1397 = vmatpush1.xpose.msra.mxu0 0.0
        %1398 = vmatprep.subr.mxu0 0.0
        %1399 = vmatpush1.xpose.msra.mxu0 0.0
        %1400 = vmatprep.subr.mxu0 0.0
        %1401 = vmatpush1.xpose.msra.mxu0 0.0
        %1402 = vmatprep.subr.mxu0 0.0
        %1403 = vmatpush1.xpose.msra.mxu0 0.0
        %1404 = vmatprep.subr.mxu0 0.0
        %1405 = vmatpush1.xpose.msra.mxu0 0.0
        %1406 = vmatprep.subr.mxu0 0.0
        %1407 = vmatpush1.xpose.msra.mxu0 0.0
        %1408 = vmatprep.subr.mxu0 0.0
        %1409 = vmatpush1.xpose.msra.mxu0 0.0
        %1410 = vmatprep.subr.mxu0 0.0
        %1411 = vmatpush1.xpose.msra.mxu0 0.0
        %1412 = vmatprep.subr.mxu0 0.0
        %1413 = vmatpush1.xpose.msra.mxu0 0.0
        %1414 = vmatprep.subr.mxu0 0.0
        %1415 = vmatpush1.xpose.msra.mxu0 0.0
        %1416 = vmatprep.subr.mxu0 0.0
        %1417 = vmatpush1.xpose.msra.mxu0 0.0
        %1418 = vmatprep.subr.mxu0 0.0
        %1419 = vmatpush1.xpose.msra.mxu0 0.0
        %1420 = vmatprep.subr.mxu0 0.0
        %1421 = vmatpush1.xpose.msra.mxu0 0.0
        %1422 = vmatprep.subr.mxu0 0.0
        %1423 = vmatpush1.xpose.msra.mxu0 0.0
        %1424 = vmatprep.subr.mxu0 0.0
        %1425 = vmatpush1.xpose.msra.mxu0 0.0
        %1426 = vmatprep.subr.mxu0 0.0
        %1427 = vmatpush1.xpose.msra.mxu0 0.0
        %1428 = vmatprep.mubr.f32.mxu0 0.0
        %1429 = vmatmul.mubr.f32.gmra.mrb[0].mxu0 %v1332
        %v1430 = vpop.f32.mrb[0].mxu0
        %v1431 = vadd.f32 %v1292, %v1430
        %v1432 = vpop.f32.mrb[0].mxu0
        %1433 = vmatprep.mubr.f32.mxu0 0.0
        %1434 = vmatmul.mubr.f32.gmra.mrb[0].mxu0 %v1334
        %v1435 = vpop.f32.mrb[0].mxu0
        %v1436 = vadd.f32 %v1293, %v1435
        %v1437 = vpop.f32.mrb[0].mxu0
        %1438 = vmatprep.mubr.f32.mxu0 0.0
        %1439 = vmatmul.mubr.f32.gmra.mrb[0].mxu0 %v1336
        %v1440 = vpop.f32.mrb[0].mxu0
        %v1441 = vadd.f32 %v1294, %v1440
        %v1442 = vpop.f32.mrb[0].mxu0
        %1443 = vmatprep.mubr.f32.mxu0 0.0
        %1444 = vmatmul.mubr.f32.gmra.mrb[0].mxu0 %v1338
        %v1445 = vpop.f32.mrb[0].mxu0
        %v1446 = vadd.f32 %v1295, %v1445
        %v1447 = vpop.f32.mrb[0].mxu0
        %1448 = vmatprep.mubr.f32.mxu0 0.0
        %1449 = vmatmul.mubr.f32.gmra.mrb[0].mxu0 %v1340
        %v1450 = vpop.f32.mrb[0].mxu0
        %v1451 = vadd.f32 %v1296, %v1450
        %v1452 = vpop.f32.mrb[0].mxu0
        %1453 = vmatprep.mubr.f32.mxu0 0.0
        %1454 = vmatmul.mubr.f32.gmra.mrb[0].mxu0 %v1342
        %v1455 = vpop.f32.mrb[0].mxu0
        %v1456 = vadd.f32 %v1297, %v1455
        %v1457 = vpop.f32.mrb[0].mxu0
        %1458 = vmatprep.mubr.f32.mxu0 0.0
        %1459 = vmatmul.mubr.f32.gmra.mrb[0].mxu0 %v1344
        %v1460 = vpop.f32.mrb[0].mxu0
        %v1461 = vadd.f32 %v1298, %v1460
        %v1462 = vpop.f32.mrb[0].mxu0
        %1463 = vmatprep.mubr.f32.mxu0 0.0
        %1464 = vmatmul.mubr.f32.gmra.mrb[0].mxu0 %v1346
        %v1465 = vpop.f32.mrb[0].mxu0
        %v1466 = vadd.f32 %v1299, %v1465
        %v1467 = vpop.f32.mrb[0].mxu0
        %1468 = vdwg.mxu0
        %1469 = vrot.lane.b32.xlu0 %v439, 120
        %v1470 = vpop.permute.xlu0 %1469
        %1471 = vrot.lane.b32.xlu0 %v444, 120
        %v1472 = vpop.permute.xlu0 %1471
        %1473 = vrot.lane.b32.xlu0 %v449, 120
        %v1474 = vpop.permute.xlu0 %1473
        %1475 = vrot.lane.b32.xlu0 %v454, 120
        %v1476 = vpop.permute.xlu0 %1475
        %1477 = vrot.lane.b32.xlu0 %v459, 120
        %v1478 = vpop.permute.xlu0 %1477
        %1479 = vrot.lane.b32.xlu0 %v464, 120
        %v1480 = vpop.permute.xlu0 %1479
        %1481 = vrot.lane.b32.xlu0 %v469, 120
        %v1482 = vpop.permute.xlu0 %1481
        %1483 = vrot.lane.b32.xlu0 %v474, 120
        %v1484 = vpop.permute.xlu0 %1483
        %1485 = vrot.lane.b32.xlu0 %v439, 88
        %v1486 = vpop.permute.xlu0 %1485
        %1487 = vrot.lane.b32.xlu0 %v444, 88
        %v1488 = vpop.permute.xlu0 %1487
        %1489 = vrot.lane.b32.xlu0 %v449, 88
        %v1490 = vpop.permute.xlu0 %1489
        %1491 = vrot.lane.b32.xlu0 %v454, 88
        %v1492 = vpop.permute.xlu0 %1491
        %1493 = vrot.lane.b32.xlu0 %v459, 88
        %v1494 = vpop.permute.xlu0 %1493
        %1495 = vrot.lane.b32.xlu0 %v464, 88
        %v1496 = vpop.permute.xlu0 %1495
        %1497 = vrot.lane.b32.xlu0 %v469, 88
        %v1498 = vpop.permute.xlu0 %1497
        %1499 = vrot.lane.b32.xlu0 %v474, 88
        %v1500 = vpop.permute.xlu0 %1499
        %v1501 = vsel %vm509, %v1470, 0
        %v1503 = vsel %vm509, %v1472, 0
        %v1505 = vsel %vm509, %v1474, 0
        %v1507 = vsel %vm509, %v1476, 0
        %v1509 = vsel %vm509, %v1478, 0
        %v1511 = vsel %vm509, %v1480, 0
        %v1513 = vsel %vm509, %v1482, 0
        %v1515 = vsel %vm509, %v1484, 0
        %v1517 = vsel %vm509, %v1486, 0
        %v1519 = vsel %vm509, %v1488, 0
        %v1521 = vsel %vm509, %v1490, 0
        %v1523 = vsel %vm509, %v1492, 0
        %v1525 = vsel %vm509, %v1494, 0
        %v1527 = vsel %vm509, %v1496, 0
        %v1529 = vsel %vm509, %v1498, 0
        %v1531 = vsel %vm509, %v1500, 0
        %1533 = vmatprep.subr.mxu0 0.0
        %1534 = vmatpush1.xpose.msra.mxu0 %v1517
        %1535 = vmatprep.subr.mxu0 0.0
        %1536 = vmatpush1.xpose.msra.mxu0 %v1519
        %1537 = vmatprep.subr.mxu0 0.0
        %1538 = vmatpush1.xpose.msra.mxu0 %v1521
        %1539 = vmatprep.subr.mxu0 0.0
        %1540 = vmatpush1.xpose.msra.mxu0 %v1523
        %1541 = vmatprep.subr.mxu0 0.0
        %1542 = vmatpush1.xpose.msra.mxu0 %v1525
        %1543 = vmatprep.subr.mxu0 0.0
        %1544 = vmatpush1.xpose.msra.mxu0 %v1527
        %1545 = vmatprep.subr.mxu0 0.0
        %1546 = vmatpush1.xpose.msra.mxu0 %v1529
        %1547 = vmatprep.subr.mxu0 0.0
        %1548 = vmatpush1.xpose.msra.mxu0 %v1531
        %1549 = vmatprep.subr.mxu0 0.0
        %1550 = vmatpush1.xpose.msra.mxu0 0.0
        %1551 = vmatprep.subr.mxu0 0.0
        %1552 = vmatpush1.xpose.msra.mxu0 0.0
        %1553 = vmatprep.subr.mxu0 0.0
        %1554 = vmatpush1.xpose.msra.mxu0 0.0
        %1555 = vmatprep.subr.mxu0 0.0
        %1556 = vmatpush1.xpose.msra.mxu0 0.0
        %1557 = vmatprep.subr.mxu0 0.0
        %1558 = vmatpush1.xpose.msra.mxu0 0.0
        %1559 = vmatprep.subr.mxu0 0.0
        %1560 = vmatpush1.xpose.msra.mxu0 0.0
        %1561 = vmatprep.subr.mxu0 0.0
        %1562 = vmatpush1.xpose.msra.mxu0 0.0
        %1563 = vmatprep.subr.mxu0 0.0
        %1564 = vmatpush1.xpose.msra.mxu0 0.0
        %1565 = vmatprep.subr.mxu0 0.0
        %1566 = vmatpush1.xpose.msra.mxu0 0.0
        %1567 = vmatprep.subr.mxu0 0.0
        %1568 = vmatpush1.xpose.msra.mxu0 0.0
        %1569 = vmatprep.subr.mxu0 0.0
        %1570 = vmatpush1.xpose.msra.mxu0 0.0
        %1571 = vmatprep.subr.mxu0 0.0
        %1572 = vmatpush1.xpose.msra.mxu0 0.0
        %1573 = vmatprep.subr.mxu0 0.0
        %1574 = vmatpush1.xpose.msra.mxu0 0.0
        %1575 = vmatprep.subr.mxu0 0.0
        %1576 = vmatpush1.xpose.msra.mxu0 0.0
        %1577 = vmatprep.subr.mxu0 0.0
        %1578 = vmatpush1.xpose.msra.mxu0 0.0
        %1579 = vmatprep.subr.mxu0 0.0
        %1580 = vmatpush1.xpose.msra.mxu0 0.0
        %1581 = vmatprep.subr.mxu0 0.0
        %1582 = vmatpush1.xpose.msra.mxu0 0.0
        %1583 = vmatprep.subr.mxu0 0.0
        %1584 = vmatpush1.xpose.msra.mxu0 0.0
        %1585 = vmatprep.subr.mxu0 0.0
        %1586 = vmatpush1.xpose.msra.mxu0 0.0
        %1587 = vmatprep.subr.mxu0 0.0
        %1588 = vmatpush1.xpose.msra.mxu0 0.0
        %1589 = vmatprep.subr.mxu0 0.0
        %1590 = vmatpush1.xpose.msra.mxu0 0.0
        %1591 = vmatprep.subr.mxu0 0.0
        %1592 = vmatpush1.xpose.msra.mxu0 0.0
        %1593 = vmatprep.subr.mxu0 0.0
        %1594 = vmatpush1.xpose.msra.mxu0 0.0
        %1595 = vmatprep.subr.mxu0 0.0
        %1596 = vmatpush1.xpose.msra.mxu0 0.0
        %1597 = vmatprep.mubr.f32.mxu0 0.0
        %1598 = vmatmul.mubr.f32.gmra.mrb[0].mxu0 %v1501
        %v1599 = vpop.f32.mrb[0].mxu0
        %v1600 = vadd.f32 %v1292, %v1599
        %v1601 = vpop.f32.mrb[0].mxu0
        %1602 = vmatprep.mubr.f32.mxu0 0.0
        %1603 = vmatmul.mubr.f32.gmra.mrb[0].mxu0 %v1503
        %v1604 = vpop.f32.mrb[0].mxu0
        %v1605 = vadd.f32 %v1293, %v1604
        %v1606 = vpop.f32.mrb[0].mxu0
        %1607 = vmatprep.mubr.f32.mxu0 0.0
        %1608 = vmatmul.mubr.f32.gmra.mrb[0].mxu0 %v1505
        %v1609 = vpop.f32.mrb[0].mxu0
        %v1610 = vadd.f32 %v1294, %v1609
        %v1611 = vpop.f32.mrb[0].mxu0
        %1612 = vmatprep.mubr.f32.mxu0 0.0
        %1613 = vmatmul.mubr.f32.gmra.mrb[0].mxu0 %v1507
        %v1614 = vpop.f32.mrb[0].mxu0
        %v1615 = vadd.f32 %v1295, %v1614
        %v1616 = vpop.f32.mrb[0].mxu0
        %1617 = vmatprep.mubr.f32.mxu0 0.0
        %1618 = vmatmul.mubr.f32.gmra.mrb[0].mxu0 %v1509
        %v1619 = vpop.f32.mrb[0].mxu0
        %v1620 = vadd.f32 %v1296, %v1619
        %v1621 = vpop.f32.mrb[0].mxu0
        %1622 = vmatprep.mubr.f32.mxu0 0.0
        %1623 = vmatmul.mubr.f32.gmra.mrb[0].mxu0 %v1511
        %v1624 = vpop.f32.mrb[0].mxu0
        %v1625 = vadd.f32 %v1297, %v1624
        %v1626 = vpop.f32.mrb[0].mxu0
        %1627 = vmatprep.mubr.f32.mxu0 0.0
        %1628 = vmatmul.mubr.f32.gmra.mrb[0].mxu0 %v1513
        %v1629 = vpop.f32.mrb[0].mxu0
        %v1630 = vadd.f32 %v1298, %v1629
        %v1631 = vpop.f32.mrb[0].mxu0
        %1632 = vmatprep.mubr.f32.mxu0 0.0
        %1633 = vmatmul.mubr.f32.gmra.mrb[0].mxu0 %v1515
        %v1634 = vpop.f32.mrb[0].mxu0
        %v1635 = vadd.f32 %v1299, %v1634
        %v1636 = vpop.f32.mrb[0].mxu0
        %1637 = vdwg.mxu0
        %v1638 = vsel %vm808, %v1431, -inf
        %1639 = vmax.xlane.f32.xlu0 %v1638
        %v1640 = vpop.xlane.xlu0 %1639
        %v1641 = vsel %vm808, %v1436, -inf
        %1642 = vmax.xlane.f32.xlu0 %v1641
        %v1643 = vpop.xlane.xlu0 %1642
        %v1644 = vsel %vm808, %v1441, -inf
        %1645 = vmax.xlane.f32.xlu0 %v1644
        %v1646 = vpop.xlane.xlu0 %1645
        %v1647 = vsel %vm808, %v1446, -inf
        %1648 = vmax.xlane.f32.xlu0 %v1647
        %v1649 = vpop.xlane.xlu0 %1648
        %v1650 = vsel %vm808, %v1451, -inf
        %1651 = vmax.xlane.f32.xlu0 %v1650
        %v1652 = vpop.xlane.xlu0 %1651
        %v1653 = vsel %vm808, %v1456, -inf
        %1654 = vmax.xlane.f32.xlu0 %v1653
        %v1655 = vpop.xlane.xlu0 %1654
        %v1656 = vsel %vm808, %v1461, -inf
        %1657 = vmax.xlane.f32.xlu0 %v1656
        %v1658 = vpop.xlane.xlu0 %1657
        %v1659 = vsel %vm808, %v1466, -inf
        %1660 = vmax.xlane.f32.xlu0 %v1659
        %v1661 = vpop.xlane.xlu0 %1660
        %v1662 = vsel %vm808, %v1600, -inf
        %1663 = vmax.xlane.f32.xlu0 %v1662
        %v1664 = vpop.xlane.xlu0 %1663
        %v1665 = vsel %vm808, %v1605, -inf
        %1666 = vmax.xlane.f32.xlu0 %v1665
        %v1667 = vpop.xlane.xlu0 %1666
        %v1668 = vsel %vm808, %v1610, -inf
        %1669 = vmax.xlane.f32.xlu0 %v1668
        %v1670 = vpop.xlane.xlu0 %1669
        %v1671 = vsel %vm808, %v1615, -inf
        %1672 = vmax.xlane.f32.xlu0 %v1671
        %v1673 = vpop.xlane.xlu0 %1672
        %v1674 = vsel %vm808, %v1620, -inf
        %1675 = vmax.xlane.f32.xlu0 %v1674
        %v1676 = vpop.xlane.xlu0 %1675
        %v1677 = vsel %vm808, %v1625, -inf
        %1678 = vmax.xlane.f32.xlu0 %v1677
        %v1679 = vpop.xlane.xlu0 %1678
        %v1680 = vsel %vm808, %v1630, -inf
        %1681 = vmax.xlane.f32.xlu0 %v1680
        %v1682 = vpop.xlane.xlu0 %1681
        %v1683 = vsel %vm808, %v1635, -inf
        %1684 = vmax.xlane.f32.xlu0 %v1683
        %v1685 = vpop.xlane.xlu0 %1684
        %v1686 = vsub.f32 %v1431, %v1640
        %v1687 = vsub.f32 %v1436, %v1643
        %v1688 = vsub.f32 %v1441, %v1646
        %v1689 = vsub.f32 %v1446, %v1649
        %v1690 = vsub.f32 %v1451, %v1652
        %v1691 = vsub.f32 %v1456, %v1655
        %v1692 = vsub.f32 %v1461, %v1658
        %v1693 = vsub.f32 %v1466, %v1661
        %v1694 = vsub.f32 %v1600, %v1664
        %v1695 = vsub.f32 %v1605, %v1667
        %v1696 = vsub.f32 %v1610, %v1670
        %v1697 = vsub.f32 %v1615, %v1673
        %v1698 = vsub.f32 %v1620, %v1676
        %v1699 = vsub.f32 %v1625, %v1679
        %v1700 = vsub.f32 %v1630, %v1682
        %v1701 = vsub.f32 %v1635, %v1685
        %v1702 = vmul.f32 %v1686, 1.442695
        %v1703 = vpow.pop %v1702
        %v1704 = vmul.f32 %v1687, 1.442695
        %v1705 = vpow.pop %v1704
        %v1706 = vmul.f32 %v1688, 1.442695
        %v1707 = vpow.pop %v1706
        %v1708 = vmul.f32 %v1689, 1.442695
        %v1709 = vpow.pop %v1708
        %v1710 = vmul.f32 %v1690, 1.442695
        %v1711 = vpow.pop %v1710
        %v1712 = vmul.f32 %v1691, 1.442695
        %v1713 = vpow.pop %v1712
        %v1714 = vmul.f32 %v1692, 1.442695
        %v1715 = vpow.pop %v1714
        %v1716 = vmul.f32 %v1693, 1.442695
        %v1717 = vpow.pop %v1716
        %v1718 = vmul.f32 %v1694, 1.442695
        %v1719 = vpow.pop %v1718
        %v1720 = vmul.f32 %v1695, 1.442695
        %v1721 = vpow.pop %v1720
        %v1722 = vmul.f32 %v1696, 1.442695
        %v1723 = vpow.pop %v1722
        %v1724 = vmul.f32 %v1697, 1.442695
        %v1725 = vpow.pop %v1724
        %v1726 = vmul.f32 %v1698, 1.442695
        %v1727 = vpow.pop %v1726
        %v1728 = vmul.f32 %v1699, 1.442695
        %v1729 = vpow.pop %v1728
        %v1730 = vmul.f32 %v1700, 1.442695
        %v1731 = vpow.pop %v1730
        %v1732 = vmul.f32 %v1701, 1.442695
        %v1733 = vpow.pop %v1732
        %v1734 = vsel %vm808, %v1703, 0.0
        %1735 = vadd.xlane.f32.xlu0 %v1734
        %v1736 = vpop.xlane.xlu0 %1735
        %v1737 = vsel %vm808, %v1705, 0.0
        %1738 = vadd.xlane.f32.xlu0 %v1737
        %v1739 = vpop.xlane.xlu0 %1738
        %v1740 = vsel %vm808, %v1707, 0.0
        %1741 = vadd.xlane.f32.xlu0 %v1740
        %v1742 = vpop.xlane.xlu0 %1741
        %v1743 = vsel %vm808, %v1709, 0.0
        %1744 = vadd.xlane.f32.xlu0 %v1743
        %v1745 = vpop.xlane.xlu0 %1744
        %v1746 = vsel %vm808, %v1711, 0.0
        %1747 = vadd.xlane.f32.xlu0 %v1746
        %v1748 = vpop.xlane.xlu0 %1747
        %v1749 = vsel %vm808, %v1713, 0.0
        %1750 = vadd.xlane.f32.xlu0 %v1749
        %v1751 = vpop.xlane.xlu0 %1750
        %v1752 = vsel %vm808, %v1715, 0.0
        %1753 = vadd.xlane.f32.xlu0 %v1752
        %v1754 = vpop.xlane.xlu0 %1753
        %v1755 = vsel %vm808, %v1717, 0.0
        %1756 = vadd.xlane.f32.xlu0 %v1755
        %v1757 = vpop.xlane.xlu0 %1756
        %v1758 = vsel %vm808, %v1719, 0.0
        %1759 = vadd.xlane.f32.xlu0 %v1758
        %v1760 = vpop.xlane.xlu0 %1759
        %v1761 = vsel %vm808, %v1721, 0.0
        %1762 = vadd.xlane.f32.xlu0 %v1761
        %v1763 = vpop.xlane.xlu0 %1762
        %v1764 = vsel %vm808, %v1723, 0.0
        %1765 = vadd.xlane.f32.xlu0 %v1764
        %v1766 = vpop.xlane.xlu0 %1765
        %v1767 = vsel %vm808, %v1725, 0.0
        %1768 = vadd.xlane.f32.xlu0 %v1767
        %v1769 = vpop.xlane.xlu0 %1768
        %v1770 = vsel %vm808, %v1727, 0.0
        %1771 = vadd.xlane.f32.xlu0 %v1770
        %v1772 = vpop.xlane.xlu0 %1771
        %v1773 = vsel %vm808, %v1729, 0.0
        %1774 = vadd.xlane.f32.xlu0 %v1773
        %v1775 = vpop.xlane.xlu0 %1774
        %v1776 = vsel %vm808, %v1731, 0.0
        %1777 = vadd.xlane.f32.xlu0 %v1776
        %v1778 = vpop.xlane.xlu0 %1777
        %v1779 = vsel %vm808, %v1733, 0.0
        %1780 = vadd.xlane.f32.xlu0 %v1779
        %v1781 = vpop.xlane.xlu0 %1780
        %1782 = vrot.lane.b32.xlu0 %v399, 56
        %v1783 = vpop.permute.xlu0 %1782
        %1784 = vrot.lane.b32.xlu0 %v404, 56
        %v1785 = vpop.permute.xlu0 %1784
        %1786 = vrot.lane.b32.xlu0 %v409, 56
        %v1787 = vpop.permute.xlu0 %1786
        %1788 = vrot.lane.b32.xlu0 %v414, 56
        %v1789 = vpop.permute.xlu0 %1788
        %1790 = vrot.lane.b32.xlu0 %v419, 56
        %v1791 = vpop.permute.xlu0 %1790
        %1792 = vrot.lane.b32.xlu0 %v424, 56
        %v1793 = vpop.permute.xlu0 %1792
        %1794 = vrot.lane.b32.xlu0 %v429, 56
        %v1795 = vpop.permute.xlu0 %1794
        %1796 = vrot.lane.b32.xlu0 %v434, 56
        %v1797 = vpop.permute.xlu0 %1796
        %v1807 = vsel %vm808, %v1703, 0
        %v1810 = vsel %vm808, %v1705, 0
        %v1813 = vsel %vm808, %v1707, 0
        %v1816 = vsel %vm808, %v1709, 0
        %v1819 = vsel %vm808, %v1711, 0
        %v1822 = vsel %vm808, %v1713, 0
        %v1825 = vsel %vm808, %v1715, 0
        %v1828 = vsel %vm808, %v1717, 0
        %1830 = vmatprep.subr.mxu0 0.0
        %1831 = vmatpush1.msra.mxu0 %v1783
        %1832 = vmatprep.subr.mxu0 0.0
        %1833 = vmatpush1.msra.mxu0 %v1785
        %1834 = vmatprep.subr.mxu0 0.0
        %1835 = vmatpush1.msra.mxu0 %v1787
        %1836 = vmatprep.subr.mxu0 0.0
        %1837 = vmatpush1.msra.mxu0 %v1789
        %1838 = vmatprep.subr.mxu0 0.0
        %1839 = vmatpush1.msra.mxu0 %v1791
        %1840 = vmatprep.subr.mxu0 0.0
        %1841 = vmatpush1.msra.mxu0 %v1793
        %1842 = vmatprep.subr.mxu0 0.0
        %1843 = vmatpush1.msra.mxu0 %v1795
        %1844 = vmatprep.subr.mxu0 0.0
        %1845 = vmatpush1.msra.mxu0 %v1797
        %1846 = vmatprep.subr.mxu0 0.0
        %1847 = vmatpush1.msra.mxu0 0.0
        %1848 = vmatprep.subr.mxu0 0.0
        %1849 = vmatpush1.msra.mxu0 0.0
        %1850 = vmatprep.subr.mxu0 0.0
        %1851 = vmatpush1.msra.mxu0 0.0
        %1852 = vmatprep.subr.mxu0 0.0
        %1853 = vmatpush1.msra.mxu0 0.0
        %1854 = vmatprep.subr.mxu0 0.0
        %1855 = vmatpush1.msra.mxu0 0.0
        %1856 = vmatprep.subr.mxu0 0.0
        %1857 = vmatpush1.msra.mxu0 0.0
        %1858 = vmatprep.subr.mxu0 0.0
        %1859 = vmatpush1.msra.mxu0 0.0
        %1860 = vmatprep.subr.mxu0 0.0
        %1861 = vmatpush1.msra.mxu0 0.0
        %1862 = vmatprep.subr.mxu0 0.0
        %1863 = vmatpush1.msra.mxu0 0.0
        %1864 = vmatprep.subr.mxu0 0.0
        %1865 = vmatpush1.msra.mxu0 0.0
        %1866 = vmatprep.subr.mxu0 0.0
        %1867 = vmatpush1.msra.mxu0 0.0
        %1868 = vmatprep.subr.mxu0 0.0
        %1869 = vmatpush1.msra.mxu0 0.0
        %1870 = vmatprep.subr.mxu0 0.0
        %1871 = vmatpush1.msra.mxu0 0.0
        %1872 = vmatprep.subr.mxu0 0.0
        %1873 = vmatpush1.msra.mxu0 0.0
        %1874 = vmatprep.subr.mxu0 0.0
        %1875 = vmatpush1.msra.mxu0 0.0
        %1876 = vmatprep.subr.mxu0 0.0
        %1877 = vmatpush1.msra.mxu0 0.0
        %1878 = vmatprep.subr.mxu0 0.0
        %1879 = vmatpush1.msra.mxu0 0.0
        %1880 = vmatprep.subr.mxu0 0.0
        %1881 = vmatpush1.msra.mxu0 0.0
        %1882 = vmatprep.subr.mxu0 0.0
        %1883 = vmatpush1.msra.mxu0 0.0
        %1884 = vmatprep.subr.mxu0 0.0
        %1885 = vmatpush1.msra.mxu0 0.0
        %1886 = vmatprep.subr.mxu0 0.0
        %1887 = vmatpush1.msra.mxu0 0.0
        %1888 = vmatprep.subr.mxu0 0.0
        %1889 = vmatpush1.msra.mxu0 0.0
        %1890 = vmatprep.subr.mxu0 0.0
        %1891 = vmatpush1.msra.mxu0 0.0
        %1892 = vmatprep.subr.mxu0 0.0
        %1893 = vmatpush1.msra.mxu0 0.0
        %1894 = vmatprep.mubr.f32.mxu0 0.0
        %1895 = vmatmul.mubr.f32.gmra.mrb[0].mxu0 %v1807
        %v1896 = vpop.f32.mrb[0].mxu0
        %v1897 = vadd.f32 0.0, %v1896
        %v1898 = vpop.f32.mrb[0].mxu0
        %1899 = vmatprep.mubr.f32.mxu0 0.0
        %1900 = vmatmul.mubr.f32.gmra.mrb[0].mxu0 %v1810
        %v1901 = vpop.f32.mrb[0].mxu0
        %v1902 = vadd.f32 0.0, %v1901
        %v1903 = vpop.f32.mrb[0].mxu0
        %1904 = vmatprep.mubr.f32.mxu0 0.0
        %1905 = vmatmul.mubr.f32.gmra.mrb[0].mxu0 %v1813
        %v1906 = vpop.f32.mrb[0].mxu0
        %v1907 = vadd.f32 0.0, %v1906
        %v1908 = vpop.f32.mrb[0].mxu0
        %1909 = vmatprep.mubr.f32.mxu0 0.0
        %1910 = vmatmul.mubr.f32.gmra.mrb[0].mxu0 %v1816
        %v1911 = vpop.f32.mrb[0].mxu0
        %v1912 = vadd.f32 0.0, %v1911
        %v1913 = vpop.f32.mrb[0].mxu0
        %1914 = vmatprep.mubr.f32.mxu0 0.0
        %1915 = vmatmul.mubr.f32.gmra.mrb[0].mxu0 %v1819
        %v1916 = vpop.f32.mrb[0].mxu0
        %v1917 = vadd.f32 0.0, %v1916
        %v1918 = vpop.f32.mrb[0].mxu0
        %1919 = vmatprep.mubr.f32.mxu0 0.0
        %1920 = vmatmul.mubr.f32.gmra.mrb[0].mxu0 %v1822
        %v1921 = vpop.f32.mrb[0].mxu0
        %v1922 = vadd.f32 0.0, %v1921
        %v1923 = vpop.f32.mrb[0].mxu0
        %1924 = vmatprep.mubr.f32.mxu0 0.0
        %1925 = vmatmul.mubr.f32.gmra.mrb[0].mxu0 %v1825
        %v1926 = vpop.f32.mrb[0].mxu0
        %v1927 = vadd.f32 0.0, %v1926
        %v1928 = vpop.f32.mrb[0].mxu0
        %1929 = vmatprep.mubr.f32.mxu0 0.0
        %1930 = vmatmul.mubr.f32.gmra.mrb[0].mxu0 %v1828
        %v1931 = vpop.f32.mrb[0].mxu0
        %v1932 = vadd.f32 0.0, %v1931
        %v1933 = vpop.f32.mrb[0].mxu0
        %1934 = vdwg.mxu0
        %1935 = vrot.lane.b32.xlu0 %v439, 56
        %v1936 = vpop.permute.xlu0 %1935
        %1937 = vrot.lane.b32.xlu0 %v444, 56
        %v1938 = vpop.permute.xlu0 %1937
        %1939 = vrot.lane.b32.xlu0 %v449, 56
        %v1940 = vpop.permute.xlu0 %1939
        %1941 = vrot.lane.b32.xlu0 %v454, 56
        %v1942 = vpop.permute.xlu0 %1941
        %1943 = vrot.lane.b32.xlu0 %v459, 56
        %v1944 = vpop.permute.xlu0 %1943
        %1945 = vrot.lane.b32.xlu0 %v464, 56
        %v1946 = vpop.permute.xlu0 %1945
        %1947 = vrot.lane.b32.xlu0 %v469, 56
        %v1948 = vpop.permute.xlu0 %1947
        %1949 = vrot.lane.b32.xlu0 %v474, 56
        %v1950 = vpop.permute.xlu0 %1949
        %v1960 = vsel %vm808, %v1719, 0
        %v1963 = vsel %vm808, %v1721, 0
        %v1966 = vsel %vm808, %v1723, 0
        %v1969 = vsel %vm808, %v1725, 0
        %v1972 = vsel %vm808, %v1727, 0
        %v1975 = vsel %vm808, %v1729, 0
        %v1978 = vsel %vm808, %v1731, 0
        %v1981 = vsel %vm808, %v1733, 0
        %1983 = vmatprep.subr.mxu0 0.0
        %1984 = vmatpush1.msra.mxu0 %v1936
        %1985 = vmatprep.subr.mxu0 0.0
        %1986 = vmatpush1.msra.mxu0 %v1938
        %1987 = vmatprep.subr.mxu0 0.0
        %1988 = vmatpush1.msra.mxu0 %v1940
        %1989 = vmatprep.subr.mxu0 0.0
        %1990 = vmatpush1.msra.mxu0 %v1942
        %1991 = vmatprep.subr.mxu0 0.0
        %1992 = vmatpush1.msra.mxu0 %v1944
        %1993 = vmatprep.subr.mxu0 0.0
        %1994 = vmatpush1.msra.mxu0 %v1946
        %1995 = vmatprep.subr.mxu0 0.0
        %1996 = vmatpush1.msra.mxu0 %v1948
        %1997 = vmatprep.subr.mxu0 0.0
        %1998 = vmatpush1.msra.mxu0 %v1950
        %1999 = vmatprep.subr.mxu0 0.0
        %2000 = vmatpush1.msra.mxu0 0.0
        %2001 = vmatprep.subr.mxu0 0.0
        %2002 = vmatpush1.msra.mxu0 0.0
        %2003 = vmatprep.subr.mxu0 0.0
        %2004 = vmatpush1.msra.mxu0 0.0
        %2005 = vmatprep.subr.mxu0 0.0
        %2006 = vmatpush1.msra.mxu0 0.0
        %2007 = vmatprep.subr.mxu0 0.0
        %2008 = vmatpush1.msra.mxu0 0.0
        %2009 = vmatprep.subr.mxu0 0.0
        %2010 = vmatpush1.msra.mxu0 0.0
        %2011 = vmatprep.subr.mxu0 0.0
        %2012 = vmatpush1.msra.mxu0 0.0
        %2013 = vmatprep.subr.mxu0 0.0
        %2014 = vmatpush1.msra.mxu0 0.0
        %2015 = vmatprep.subr.mxu0 0.0
        %2016 = vmatpush1.msra.mxu0 0.0
        %2017 = vmatprep.subr.mxu0 0.0
        %2018 = vmatpush1.msra.mxu0 0.0
        %2019 = vmatprep.subr.mxu0 0.0
        %2020 = vmatpush1.msra.mxu0 0.0
        %2021 = vmatprep.subr.mxu0 0.0
        %2022 = vmatpush1.msra.mxu0 0.0
        %2023 = vmatprep.subr.mxu0 0.0
        %2024 = vmatpush1.msra.mxu0 0.0
        %2025 = vmatprep.subr.mxu0 0.0
        %2026 = vmatpush1.msra.mxu0 0.0
        %2027 = vmatprep.subr.mxu0 0.0
        %2028 = vmatpush1.msra.mxu0 0.0
        %2029 = vmatprep.subr.mxu0 0.0
        %2030 = vmatpush1.msra.mxu0 0.0
        %2031 = vmatprep.subr.mxu0 0.0
        %2032 = vmatpush1.msra.mxu0 0.0
        %2033 = vmatprep.subr.mxu0 0.0
        %2034 = vmatpush1.msra.mxu0 0.0
        %2035 = vmatprep.subr.mxu0 0.0
        %2036 = vmatpush1.msra.mxu0 0.0
        %2037 = vmatprep.subr.mxu0 0.0
        %2038 = vmatpush1.msra.mxu0 0.0
        %2039 = vmatprep.subr.mxu0 0.0
        %2040 = vmatpush1.msra.mxu0 0.0
        %2041 = vmatprep.subr.mxu0 0.0
        %2042 = vmatpush1.msra.mxu0 0.0
        %2043 = vmatprep.subr.mxu0 0.0
        %2044 = vmatpush1.msra.mxu0 0.0
        %2045 = vmatprep.subr.mxu0 0.0
        %2046 = vmatpush1.msra.mxu0 0.0
        %2047 = vmatprep.mubr.f32.mxu0 0.0
        %2048 = vmatmul.mubr.f32.gmra.mrb[0].mxu0 %v1960
        %v2049 = vpop.f32.mrb[0].mxu0
        %v2050 = vadd.f32 0.0, %v2049
        %v2051 = vpop.f32.mrb[0].mxu0
        %2052 = vmatprep.mubr.f32.mxu0 0.0
        %2053 = vmatmul.mubr.f32.gmra.mrb[0].mxu0 %v1963
        %v2054 = vpop.f32.mrb[0].mxu0
        %v2055 = vadd.f32 0.0, %v2054
        %v2056 = vpop.f32.mrb[0].mxu0
        %2057 = vmatprep.mubr.f32.mxu0 0.0
        %2058 = vmatmul.mubr.f32.gmra.mrb[0].mxu0 %v1966
        %v2059 = vpop.f32.mrb[0].mxu0
        %v2060 = vadd.f32 0.0, %v2059
        %v2061 = vpop.f32.mrb[0].mxu0
        %2062 = vmatprep.mubr.f32.mxu0 0.0
        %2063 = vmatmul.mubr.f32.gmra.mrb[0].mxu0 %v1969
        %v2064 = vpop.f32.mrb[0].mxu0
        %v2065 = vadd.f32 0.0, %v2064
        %v2066 = vpop.f32.mrb[0].mxu0
        %2067 = vmatprep.mubr.f32.mxu0 0.0
        %2068 = vmatmul.mubr.f32.gmra.mrb[0].mxu0 %v1972
        %v2069 = vpop.f32.mrb[0].mxu0
        %v2070 = vadd.f32 0.0, %v2069
        %v2071 = vpop.f32.mrb[0].mxu0
        %2072 = vmatprep.mubr.f32.mxu0 0.0
        %2073 = vmatmul.mubr.f32.gmra.mrb[0].mxu0 %v1975
        %v2074 = vpop.f32.mrb[0].mxu0
        %v2075 = vadd.f32 0.0, %v2074
        %v2076 = vpop.f32.mrb[0].mxu0
        %2077 = vmatprep.mubr.f32.mxu0 0.0
        %2078 = vmatmul.mubr.f32.gmra.mrb[0].mxu0 %v1978
        %v2079 = vpop.f32.mrb[0].mxu0
        %v2080 = vadd.f32 0.0, %v2079
        %v2081 = vpop.f32.mrb[0].mxu0
        %2082 = vmatprep.mubr.f32.mxu0 0.0
        %2083 = vmatmul.mubr.f32.gmra.mrb[0].mxu0 %v1981
        %v2084 = vpop.f32.mrb[0].mxu0
        %v2085 = vadd.f32 0.0, %v2084
        %v2086 = vpop.f32.mrb[0].mxu0
        %2087 = vdwg.mxu0
        %v2088 = vrcp.pop %v1736
        %v2089 = vrcp.pop %v1739
        %v2090 = vrcp.pop %v1742
        %v2091 = vrcp.pop %v1745
        %v2092 = vrcp.pop %v1748
        %v2093 = vrcp.pop %v1751
        %v2094 = vrcp.pop %v1754
        %v2095 = vrcp.pop %v1757
        %v2096 = vrcp.pop %v1760
        %v2097 = vrcp.pop %v1763
        %v2098 = vrcp.pop %v1766
        %v2099 = vrcp.pop %v1769
        %v2100 = vrcp.pop %v1772
        %v2101 = vrcp.pop %v1775
        %v2102 = vrcp.pop %v1778
        %v2103 = vrcp.pop %v1781
        %v2104 = vmul.f32 %v1897, %v2088
        %v2105 = vmul.f32 %v1902, %v2089
        %v2106 = vmul.f32 %v1907, %v2090
        %v2107 = vmul.f32 %v1912, %v2091
        %v2108 = vmul.f32 %v1917, %v2092
        %v2109 = vmul.f32 %v1922, %v2093
        %v2110 = vmul.f32 %v1927, %v2094
        %v2111 = vmul.f32 %v1932, %v2095
        %v2112 = vmul.f32 %v2050, %v2096
        %v2113 = vmul.f32 %v2055, %v2097
        %v2114 = vmul.f32 %v2060, %v2098
        %v2115 = vmul.f32 %v2065, %v2099
        %v2116 = vmul.f32 %v2070, %v2100
        %v2117 = vmul.f32 %v2075, %v2101
        %v2118 = vmul.f32 %v2080, %v2102
        %v2119 = vmul.f32 %v2085, %v2103
        %s2120 = scalar_lea.vmem %s3, 128
        %v2121 = vld [vmem:[%s2120] sm:$0xff]
        %v2122 = vld [vmem:[%s2120 + $0x8] sm:$0xff]
        %v2123 = vld [vmem:[%s2120 + $0x10] sm:$0xff]
        %v2124 = vld [vmem:[%s2120 + $0x18] sm:$0xff]
        %v2125 = vld [vmem:[%s2120 + $0x20] sm:$0xff]
        %v2126 = vld [vmem:[%s2120 + $0x28] sm:$0xff]
        %v2127 = vld [vmem:[%s2120 + $0x30] sm:$0xff]
        %v2128 = vld [vmem:[%s2120 + $0x38] sm:$0xff]
        %2129 = vrot.lane.b32.xlu0 %v399, 112
        %v2130 = vpop.permute.xlu0 %2129
        %2131 = vrot.lane.b32.xlu0 %v404, 112
        %v2132 = vpop.permute.xlu0 %2131
        %2133 = vrot.lane.b32.xlu0 %v409, 112
        %v2134 = vpop.permute.xlu0 %2133
        %2135 = vrot.lane.b32.xlu0 %v414, 112
        %v2136 = vpop.permute.xlu0 %2135
        %2137 = vrot.lane.b32.xlu0 %v419, 112
        %v2138 = vpop.permute.xlu0 %2137
        %2139 = vrot.lane.b32.xlu0 %v424, 112
        %v2140 = vpop.permute.xlu0 %2139
        %2141 = vrot.lane.b32.xlu0 %v429, 112
        %v2142 = vpop.permute.xlu0 %2141
        %2143 = vrot.lane.b32.xlu0 %v434, 112
        %v2144 = vpop.permute.xlu0 %2143
        %2145 = vrot.lane.b32.xlu0 %v399, 80
        %v2146 = vpop.permute.xlu0 %2145
        %2147 = vrot.lane.b32.xlu0 %v404, 80
        %v2148 = vpop.permute.xlu0 %2147
        %2149 = vrot.lane.b32.xlu0 %v409, 80
        %v2150 = vpop.permute.xlu0 %2149
        %2151 = vrot.lane.b32.xlu0 %v414, 80
        %v2152 = vpop.permute.xlu0 %2151
        %2153 = vrot.lane.b32.xlu0 %v419, 80
        %v2154 = vpop.permute.xlu0 %2153
        %2155 = vrot.lane.b32.xlu0 %v424, 80
        %v2156 = vpop.permute.xlu0 %2155
        %2157 = vrot.lane.b32.xlu0 %v429, 80
        %v2158 = vpop.permute.xlu0 %2157
        %2159 = vrot.lane.b32.xlu0 %v434, 80
        %v2160 = vpop.permute.xlu0 %2159
        %v2161 = vsel %vm509, %v2130, 0
        %v2163 = vsel %vm509, %v2132, 0
        %v2165 = vsel %vm509, %v2134, 0
        %v2167 = vsel %vm509, %v2136, 0
        %v2169 = vsel %vm509, %v2138, 0
        %v2171 = vsel %vm509, %v2140, 0
        %v2173 = vsel %vm509, %v2142, 0
        %v2175 = vsel %vm509, %v2144, 0
        %v2177 = vsel %vm509, %v2146, 0
        %v2179 = vsel %vm509, %v2148, 0
        %v2181 = vsel %vm509, %v2150, 0
        %v2183 = vsel %vm509, %v2152, 0
        %v2185 = vsel %vm509, %v2154, 0
        %v2187 = vsel %vm509, %v2156, 0
        %v2189 = vsel %vm509, %v2158, 0
        %v2191 = vsel %vm509, %v2160, 0
        %2193 = vmatprep.subr.mxu0 0.0
        %2194 = vmatpush1.xpose.msra.mxu0 %v2177
        %2195 = vmatprep.subr.mxu0 0.0
        %2196 = vmatpush1.xpose.msra.mxu0 %v2179
        %2197 = vmatprep.subr.mxu0 0.0
        %2198 = vmatpush1.xpose.msra.mxu0 %v2181
        %2199 = vmatprep.subr.mxu0 0.0
        %2200 = vmatpush1.xpose.msra.mxu0 %v2183
        %2201 = vmatprep.subr.mxu0 0.0
        %2202 = vmatpush1.xpose.msra.mxu0 %v2185
        %2203 = vmatprep.subr.mxu0 0.0
        %2204 = vmatpush1.xpose.msra.mxu0 %v2187
        %2205 = vmatprep.subr.mxu0 0.0
        %2206 = vmatpush1.xpose.msra.mxu0 %v2189
        %2207 = vmatprep.subr.mxu0 0.0
        %2208 = vmatpush1.xpose.msra.mxu0 %v2191
        %2209 = vmatprep.subr.mxu0 0.0
        %2210 = vmatpush1.xpose.msra.mxu0 0.0
        %2211 = vmatprep.subr.mxu0 0.0
        %2212 = vmatpush1.xpose.msra.mxu0 0.0
        %2213 = vmatprep.subr.mxu0 0.0
        %2214 = vmatpush1.xpose.msra.mxu0 0.0
        %2215 = vmatprep.subr.mxu0 0.0
        %2216 = vmatpush1.xpose.msra.mxu0 0.0
        %2217 = vmatprep.subr.mxu0 0.0
        %2218 = vmatpush1.xpose.msra.mxu0 0.0
        %2219 = vmatprep.subr.mxu0 0.0
        %2220 = vmatpush1.xpose.msra.mxu0 0.0
        %2221 = vmatprep.subr.mxu0 0.0
        %2222 = vmatpush1.xpose.msra.mxu0 0.0
        %2223 = vmatprep.subr.mxu0 0.0
        %2224 = vmatpush1.xpose.msra.mxu0 0.0
        %2225 = vmatprep.subr.mxu0 0.0
        %2226 = vmatpush1.xpose.msra.mxu0 0.0
        %2227 = vmatprep.subr.mxu0 0.0
        %2228 = vmatpush1.xpose.msra.mxu0 0.0
        %2229 = vmatprep.subr.mxu0 0.0
        %2230 = vmatpush1.xpose.msra.mxu0 0.0
        %2231 = vmatprep.subr.mxu0 0.0
        %2232 = vmatpush1.xpose.msra.mxu0 0.0
        %2233 = vmatprep.subr.mxu0 0.0
        %2234 = vmatpush1.xpose.msra.mxu0 0.0
        %2235 = vmatprep.subr.mxu0 0.0
        %2236 = vmatpush1.xpose.msra.mxu0 0.0
        %2237 = vmatprep.subr.mxu0 0.0
        %2238 = vmatpush1.xpose.msra.mxu0 0.0
        %2239 = vmatprep.subr.mxu0 0.0
        %2240 = vmatpush1.xpose.msra.mxu0 0.0
        %2241 = vmatprep.subr.mxu0 0.0
        %2242 = vmatpush1.xpose.msra.mxu0 0.0
        %2243 = vmatprep.subr.mxu0 0.0
        %2244 = vmatpush1.xpose.msra.mxu0 0.0
        %2245 = vmatprep.subr.mxu0 0.0
        %2246 = vmatpush1.xpose.msra.mxu0 0.0
        %2247 = vmatprep.subr.mxu0 0.0
        %2248 = vmatpush1.xpose.msra.mxu0 0.0
        %2249 = vmatprep.subr.mxu0 0.0
        %2250 = vmatpush1.xpose.msra.mxu0 0.0
        %2251 = vmatprep.subr.mxu0 0.0
        %2252 = vmatpush1.xpose.msra.mxu0 0.0
        %2253 = vmatprep.subr.mxu0 0.0
        %2254 = vmatpush1.xpose.msra.mxu0 0.0
        %2255 = vmatprep.subr.mxu0 0.0
        %2256 = vmatpush1.xpose.msra.mxu0 0.0
        %2257 = vmatprep.mubr.f32.mxu0 0.0
        %2258 = vmatmul.mubr.f32.gmra.mrb[0].mxu0 %v2161
        %v2259 = vpop.f32.mrb[0].mxu0
        %v2260 = vadd.f32 %v2121, %v2259
        %v2261 = vpop.f32.mrb[0].mxu0
        %2262 = vmatprep.mubr.f32.mxu0 0.0
        %2263 = vmatmul.mubr.f32.gmra.mrb[0].mxu0 %v2163
        %v2264 = vpop.f32.mrb[0].mxu0
        %v2265 = vadd.f32 %v2122, %v2264
        %v2266 = vpop.f32.mrb[0].mxu0
        %2267 = vmatprep.mubr.f32.mxu0 0.0
        %2268 = vmatmul.mubr.f32.gmra.mrb[0].mxu0 %v2165
        %v2269 = vpop.f32.mrb[0].mxu0
        %v2270 = vadd.f32 %v2123, %v2269
        %v2271 = vpop.f32.mrb[0].mxu0
        %2272 = vmatprep.mubr.f32.mxu0 0.0
        %2273 = vmatmul.mubr.f32.gmra.mrb[0].mxu0 %v2167
        %v2274 = vpop.f32.mrb[0].mxu0
        %v2275 = vadd.f32 %v2124, %v2274
        %v2276 = vpop.f32.mrb[0].mxu0
        %2277 = vmatprep.mubr.f32.mxu0 0.0
        %2278 = vmatmul.mubr.f32.gmra.mrb[0].mxu0 %v2169
        %v2279 = vpop.f32.mrb[0].mxu0
        %v2280 = vadd.f32 %v2125, %v2279
        %v2281 = vpop.f32.mrb[0].mxu0
        %2282 = vmatprep.mubr.f32.mxu0 0.0
        %2283 = vmatmul.mubr.f32.gmra.mrb[0].mxu0 %v2171
        %v2284 = vpop.f32.mrb[0].mxu0
        %v2285 = vadd.f32 %v2126, %v2284
        %v2286 = vpop.f32.mrb[0].mxu0
        %2287 = vmatprep.mubr.f32.mxu0 0.0
        %2288 = vmatmul.mubr.f32.gmra.mrb[0].mxu0 %v2173
        %v2289 = vpop.f32.mrb[0].mxu0
        %v2290 = vadd.f32 %v2127, %v2289
        %v2291 = vpop.f32.mrb[0].mxu0
        %2292 = vmatprep.mubr.f32.mxu0 0.0
        %2293 = vmatmul.mubr.f32.gmra.mrb[0].mxu0 %v2175
        %v2294 = vpop.f32.mrb[0].mxu0
        %v2295 = vadd.f32 %v2128, %v2294
        %v2296 = vpop.f32.mrb[0].mxu0
        %2297 = vdwg.mxu0
        %2298 = vrot.lane.b32.xlu0 %v439, 112
        %v2299 = vpop.permute.xlu0 %2298
        %2300 = vrot.lane.b32.xlu0 %v444, 112
        %v2301 = vpop.permute.xlu0 %2300
        %2302 = vrot.lane.b32.xlu0 %v449, 112
        %v2303 = vpop.permute.xlu0 %2302
        %2304 = vrot.lane.b32.xlu0 %v454, 112
        %v2305 = vpop.permute.xlu0 %2304
        %2306 = vrot.lane.b32.xlu0 %v459, 112
        %v2307 = vpop.permute.xlu0 %2306
        %2308 = vrot.lane.b32.xlu0 %v464, 112
        %v2309 = vpop.permute.xlu0 %2308
        %2310 = vrot.lane.b32.xlu0 %v469, 112
        %v2311 = vpop.permute.xlu0 %2310
        %2312 = vrot.lane.b32.xlu0 %v474, 112
        %v2313 = vpop.permute.xlu0 %2312
        %2314 = vrot.lane.b32.xlu0 %v439, 80
        %v2315 = vpop.permute.xlu0 %2314
        %2316 = vrot.lane.b32.xlu0 %v444, 80
        %v2317 = vpop.permute.xlu0 %2316
        %2318 = vrot.lane.b32.xlu0 %v449, 80
        %v2319 = vpop.permute.xlu0 %2318
        %2320 = vrot.lane.b32.xlu0 %v454, 80
        %v2321 = vpop.permute.xlu0 %2320
        %2322 = vrot.lane.b32.xlu0 %v459, 80
        %v2323 = vpop.permute.xlu0 %2322
        %2324 = vrot.lane.b32.xlu0 %v464, 80
        %v2325 = vpop.permute.xlu0 %2324
        %2326 = vrot.lane.b32.xlu0 %v469, 80
        %v2327 = vpop.permute.xlu0 %2326
        %2328 = vrot.lane.b32.xlu0 %v474, 80
        %v2329 = vpop.permute.xlu0 %2328
        %v2330 = vsel %vm509, %v2299, 0
        %v2332 = vsel %vm509, %v2301, 0
        %v2334 = vsel %vm509, %v2303, 0
        %v2336 = vsel %vm509, %v2305, 0
        %v2338 = vsel %vm509, %v2307, 0
        %v2340 = vsel %vm509, %v2309, 0
        %v2342 = vsel %vm509, %v2311, 0
        %v2344 = vsel %vm509, %v2313, 0
        %v2346 = vsel %vm509, %v2315, 0
        %v2348 = vsel %vm509, %v2317, 0
        %v2350 = vsel %vm509, %v2319, 0
        %v2352 = vsel %vm509, %v2321, 0
        %v2354 = vsel %vm509, %v2323, 0
        %v2356 = vsel %vm509, %v2325, 0
        %v2358 = vsel %vm509, %v2327, 0
        %v2360 = vsel %vm509, %v2329, 0
        %2362 = vmatprep.subr.mxu0 0.0
        %2363 = vmatpush1.xpose.msra.mxu0 %v2346
        %2364 = vmatprep.subr.mxu0 0.0
        %2365 = vmatpush1.xpose.msra.mxu0 %v2348
        %2366 = vmatprep.subr.mxu0 0.0
        %2367 = vmatpush1.xpose.msra.mxu0 %v2350
        %2368 = vmatprep.subr.mxu0 0.0
        %2369 = vmatpush1.xpose.msra.mxu0 %v2352
        %2370 = vmatprep.subr.mxu0 0.0
        %2371 = vmatpush1.xpose.msra.mxu0 %v2354
        %2372 = vmatprep.subr.mxu0 0.0
        %2373 = vmatpush1.xpose.msra.mxu0 %v2356
        %2374 = vmatprep.subr.mxu0 0.0
        %2375 = vmatpush1.xpose.msra.mxu0 %v2358
        %2376 = vmatprep.subr.mxu0 0.0
        %2377 = vmatpush1.xpose.msra.mxu0 %v2360
        %2378 = vmatprep.subr.mxu0 0.0
        %2379 = vmatpush1.xpose.msra.mxu0 0.0
        %2380 = vmatprep.subr.mxu0 0.0
        %2381 = vmatpush1.xpose.msra.mxu0 0.0
        %2382 = vmatprep.subr.mxu0 0.0
        %2383 = vmatpush1.xpose.msra.mxu0 0.0
        %2384 = vmatprep.subr.mxu0 0.0
        %2385 = vmatpush1.xpose.msra.mxu0 0.0
        %2386 = vmatprep.subr.mxu0 0.0
        %2387 = vmatpush1.xpose.msra.mxu0 0.0
        %2388 = vmatprep.subr.mxu0 0.0
        %2389 = vmatpush1.xpose.msra.mxu0 0.0
        %2390 = vmatprep.subr.mxu0 0.0
        %2391 = vmatpush1.xpose.msra.mxu0 0.0
        %2392 = vmatprep.subr.mxu0 0.0
        %2393 = vmatpush1.xpose.msra.mxu0 0.0
        %2394 = vmatprep.subr.mxu0 0.0
        %2395 = vmatpush1.xpose.msra.mxu0 0.0
        %2396 = vmatprep.subr.mxu0 0.0
        %2397 = vmatpush1.xpose.msra.mxu0 0.0
        %2398 = vmatprep.subr.mxu0 0.0
        %2399 = vmatpush1.xpose.msra.mxu0 0.0
        %2400 = vmatprep.subr.mxu0 0.0
        %2401 = vmatpush1.xpose.msra.mxu0 0.0
        %2402 = vmatprep.subr.mxu0 0.0
        %2403 = vmatpush1.xpose.msra.mxu0 0.0
        %2404 = vmatprep.subr.mxu0 0.0
        %2405 = vmatpush1.xpose.msra.mxu0 0.0
        %2406 = vmatprep.subr.mxu0 0.0
        %2407 = vmatpush1.xpose.msra.mxu0 0.0
        %2408 = vmatprep.subr.mxu0 0.0
        %2409 = vmatpush1.xpose.msra.mxu0 0.0
        %2410 = vmatprep.subr.mxu0 0.0
        %2411 = vmatpush1.xpose.msra.mxu0 0.0
        %2412 = vmatprep.subr.mxu0 0.0
        %2413 = vmatpush1.xpose.msra.mxu0 0.0
        %2414 = vmatprep.subr.mxu0 0.0
        %2415 = vmatpush1.xpose.msra.mxu0 0.0
        %2416 = vmatprep.subr.mxu0 0.0
        %2417 = vmatpush1.xpose.msra.mxu0 0.0
        %2418 = vmatprep.subr.mxu0 0.0
        %2419 = vmatpush1.xpose.msra.mxu0 0.0
        %2420 = vmatprep.subr.mxu0 0.0
        %2421 = vmatpush1.xpose.msra.mxu0 0.0
        %2422 = vmatprep.subr.mxu0 0.0
        %2423 = vmatpush1.xpose.msra.mxu0 0.0
        %2424 = vmatprep.subr.mxu0 0.0
        %2425 = vmatpush1.xpose.msra.mxu0 0.0
        %2426 = vmatprep.mubr.f32.mxu0 0.0
        %2427 = vmatmul.mubr.f32.gmra.mrb[0].mxu0 %v2330
        %v2428 = vpop.f32.mrb[0].mxu0
        %v2429 = vadd.f32 %v2121, %v2428
        %v2430 = vpop.f32.mrb[0].mxu0
        %2431 = vmatprep.mubr.f32.mxu0 0.0
        %2432 = vmatmul.mubr.f32.gmra.mrb[0].mxu0 %v2332
        %v2433 = vpop.f32.mrb[0].mxu0
        %v2434 = vadd.f32 %v2122, %v2433
        %v2435 = vpop.f32.mrb[0].mxu0
        %2436 = vmatprep.mubr.f32.mxu0 0.0
        %2437 = vmatmul.mubr.f32.gmra.mrb[0].mxu0 %v2334
        %v2438 = vpop.f32.mrb[0].mxu0
        %v2439 = vadd.f32 %v2123, %v2438
        %v2440 = vpop.f32.mrb[0].mxu0
        %2441 = vmatprep.mubr.f32.mxu0 0.0
        %2442 = vmatmul.mubr.f32.gmra.mrb[0].mxu0 %v2336
        %v2443 = vpop.f32.mrb[0].mxu0
        %v2444 = vadd.f32 %v2124, %v2443
        %v2445 = vpop.f32.mrb[0].mxu0
        %2446 = vmatprep.mubr.f32.mxu0 0.0
        %2447 = vmatmul.mubr.f32.gmra.mrb[0].mxu0 %v2338
        %v2448 = vpop.f32.mrb[0].mxu0
        %v2449 = vadd.f32 %v2125, %v2448
        %v2450 = vpop.f32.mrb[0].mxu0
        %2451 = vmatprep.mubr.f32.mxu0 0.0
        %2452 = vmatmul.mubr.f32.gmra.mrb[0].mxu0 %v2340
        %v2453 = vpop.f32.mrb[0].mxu0
        %v2454 = vadd.f32 %v2126, %v2453
        %v2455 = vpop.f32.mrb[0].mxu0
        %2456 = vmatprep.mubr.f32.mxu0 0.0
        %2457 = vmatmul.mubr.f32.gmra.mrb[0].mxu0 %v2342
        %v2458 = vpop.f32.mrb[0].mxu0
        %v2459 = vadd.f32 %v2127, %v2458
        %v2460 = vpop.f32.mrb[0].mxu0
        %2461 = vmatprep.mubr.f32.mxu0 0.0
        %2462 = vmatmul.mubr.f32.gmra.mrb[0].mxu0 %v2344
        %v2463 = vpop.f32.mrb[0].mxu0
        %v2464 = vadd.f32 %v2128, %v2463
        %v2465 = vpop.f32.mrb[0].mxu0
        %2466 = vdwg.mxu0
        %v2467 = vsel %vm808, %v2260, -inf
        %2468 = vmax.xlane.f32.xlu0 %v2467
        %v2469 = vpop.xlane.xlu0 %2468
        %v2470 = vsel %vm808, %v2265, -inf
        %2471 = vmax.xlane.f32.xlu0 %v2470
        %v2472 = vpop.xlane.xlu0 %2471
        %v2473 = vsel %vm808, %v2270, -inf
        %2474 = vmax.xlane.f32.xlu0 %v2473
        %v2475 = vpop.xlane.xlu0 %2474
        %v2476 = vsel %vm808, %v2275, -inf
        %2477 = vmax.xlane.f32.xlu0 %v2476
        %v2478 = vpop.xlane.xlu0 %2477
        %v2479 = vsel %vm808, %v2280, -inf
        %2480 = vmax.xlane.f32.xlu0 %v2479
        %v2481 = vpop.xlane.xlu0 %2480
        %v2482 = vsel %vm808, %v2285, -inf
        %2483 = vmax.xlane.f32.xlu0 %v2482
        %v2484 = vpop.xlane.xlu0 %2483
        %v2485 = vsel %vm808, %v2290, -inf
        %2486 = vmax.xlane.f32.xlu0 %v2485
        %v2487 = vpop.xlane.xlu0 %2486
        %v2488 = vsel %vm808, %v2295, -inf
        %2489 = vmax.xlane.f32.xlu0 %v2488
        %v2490 = vpop.xlane.xlu0 %2489
        %v2491 = vsel %vm808, %v2429, -inf
        %2492 = vmax.xlane.f32.xlu0 %v2491
        %v2493 = vpop.xlane.xlu0 %2492
        %v2494 = vsel %vm808, %v2434, -inf
        %2495 = vmax.xlane.f32.xlu0 %v2494
        %v2496 = vpop.xlane.xlu0 %2495
        %v2497 = vsel %vm808, %v2439, -inf
        %2498 = vmax.xlane.f32.xlu0 %v2497
        %v2499 = vpop.xlane.xlu0 %2498
        %v2500 = vsel %vm808, %v2444, -inf
        %2501 = vmax.xlane.f32.xlu0 %v2500
        %v2502 = vpop.xlane.xlu0 %2501
        %v2503 = vsel %vm808, %v2449, -inf
        %2504 = vmax.xlane.f32.xlu0 %v2503
        %v2505 = vpop.xlane.xlu0 %2504
        %v2506 = vsel %vm808, %v2454, -inf
        %2507 = vmax.xlane.f32.xlu0 %v2506
        %v2508 = vpop.xlane.xlu0 %2507
        %v2509 = vsel %vm808, %v2459, -inf
        %2510 = vmax.xlane.f32.xlu0 %v2509
        %v2511 = vpop.xlane.xlu0 %2510
        %v2512 = vsel %vm808, %v2464, -inf
        %2513 = vmax.xlane.f32.xlu0 %v2512
        %v2514 = vpop.xlane.xlu0 %2513
        %v2515 = vsub.f32 %v2260, %v2469
        %v2516 = vsub.f32 %v2265, %v2472
        %v2517 = vsub.f32 %v2270, %v2475
        %v2518 = vsub.f32 %v2275, %v2478
        %v2519 = vsub.f32 %v2280, %v2481
        %v2520 = vsub.f32 %v2285, %v2484
        %v2521 = vsub.f32 %v2290, %v2487
        %v2522 = vsub.f32 %v2295, %v2490
        %v2523 = vsub.f32 %v2429, %v2493
        %v2524 = vsub.f32 %v2434, %v2496
        %v2525 = vsub.f32 %v2439, %v2499
        %v2526 = vsub.f32 %v2444, %v2502
        %v2527 = vsub.f32 %v2449, %v2505
        %v2528 = vsub.f32 %v2454, %v2508
        %v2529 = vsub.f32 %v2459, %v2511
        %v2530 = vsub.f32 %v2464, %v2514
        %v2531 = vmul.f32 %v2515, 1.442695
        %v2532 = vpow.pop %v2531
        %v2533 = vmul.f32 %v2516, 1.442695
        %v2534 = vpow.pop %v2533
        %v2535 = vmul.f32 %v2517, 1.442695
        %v2536 = vpow.pop %v2535
        %v2537 = vmul.f32 %v2518, 1.442695
        %v2538 = vpow.pop %v2537
        %v2539 = vmul.f32 %v2519, 1.442695
        %v2540 = vpow.pop %v2539
        %v2541 = vmul.f32 %v2520, 1.442695
        %v2542 = vpow.pop %v2541
        %v2543 = vmul.f32 %v2521, 1.442695
        %v2544 = vpow.pop %v2543
        %v2545 = vmul.f32 %v2522, 1.442695
        %v2546 = vpow.pop %v2545
        %v2547 = vmul.f32 %v2523, 1.442695
        %v2548 = vpow.pop %v2547
        %v2549 = vmul.f32 %v2524, 1.442695
        %v2550 = vpow.pop %v2549
        %v2551 = vmul.f32 %v2525, 1.442695
        %v2552 = vpow.pop %v2551
        %v2553 = vmul.f32 %v2526, 1.442695
        %v2554 = vpow.pop %v2553
        %v2555 = vmul.f32 %v2527, 1.442695
        %v2556 = vpow.pop %v2555
        %v2557 = vmul.f32 %v2528, 1.442695
        %v2558 = vpow.pop %v2557
        %v2559 = vmul.f32 %v2529, 1.442695
        %v2560 = vpow.pop %v2559
        %v2561 = vmul.f32 %v2530, 1.442695
        %v2562 = vpow.pop %v2561
        %v2563 = vsel %vm808, %v2532, 0.0
        %2564 = vadd.xlane.f32.xlu0 %v2563
        %v2565 = vpop.xlane.xlu0 %2564
        %v2566 = vsel %vm808, %v2534, 0.0
        %2567 = vadd.xlane.f32.xlu0 %v2566
        %v2568 = vpop.xlane.xlu0 %2567
        %v2569 = vsel %vm808, %v2536, 0.0
        %2570 = vadd.xlane.f32.xlu0 %v2569
        %v2571 = vpop.xlane.xlu0 %2570
        %v2572 = vsel %vm808, %v2538, 0.0
        %2573 = vadd.xlane.f32.xlu0 %v2572
        %v2574 = vpop.xlane.xlu0 %2573
        %v2575 = vsel %vm808, %v2540, 0.0
        %2576 = vadd.xlane.f32.xlu0 %v2575
        %v2577 = vpop.xlane.xlu0 %2576
        %v2578 = vsel %vm808, %v2542, 0.0
        %2579 = vadd.xlane.f32.xlu0 %v2578
        %v2580 = vpop.xlane.xlu0 %2579
        %v2581 = vsel %vm808, %v2544, 0.0
        %2582 = vadd.xlane.f32.xlu0 %v2581
        %v2583 = vpop.xlane.xlu0 %2582
        %v2584 = vsel %vm808, %v2546, 0.0
        %2585 = vadd.xlane.f32.xlu0 %v2584
        %v2586 = vpop.xlane.xlu0 %2585
        %v2587 = vsel %vm808, %v2548, 0.0
        %2588 = vadd.xlane.f32.xlu0 %v2587
        %v2589 = vpop.xlane.xlu0 %2588
        %v2590 = vsel %vm808, %v2550, 0.0
        %2591 = vadd.xlane.f32.xlu0 %v2590
        %v2592 = vpop.xlane.xlu0 %2591
        %v2593 = vsel %vm808, %v2552, 0.0
        %2594 = vadd.xlane.f32.xlu0 %v2593
        %v2595 = vpop.xlane.xlu0 %2594
        %v2596 = vsel %vm808, %v2554, 0.0
        %2597 = vadd.xlane.f32.xlu0 %v2596
        %v2598 = vpop.xlane.xlu0 %2597
        %v2599 = vsel %vm808, %v2556, 0.0
        %2600 = vadd.xlane.f32.xlu0 %v2599
        %v2601 = vpop.xlane.xlu0 %2600
        %v2602 = vsel %vm808, %v2558, 0.0
        %2603 = vadd.xlane.f32.xlu0 %v2602
        %v2604 = vpop.xlane.xlu0 %2603
        %v2605 = vsel %vm808, %v2560, 0.0
        %2606 = vadd.xlane.f32.xlu0 %v2605
        %v2607 = vpop.xlane.xlu0 %2606
        %v2608 = vsel %vm808, %v2562, 0.0
        %2609 = vadd.xlane.f32.xlu0 %v2608
        %v2610 = vpop.xlane.xlu0 %2609
        %2611 = vrot.lane.b32.xlu0 %v399, 48
        %v2612 = vpop.permute.xlu0 %2611
        %2613 = vrot.lane.b32.xlu0 %v404, 48
        %v2614 = vpop.permute.xlu0 %2613
        %2615 = vrot.lane.b32.xlu0 %v409, 48
        %v2616 = vpop.permute.xlu0 %2615
        %2617 = vrot.lane.b32.xlu0 %v414, 48
        %v2618 = vpop.permute.xlu0 %2617
        %2619 = vrot.lane.b32.xlu0 %v419, 48
        %v2620 = vpop.permute.xlu0 %2619
        %2621 = vrot.lane.b32.xlu0 %v424, 48
        %v2622 = vpop.permute.xlu0 %2621
        %2623 = vrot.lane.b32.xlu0 %v429, 48
        %v2624 = vpop.permute.xlu0 %2623
        %2625 = vrot.lane.b32.xlu0 %v434, 48
        %v2626 = vpop.permute.xlu0 %2625
        %v2636 = vsel %vm808, %v2532, 0
        %v2639 = vsel %vm808, %v2534, 0
        %v2642 = vsel %vm808, %v2536, 0
        %v2645 = vsel %vm808, %v2538, 0
        %v2648 = vsel %vm808, %v2540, 0
        %v2651 = vsel %vm808, %v2542, 0
        %v2654 = vsel %vm808, %v2544, 0
        %v2657 = vsel %vm808, %v2546, 0
        %2659 = vmatprep.subr.mxu0 0.0
        %2660 = vmatpush1.msra.mxu0 %v2612
        %2661 = vmatprep.subr.mxu0 0.0
        %2662 = vmatpush1.msra.mxu0 %v2614
        %2663 = vmatprep.subr.mxu0 0.0
        %2664 = vmatpush1.msra.mxu0 %v2616
        %2665 = vmatprep.subr.mxu0 0.0
        %2666 = vmatpush1.msra.mxu0 %v2618
        %2667 = vmatprep.subr.mxu0 0.0
        %2668 = vmatpush1.msra.mxu0 %v2620
        %2669 = vmatprep.subr.mxu0 0.0
        %2670 = vmatpush1.msra.mxu0 %v2622
        %2671 = vmatprep.subr.mxu0 0.0
        %2672 = vmatpush1.msra.mxu0 %v2624
        %2673 = vmatprep.subr.mxu0 0.0
        %2674 = vmatpush1.msra.mxu0 %v2626
        %2675 = vmatprep.subr.mxu0 0.0
        %2676 = vmatpush1.msra.mxu0 0.0
        %2677 = vmatprep.subr.mxu0 0.0
        %2678 = vmatpush1.msra.mxu0 0.0
        %2679 = vmatprep.subr.mxu0 0.0
        %2680 = vmatpush1.msra.mxu0 0.0
        %2681 = vmatprep.subr.mxu0 0.0
        %2682 = vmatpush1.msra.mxu0 0.0
        %2683 = vmatprep.subr.mxu0 0.0
        %2684 = vmatpush1.msra.mxu0 0.0
        %2685 = vmatprep.subr.mxu0 0.0
        %2686 = vmatpush1.msra.mxu0 0.0
        %2687 = vmatprep.subr.mxu0 0.0
        %2688 = vmatpush1.msra.mxu0 0.0
        %2689 = vmatprep.subr.mxu0 0.0
        %2690 = vmatpush1.msra.mxu0 0.0
        %2691 = vmatprep.subr.mxu0 0.0
        %2692 = vmatpush1.msra.mxu0 0.0
        %2693 = vmatprep.subr.mxu0 0.0
        %2694 = vmatpush1.msra.mxu0 0.0
        %2695 = vmatprep.subr.mxu0 0.0
        %2696 = vmatpush1.msra.mxu0 0.0
        %2697 = vmatprep.subr.mxu0 0.0
        %2698 = vmatpush1.msra.mxu0 0.0
        %2699 = vmatprep.subr.mxu0 0.0
        %2700 = vmatpush1.msra.mxu0 0.0
        %2701 = vmatprep.subr.mxu0 0.0
        %2702 = vmatpush1.msra.mxu0 0.0
        %2703 = vmatprep.subr.mxu0 0.0
        %2704 = vmatpush1.msra.mxu0 0.0
        %2705 = vmatprep.subr.mxu0 0.0
        %2706 = vmatpush1.msra.mxu0 0.0
        %2707 = vmatprep.subr.mxu0 0.0
        %2708 = vmatpush1.msra.mxu0 0.0
        %2709 = vmatprep.subr.mxu0 0.0
        %2710 = vmatpush1.msra.mxu0 0.0
        %2711 = vmatprep.subr.mxu0 0.0
        %2712 = vmatpush1.msra.mxu0 0.0
        %2713 = vmatprep.subr.mxu0 0.0
        %2714 = vmatpush1.msra.mxu0 0.0
        %2715 = vmatprep.subr.mxu0 0.0
        %2716 = vmatpush1.msra.mxu0 0.0
        %2717 = vmatprep.subr.mxu0 0.0
        %2718 = vmatpush1.msra.mxu0 0.0
        %2719 = vmatprep.subr.mxu0 0.0
        %2720 = vmatpush1.msra.mxu0 0.0
        %2721 = vmatprep.subr.mxu0 0.0
        %2722 = vmatpush1.msra.mxu0 0.0
        %2723 = vmatprep.mubr.f32.mxu0 0.0
        %2724 = vmatmul.mubr.f32.gmra.mrb[0].mxu0 %v2636
        %v2725 = vpop.f32.mrb[0].mxu0
        %v2726 = vadd.f32 0.0, %v2725
        %v2727 = vpop.f32.mrb[0].mxu0
        %2728 = vmatprep.mubr.f32.mxu0 0.0
        %2729 = vmatmul.mubr.f32.gmra.mrb[0].mxu0 %v2639
        %v2730 = vpop.f32.mrb[0].mxu0
        %v2731 = vadd.f32 0.0, %v2730
        %v2732 = vpop.f32.mrb[0].mxu0
        %2733 = vmatprep.mubr.f32.mxu0 0.0
        %2734 = vmatmul.mubr.f32.gmra.mrb[0].mxu0 %v2642
        %v2735 = vpop.f32.mrb[0].mxu0
        %v2736 = vadd.f32 0.0, %v2735
        %v2737 = vpop.f32.mrb[0].mxu0
        %2738 = vmatprep.mubr.f32.mxu0 0.0
        %2739 = vmatmul.mubr.f32.gmra.mrb[0].mxu0 %v2645
        %v2740 = vpop.f32.mrb[0].mxu0
        %v2741 = vadd.f32 0.0, %v2740
        %v2742 = vpop.f32.mrb[0].mxu0
        %2743 = vmatprep.mubr.f32.mxu0 0.0
        %2744 = vmatmul.mubr.f32.gmra.mrb[0].mxu0 %v2648
        %v2745 = vpop.f32.mrb[0].mxu0
        %v2746 = vadd.f32 0.0, %v2745
        %v2747 = vpop.f32.mrb[0].mxu0
        %2748 = vmatprep.mubr.f32.mxu0 0.0
        %2749 = vmatmul.mubr.f32.gmra.mrb[0].mxu0 %v2651
        %v2750 = vpop.f32.mrb[0].mxu0
        %v2751 = vadd.f32 0.0, %v2750
        %v2752 = vpop.f32.mrb[0].mxu0
        %2753 = vmatprep.mubr.f32.mxu0 0.0
        %2754 = vmatmul.mubr.f32.gmra.mrb[0].mxu0 %v2654
        %v2755 = vpop.f32.mrb[0].mxu0
        %v2756 = vadd.f32 0.0, %v2755
        %v2757 = vpop.f32.mrb[0].mxu0
        %2758 = vmatprep.mubr.f32.mxu0 0.0
        %2759 = vmatmul.mubr.f32.gmra.mrb[0].mxu0 %v2657
        %v2760 = vpop.f32.mrb[0].mxu0
        %v2761 = vadd.f32 0.0, %v2760
        %v2762 = vpop.f32.mrb[0].mxu0
        %2763 = vdwg.mxu0
        %2764 = vrot.lane.b32.xlu0 %v439, 48
        %v2765 = vpop.permute.xlu0 %2764
        %2766 = vrot.lane.b32.xlu0 %v444, 48
        %v2767 = vpop.permute.xlu0 %2766
        %2768 = vrot.lane.b32.xlu0 %v449, 48
        %v2769 = vpop.permute.xlu0 %2768
        %2770 = vrot.lane.b32.xlu0 %v454, 48
        %v2771 = vpop.permute.xlu0 %2770
        %2772 = vrot.lane.b32.xlu0 %v459, 48
        %v2773 = vpop.permute.xlu0 %2772
        %2774 = vrot.lane.b32.xlu0 %v464, 48
        %v2775 = vpop.permute.xlu0 %2774
        %2776 = vrot.lane.b32.xlu0 %v469, 48
        %v2777 = vpop.permute.xlu0 %2776
        %2778 = vrot.lane.b32.xlu0 %v474, 48
        %v2779 = vpop.permute.xlu0 %2778
        %v2789 = vsel %vm808, %v2548, 0
        %v2792 = vsel %vm808, %v2550, 0
        %v2795 = vsel %vm808, %v2552, 0
        %v2798 = vsel %vm808, %v2554, 0
        %v2801 = vsel %vm808, %v2556, 0
        %v2804 = vsel %vm808, %v2558, 0
        %v2807 = vsel %vm808, %v2560, 0
        %v2810 = vsel %vm808, %v2562, 0
        %2812 = vmatprep.subr.mxu0 0.0
        %2813 = vmatpush1.msra.mxu0 %v2765
        %2814 = vmatprep.subr.mxu0 0.0
        %2815 = vmatpush1.msra.mxu0 %v2767
        %2816 = vmatprep.subr.mxu0 0.0
        %2817 = vmatpush1.msra.mxu0 %v2769
        %2818 = vmatprep.subr.mxu0 0.0
        %2819 = vmatpush1.msra.mxu0 %v2771
        %2820 = vmatprep.subr.mxu0 0.0
        %2821 = vmatpush1.msra.mxu0 %v2773
        %2822 = vmatprep.subr.mxu0 0.0
        %2823 = vmatpush1.msra.mxu0 %v2775
        %2824 = vmatprep.subr.mxu0 0.0
        %2825 = vmatpush1.msra.mxu0 %v2777
        %2826 = vmatprep.subr.mxu0 0.0
        %2827 = vmatpush1.msra.mxu0 %v2779
        %2828 = vmatprep.subr.mxu0 0.0
        %2829 = vmatpush1.msra.mxu0 0.0
        %2830 = vmatprep.subr.mxu0 0.0
        %2831 = vmatpush1.msra.mxu0 0.0
        %2832 = vmatprep.subr.mxu0 0.0
        %2833 = vmatpush1.msra.mxu0 0.0
        %2834 = vmatprep.subr.mxu0 0.0
        %2835 = vmatpush1.msra.mxu0 0.0
        %2836 = vmatprep.subr.mxu0 0.0
        %2837 = vmatpush1.msra.mxu0 0.0
        %2838 = vmatprep.subr.mxu0 0.0
        %2839 = vmatpush1.msra.mxu0 0.0
        %2840 = vmatprep.subr.mxu0 0.0
        %2841 = vmatpush1.msra.mxu0 0.0
        %2842 = vmatprep.subr.mxu0 0.0
        %2843 = vmatpush1.msra.mxu0 0.0
        %2844 = vmatprep.subr.mxu0 0.0
        %2845 = vmatpush1.msra.mxu0 0.0
        %2846 = vmatprep.subr.mxu0 0.0
        %2847 = vmatpush1.msra.mxu0 0.0
        %2848 = vmatprep.subr.mxu0 0.0
        %2849 = vmatpush1.msra.mxu0 0.0
        %2850 = vmatprep.subr.mxu0 0.0
        %2851 = vmatpush1.msra.mxu0 0.0
        %2852 = vmatprep.subr.mxu0 0.0
        %2853 = vmatpush1.msra.mxu0 0.0
        %2854 = vmatprep.subr.mxu0 0.0
        %2855 = vmatpush1.msra.mxu0 0.0
        %2856 = vmatprep.subr.mxu0 0.0
        %2857 = vmatpush1.msra.mxu0 0.0
        %2858 = vmatprep.subr.mxu0 0.0
        %2859 = vmatpush1.msra.mxu0 0.0
        %2860 = vmatprep.subr.mxu0 0.0
        %2861 = vmatpush1.msra.mxu0 0.0
        %2862 = vmatprep.subr.mxu0 0.0
        %2863 = vmatpush1.msra.mxu0 0.0
        %2864 = vmatprep.subr.mxu0 0.0
        %2865 = vmatpush1.msra.mxu0 0.0
        %2866 = vmatprep.subr.mxu0 0.0
        %2867 = vmatpush1.msra.mxu0 0.0
        %2868 = vmatprep.subr.mxu0 0.0
        %2869 = vmatpush1.msra.mxu0 0.0
        %2870 = vmatprep.subr.mxu0 0.0
        %2871 = vmatpush1.msra.mxu0 0.0
        %2872 = vmatprep.subr.mxu0 0.0
        %2873 = vmatpush1.msra.mxu0 0.0
        %2874 = vmatprep.subr.mxu0 0.0
        %2875 = vmatpush1.msra.mxu0 0.0
        %2876 = vmatprep.mubr.f32.mxu0 0.0
        %2877 = vmatmul.mubr.f32.gmra.mrb[0].mxu0 %v2789
        %v2878 = vpop.f32.mrb[0].mxu0
        %v2879 = vadd.f32 0.0, %v2878
        %v2880 = vpop.f32.mrb[0].mxu0
        %2881 = vmatprep.mubr.f32.mxu0 0.0
        %2882 = vmatmul.mubr.f32.gmra.mrb[0].mxu0 %v2792
        %v2883 = vpop.f32.mrb[0].mxu0
        %v2884 = vadd.f32 0.0, %v2883
        %v2885 = vpop.f32.mrb[0].mxu0
        %2886 = vmatprep.mubr.f32.mxu0 0.0
        %2887 = vmatmul.mubr.f32.gmra.mrb[0].mxu0 %v2795
        %v2888 = vpop.f32.mrb[0].mxu0
        %v2889 = vadd.f32 0.0, %v2888
        %v2890 = vpop.f32.mrb[0].mxu0
        %2891 = vmatprep.mubr.f32.mxu0 0.0
        %2892 = vmatmul.mubr.f32.gmra.mrb[0].mxu0 %v2798
        %v2893 = vpop.f32.mrb[0].mxu0
        %v2894 = vadd.f32 0.0, %v2893
        %v2895 = vpop.f32.mrb[0].mxu0
        %2896 = vmatprep.mubr.f32.mxu0 0.0
        %2897 = vmatmul.mubr.f32.gmra.mrb[0].mxu0 %v2801
        %v2898 = vpop.f32.mrb[0].mxu0
        %v2899 = vadd.f32 0.0, %v2898
        %v2900 = vpop.f32.mrb[0].mxu0
        %2901 = vmatprep.mubr.f32.mxu0 0.0
        %2902 = vmatmul.mubr.f32.gmra.mrb[0].mxu0 %v2804
        %v2903 = vpop.f32.mrb[0].mxu0
        %v2904 = vadd.f32 0.0, %v2903
        %v2905 = vpop.f32.mrb[0].mxu0
        %2906 = vmatprep.mubr.f32.mxu0 0.0
        %2907 = vmatmul.mubr.f32.gmra.mrb[0].mxu0 %v2807
        %v2908 = vpop.f32.mrb[0].mxu0
        %v2909 = vadd.f32 0.0, %v2908
        %v2910 = vpop.f32.mrb[0].mxu0
        %2911 = vmatprep.mubr.f32.mxu0 0.0
        %2912 = vmatmul.mubr.f32.gmra.mrb[0].mxu0 %v2810
        %v2913 = vpop.f32.mrb[0].mxu0
        %v2914 = vadd.f32 0.0, %v2913
        %v2915 = vpop.f32.mrb[0].mxu0
        %2916 = vdwg.mxu0
        %v2917 = vrcp.pop %v2565
        %v2918 = vrcp.pop %v2568
        %v2919 = vrcp.pop %v2571
        %v2920 = vrcp.pop %v2574
        %v2921 = vrcp.pop %v2577
        %v2922 = vrcp.pop %v2580
        %v2923 = vrcp.pop %v2583
        %v2924 = vrcp.pop %v2586
        %v2925 = vrcp.pop %v2589
        %v2926 = vrcp.pop %v2592
        %v2927 = vrcp.pop %v2595
        %v2928 = vrcp.pop %v2598
        %v2929 = vrcp.pop %v2601
        %v2930 = vrcp.pop %v2604
        %v2931 = vrcp.pop %v2607
        %v2932 = vrcp.pop %v2610
        %v2933 = vmul.f32 %v2726, %v2917
        %v2934 = vmul.f32 %v2731, %v2918
        %v2935 = vmul.f32 %v2736, %v2919
        %v2936 = vmul.f32 %v2741, %v2920
        %v2937 = vmul.f32 %v2746, %v2921
        %v2938 = vmul.f32 %v2751, %v2922
        %v2939 = vmul.f32 %v2756, %v2923
        %v2940 = vmul.f32 %v2761, %v2924
        %v2941 = vmul.f32 %v2879, %v2925
        %v2942 = vmul.f32 %v2884, %v2926
        %v2943 = vmul.f32 %v2889, %v2927
        %v2944 = vmul.f32 %v2894, %v2928
        %v2945 = vmul.f32 %v2899, %v2929
        %v2946 = vmul.f32 %v2904, %v2930
        %v2947 = vmul.f32 %v2909, %v2931
        %v2948 = vmul.f32 %v2914, %v2932
        %s2949 = scalar_lea.vmem %s3, 192
        %v2950 = vld [vmem:[%s2949] sm:$0xff]
        %v2951 = vld [vmem:[%s2949 + $0x8] sm:$0xff]
        %v2952 = vld [vmem:[%s2949 + $0x10] sm:$0xff]
        %v2953 = vld [vmem:[%s2949 + $0x18] sm:$0xff]
        %v2954 = vld [vmem:[%s2949 + $0x20] sm:$0xff]
        %v2955 = vld [vmem:[%s2949 + $0x28] sm:$0xff]
        %v2956 = vld [vmem:[%s2949 + $0x30] sm:$0xff]
        %v2957 = vld [vmem:[%s2949 + $0x38] sm:$0xff]
        %2958 = vrot.lane.b32.xlu0 %v399, 104
        %v2959 = vpop.permute.xlu0 %2958
        %2960 = vrot.lane.b32.xlu0 %v404, 104
        %v2961 = vpop.permute.xlu0 %2960
        %2962 = vrot.lane.b32.xlu0 %v409, 104
        %v2963 = vpop.permute.xlu0 %2962
        %2964 = vrot.lane.b32.xlu0 %v414, 104
        %v2965 = vpop.permute.xlu0 %2964
        %2966 = vrot.lane.b32.xlu0 %v419, 104
        %v2967 = vpop.permute.xlu0 %2966
        %2968 = vrot.lane.b32.xlu0 %v424, 104
        %v2969 = vpop.permute.xlu0 %2968
        %2970 = vrot.lane.b32.xlu0 %v429, 104
        %v2971 = vpop.permute.xlu0 %2970
        %2972 = vrot.lane.b32.xlu0 %v434, 104
        %v2973 = vpop.permute.xlu0 %2972
        %2974 = vrot.lane.b32.xlu0 %v399, 72
        %v2975 = vpop.permute.xlu0 %2974
        %2976 = vrot.lane.b32.xlu0 %v404, 72
        %v2977 = vpop.permute.xlu0 %2976
        %2978 = vrot.lane.b32.xlu0 %v409, 72
        %v2979 = vpop.permute.xlu0 %2978
        %2980 = vrot.lane.b32.xlu0 %v414, 72
        %v2981 = vpop.permute.xlu0 %2980
        %2982 = vrot.lane.b32.xlu0 %v419, 72
        %v2983 = vpop.permute.xlu0 %2982
        %2984 = vrot.lane.b32.xlu0 %v424, 72
        %v2985 = vpop.permute.xlu0 %2984
        %2986 = vrot.lane.b32.xlu0 %v429, 72
        %v2987 = vpop.permute.xlu0 %2986
        %2988 = vrot.lane.b32.xlu0 %v434, 72
        %v2989 = vpop.permute.xlu0 %2988
        %v2990 = vsel %vm509, %v2959, 0
        %v2992 = vsel %vm509, %v2961, 0
        %v2994 = vsel %vm509, %v2963, 0
        %v2996 = vsel %vm509, %v2965, 0
        %v2998 = vsel %vm509, %v2967, 0
        %v3000 = vsel %vm509, %v2969, 0
        %v3002 = vsel %vm509, %v2971, 0
        %v3004 = vsel %vm509, %v2973, 0
        %v3006 = vsel %vm509, %v2975, 0
        %v3008 = vsel %vm509, %v2977, 0
        %v3010 = vsel %vm509, %v2979, 0
        %v3012 = vsel %vm509, %v2981, 0
        %v3014 = vsel %vm509, %v2983, 0
        %v3016 = vsel %vm509, %v2985, 0
        %v3018 = vsel %vm509, %v2987, 0
        %v3020 = vsel %vm509, %v2989, 0
        %3022 = vmatprep.subr.mxu0 0.0
        %3023 = vmatpush1.xpose.msra.mxu0 %v3006
        %3024 = vmatprep.subr.mxu0 0.0
        %3025 = vmatpush1.xpose.msra.mxu0 %v3008
        %3026 = vmatprep.subr.mxu0 0.0
        %3027 = vmatpush1.xpose.msra.mxu0 %v3010
        %3028 = vmatprep.subr.mxu0 0.0
        %3029 = vmatpush1.xpose.msra.mxu0 %v3012
        %3030 = vmatprep.subr.mxu0 0.0
        %3031 = vmatpush1.xpose.msra.mxu0 %v3014
        %3032 = vmatprep.subr.mxu0 0.0
        %3033 = vmatpush1.xpose.msra.mxu0 %v3016
        %3034 = vmatprep.subr.mxu0 0.0
        %3035 = vmatpush1.xpose.msra.mxu0 %v3018
        %3036 = vmatprep.subr.mxu0 0.0
        %3037 = vmatpush1.xpose.msra.mxu0 %v3020
        %3038 = vmatprep.subr.mxu0 0.0
        %3039 = vmatpush1.xpose.msra.mxu0 0.0
        %3040 = vmatprep.subr.mxu0 0.0
        %3041 = vmatpush1.xpose.msra.mxu0 0.0
        %3042 = vmatprep.subr.mxu0 0.0
        %3043 = vmatpush1.xpose.msra.mxu0 0.0
        %3044 = vmatprep.subr.mxu0 0.0
        %3045 = vmatpush1.xpose.msra.mxu0 0.0
        %3046 = vmatprep.subr.mxu0 0.0
        %3047 = vmatpush1.xpose.msra.mxu0 0.0
        %3048 = vmatprep.subr.mxu0 0.0
        %3049 = vmatpush1.xpose.msra.mxu0 0.0
        %3050 = vmatprep.subr.mxu0 0.0
        %3051 = vmatpush1.xpose.msra.mxu0 0.0
        %3052 = vmatprep.subr.mxu0 0.0
        %3053 = vmatpush1.xpose.msra.mxu0 0.0
        %3054 = vmatprep.subr.mxu0 0.0
        %3055 = vmatpush1.xpose.msra.mxu0 0.0
        %3056 = vmatprep.subr.mxu0 0.0
        %3057 = vmatpush1.xpose.msra.mxu0 0.0
        %3058 = vmatprep.subr.mxu0 0.0
        %3059 = vmatpush1.xpose.msra.mxu0 0.0
        %3060 = vmatprep.subr.mxu0 0.0
        %3061 = vmatpush1.xpose.msra.mxu0 0.0
        %3062 = vmatprep.subr.mxu0 0.0
        %3063 = vmatpush1.xpose.msra.mxu0 0.0
        %3064 = vmatprep.subr.mxu0 0.0
        %3065 = vmatpush1.xpose.msra.mxu0 0.0
        %3066 = vmatprep.subr.mxu0 0.0
        %3067 = vmatpush1.xpose.msra.mxu0 0.0
        %3068 = vmatprep.subr.mxu0 0.0
        %3069 = vmatpush1.xpose.msra.mxu0 0.0
        %3070 = vmatprep.subr.mxu0 0.0
        %3071 = vmatpush1.xpose.msra.mxu0 0.0
        %3072 = vmatprep.subr.mxu0 0.0
        %3073 = vmatpush1.xpose.msra.mxu0 0.0
        %3074 = vmatprep.subr.mxu0 0.0
        %3075 = vmatpush1.xpose.msra.mxu0 0.0
        %3076 = vmatprep.subr.mxu0 0.0
        %3077 = vmatpush1.xpose.msra.mxu0 0.0
        %3078 = vmatprep.subr.mxu0 0.0
        %3079 = vmatpush1.xpose.msra.mxu0 0.0
        %3080 = vmatprep.subr.mxu0 0.0
        %3081 = vmatpush1.xpose.msra.mxu0 0.0
        %3082 = vmatprep.subr.mxu0 0.0
        %3083 = vmatpush1.xpose.msra.mxu0 0.0
        %3084 = vmatprep.subr.mxu0 0.0
        %3085 = vmatpush1.xpose.msra.mxu0 0.0
        %3086 = vmatprep.mubr.f32.mxu0 0.0
        %3087 = vmatmul.mubr.f32.gmra.mrb[0].mxu0 %v2990
        %v3088 = vpop.f32.mrb[0].mxu0
        %v3089 = vadd.f32 %v2950, %v3088
        %v3090 = vpop.f32.mrb[0].mxu0
        %3091 = vmatprep.mubr.f32.mxu0 0.0
        %3092 = vmatmul.mubr.f32.gmra.mrb[0].mxu0 %v2992
        %v3093 = vpop.f32.mrb[0].mxu0
        %v3094 = vadd.f32 %v2951, %v3093
        %v3095 = vpop.f32.mrb[0].mxu0
        %3096 = vmatprep.mubr.f32.mxu0 0.0
        %3097 = vmatmul.mubr.f32.gmra.mrb[0].mxu0 %v2994
        %v3098 = vpop.f32.mrb[0].mxu0
        %v3099 = vadd.f32 %v2952, %v3098
        %v3100 = vpop.f32.mrb[0].mxu0
        %3101 = vmatprep.mubr.f32.mxu0 0.0
        %3102 = vmatmul.mubr.f32.gmra.mrb[0].mxu0 %v2996
        %v3103 = vpop.f32.mrb[0].mxu0
        %v3104 = vadd.f32 %v2953, %v3103
        %v3105 = vpop.f32.mrb[0].mxu0
        %3106 = vmatprep.mubr.f32.mxu0 0.0
        %3107 = vmatmul.mubr.f32.gmra.mrb[0].mxu0 %v2998
        %v3108 = vpop.f32.mrb[0].mxu0
        %v3109 = vadd.f32 %v2954, %v3108
        %v3110 = vpop.f32.mrb[0].mxu0
        %3111 = vmatprep.mubr.f32.mxu0 0.0
        %3112 = vmatmul.mubr.f32.gmra.mrb[0].mxu0 %v3000
        %v3113 = vpop.f32.mrb[0].mxu0
        %v3114 = vadd.f32 %v2955, %v3113
        %v3115 = vpop.f32.mrb[0].mxu0
        %3116 = vmatprep.mubr.f32.mxu0 0.0
        %3117 = vmatmul.mubr.f32.gmra.mrb[0].mxu0 %v3002
        %v3118 = vpop.f32.mrb[0].mxu0
        %v3119 = vadd.f32 %v2956, %v3118
        %v3120 = vpop.f32.mrb[0].mxu0
        %3121 = vmatprep.mubr.f32.mxu0 0.0
        %3122 = vmatmul.mubr.f32.gmra.mrb[0].mxu0 %v3004
        %v3123 = vpop.f32.mrb[0].mxu0
        %v3124 = vadd.f32 %v2957, %v3123
        %v3125 = vpop.f32.mrb[0].mxu0
        %3126 = vdwg.mxu0
        %3127 = vrot.lane.b32.xlu0 %v439, 104
        %v3128 = vpop.permute.xlu0 %3127
        %3129 = vrot.lane.b32.xlu0 %v444, 104
        %v3130 = vpop.permute.xlu0 %3129
        %3131 = vrot.lane.b32.xlu0 %v449, 104
        %v3132 = vpop.permute.xlu0 %3131
        %3133 = vrot.lane.b32.xlu0 %v454, 104
        %v3134 = vpop.permute.xlu0 %3133
        %3135 = vrot.lane.b32.xlu0 %v459, 104
        %v3136 = vpop.permute.xlu0 %3135
        %3137 = vrot.lane.b32.xlu0 %v464, 104
        %v3138 = vpop.permute.xlu0 %3137
        %3139 = vrot.lane.b32.xlu0 %v469, 104
        %v3140 = vpop.permute.xlu0 %3139
        %3141 = vrot.lane.b32.xlu0 %v474, 104
        %v3142 = vpop.permute.xlu0 %3141
        %3143 = vrot.lane.b32.xlu0 %v439, 72
        %v3144 = vpop.permute.xlu0 %3143
        %3145 = vrot.lane.b32.xlu0 %v444, 72
        %v3146 = vpop.permute.xlu0 %3145
        %3147 = vrot.lane.b32.xlu0 %v449, 72
        %v3148 = vpop.permute.xlu0 %3147
        %3149 = vrot.lane.b32.xlu0 %v454, 72
        %v3150 = vpop.permute.xlu0 %3149
        %3151 = vrot.lane.b32.xlu0 %v459, 72
        %v3152 = vpop.permute.xlu0 %3151
        %3153 = vrot.lane.b32.xlu0 %v464, 72
        %v3154 = vpop.permute.xlu0 %3153
        %3155 = vrot.lane.b32.xlu0 %v469, 72
        %v3156 = vpop.permute.xlu0 %3155
        %3157 = vrot.lane.b32.xlu0 %v474, 72
        %v3158 = vpop.permute.xlu0 %3157
        %v3159 = vsel %vm509, %v3128, 0
        %v3161 = vsel %vm509, %v3130, 0
        %v3163 = vsel %vm509, %v3132, 0
        %v3165 = vsel %vm509, %v3134, 0
        %v3167 = vsel %vm509, %v3136, 0
        %v3169 = vsel %vm509, %v3138, 0
        %v3171 = vsel %vm509, %v3140, 0
        %v3173 = vsel %vm509, %v3142, 0
        %v3175 = vsel %vm509, %v3144, 0
        %v3177 = vsel %vm509, %v3146, 0
        %v3179 = vsel %vm509, %v3148, 0
        %v3181 = vsel %vm509, %v3150, 0
        %v3183 = vsel %vm509, %v3152, 0
        %v3185 = vsel %vm509, %v3154, 0
        %v3187 = vsel %vm509, %v3156, 0
        %v3189 = vsel %vm509, %v3158, 0
        %3191 = vmatprep.subr.mxu0 0.0
        %3192 = vmatpush1.xpose.msra.mxu0 %v3175
        %3193 = vmatprep.subr.mxu0 0.0
        %3194 = vmatpush1.xpose.msra.mxu0 %v3177
        %3195 = vmatprep.subr.mxu0 0.0
        %3196 = vmatpush1.xpose.msra.mxu0 %v3179
        %3197 = vmatprep.subr.mxu0 0.0
        %3198 = vmatpush1.xpose.msra.mxu0 %v3181
        %3199 = vmatprep.subr.mxu0 0.0
        %3200 = vmatpush1.xpose.msra.mxu0 %v3183
        %3201 = vmatprep.subr.mxu0 0.0
        %3202 = vmatpush1.xpose.msra.mxu0 %v3185
        %3203 = vmatprep.subr.mxu0 0.0
        %3204 = vmatpush1.xpose.msra.mxu0 %v3187
        %3205 = vmatprep.subr.mxu0 0.0
        %3206 = vmatpush1.xpose.msra.mxu0 %v3189
        %3207 = vmatprep.subr.mxu0 0.0
        %3208 = vmatpush1.xpose.msra.mxu0 0.0
        %3209 = vmatprep.subr.mxu0 0.0
        %3210 = vmatpush1.xpose.msra.mxu0 0.0
        %3211 = vmatprep.subr.mxu0 0.0
        %3212 = vmatpush1.xpose.msra.mxu0 0.0
        %3213 = vmatprep.subr.mxu0 0.0
        %3214 = vmatpush1.xpose.msra.mxu0 0.0
        %3215 = vmatprep.subr.mxu0 0.0
        %3216 = vmatpush1.xpose.msra.mxu0 0.0
        %3217 = vmatprep.subr.mxu0 0.0
        %3218 = vmatpush1.xpose.msra.mxu0 0.0
        %3219 = vmatprep.subr.mxu0 0.0
        %3220 = vmatpush1.xpose.msra.mxu0 0.0
        %3221 = vmatprep.subr.mxu0 0.0
        %3222 = vmatpush1.xpose.msra.mxu0 0.0
        %3223 = vmatprep.subr.mxu0 0.0
        %3224 = vmatpush1.xpose.msra.mxu0 0.0
        %3225 = vmatprep.subr.mxu0 0.0
        %3226 = vmatpush1.xpose.msra.mxu0 0.0
        %3227 = vmatprep.subr.mxu0 0.0
        %3228 = vmatpush1.xpose.msra.mxu0 0.0
        %3229 = vmatprep.subr.mxu0 0.0
        %3230 = vmatpush1.xpose.msra.mxu0 0.0
        %3231 = vmatprep.subr.mxu0 0.0
        %3232 = vmatpush1.xpose.msra.mxu0 0.0
        %3233 = vmatprep.subr.mxu0 0.0
        %3234 = vmatpush1.xpose.msra.mxu0 0.0
        %3235 = vmatprep.subr.mxu0 0.0
        %3236 = vmatpush1.xpose.msra.mxu0 0.0
        %3237 = vmatprep.subr.mxu0 0.0
        %3238 = vmatpush1.xpose.msra.mxu0 0.0
        %3239 = vmatprep.subr.mxu0 0.0
        %3240 = vmatpush1.xpose.msra.mxu0 0.0
        %3241 = vmatprep.subr.mxu0 0.0
        %3242 = vmatpush1.xpose.msra.mxu0 0.0
        %3243 = vmatprep.subr.mxu0 0.0
        %3244 = vmatpush1.xpose.msra.mxu0 0.0
        %3245 = vmatprep.subr.mxu0 0.0
        %3246 = vmatpush1.xpose.msra.mxu0 0.0
        %3247 = vmatprep.subr.mxu0 0.0
        %3248 = vmatpush1.xpose.msra.mxu0 0.0
        %3249 = vmatprep.subr.mxu0 0.0
        %3250 = vmatpush1.xpose.msra.mxu0 0.0
        %3251 = vmatprep.subr.mxu0 0.0
        %3252 = vmatpush1.xpose.msra.mxu0 0.0
        %3253 = vmatprep.subr.mxu0 0.0
        %3254 = vmatpush1.xpose.msra.mxu0 0.0
        %3255 = vmatprep.mubr.f32.mxu0 0.0
        %3256 = vmatmul.mubr.f32.gmra.mrb[0].mxu0 %v3159
        %v3257 = vpop.f32.mrb[0].mxu0
        %v3258 = vadd.f32 %v2950, %v3257
        %v3259 = vpop.f32.mrb[0].mxu0
        %3260 = vmatprep.mubr.f32.mxu0 0.0
        %3261 = vmatmul.mubr.f32.gmra.mrb[0].mxu0 %v3161
        %v3262 = vpop.f32.mrb[0].mxu0
        %v3263 = vadd.f32 %v2951, %v3262
        %v3264 = vpop.f32.mrb[0].mxu0
        %3265 = vmatprep.mubr.f32.mxu0 0.0
        %3266 = vmatmul.mubr.f32.gmra.mrb[0].mxu0 %v3163
        %v3267 = vpop.f32.mrb[0].mxu0
        %v3268 = vadd.f32 %v2952, %v3267
        %v3269 = vpop.f32.mrb[0].mxu0
        %3270 = vmatprep.mubr.f32.mxu0 0.0
        %3271 = vmatmul.mubr.f32.gmra.mrb[0].mxu0 %v3165
        %v3272 = vpop.f32.mrb[0].mxu0
        %v3273 = vadd.f32 %v2953, %v3272
        %v3274 = vpop.f32.mrb[0].mxu0
        %3275 = vmatprep.mubr.f32.mxu0 0.0
        %3276 = vmatmul.mubr.f32.gmra.mrb[0].mxu0 %v3167
        %v3277 = vpop.f32.mrb[0].mxu0
        %v3278 = vadd.f32 %v2954, %v3277
        %v3279 = vpop.f32.mrb[0].mxu0
        %3280 = vmatprep.mubr.f32.mxu0 0.0
        %3281 = vmatmul.mubr.f32.gmra.mrb[0].mxu0 %v3169
        %v3282 = vpop.f32.mrb[0].mxu0
        %v3283 = vadd.f32 %v2955, %v3282
        %v3284 = vpop.f32.mrb[0].mxu0
        %3285 = vmatprep.mubr.f32.mxu0 0.0
        %3286 = vmatmul.mubr.f32.gmra.mrb[0].mxu0 %v3171
        %v3287 = vpop.f32.mrb[0].mxu0
        %v3288 = vadd.f32 %v2956, %v3287
        %v3289 = vpop.f32.mrb[0].mxu0
        %3290 = vmatprep.mubr.f32.mxu0 0.0
        %3291 = vmatmul.mubr.f32.gmra.mrb[0].mxu0 %v3173
        %v3292 = vpop.f32.mrb[0].mxu0
        %v3293 = vadd.f32 %v2957, %v3292
        %v3294 = vpop.f32.mrb[0].mxu0
        %3295 = vdwg.mxu0
        %v3296 = vsel %vm808, %v3089, -inf
        %3297 = vmax.xlane.f32.xlu0 %v3296
        %v3298 = vpop.xlane.xlu0 %3297
        %v3299 = vsel %vm808, %v3094, -inf
        %3300 = vmax.xlane.f32.xlu0 %v3299
        %v3301 = vpop.xlane.xlu0 %3300
        %v3302 = vsel %vm808, %v3099, -inf
        %3303 = vmax.xlane.f32.xlu0 %v3302
        %v3304 = vpop.xlane.xlu0 %3303
        %v3305 = vsel %vm808, %v3104, -inf
        %3306 = vmax.xlane.f32.xlu0 %v3305
        %v3307 = vpop.xlane.xlu0 %3306
        %v3308 = vsel %vm808, %v3109, -inf
        %3309 = vmax.xlane.f32.xlu0 %v3308
        %v3310 = vpop.xlane.xlu0 %3309
        %v3311 = vsel %vm808, %v3114, -inf
        %3312 = vmax.xlane.f32.xlu0 %v3311
        %v3313 = vpop.xlane.xlu0 %3312
        %v3314 = vsel %vm808, %v3119, -inf
        %3315 = vmax.xlane.f32.xlu0 %v3314
        %v3316 = vpop.xlane.xlu0 %3315
        %v3317 = vsel %vm808, %v3124, -inf
        %3318 = vmax.xlane.f32.xlu0 %v3317
        %v3319 = vpop.xlane.xlu0 %3318
        %v3320 = vsel %vm808, %v3258, -inf
        %3321 = vmax.xlane.f32.xlu0 %v3320
        %v3322 = vpop.xlane.xlu0 %3321
        %v3323 = vsel %vm808, %v3263, -inf
        %3324 = vmax.xlane.f32.xlu0 %v3323
        %v3325 = vpop.xlane.xlu0 %3324
        %v3326 = vsel %vm808, %v3268, -inf
        %3327 = vmax.xlane.f32.xlu0 %v3326
        %v3328 = vpop.xlane.xlu0 %3327
        %v3329 = vsel %vm808, %v3273, -inf
        %3330 = vmax.xlane.f32.xlu0 %v3329
        %v3331 = vpop.xlane.xlu0 %3330
        %v3332 = vsel %vm808, %v3278, -inf
        %3333 = vmax.xlane.f32.xlu0 %v3332
        %v3334 = vpop.xlane.xlu0 %3333
        %v3335 = vsel %vm808, %v3283, -inf
        %3336 = vmax.xlane.f32.xlu0 %v3335
        %v3337 = vpop.xlane.xlu0 %3336
        %v3338 = vsel %vm808, %v3288, -inf
        %3339 = vmax.xlane.f32.xlu0 %v3338
        %v3340 = vpop.xlane.xlu0 %3339
        %v3341 = vsel %vm808, %v3293, -inf
        %3342 = vmax.xlane.f32.xlu0 %v3341
        %v3343 = vpop.xlane.xlu0 %3342
        %v3344 = vsub.f32 %v3089, %v3298
        %v3345 = vsub.f32 %v3094, %v3301
        %v3346 = vsub.f32 %v3099, %v3304
        %v3347 = vsub.f32 %v3104, %v3307
        %v3348 = vsub.f32 %v3109, %v3310
        %v3349 = vsub.f32 %v3114, %v3313
        %v3350 = vsub.f32 %v3119, %v3316
        %v3351 = vsub.f32 %v3124, %v3319
        %v3352 = vsub.f32 %v3258, %v3322
        %v3353 = vsub.f32 %v3263, %v3325
        %v3354 = vsub.f32 %v3268, %v3328
        %v3355 = vsub.f32 %v3273, %v3331
        %v3356 = vsub.f32 %v3278, %v3334
        %v3357 = vsub.f32 %v3283, %v3337
        %v3358 = vsub.f32 %v3288, %v3340
        %v3359 = vsub.f32 %v3293, %v3343
        %v3360 = vmul.f32 %v3344, 1.442695
        %v3361 = vpow.pop %v3360
        %v3362 = vmul.f32 %v3345, 1.442695
        %v3363 = vpow.pop %v3362
        %v3364 = vmul.f32 %v3346, 1.442695
        %v3365 = vpow.pop %v3364
        %v3366 = vmul.f32 %v3347, 1.442695
        %v3367 = vpow.pop %v3366
        %v3368 = vmul.f32 %v3348, 1.442695
        %v3369 = vpow.pop %v3368
        %v3370 = vmul.f32 %v3349, 1.442695
        %v3371 = vpow.pop %v3370
        %v3372 = vmul.f32 %v3350, 1.442695
        %v3373 = vpow.pop %v3372
        %v3374 = vmul.f32 %v3351, 1.442695
        %v3375 = vpow.pop %v3374
        %v3376 = vmul.f32 %v3352, 1.442695
        %v3377 = vpow.pop %v3376
        %v3378 = vmul.f32 %v3353, 1.442695
        %v3379 = vpow.pop %v3378
        %v3380 = vmul.f32 %v3354, 1.442695
        %v3381 = vpow.pop %v3380
        %v3382 = vmul.f32 %v3355, 1.442695
        %v3383 = vpow.pop %v3382
        %v3384 = vmul.f32 %v3356, 1.442695
        %v3385 = vpow.pop %v3384
        %v3386 = vmul.f32 %v3357, 1.442695
        %v3387 = vpow.pop %v3386
        %v3388 = vmul.f32 %v3358, 1.442695
        %v3389 = vpow.pop %v3388
        %v3390 = vmul.f32 %v3359, 1.442695
        %v3391 = vpow.pop %v3390
        %v3392 = vsel %vm808, %v3361, 0.0
        %3393 = vadd.xlane.f32.xlu0 %v3392
        %v3394 = vpop.xlane.xlu0 %3393
        %v3395 = vsel %vm808, %v3363, 0.0
        %3396 = vadd.xlane.f32.xlu0 %v3395
        %v3397 = vpop.xlane.xlu0 %3396
        %v3398 = vsel %vm808, %v3365, 0.0
        %3399 = vadd.xlane.f32.xlu0 %v3398
        %v3400 = vpop.xlane.xlu0 %3399
        %v3401 = vsel %vm808, %v3367, 0.0
        %3402 = vadd.xlane.f32.xlu0 %v3401
        %v3403 = vpop.xlane.xlu0 %3402
        %v3404 = vsel %vm808, %v3369, 0.0
        %3405 = vadd.xlane.f32.xlu0 %v3404
        %v3406 = vpop.xlane.xlu0 %3405
        %v3407 = vsel %vm808, %v3371, 0.0
        %3408 = vadd.xlane.f32.xlu0 %v3407
        %v3409 = vpop.xlane.xlu0 %3408
        %v3410 = vsel %vm808, %v3373, 0.0
        %3411 = vadd.xlane.f32.xlu0 %v3410
        %v3412 = vpop.xlane.xlu0 %3411
        %v3413 = vsel %vm808, %v3375, 0.0
        %3414 = vadd.xlane.f32.xlu0 %v3413
        %v3415 = vpop.xlane.xlu0 %3414
        %v3416 = vsel %vm808, %v3377, 0.0
        %3417 = vadd.xlane.f32.xlu0 %v3416
        %v3418 = vpop.xlane.xlu0 %3417
        %v3419 = vsel %vm808, %v3379, 0.0
        %3420 = vadd.xlane.f32.xlu0 %v3419
        %v3421 = vpop.xlane.xlu0 %3420
        %v3422 = vsel %vm808, %v3381, 0.0
        %3423 = vadd.xlane.f32.xlu0 %v3422
        %v3424 = vpop.xlane.xlu0 %3423
        %v3425 = vsel %vm808, %v3383, 0.0
        %3426 = vadd.xlane.f32.xlu0 %v3425
        %v3427 = vpop.xlane.xlu0 %3426
        %v3428 = vsel %vm808, %v3385, 0.0
        %3429 = vadd.xlane.f32.xlu0 %v3428
        %v3430 = vpop.xlane.xlu0 %3429
        %v3431 = vsel %vm808, %v3387, 0.0
        %3432 = vadd.xlane.f32.xlu0 %v3431
        %v3433 = vpop.xlane.xlu0 %3432
        %v3434 = vsel %vm808, %v3389, 0.0
        %3435 = vadd.xlane.f32.xlu0 %v3434
        %v3436 = vpop.xlane.xlu0 %3435
        %v3437 = vsel %vm808, %v3391, 0.0
        %3438 = vadd.xlane.f32.xlu0 %v3437
        %v3439 = vpop.xlane.xlu0 %3438
        %3440 = vrot.lane.b32.xlu0 %v399, 40
        %v3441 = vpop.permute.xlu0 %3440
        %3442 = vrot.lane.b32.xlu0 %v404, 40
        %v3443 = vpop.permute.xlu0 %3442
        %3444 = vrot.lane.b32.xlu0 %v409, 40
        %v3445 = vpop.permute.xlu0 %3444
        %3446 = vrot.lane.b32.xlu0 %v414, 40
        %v3447 = vpop.permute.xlu0 %3446
        %3448 = vrot.lane.b32.xlu0 %v419, 40
        %v3449 = vpop.permute.xlu0 %3448
        %3450 = vrot.lane.b32.xlu0 %v424, 40
        %v3451 = vpop.permute.xlu0 %3450
        %3452 = vrot.lane.b32.xlu0 %v429, 40
        %v3453 = vpop.permute.xlu0 %3452
        %3454 = vrot.lane.b32.xlu0 %v434, 40
        %v3455 = vpop.permute.xlu0 %3454
        %v3465 = vsel %vm808, %v3361, 0
        %v3468 = vsel %vm808, %v3363, 0
        %v3471 = vsel %vm808, %v3365, 0
        %v3474 = vsel %vm808, %v3367, 0
        %v3477 = vsel %vm808, %v3369, 0
        %v3480 = vsel %vm808, %v3371, 0
        %v3483 = vsel %vm808, %v3373, 0
        %v3486 = vsel %vm808, %v3375, 0
        %3488 = vmatprep.subr.mxu0 0.0
        %3489 = vmatpush1.msra.mxu0 %v3441
        %3490 = vmatprep.subr.mxu0 0.0
        %3491 = vmatpush1.msra.mxu0 %v3443
        %3492 = vmatprep.subr.mxu0 0.0
        %3493 = vmatpush1.msra.mxu0 %v3445
        %3494 = vmatprep.subr.mxu0 0.0
        %3495 = vmatpush1.msra.mxu0 %v3447
        %3496 = vmatprep.subr.mxu0 0.0
        %3497 = vmatpush1.msra.mxu0 %v3449
        %3498 = vmatprep.subr.mxu0 0.0
        %3499 = vmatpush1.msra.mxu0 %v3451
        %3500 = vmatprep.subr.mxu0 0.0
        %3501 = vmatpush1.msra.mxu0 %v3453
        %3502 = vmatprep.subr.mxu0 0.0
        %3503 = vmatpush1.msra.mxu0 %v3455
        %3504 = vmatprep.subr.mxu0 0.0
        %3505 = vmatpush1.msra.mxu0 0.0
        %3506 = vmatprep.subr.mxu0 0.0
        %3507 = vmatpush1.msra.mxu0 0.0
        %3508 = vmatprep.subr.mxu0 0.0
        %3509 = vmatpush1.msra.mxu0 0.0
        %3510 = vmatprep.subr.mxu0 0.0
        %3511 = vmatpush1.msra.mxu0 0.0
        %3512 = vmatprep.subr.mxu0 0.0
        %3513 = vmatpush1.msra.mxu0 0.0
        %3514 = vmatprep.subr.mxu0 0.0
        %3515 = vmatpush1.msra.mxu0 0.0
        %3516 = vmatprep.subr.mxu0 0.0
        %3517 = vmatpush1.msra.mxu0 0.0
        %3518 = vmatprep.subr.mxu0 0.0
        %3519 = vmatpush1.msra.mxu0 0.0
        %3520 = vmatprep.subr.mxu0 0.0
        %3521 = vmatpush1.msra.mxu0 0.0
        %3522 = vmatprep.subr.mxu0 0.0
        %3523 = vmatpush1.msra.mxu0 0.0
        %3524 = vmatprep.subr.mxu0 0.0
        %3525 = vmatpush1.msra.mxu0 0.0
        %3526 = vmatprep.subr.mxu0 0.0
        %3527 = vmatpush1.msra.mxu0 0.0
        %3528 = vmatprep.subr.mxu0 0.0
        %3529 = vmatpush1.msra.mxu0 0.0
        %3530 = vmatprep.subr.mxu0 0.0
        %3531 = vmatpush1.msra.mxu0 0.0
        %3532 = vmatprep.subr.mxu0 0.0
        %3533 = vmatpush1.msra.mxu0 0.0
        %3534 = vmatprep.subr.mxu0 0.0
        %3535 = vmatpush1.msra.mxu0 0.0
        %3536 = vmatprep.subr.mxu0 0.0
        %3537 = vmatpush1.msra.mxu0 0.0
        %3538 = vmatprep.subr.mxu0 0.0
        %3539 = vmatpush1.msra.mxu0 0.0
        %3540 = vmatprep.subr.mxu0 0.0
        %3541 = vmatpush1.msra.mxu0 0.0
        %3542 = vmatprep.subr.mxu0 0.0
        %3543 = vmatpush1.msra.mxu0 0.0
        %3544 = vmatprep.subr.mxu0 0.0
        %3545 = vmatpush1.msra.mxu0 0.0
        %3546 = vmatprep.subr.mxu0 0.0
        %3547 = vmatpush1.msra.mxu0 0.0
        %3548 = vmatprep.subr.mxu0 0.0
        %3549 = vmatpush1.msra.mxu0 0.0
        %3550 = vmatprep.subr.mxu0 0.0
        %3551 = vmatpush1.msra.mxu0 0.0
        %3552 = vmatprep.mubr.f32.mxu0 0.0
        %3553 = vmatmul.mubr.f32.gmra.mrb[0].mxu0 %v3465
        %v3554 = vpop.f32.mrb[0].mxu0
        %v3555 = vadd.f32 0.0, %v3554
        %v3556 = vpop.f32.mrb[0].mxu0
        %3557 = vmatprep.mubr.f32.mxu0 0.0
        %3558 = vmatmul.mubr.f32.gmra.mrb[0].mxu0 %v3468
        %v3559 = vpop.f32.mrb[0].mxu0
        %v3560 = vadd.f32 0.0, %v3559
        %v3561 = vpop.f32.mrb[0].mxu0
        %3562 = vmatprep.mubr.f32.mxu0 0.0
        %3563 = vmatmul.mubr.f32.gmra.mrb[0].mxu0 %v3471
        %v3564 = vpop.f32.mrb[0].mxu0
        %v3565 = vadd.f32 0.0, %v3564
        %v3566 = vpop.f32.mrb[0].mxu0
        %3567 = vmatprep.mubr.f32.mxu0 0.0
        %3568 = vmatmul.mubr.f32.gmra.mrb[0].mxu0 %v3474
        %v3569 = vpop.f32.mrb[0].mxu0
        %v3570 = vadd.f32 0.0, %v3569
        %v3571 = vpop.f32.mrb[0].mxu0
        %3572 = vmatprep.mubr.f32.mxu0 0.0
        %3573 = vmatmul.mubr.f32.gmra.mrb[0].mxu0 %v3477
        %v3574 = vpop.f32.mrb[0].mxu0
        %v3575 = vadd.f32 0.0, %v3574
        %v3576 = vpop.f32.mrb[0].mxu0
        %3577 = vmatprep.mubr.f32.mxu0 0.0
        %3578 = vmatmul.mubr.f32.gmra.mrb[0].mxu0 %v3480
        %v3579 = vpop.f32.mrb[0].mxu0
        %v3580 = vadd.f32 0.0, %v3579
        %v3581 = vpop.f32.mrb[0].mxu0
        %3582 = vmatprep.mubr.f32.mxu0 0.0
        %3583 = vmatmul.mubr.f32.gmra.mrb[0].mxu0 %v3483
        %v3584 = vpop.f32.mrb[0].mxu0
        %v3585 = vadd.f32 0.0, %v3584
        %v3586 = vpop.f32.mrb[0].mxu0
        %3587 = vmatprep.mubr.f32.mxu0 0.0
        %3588 = vmatmul.mubr.f32.gmra.mrb[0].mxu0 %v3486
        %v3589 = vpop.f32.mrb[0].mxu0
        %v3590 = vadd.f32 0.0, %v3589
        %v3591 = vpop.f32.mrb[0].mxu0
        %3592 = vdwg.mxu0
        %3593 = vrot.lane.b32.xlu0 %v439, 40
        %v3594 = vpop.permute.xlu0 %3593
        %3595 = vrot.lane.b32.xlu0 %v444, 40
        %v3596 = vpop.permute.xlu0 %3595
        %3597 = vrot.lane.b32.xlu0 %v449, 40
        %v3598 = vpop.permute.xlu0 %3597
        %3599 = vrot.lane.b32.xlu0 %v454, 40
        %v3600 = vpop.permute.xlu0 %3599
        %3601 = vrot.lane.b32.xlu0 %v459, 40
        %v3602 = vpop.permute.xlu0 %3601
        %3603 = vrot.lane.b32.xlu0 %v464, 40
        %v3604 = vpop.permute.xlu0 %3603
        %3605 = vrot.lane.b32.xlu0 %v469, 40
        %v3606 = vpop.permute.xlu0 %3605
        %3607 = vrot.lane.b32.xlu0 %v474, 40
        %v3608 = vpop.permute.xlu0 %3607
        %v3618 = vsel %vm808, %v3377, 0
        %v3621 = vsel %vm808, %v3379, 0
        %v3624 = vsel %vm808, %v3381, 0
        %v3627 = vsel %vm808, %v3383, 0
        %v3630 = vsel %vm808, %v3385, 0
        %v3633 = vsel %vm808, %v3387, 0
        %v3636 = vsel %vm808, %v3389, 0
        %v3639 = vsel %vm808, %v3391, 0
        %3641 = vmatprep.subr.mxu0 0.0
        %3642 = vmatpush1.msra.mxu0 %v3594
        %3643 = vmatprep.subr.mxu0 0.0
        %3644 = vmatpush1.msra.mxu0 %v3596
        %3645 = vmatprep.subr.mxu0 0.0
        %3646 = vmatpush1.msra.mxu0 %v3598
        %3647 = vmatprep.subr.mxu0 0.0
        %3648 = vmatpush1.msra.mxu0 %v3600
        %3649 = vmatprep.subr.mxu0 0.0
        %3650 = vmatpush1.msra.mxu0 %v3602
        %3651 = vmatprep.subr.mxu0 0.0
        %3652 = vmatpush1.msra.mxu0 %v3604
        %3653 = vmatprep.subr.mxu0 0.0
        %3654 = vmatpush1.msra.mxu0 %v3606
        %3655 = vmatprep.subr.mxu0 0.0
        %3656 = vmatpush1.msra.mxu0 %v3608
        %3657 = vmatprep.subr.mxu0 0.0
        %3658 = vmatpush1.msra.mxu0 0.0
        %3659 = vmatprep.subr.mxu0 0.0
        %3660 = vmatpush1.msra.mxu0 0.0
        %3661 = vmatprep.subr.mxu0 0.0
        %3662 = vmatpush1.msra.mxu0 0.0
        %3663 = vmatprep.subr.mxu0 0.0
        %3664 = vmatpush1.msra.mxu0 0.0
        %3665 = vmatprep.subr.mxu0 0.0
        %3666 = vmatpush1.msra.mxu0 0.0
        %3667 = vmatprep.subr.mxu0 0.0
        %3668 = vmatpush1.msra.mxu0 0.0
        %3669 = vmatprep.subr.mxu0 0.0
        %3670 = vmatpush1.msra.mxu0 0.0
        %3671 = vmatprep.subr.mxu0 0.0
        %3672 = vmatpush1.msra.mxu0 0.0
        %3673 = vmatprep.subr.mxu0 0.0
        %3674 = vmatpush1.msra.mxu0 0.0
        %3675 = vmatprep.subr.mxu0 0.0
        %3676 = vmatpush1.msra.mxu0 0.0
        %3677 = vmatprep.subr.mxu0 0.0
        %3678 = vmatpush1.msra.mxu0 0.0
        %3679 = vmatprep.subr.mxu0 0.0
        %3680 = vmatpush1.msra.mxu0 0.0
        %3681 = vmatprep.subr.mxu0 0.0
        %3682 = vmatpush1.msra.mxu0 0.0
        %3683 = vmatprep.subr.mxu0 0.0
        %3684 = vmatpush1.msra.mxu0 0.0
        %3685 = vmatprep.subr.mxu0 0.0
        %3686 = vmatpush1.msra.mxu0 0.0
        %3687 = vmatprep.subr.mxu0 0.0
        %3688 = vmatpush1.msra.mxu0 0.0
        %3689 = vmatprep.subr.mxu0 0.0
        %3690 = vmatpush1.msra.mxu0 0.0
        %3691 = vmatprep.subr.mxu0 0.0
        %3692 = vmatpush1.msra.mxu0 0.0
        %3693 = vmatprep.subr.mxu0 0.0
        %3694 = vmatpush1.msra.mxu0 0.0
        %3695 = vmatprep.subr.mxu0 0.0
        %3696 = vmatpush1.msra.mxu0 0.0
        %3697 = vmatprep.subr.mxu0 0.0
        %3698 = vmatpush1.msra.mxu0 0.0
        %3699 = vmatprep.subr.mxu0 0.0
        %3700 = vmatpush1.msra.mxu0 0.0
        %3701 = vmatprep.subr.mxu0 0.0
        %3702 = vmatpush1.msra.mxu0 0.0
        %3703 = vmatprep.subr.mxu0 0.0
        %3704 = vmatpush1.msra.mxu0 0.0
        %3705 = vmatprep.mubr.f32.mxu0 0.0
        %3706 = vmatmul.mubr.f32.gmra.mrb[0].mxu0 %v3618
        %v3707 = vpop.f32.mrb[0].mxu0
        %v3708 = vadd.f32 0.0, %v3707
        %v3709 = vpop.f32.mrb[0].mxu0
        %3710 = vmatprep.mubr.f32.mxu0 0.0
        %3711 = vmatmul.mubr.f32.gmra.mrb[0].mxu0 %v3621
        %v3712 = vpop.f32.mrb[0].mxu0
        %v3713 = vadd.f32 0.0, %v3712
        %v3714 = vpop.f32.mrb[0].mxu0
        %3715 = vmatprep.mubr.f32.mxu0 0.0
        %3716 = vmatmul.mubr.f32.gmra.mrb[0].mxu0 %v3624
        %v3717 = vpop.f32.mrb[0].mxu0
        %v3718 = vadd.f32 0.0, %v3717
        %v3719 = vpop.f32.mrb[0].mxu0
        %3720 = vmatprep.mubr.f32.mxu0 0.0
        %3721 = vmatmul.mubr.f32.gmra.mrb[0].mxu0 %v3627
        %v3722 = vpop.f32.mrb[0].mxu0
        %v3723 = vadd.f32 0.0, %v3722
        %v3724 = vpop.f32.mrb[0].mxu0
        %3725 = vmatprep.mubr.f32.mxu0 0.0
        %3726 = vmatmul.mubr.f32.gmra.mrb[0].mxu0 %v3630
        %v3727 = vpop.f32.mrb[0].mxu0
        %v3728 = vadd.f32 0.0, %v3727
        %v3729 = vpop.f32.mrb[0].mxu0
        %3730 = vmatprep.mubr.f32.mxu0 0.0
        %3731 = vmatmul.mubr.f32.gmra.mrb[0].mxu0 %v3633
        %v3732 = vpop.f32.mrb[0].mxu0
        %v3733 = vadd.f32 0.0, %v3732
        %v3734 = vpop.f32.mrb[0].mxu0
        %3735 = vmatprep.mubr.f32.mxu0 0.0
        %3736 = vmatmul.mubr.f32.gmra.mrb[0].mxu0 %v3636
        %v3737 = vpop.f32.mrb[0].mxu0
        %v3738 = vadd.f32 0.0, %v3737
        %v3739 = vpop.f32.mrb[0].mxu0
        %3740 = vmatprep.mubr.f32.mxu0 0.0
        %3741 = vmatmul.mubr.f32.gmra.mrb[0].mxu0 %v3639
        %v3742 = vpop.f32.mrb[0].mxu0
        %v3743 = vadd.f32 0.0, %v3742
        %v3744 = vpop.f32.mrb[0].mxu0
        %3745 = vdwg.mxu0
        %v3746 = vrcp.pop %v3394
        %v3747 = vrcp.pop %v3397
        %v3748 = vrcp.pop %v3400
        %v3749 = vrcp.pop %v3403
        %v3750 = vrcp.pop %v3406
        %v3751 = vrcp.pop %v3409
        %v3752 = vrcp.pop %v3412
        %v3753 = vrcp.pop %v3415
        %v3754 = vrcp.pop %v3418
        %v3755 = vrcp.pop %v3421
        %v3756 = vrcp.pop %v3424
        %v3757 = vrcp.pop %v3427
        %v3758 = vrcp.pop %v3430
        %v3759 = vrcp.pop %v3433
        %v3760 = vrcp.pop %v3436
        %v3761 = vrcp.pop %v3439
        %v3762 = vmul.f32 %v3555, %v3746
        %v3763 = vmul.f32 %v3560, %v3747
        %v3764 = vmul.f32 %v3565, %v3748
        %v3765 = vmul.f32 %v3570, %v3749
        %v3766 = vmul.f32 %v3575, %v3750
        %v3767 = vmul.f32 %v3580, %v3751
        %v3768 = vmul.f32 %v3585, %v3752
        %v3769 = vmul.f32 %v3590, %v3753
        %v3770 = vmul.f32 %v3708, %v3754
        %v3771 = vmul.f32 %v3713, %v3755
        %v3772 = vmul.f32 %v3718, %v3756
        %v3773 = vmul.f32 %v3723, %v3757
        %v3774 = vmul.f32 %v3728, %v3758
        %v3775 = vmul.f32 %v3733, %v3759
        %v3776 = vmul.f32 %v3738, %v3760
        %v3777 = vmul.f32 %v3743, %v3761
        %3794 = vrot.lane.b32.xlu0 %v2104, 8
        %v3795 = vpop.permute.xlu0 %3794
        %3796 = vrot.lane.b32.xlu0 %v2105, 8
        %v3797 = vpop.permute.xlu0 %3796
        %3798 = vrot.lane.b32.xlu0 %v2106, 8
        %v3799 = vpop.permute.xlu0 %3798
        %3800 = vrot.lane.b32.xlu0 %v2107, 8
        %v3801 = vpop.permute.xlu0 %3800
        %3802 = vrot.lane.b32.xlu0 %v2108, 8
        %v3803 = vpop.permute.xlu0 %3802
        %3804 = vrot.lane.b32.xlu0 %v2109, 8
        %v3805 = vpop.permute.xlu0 %3804
        %3806 = vrot.lane.b32.xlu0 %v2110, 8
        %v3807 = vpop.permute.xlu0 %3806
        %3808 = vrot.lane.b32.xlu0 %v2111, 8
        %v3809 = vpop.permute.xlu0 %3808
        %3810 = vrot.lane.b32.xlu0 %v2112, 8
        %v3811 = vpop.permute.xlu0 %3810
        %3812 = vrot.lane.b32.xlu0 %v2113, 8
        %v3813 = vpop.permute.xlu0 %3812
        %3814 = vrot.lane.b32.xlu0 %v2114, 8
        %v3815 = vpop.permute.xlu0 %3814
        %3816 = vrot.lane.b32.xlu0 %v2115, 8
        %v3817 = vpop.permute.xlu0 %3816
        %3818 = vrot.lane.b32.xlu0 %v2116, 8
        %v3819 = vpop.permute.xlu0 %3818
        %3820 = vrot.lane.b32.xlu0 %v2117, 8
        %v3821 = vpop.permute.xlu0 %3820
        %3822 = vrot.lane.b32.xlu0 %v2118, 8
        %v3823 = vpop.permute.xlu0 %3822
        %3824 = vrot.lane.b32.xlu0 %v2119, 8
        %v3825 = vpop.permute.xlu0 %3824
        %3858 = vrot.lane.b32.xlu0 %v2933, 16
        %v3859 = vpop.permute.xlu0 %3858
        %3860 = vrot.lane.b32.xlu0 %v2934, 16
        %v3861 = vpop.permute.xlu0 %3860
        %3862 = vrot.lane.b32.xlu0 %v2935, 16
        %v3863 = vpop.permute.xlu0 %3862
        %3864 = vrot.lane.b32.xlu0 %v2936, 16
        %v3865 = vpop.permute.xlu0 %3864
        %3866 = vrot.lane.b32.xlu0 %v2937, 16
        %v3867 = vpop.permute.xlu0 %3866
        %3868 = vrot.lane.b32.xlu0 %v2938, 16
        %v3869 = vpop.permute.xlu0 %3868
        %3870 = vrot.lane.b32.xlu0 %v2939, 16
        %v3871 = vpop.permute.xlu0 %3870
        %3872 = vrot.lane.b32.xlu0 %v2940, 16
        %v3873 = vpop.permute.xlu0 %3872
        %3874 = vrot.lane.b32.xlu0 %v2941, 16
        %v3875 = vpop.permute.xlu0 %3874
        %3876 = vrot.lane.b32.xlu0 %v2942, 16
        %v3877 = vpop.permute.xlu0 %3876
        %3878 = vrot.lane.b32.xlu0 %v2943, 16
        %v3879 = vpop.permute.xlu0 %3878
        %3880 = vrot.lane.b32.xlu0 %v2944, 16
        %v3881 = vpop.permute.xlu0 %3880
        %3882 = vrot.lane.b32.xlu0 %v2945, 16
        %v3883 = vpop.permute.xlu0 %3882
        %3884 = vrot.lane.b32.xlu0 %v2946, 16
        %v3885 = vpop.permute.xlu0 %3884
        %3886 = vrot.lane.b32.xlu0 %v2947, 16
        %v3887 = vpop.permute.xlu0 %3886
        %3888 = vrot.lane.b32.xlu0 %v2948, 16
        %v3889 = vpop.permute.xlu0 %3888
        %3922 = vrot.lane.b32.xlu0 %v3762, 24
        %v3923 = vpop.permute.xlu0 %3922
        %3924 = vrot.lane.b32.xlu0 %v3763, 24
        %v3925 = vpop.permute.xlu0 %3924
        %3926 = vrot.lane.b32.xlu0 %v3764, 24
        %v3927 = vpop.permute.xlu0 %3926
        %3928 = vrot.lane.b32.xlu0 %v3765, 24
        %v3929 = vpop.permute.xlu0 %3928
        %3930 = vrot.lane.b32.xlu0 %v3766, 24
        %v3931 = vpop.permute.xlu0 %3930
        %3932 = vrot.lane.b32.xlu0 %v3767, 24
        %v3933 = vpop.permute.xlu0 %3932
        %3934 = vrot.lane.b32.xlu0 %v3768, 24
        %v3935 = vpop.permute.xlu0 %3934
        %3936 = vrot.lane.b32.xlu0 %v3769, 24
        %v3937 = vpop.permute.xlu0 %3936
        %3938 = vrot.lane.b32.xlu0 %v3770, 24
        %v3939 = vpop.permute.xlu0 %3938
        %3940 = vrot.lane.b32.xlu0 %v3771, 24
        %v3941 = vpop.permute.xlu0 %3940
        %3942 = vrot.lane.b32.xlu0 %v3772, 24
        %v3943 = vpop.permute.xlu0 %3942
        %3944 = vrot.lane.b32.xlu0 %v3773, 24
        %v3945 = vpop.permute.xlu0 %3944
        %3946 = vrot.lane.b32.xlu0 %v3774, 24
        %v3947 = vpop.permute.xlu0 %3946
        %3948 = vrot.lane.b32.xlu0 %v3775, 24
        %v3949 = vpop.permute.xlu0 %3948
        %3950 = vrot.lane.b32.xlu0 %v3776, 24
        %v3951 = vpop.permute.xlu0 %3950
        %3952 = vrot.lane.b32.xlu0 %v3777, 24
        %v3953 = vpop.permute.xlu0 %3952
        %v3970 = vsel %vm509, %v1275, %v3795
        %v3971 = vsel %vm509, %v1276, %v3797
        %v3972 = vsel %vm509, %v1277, %v3799
        %v3973 = vsel %vm509, %v1278, %v3801
        %v3974 = vsel %vm509, %v1279, %v3803
        %v3975 = vsel %vm509, %v1280, %v3805
        %v3976 = vsel %vm509, %v1281, %v3807
        %v3977 = vsel %vm509, %v1282, %v3809
        %v3978 = vsel %vm509, %v1283, %v3811
        %v3979 = vsel %vm509, %v1284, %v3813
        %v3980 = vsel %vm509, %v1285, %v3815
        %v3981 = vsel %vm509, %v1286, %v3817
        %v3982 = vsel %vm509, %v1287, %v3819
        %v3983 = vsel %vm509, %v1288, %v3821
        %v3984 = vsel %vm509, %v1289, %v3823
        %v3985 = vsel %vm509, %v1290, %v3825
        %vm3986 = vcmask 130048
        %v3987 = vsel %vm3986, %v3970, %v3859
        %v3988 = vsel %vm3986, %v3971, %v3861
        %v3989 = vsel %vm3986, %v3972, %v3863
        %v3990 = vsel %vm3986, %v3973, %v3865
        %v3991 = vsel %vm3986, %v3974, %v3867
        %v3992 = vsel %vm3986, %v3975, %v3869
        %v3993 = vsel %vm3986, %v3976, %v3871
        %v3994 = vsel %vm3986, %v3977, %v3873
        %v3995 = vsel %vm3986, %v3978, %v3875
        %v3996 = vsel %vm3986, %v3979, %v3877
        %v3997 = vsel %vm3986, %v3980, %v3879
        %v3998 = vsel %vm3986, %v3981, %v3881
        %v3999 = vsel %vm3986, %v3982, %v3883
        %v4000 = vsel %vm3986, %v3983, %v3885
        %v4001 = vsel %vm3986, %v3984, %v3887
        %v4002 = vsel %vm3986, %v3985, %v3889
        %vm4003 = vcmask 195584
        %v4004 = vsel %vm4003, %v3987, %v3923
        %v4005 = vsel %vm4003, %v3988, %v3925
        %v4006 = vsel %vm4003, %v3989, %v3927
        %v4007 = vsel %vm4003, %v3990, %v3929
        %v4008 = vsel %vm4003, %v3991, %v3931
        %v4009 = vsel %vm4003, %v3992, %v3933
        %v4010 = vsel %vm4003, %v3993, %v3935
        %v4011 = vsel %vm4003, %v3994, %v3937
        %v4012 = vsel %vm4003, %v3995, %v3939
        %v4013 = vsel %vm4003, %v3996, %v3941
        %v4014 = vsel %vm4003, %v3997, %v3943
        %v4015 = vsel %vm4003, %v3998, %v3945
        %v4016 = vsel %vm4003, %v3999, %v3947
        %v4017 = vsel %vm4003, %v4000, %v3949
        %v4018 = vsel %vm4003, %v4001, %v3951
        %v4019 = vsel %vm4003, %v4002, %v3953
        %v4020 = vld [vmem:[%s4] sm:$0xff]
        %v4021 = vld [vmem:[%s4 + $0x8] sm:$0xff]
        %v4022 = vld [vmem:[%s4 + $0x10] sm:$0xff]
        %v4023 = vld [vmem:[%s4 + $0x18] sm:$0xff]
        %v4024 = vld [vmem:[%s5] sm:$0x1]
        %v4026 = vlaneseq
        %v4027 = vshrl.u32 %v4026, 7
        %v4028 = vsub.s32 0, %v4027
        %v4029 = vrot.slane %v4024, %v4028
        %v4032 = vsel %vm283, %v4004, 0
        %v4035 = vsel %vm283, %v4005, 0
        %v4038 = vsel %vm283, %v4006, 0
        %v4041 = vsel %vm283, %v4007, 0
        %v4044 = vsel %vm283, %v4008, 0
        %v4047 = vsel %vm283, %v4009, 0
        %v4050 = vsel %vm283, %v4010, 0
        %v4053 = vsel %vm283, %v4011, 0
        %v4056 = vsel %vm283, %v4012, 0
        %v4059 = vsel %vm283, %v4013, 0
        %v4062 = vsel %vm283, %v4014, 0
        %v4065 = vsel %vm283, %v4015, 0
        %v4068 = vsel %vm283, %v4016, 0
        %v4071 = vsel %vm283, %v4017, 0
        %v4074 = vsel %vm283, %v4018, 0
        %v4077 = vsel %vm283, %v4019, 0
        %4079 = vmatprep.subr.mxu0 0.0
        %4080 = vmatpush1.msra.mxu0 %v4020
        %4081 = vmatprep.subr.mxu0 0.0
        %4082 = vmatpush1.msra.mxu0 %v4021
        %4083 = vmatprep.subr.mxu0 0.0
        %4084 = vmatpush1.msra.mxu0 %v4022
        %4085 = vmatprep.subr.mxu0 0.0
        %4086 = vmatpush1.msra.mxu0 %v4023
        %4087 = vmatprep.subr.mxu0 0.0
        %4088 = vmatpush1.msra.mxu0 0.0
        %4089 = vmatprep.subr.mxu0 0.0
        %4090 = vmatpush1.msra.mxu0 0.0
        %4091 = vmatprep.subr.mxu0 0.0
        %4092 = vmatpush1.msra.mxu0 0.0
        %4093 = vmatprep.subr.mxu0 0.0
        %4094 = vmatpush1.msra.mxu0 0.0
        %4095 = vmatprep.subr.mxu0 0.0
        %4096 = vmatpush1.msra.mxu0 0.0
        %4097 = vmatprep.subr.mxu0 0.0
        %4098 = vmatpush1.msra.mxu0 0.0
        %4099 = vmatprep.subr.mxu0 0.0
        %4100 = vmatpush1.msra.mxu0 0.0
        %4101 = vmatprep.subr.mxu0 0.0
        %4102 = vmatpush1.msra.mxu0 0.0
        %4103 = vmatprep.subr.mxu0 0.0
        %4104 = vmatpush1.msra.mxu0 0.0
        %4105 = vmatprep.subr.mxu0 0.0
        %4106 = vmatpush1.msra.mxu0 0.0
        %4107 = vmatprep.subr.mxu0 0.0
        %4108 = vmatpush1.msra.mxu0 0.0
        %4109 = vmatprep.subr.mxu0 0.0
        %4110 = vmatpush1.msra.mxu0 0.0
        %4111 = vmatprep.subr.mxu0 0.0
        %4112 = vmatpush1.msra.mxu0 0.0
        %4113 = vmatprep.subr.mxu0 0.0
        %4114 = vmatpush1.msra.mxu0 0.0
        %4115 = vmatprep.subr.mxu0 0.0
        %4116 = vmatpush1.msra.mxu0 0.0
        %4117 = vmatprep.subr.mxu0 0.0
        %4118 = vmatpush1.msra.mxu0 0.0
        %4119 = vmatprep.subr.mxu0 0.0
        %4120 = vmatpush1.msra.mxu0 0.0
        %4121 = vmatprep.subr.mxu0 0.0
        %4122 = vmatpush1.msra.mxu0 0.0
        %4123 = vmatprep.subr.mxu0 0.0
        %4124 = vmatpush1.msra.mxu0 0.0
        %4125 = vmatprep.subr.mxu0 0.0
        %4126 = vmatpush1.msra.mxu0 0.0
        %4127 = vmatprep.subr.mxu0 0.0
        %4128 = vmatpush1.msra.mxu0 0.0
        %4129 = vmatprep.subr.mxu0 0.0
        %4130 = vmatpush1.msra.mxu0 0.0
        %4131 = vmatprep.subr.mxu0 0.0
        %4132 = vmatpush1.msra.mxu0 0.0
        %4133 = vmatprep.subr.mxu0 0.0
        %4134 = vmatpush1.msra.mxu0 0.0
        %4135 = vmatprep.subr.mxu0 0.0
        %4136 = vmatpush1.msra.mxu0 0.0
        %4137 = vmatprep.subr.mxu0 0.0
        %4138 = vmatpush1.msra.mxu0 0.0
        %4139 = vmatprep.subr.mxu0 0.0
        %4140 = vmatpush1.msra.mxu0 0.0
        %4141 = vmatprep.subr.mxu0 0.0
        %4142 = vmatpush1.msra.mxu0 0.0
        %4143 = vmatprep.mubr.f32.mxu0 0.0
        %4144 = vmatmul.mubr.f32.gmra.mrb[0].mxu0 %v4032
        %v4145 = vpop.f32.mrb[0].mxu0
        %v4146 = vadd.f32 %v4029, %v4145
        %v4147 = vpop.f32.mrb[0].mxu0
        %4148 = vmatprep.mubr.f32.mxu0 0.0
        %4149 = vmatmul.mubr.f32.gmra.mrb[0].mxu0 %v4035
        %v4150 = vpop.f32.mrb[0].mxu0
        %v4151 = vadd.f32 %v4029, %v4150
        %v4152 = vpop.f32.mrb[0].mxu0
        %4153 = vmatprep.mubr.f32.mxu0 0.0
        %4154 = vmatmul.mubr.f32.gmra.mrb[0].mxu0 %v4038
        %v4155 = vpop.f32.mrb[0].mxu0
        %v4156 = vadd.f32 %v4029, %v4155
        %v4157 = vpop.f32.mrb[0].mxu0
        %4158 = vmatprep.mubr.f32.mxu0 0.0
        %4159 = vmatmul.mubr.f32.gmra.mrb[0].mxu0 %v4041
        %v4160 = vpop.f32.mrb[0].mxu0
        %v4161 = vadd.f32 %v4029, %v4160
        %v4162 = vpop.f32.mrb[0].mxu0
        %4163 = vmatprep.mubr.f32.mxu0 0.0
        %4164 = vmatmul.mubr.f32.gmra.mrb[0].mxu0 %v4044
        %v4165 = vpop.f32.mrb[0].mxu0
        %v4166 = vadd.f32 %v4029, %v4165
        %v4167 = vpop.f32.mrb[0].mxu0
        %4168 = vmatprep.mubr.f32.mxu0 0.0
        %4169 = vmatmul.mubr.f32.gmra.mrb[0].mxu0 %v4047
        %v4170 = vpop.f32.mrb[0].mxu0
        %v4171 = vadd.f32 %v4029, %v4170
        %v4172 = vpop.f32.mrb[0].mxu0
        %4173 = vmatprep.mubr.f32.mxu0 0.0
        %4174 = vmatmul.mubr.f32.gmra.mrb[0].mxu0 %v4050
        %v4175 = vpop.f32.mrb[0].mxu0
        %v4176 = vadd.f32 %v4029, %v4175
        %v4177 = vpop.f32.mrb[0].mxu0
        %4178 = vmatprep.mubr.f32.mxu0 0.0
        %4179 = vmatmul.mubr.f32.gmra.mrb[0].mxu0 %v4053
        %v4180 = vpop.f32.mrb[0].mxu0
        %v4181 = vadd.f32 %v4029, %v4180
        %v4182 = vpop.f32.mrb[0].mxu0
        %4183 = vmatprep.mubr.f32.mxu0 0.0
        %4184 = vmatmul.mubr.f32.gmra.mrb[0].mxu0 %v4056
        %v4185 = vpop.f32.mrb[0].mxu0
        %v4186 = vadd.f32 %v4029, %v4185
        %v4187 = vpop.f32.mrb[0].mxu0
        %4188 = vmatprep.mubr.f32.mxu0 0.0
        %4189 = vmatmul.mubr.f32.gmra.mrb[0].mxu0 %v4059
        %v4190 = vpop.f32.mrb[0].mxu0
        %v4191 = vadd.f32 %v4029, %v4190
        %v4192 = vpop.f32.mrb[0].mxu0
        %4193 = vmatprep.mubr.f32.mxu0 0.0
        %4194 = vmatmul.mubr.f32.gmra.mrb[0].mxu0 %v4062
        %v4195 = vpop.f32.mrb[0].mxu0
        %v4196 = vadd.f32 %v4029, %v4195
        %v4197 = vpop.f32.mrb[0].mxu0
        %4198 = vmatprep.mubr.f32.mxu0 0.0
        %4199 = vmatmul.mubr.f32.gmra.mrb[0].mxu0 %v4065
        %v4200 = vpop.f32.mrb[0].mxu0
        %v4201 = vadd.f32 %v4029, %v4200
        %v4202 = vpop.f32.mrb[0].mxu0
        %4203 = vmatprep.mubr.f32.mxu0 0.0
        %4204 = vmatmul.mubr.f32.gmra.mrb[0].mxu0 %v4068
        %v4205 = vpop.f32.mrb[0].mxu0
        %v4206 = vadd.f32 %v4029, %v4205
        %v4207 = vpop.f32.mrb[0].mxu0
        %4208 = vmatprep.mubr.f32.mxu0 0.0
        %4209 = vmatmul.mubr.f32.gmra.mrb[0].mxu0 %v4071
        %v4210 = vpop.f32.mrb[0].mxu0
        %v4211 = vadd.f32 %v4029, %v4210
        %v4212 = vpop.f32.mrb[0].mxu0
        %4213 = vmatprep.mubr.f32.mxu0 0.0
        %4214 = vmatmul.mubr.f32.gmra.mrb[0].mxu0 %v4074
        %v4215 = vpop.f32.mrb[0].mxu0
        %v4216 = vadd.f32 %v4029, %v4215
        %v4217 = vpop.f32.mrb[0].mxu0
        %4218 = vmatprep.mubr.f32.mxu0 0.0
        %4219 = vmatmul.mubr.f32.gmra.mrb[0].mxu0 %v4077
        %v4220 = vpop.f32.mrb[0].mxu0
        %v4221 = vadd.f32 %v4029, %v4220
        %v4222 = vpop.f32.mrb[0].mxu0
        %4223 = vdwg.mxu0
        %4224 = vst [vmem:[%s247] sm:$0xff] %v4146
        %4225 = vst [vmem:[%s247 + $0x8] sm:$0xff] %v4151
        %4226 = vst [vmem:[%s247 + $0x10] sm:$0xff] %v4156
        %4227 = vst [vmem:[%s247 + $0x18] sm:$0xff] %v4161
        %4228 = vst [vmem:[%s247 + $0x20] sm:$0xff] %v4166
        %4229 = vst [vmem:[%s247 + $0x28] sm:$0xff] %v4171
        %4230 = vst [vmem:[%s247 + $0x30] sm:$0xff] %v4176
        %4231 = vst [vmem:[%s247 + $0x38] sm:$0xff] %v4181
        %4232 = vst [vmem:[%s247 + $0x40] sm:$0xff] %v4186
        %4233 = vst [vmem:[%s247 + $0x48] sm:$0xff] %v4191
        %4234 = vst [vmem:[%s247 + $0x50] sm:$0xff] %v4196
        %4235 = vst [vmem:[%s247 + $0x58] sm:$0xff] %v4201
        %4236 = vst [vmem:[%s247 + $0x60] sm:$0xff] %v4206
        %4237 = vst [vmem:[%s247 + $0x68] sm:$0xff] %v4211
        %4238 = vst [vmem:[%s247 + $0x70] sm:$0xff] %v4216
        %4239 = vst [vmem:[%s247 + $0x78] sm:$0xff] %v4221
        %s4240 = sand.u32 %s159, 1
        %s4241 = scalar_lea.sflag [#allocation3], %s4240
        %s4242 = sand.u32 %s159, 1
        %s4243 = smul.addr %s4242, 128
        %s4244 = scalar_lea.vmem [#allocation2], %s4243
        // Predicated region
        $region45: #{tpu_custom_call.1} parent=43 // pred_check
          %p4245 = pneg %p169
        $region46: #{tpu_custom_call.1} parent=43 // pred_check_branch
          %4247 = sbr.rel (%p4245) target = $region48
        $region47: #{tpu_custom_call.1} parent=43 // pred_region
          %s4248 = smul.u32 2, %s20
          %s4250 = ssub.s32 2048, 2048
          %4251 = vsyncadd %s4241, %s4250
          %s4252 = smul.addr %s4248, 8
          %s4253 = smul.addr %s4252, 128
          %s4254 = scalar_lea.hbm %s6, %s4253
          %s4255 = sshll.u32 %s4244, 4
          %s4256 = int_to_ptr.vmem [resolvable:$true] %s4255
          %4261 = dma.vmem_to_hbm [thread:$0]  %s4256, 2048, %s4254, %s4241, 128, 128, 8
        $region48: #{tpu_custom_call.1} parent=43 // pred_fallthru
          _
      $region44: #{tpu_custom_call.1} parent=5 // pred_fallthru
        _
      %p4262 = scmp.le.s32.totalorder 2, %s15
      // Predicated region
      $region49: #{tpu_custom_call.1} parent=5 // pred_check
        %p4263 = pneg %p4262
      $region50: #{tpu_custom_call.1} parent=5 // pred_check_branch
        %4265 = sbr.rel (%p4263) target = $region52
      $region51: #{tpu_custom_call.1} parent=5 // pred_region
        %s4266 = ssub.s32 %s15, 2
        // Predicated region
        $region53: #{tpu_custom_call.1} parent=51 // pred_check
          %p4267 = pneg %p175
        $region54: #{tpu_custom_call.1} parent=51 // pred_check_branch
          %4269 = sbr.rel (%p4267) target = $region56
        $region55: #{tpu_custom_call.1} parent=51 // pred_region
          %s4270 = sand.u32 %s160, 1
          %s4271 = scalar_lea.sflag [#allocation3], %s4270
          %s4272 = sand.u32 %s160, 1
          %s4273 = smul.addr %s4272, 128
          %s4274 = scalar_lea.vmem [#allocation2], %s4273
          %4275 = dma.done %s4271, 2048
        $region56: #{tpu_custom_call.1} parent=51 // pred_fallthru
          _
      $region52: #{tpu_custom_call.1} parent=5 // pred_fallthru
        _
    $region6: #{tpu_custom_call.1} parent=1 // loop_footer
      %s19 = sadd.s32 1, %s15
    $region7: #{tpu_custom_call.1} parent=1 // loop_footer_branch
      %14 = sbr.rel target = $region3
    $region8: #{tpu_custom_call.1} parent=1 // loop_exit
      _
    %4276 = vsyncpa [#allocation3], 1
    %s4277 = scalar_lea.sflag [#allocation3], 1
    %4278 = vsyncpa %s4277, 1

</llo_original>
